<compile_context>
chip_gen: v7x
topology: tpu7x:2x2x1
jax: 0.10.0
libtpu: 0.0.40
codegen_flags: <defaults>
</compile_context>

<pallas_src>
import functools
import math

import jax
import jax.numpy as jnp
from jax.experimental import pallas as pl
from jax.experimental.pallas import tpu as pltpu

GELU_APPROXIMATE = True      # tanh GELU (EUP-friendly). False -> torch-exact erf GELU.

_SQRT2_INV = 1.0 / math.sqrt(2.0)
_SQRT_2_OVER_PI = math.sqrt(2.0 / math.pi)

# Grid-step roles (one streamed [dim, dim] weight block per step).
_STEP_Q, _STEP_K, _STEP_ATTN, _STEP_PROJ, _STEP_POS1, _STEP_POS2 = range(6)
_NUM_STEPS = 6


def _gelu(x, approximate):
    if approximate:
        # tanh approximation (small numeric delta vs torch's default erf GELU)
        return 0.5 * x * (1.0 + jnp.tanh(_SQRT_2_OVER_PI * (x + 0.044715 * x * x * x)))
    return 0.5 * x * (1.0 + jax.lax.erf(x * _SQRT2_INV))


def _l2_normalize(x, axis):
    # matches F.normalize(p=2, eps=1e-12): x / max(||x||, 1e-12); rsqrt goes to the EUP.
    sumsq = jnp.sum(x * x, axis=axis, keepdims=True)
    return x * jax.lax.rsqrt(jnp.maximum(sumsq, 1e-24))


# --------------------------------------------------------------------------------------
# Fused kernel (staged over a 6-step grid that streams the weight column blocks)
# --------------------------------------------------------------------------------------

def _custom_attn_kernel(x_ref, w_ref, wpv_ref, rescale_ref, bproj_ref, o_ref,
                        q_ref, k_ref, vn_ref, xo_ref, outc_ref, h_ref,
                        *, gelu_approximate):
    f32 = jnp.float32
    bf16 = w_ref.dtype
    g = pl.program_id(0)

    # ---- steps 0 / 1: project x against the streamed Wq / Wk column blocks, stash in VMEM.
    @pl.when(g == _STEP_Q)
    def _q_proj():
        q_ref[...] = jnp.dot(x_ref[...], w_ref[...], preferred_element_type=f32)

    @pl.when(g == _STEP_K)
    def _k_proj():
        k_ref[...] = jnp.dot(x_ref[...], w_ref[...], preferred_element_type=f32)

    # ---- step 2 (Wv block resident): everything softmax-coupled.  This is the heaviest
    #      stage; the DMA of the Wproj block (step 3) overlaps with it.
    @pl.when(g == _STEP_ATTN)
    def _attention():
        v = jnp.dot(x_ref[...], w_ref[...], preferred_element_type=f32)       # [n, dim]
        # v = proj_v(v^T)^T == W_pv @ v : [num_class, dim]  (no transpose materialized)
        vp = jnp.dot(wpv_ref[...], v.astype(bf16), preferred_element_type=f32)

        q = q_ref[...]
        k = k_ref[...]

        # F.normalize(p=2, eps=1e-12); rsqrt goes to the EUP slot.  rescale is folded into
        # kn's per-channel [1, dim] scale (cheaper than scaling the [dim, dim] attn).
        qn = _l2_normalize(q, axis=0)
        k_scale = jax.lax.rsqrt(jnp.maximum(jnp.sum(k * k, axis=0, keepdims=True), 1e-24))
        kn = k * (k_scale * rescale_ref[...])
        vn = _l2_normalize(vp, axis=-1)
        vn_ref[...] = vn

        # Channel-attention logits: contract the token axis (axis 0) of both operands ->
        # the MXU's native transposed-LHS path (== pl.dot(trans_a=True)).
        s = jax.lax.dot_general(kn.astype(bf16), qn.astype(bf16),
                                (((0,), (0,)), ((), ())),
                                preferred_element_type=f32)                    # [dim, dim]
        s = s - jnp.max(s, axis=-1, keepdims=True)
        p = jnp.exp(s)
        attn = p / jnp.sum(p, axis=-1, keepdims=True)                          # exact f32

        # Value mix kept in f32 for parity with the PyTorch module (cost hidden under the
        # streamed-weight DMA).
        xo_ref[...] = jnp.dot(vn, attn, preferred_element_type=f32)            # [nc, dim]

    # ---- step 3: output projection with the freshly arrived Wproj block.
    @pl.when(g == _STEP_PROJ)
    def _out_proj():
        outc_ref[...] = jnp.dot(xo_ref[...].astype(bf16), w_ref[...],
                                preferred_element_type=f32) + bproj_ref[...]

    # ---- step 4: positional MLP, first matmul + GELU (Wpos1 block).
    @pl.when(g == _STEP_POS1)
    def _pos_mlp_1():
        h_ref[...] = _gelu(jnp.dot(vn_ref[...].astype(bf16), w_ref[...],
                                   preferred_element_type=f32), gelu_approximate)

    # ---- step 5: positional MLP, second matmul + final add; single lane-dense f32 store.
    @pl.when(g == _STEP_POS2)
    def _pos_mlp_2():
        out_p = jnp.dot(h_ref[...].astype(bf16), w_ref[...], preferred_element_type=f32)
        o_ref[...] = (outc_ref[...] + out_p).astype(o_ref.dtype)


def _vmem_limit_bytes(n, dim, num_class):
    """Scoped-VMEM budget: double-buffered operands + resident scratch + f32 softmax
    temporaries, with headroom."""
    bf16_b, f32_b = 2, 4
    operands = 2 * (dim * dim * bf16_b            # streamed weight block (double-buffered)
                    + n * dim * bf16_b            # x
                    + num_class * n * bf16_b      # w_pv
                    + 2 * dim * f32_b             # rescale row + proj bias
                    + num_class * dim * f32_b)    # output buffer
    scratch = (2 * n * dim + 4 * num_class * dim) * f32_b
    temporaries = 4 * dim * dim * f32_b           # attn logits/probs + softmax reductions
    return min(int(1.5 * (operands + scratch + temporaries)) + (2 << 20), 100 << 20)


def custom_attn(x, params, *, gelu_approximate=GELU_APPROXIMATE):
    """x: [n, dim] float32.  Returns [num_class, dim] float32."""
    n, dim = x.shape
    num_class = params["w_pv"].shape[0]
    bf16 = jnp.bfloat16
    f32 = jnp.float32

    # One-time weight prep (in a real deployment the parameters would be stored this way):
    # bf16 storage halves the dominant weight DMA; concatenating every [dim, dim] weight
    # lets a single streamed operand drive the whole per-step pipeline.
    w_all = jnp.concatenate(
        [params["w_qkv"], params["w_proj"], params["w_pos1"], params["w_pos2"]],
        axis=1).astype(bf16)                                     # [dim, 6*dim]
    w_pv = params["w_pv"].astype(bf16)                           # [num_class, n]
    x_bf = x.astype(bf16)                                        # x only feeds the MXU
    rescale_row = jnp.broadcast_to(params["rescale"].astype(f32).reshape(1, 1), (1, dim))
    b_proj = params["b_proj"].astype(f32)                        # added post-accumulation

    kernel = functools.partial(_custom_attn_kernel, gelu_approximate=gelu_approximate)

    return pl.pallas_call(
        kernel,
        out_shape=jax.ShapeDtypeStruct((num_class, dim), f32),
        grid=(_NUM_STEPS,),
        in_specs=[
            pl.BlockSpec((n, dim), lambda g: (0, 0)),            # x        (bf16, resident)
            pl.BlockSpec((dim, dim), lambda g: (0, g)),          # streamed weight block
            pl.BlockSpec((num_class, n), lambda g: (0, 0)),      # w_pv     (bf16, resident)
            pl.BlockSpec((1, dim), lambda g: (0, 0)),            # rescale  (f32 row)
            pl.BlockSpec((1, dim), lambda g: (0, 0)),            # b_proj   (f32 row)
        ],
        out_specs=pl.BlockSpec((num_class, dim), lambda g: (0, 0)),
        scratch_shapes=[
            pltpu.VMEM((n, dim), f32),                           # q
            pltpu.VMEM((n, dim), f32),                           # k
            pltpu.VMEM((num_class, dim), f32),                   # vn (normalized v)
            pltpu.VMEM((num_class, dim), f32),                   # xo = vn @ attn
            pltpu.VMEM((num_class, dim), f32),                   # out_c
            pltpu.VMEM((num_class, dim), f32),                   # gelu(vn @ Wpos1)
        ],
        compiler_params=pltpu.CompilerParams(
            dimension_semantics=("arbitrary",),
            vmem_limit_bytes=_vmem_limit_bytes(n, dim, num_class),
        ),
    )(x_bf, w_all, w_pv, rescale_row, b_proj)


# --------------------------------------------------------------------------------------
# Pure-jnp reference (f32 everywhere) for correctness checking
# --------------------------------------------------------------------------------------

def custom_attn_reference(x, params, *, gelu_approximate=GELU_APPROXIMATE):
    dim = x.shape[1]
    qkv = x @ params["w_qkv"]
    q, k, v = qkv[:, :dim], qkv[:, dim:2 * dim], qkv[:, 2 * dim:]
    vp = params["w_pv"] @ v
    qn = q / jnp.maximum(jnp.sqrt(jnp.sum(q * q, axis=0, keepdims=True)), 1e-12)
    kn = k / jnp.maximum(jnp.sqrt(jnp.sum(k * k, axis=0, keepdims=True)), 1e-12)
    vn = vp / jnp.maximum(jnp.sqrt(jnp.sum(vp * vp, axis=-1, keepdims=True)), 1e-12)
    attn = (kn.T @ qn) * params["rescale"].reshape(1, 1)
    attn = jax.nn.softmax(attn, axis=-1)
    xo = vn @ attn
    out_c = xo @ params["w_proj"] + params["b_proj"]
    out_p = _gelu(vn @ params["w_pos1"], gelu_approximate) @ params["w_pos2"]
    return out_c + out_p


# --------------------------------------------------------------------------------------
# Deterministic parameter construction (shapes follow the module's __init__)
# --------------------------------------------------------------------------------------

def init_params(key, n, dim, num_class):
    ks = jax.random.split(key, 6)
    s_d = 1.0 / math.sqrt(dim)
    s_n = 1.0 / math.sqrt(n)
    return {
        # to_q | to_k | to_v concatenated, stored [in, out] so the kernel does x @ W
        "w_qkv": jax.random.normal(ks[0], (dim, 3 * dim), jnp.float32) * s_d,
        # proj_v.weight kept in PyTorch [out=num_class, in=n] layout (applied along tokens)
        "w_pv": jax.random.normal(ks[1], (num_class, n), jnp.float32) * s_n,
        "rescale": jnp.ones((1, 1), jnp.float32),
        "w_proj": jax.random.normal(ks[2], (dim, dim), jnp.float32) * s_d,
        "b_proj": jax.random.normal(ks[3], (1, dim), jnp.float32) * s_d,
        "w_pos1": jax.random.normal(ks[4], (dim, dim), jnp.float32) * s_d,
        "w_pos2": jax.random.normal(ks[5], (dim, dim), jnp.float32) * s_d,
    }


if __name__ == "__main__":
    # Small shapes consistent with the module: token count n must equal proj_v's
    # in_features (hard-coded 256 in the PyTorch module); dim is scaled down from 1024 to
    # 256 (a multiple of 256 -> full MXU fill on v6e/v7x, lane-dense tiles everywhere),
    # num_class keeps the module default 256.
    n, dim, num_class = 256, 256, 256
    key = jax.random.PRNGKey(0)
    kx, kp = jax.random.split(key)
    x = jax.random.normal(kx, (n, dim), jnp.float32)
    params = init_params(kp, n, dim, num_class)

    out = jax.block_until_ready(custom_attn(x, params))
    ref = custom_attn_reference(x, params)

    assert out.shape == (num_class, dim)
    assert bool(jnp.all(jnp.isfinite(out)))
    # bf16 MXU inputs -> loose tolerance vs the all-f32 reference
    assert bool(jnp.allclose(out, ref, atol=3e-2, rtol=3e-2)), \
        float(jnp.max(jnp.abs(out - ref)))
    print("KERNEL_OK")
</pallas_src>

<mosaic_0001>
module attributes {stable_mosaic.version = 11 : i64} {
  func.func @_custom_attn_kernel(%arg0: i32, %arg1: memref<256x256xbf16, #tpu.memory_space<vmem>>, %arg2: memref<256x256xbf16, #tpu.memory_space<vmem>>, %arg3: memref<256x256xbf16, #tpu.memory_space<vmem>>, %arg4: memref<1x256xf32, #tpu.memory_space<vmem>>, %arg5: memref<1x256xf32, #tpu.memory_space<vmem>>, %arg6: memref<256x256xf32, #tpu.memory_space<vmem>>, %arg7: memref<256x256xf32, #tpu.memory_space<vmem>>, %arg8: memref<256x256xf32, #tpu.memory_space<vmem>>, %arg9: memref<256x256xf32, #tpu.memory_space<vmem>>, %arg10: memref<256x256xf32, #tpu.memory_space<vmem>>, %arg11: memref<256x256xf32, #tpu.memory_space<vmem>>, %arg12: memref<256x256xf32, #tpu.memory_space<vmem>>) attributes {dimension_semantics = [#tpu.dimension_semantics<arbitrary>], iteration_bounds = array<i64: 6>, scalar_prefetch = 0 : i64, scratch_operands = 6 : i64, tpu.core_type = #tpu.core_type<tc>, window_params = [{pipeline_mode = #tpu.pipeline_mode<synchronous>, transform_indices = @transform_0, window_bounds = array<i64: 256, 256>}, {transform_indices = @transform_1, window_bounds = array<i64: 256, 256>}, {pipeline_mode = #tpu.pipeline_mode<synchronous>, transform_indices = @transform_2, window_bounds = array<i64: 256, 256>}, {pipeline_mode = #tpu.pipeline_mode<synchronous>, transform_indices = @transform_3, window_bounds = array<i64: 1, 256>}, {pipeline_mode = #tpu.pipeline_mode<synchronous>, transform_indices = @transform_4, window_bounds = array<i64: 1, 256>}, {pipeline_mode = #tpu.pipeline_mode<synchronous>, transform_indices = @transform_5, window_bounds = array<i64: 256, 256>}]} {
    %c0_i32 = arith.constant 0 : i32
    %0 = arith.cmpi eq, %arg0, %c0_i32 : i32
    %1 = arith.extui %0 : i1 to i32
    %c0_i32_0 = arith.constant 0 : i32
    %2 = arith.cmpi ne, %1, %c0_i32_0 : i32
    scf.if %2 {
      %c0 = arith.constant 0 : index
      %c0_6 = arith.constant 0 : index
      %18 = vector.load %arg1[%c0, %c0_6] : memref<256x256xbf16, #tpu.memory_space<vmem>>, vector<256x256xbf16>
      %c0_7 = arith.constant 0 : index
      %c0_8 = arith.constant 0 : index
      %19 = vector.load %arg2[%c0_7, %c0_8] : memref<256x256xbf16, #tpu.memory_space<vmem>>, vector<256x256xbf16>
      %cst = arith.constant dense<0.000000e+00> : vector<256x256xf32>
      %20 = tpu.matmul %18, %19, %cst {dimension_numbers = #tpu.dot_dimension_numbers<[1], [0], [0], [1], [0, 0, 1, 1], [], []>} : vector<256x256xbf16>, vector<256x256xbf16>, vector<256x256xf32> -> vector<256x256xf32>
      %c0_9 = arith.constant 0 : index
      %c0_10 = arith.constant 0 : index
      %21 = vector.load %arg7[%c0_9, %c0_10] : memref<256x256xf32, #tpu.memory_space<vmem>>, vector<256x256xf32>
      tpu.vector_store %arg7[%c0_9, %c0_10], %20 {strides = array<i32>} : memref<256x256xf32, #tpu.memory_space<vmem>>, vector<256x256xf32>,
    } else {
    }
    %c1_i32 = arith.constant 1 : i32
    %3 = arith.cmpi eq, %arg0, %c1_i32 : i32
    %4 = arith.extui %3 : i1 to i32
    %c0_i32_1 = arith.constant 0 : i32
    %5 = arith.cmpi ne, %4, %c0_i32_1 : i32
    scf.if %5 {
      %c0 = arith.constant 0 : index
      %c0_6 = arith.constant 0 : index
      %18 = vector.load %arg1[%c0, %c0_6] : memref<256x256xbf16, #tpu.memory_space<vmem>>, vector<256x256xbf16>
      %c0_7 = arith.constant 0 : index
      %c0_8 = arith.constant 0 : index
      %19 = vector.load %arg2[%c0_7, %c0_8] : memref<256x256xbf16, #tpu.memory_space<vmem>>, vector<256x256xbf16>
      %cst = arith.constant dense<0.000000e+00> : vector<256x256xf32>
      %20 = tpu.matmul %18, %19, %cst {dimension_numbers = #tpu.dot_dimension_numbers<[1], [0], [0], [1], [0, 0, 1, 1], [], []>} : vector<256x256xbf16>, vector<256x256xbf16>, vector<256x256xf32> -> vector<256x256xf32>
      %c0_9 = arith.constant 0 : index
      %c0_10 = arith.constant 0 : index
      %21 = vector.load %arg8[%c0_9, %c0_10] : memref<256x256xf32, #tpu.memory_space<vmem>>, vector<256x256xf32>
      tpu.vector_store %arg8[%c0_9, %c0_10], %20 {strides = array<i32>} : memref<256x256xf32, #tpu.memory_space<vmem>>, vector<256x256xf32>,
    } else {
    }
    %c2_i32 = arith.constant 2 : i32
    %6 = arith.cmpi eq, %arg0, %c2_i32 : i32
    %7 = arith.extui %6 : i1 to i32
    %c0_i32_2 = arith.constant 0 : i32
    %8 = arith.cmpi ne, %7, %c0_i32_2 : i32
    scf.if %8 {
      %c0 = arith.constant 0 : index
      %c0_6 = arith.constant 0 : index
      %18 = vector.load %arg1[%c0, %c0_6] : memref<256x256xbf16, #tpu.memory_space<vmem>>, vector<256x256xbf16>
      %c0_7 = arith.constant 0 : index
      %c0_8 = arith.constant 0 : index
      %19 = vector.load %arg2[%c0_7, %c0_8] : memref<256x256xbf16, #tpu.memory_space<vmem>>, vector<256x256xbf16>
      %cst = arith.constant dense<0.000000e+00> : vector<256x256xf32>
      %20 = tpu.matmul %18, %19, %cst {dimension_numbers = #tpu.dot_dimension_numbers<[1], [0], [0], [1], [0, 0, 1, 1], [], []>} : vector<256x256xbf16>, vector<256x256xbf16>, vector<256x256xf32> -> vector<256x256xf32>
      %c0_9 = arith.constant 0 : index
      %c0_10 = arith.constant 0 : index
      %21 = vector.load %arg3[%c0_9, %c0_10] : memref<256x256xbf16, #tpu.memory_space<vmem>>, vector<256x256xbf16>
      %22 = arith.truncf %20 : vector<256x256xf32> to vector<256x256xbf16>
      %cst_11 = arith.constant dense<0.000000e+00> : vector<256x256xf32>
      %23 = tpu.matmul %21, %22, %cst_11 {dimension_numbers = #tpu.dot_dimension_numbers<[1], [0], [0], [1], [0, 0, 1, 1], [], []>} : vector<256x256xbf16>, vector<256x256xbf16>, vector<256x256xf32> -> vector<256x256xf32>
      %c0_12 = arith.constant 0 : index
      %c0_13 = arith.constant 0 : index
      %24 = vector.load %arg7[%c0_12, %c0_13] : memref<256x256xf32, #tpu.memory_space<vmem>>, vector<256x256xf32>
      %c0_14 = arith.constant 0 : index
      %c0_15 = arith.constant 0 : index
      %25 = vector.load %arg8[%c0_14, %c0_15] : memref<256x256xf32, #tpu.memory_space<vmem>>, vector<256x256xf32>
      %26 = arith.mulf %24, %24 : vector<256x256xf32>
      %cst_16 = arith.constant dense<0.000000e+00> : vector<256xf32>
      %27 = vector.multi_reduction <add>, %26, %cst_16 [0] : vector<256x256xf32> to vector<256xf32>
      %28 = vector.shape_cast %27 : vector<256xf32> to vector<1x256xf32>
      %cst_17 = arith.constant 1.000000e-24 : f32
      %29 = vector.broadcast %cst_17 : f32 to vector<1x256xf32>
      %30 = arith.maximumf %28, %29 : vector<1x256xf32>
      %31 = math.rsqrt %30 : vector<1x256xf32>
      %32 = vector.broadcast %31 : vector<1x256xf32> to vector<256x256xf32>
      %33 = arith.mulf %24, %32 : vector<256x256xf32>
      %34 = arith.mulf %25, %25 : vector<256x256xf32>
      %cst_18 = arith.constant dense<0.000000e+00> : vector<256xf32>
      %35 = vector.multi_reduction <add>, %34, %cst_18 [0] : vector<256x256xf32> to vector<256xf32>
      %36 = vector.shape_cast %35 : vector<256xf32> to vector<1x256xf32>
      %cst_19 = arith.constant 1.000000e-24 : f32
      %37 = vector.broadcast %cst_19 : f32 to vector<1x256xf32>
      %38 = arith.maximumf %36, %37 : vector<1x256xf32>
      %39 = math.rsqrt %38 : vector<1x256xf32>
      %c0_20 = arith.constant 0 : index
      %c0_21 = arith.constant 0 : index
      %40 = vector.load %arg4[%c0_20, %c0_21] : memref<1x256xf32, #tpu.memory_space<vmem>>, vector<1x256xf32>
      %41 = arith.mulf %39, %40 : vector<1x256xf32>
      %42 = vector.broadcast %41 : vector<1x256xf32> to vector<256x256xf32>
      %43 = arith.mulf %25, %42 : vector<256x256xf32>
      %44 = arith.mulf %23, %23 : vector<256x256xf32>
      %cst_22 = arith.constant dense<0.000000e+00> : vector<256xf32>
      %45 = vector.multi_reduction <add>, %44, %cst_22 [1] : vector<256x256xf32> to vector<256xf32>
      %46 = vector.shape_cast %45 : vector<256xf32> to vector<256x1xf32>
      %cst_23 = arith.constant 1.000000e-24 : f32
      %47 = vector.broadcast %cst_23 : f32 to vector<256x1xf32>
      %48 = arith.maximumf %46, %47 : vector<256x1xf32>
      %49 = math.rsqrt %48 : vector<256x1xf32>
      %50 = vector.broadcast %49 : vector<256x1xf32> to vector<256x256xf32>
      %51 = arith.mulf %23, %50 : vector<256x256xf32>
      %c0_24 = arith.constant 0 : index
      %c0_25 = arith.constant 0 : index
      %52 = vector.load %arg9[%c0_24, %c0_25] : memref<256x256xf32, #tpu.memory_space<vmem>>, vector<256x256xf32>
      tpu.vector_store %arg9[%c0_24, %c0_25], %51 {strides = array<i32>} : memref<256x256xf32, #tpu.memory_space<vmem>>, vector<256x256xf32>,
      %53 = arith.truncf %43 : vector<256x256xf32> to vector<256x256xbf16>
      %54 = arith.truncf %33 : vector<256x256xf32> to vector<256x256xbf16>
      %cst_26 = arith.constant dense<0.000000e+00> : vector<256x256xf32>
      %55 = tpu.matmul %53, %54, %cst_26 {dimension_numbers = #tpu.dot_dimension_numbers<[0], [0], [1], [1], [0, 1, 1, 1], [], []>} : vector<256x256xbf16>, vector<256x256xbf16>, vector<256x256xf32> -> vector<256x256xf32>
      %cst_27 = arith.constant dense<0xFF800000> : vector<256xf32>
      %56 = vector.multi_reduction <maximumf>, %55, %cst_27 [1] : vector<256x256xf32> to vector<256xf32>
      %57 = vector.shape_cast %56 : vector<256xf32> to vector<256x1xf32>
      %58 = vector.broadcast %57 : vector<256x1xf32> to vector<256x256xf32>
      %59 = arith.subf %55, %58 : vector<256x256xf32>
      %60 = math.exp %59 : vector<256x256xf32>
      %cst_28 = arith.constant dense<0.000000e+00> : vector<256xf32>
      %61 = vector.multi_reduction <add>, %60, %cst_28 [1] : vector<256x256xf32> to vector<256xf32>
      %62 = vector.shape_cast %61 : vector<256xf32> to vector<256x1xf32>
      %63 = vector.broadcast %62 : vector<256x1xf32> to vector<256x256xf32>
      %64 = arith.divf %60, %63 : vector<256x256xf32>
      %cst_29 = arith.constant dense<0.000000e+00> : vector<256x256xf32>
      %65 = tpu.matmul %51, %64, %cst_29 {dimension_numbers = #tpu.dot_dimension_numbers<[1], [0], [0], [1], [0, 0, 1, 1], [], []>} : vector<256x256xf32>, vector<256x256xf32>, vector<256x256xf32> -> vector<256x256xf32>
      %c0_30 = arith.constant 0 : index
      %c0_31 = arith.constant 0 : index
      %66 = vector.load %arg10[%c0_30, %c0_31] : memref<256x256xf32, #tpu.memory_space<vmem>>, vector<256x256xf32>
      tpu.vector_store %arg10[%c0_30, %c0_31], %65 {strides = array<i32>} : memref<256x256xf32, #tpu.memory_space<vmem>>, vector<256x256xf32>,
    } else {
    }
    %c3_i32 = arith.constant 3 : i32
    %9 = arith.cmpi eq, %arg0, %c3_i32 : i32
    %10 = arith.extui %9 : i1 to i32
    %c0_i32_3 = arith.constant 0 : i32
    %11 = arith.cmpi ne, %10, %c0_i32_3 : i32
    scf.if %11 {
      %c0 = arith.constant 0 : index
      %c0_6 = arith.constant 0 : index
      %18 = vector.load %arg10[%c0, %c0_6] : memref<256x256xf32, #tpu.memory_space<vmem>>, vector<256x256xf32>
      %19 = arith.truncf %18 : vector<256x256xf32> to vector<256x256xbf16>
      %c0_7 = arith.constant 0 : index
      %c0_8 = arith.constant 0 : index
      %20 = vector.load %arg2[%c0_7, %c0_8] : memref<256x256xbf16, #tpu.memory_space<vmem>>, vector<256x256xbf16>
      %cst = arith.constant dense<0.000000e+00> : vector<256x256xf32>
      %21 = tpu.matmul %19, %20, %cst {dimension_numbers = #tpu.dot_dimension_numbers<[1], [0], [0], [1], [0, 0, 1, 1], [], []>} : vector<256x256xbf16>, vector<256x256xbf16>, vector<256x256xf32> -> vector<256x256xf32>
      %c0_9 = arith.constant 0 : index
      %c0_10 = arith.constant 0 : index
      %22 = vector.load %arg5[%c0_9, %c0_10] : memref<1x256xf32, #tpu.memory_space<vmem>>, vector<1x256xf32>
      %23 = vector.broadcast %22 : vector<1x256xf32> to vector<256x256xf32>
      %24 = arith.addf %21, %23 : vector<256x256xf32>
      %c0_11 = arith.constant 0 : index
      %c0_12 = arith.constant 0 : index
      %25 = vector.load %arg11[%c0_11, %c0_12] : memref<256x256xf32, #tpu.memory_space<vmem>>, vector<256x256xf32>
      tpu.vector_store %arg11[%c0_11, %c0_12], %24 {strides = array<i32>} : memref<256x256xf32, #tpu.memory_space<vmem>>, vector<256x256xf32>,
    } else {
    }
    %c4_i32 = arith.constant 4 : i32
    %12 = arith.cmpi eq, %arg0, %c4_i32 : i32
    %13 = arith.extui %12 : i1 to i32
    %c0_i32_4 = arith.constant 0 : i32
    %14 = arith.cmpi ne, %13, %c0_i32_4 : i32
    scf.if %14 {
      %c0 = arith.constant 0 : index
      %c0_6 = arith.constant 0 : index
      %18 = vector.load %arg9[%c0, %c0_6] : memref<256x256xf32, #tpu.memory_space<vmem>>, vector<256x256xf32>
      %19 = arith.truncf %18 : vector<256x256xf32> to vector<256x256xbf16>
      %c0_7 = arith.constant 0 : index
      %c0_8 = arith.constant 0 : index
      %20 = vector.load %arg2[%c0_7, %c0_8] : memref<256x256xbf16, #tpu.memory_space<vmem>>, vector<256x256xbf16>
      %cst = arith.constant dense<0.000000e+00> : vector<256x256xf32>
      %21 = tpu.matmul %19, %20, %cst {dimension_numbers = #tpu.dot_dimension_numbers<[1], [0], [0], [1], [0, 0, 1, 1], [], []>} : vector<256x256xbf16>, vector<256x256xbf16>, vector<256x256xf32> -> vector<256x256xf32>
      %cst_9 = arith.constant 5.000000e-01 : f32
      %22 = vector.broadcast %cst_9 : f32 to vector<256x256xf32>
      %23 = arith.mulf %22, %21 : vector<256x256xf32>
      %cst_10 = arith.constant 4.471500e-02 : f32
      %24 = vector.broadcast %cst_10 : f32 to vector<256x256xf32>
      %25 = arith.mulf %24, %21 : vector<256x256xf32>
      %26 = arith.mulf %25, %21 : vector<256x256xf32>
      %27 = arith.mulf %26, %21 : vector<256x256xf32>
      %28 = arith.addf %21, %27 : vector<256x256xf32>
      %cst_11 = arith.constant 0.797884583 : f32
      %29 = vector.broadcast %cst_11 : f32 to vector<256x256xf32>
      %30 = arith.mulf %29, %28 : vector<256x256xf32>
      %31 = math.tanh %30 : vector<256x256xf32>
      %cst_12 = arith.constant 1.000000e+00 : f32
      %32 = vector.broadcast %cst_12 : f32 to vector<256x256xf32>
      %33 = arith.addf %32, %31 : vector<256x256xf32>
      %34 = arith.mulf %23, %33 : vector<256x256xf32>
      %c0_13 = arith.constant 0 : index
      %c0_14 = arith.constant 0 : index
      %35 = vector.load %arg12[%c0_13, %c0_14] : memref<256x256xf32, #tpu.memory_space<vmem>>, vector<256x256xf32>
      tpu.vector_store %arg12[%c0_13, %c0_14], %34 {strides = array<i32>} : memref<256x256xf32, #tpu.memory_space<vmem>>, vector<256x256xf32>,
    } else {
    }
    %c5_i32 = arith.constant 5 : i32
    %15 = arith.cmpi eq, %arg0, %c5_i32 : i32
    %16 = arith.extui %15 : i1 to i32
    %c0_i32_5 = arith.constant 0 : i32
    %17 = arith.cmpi ne, %16, %c0_i32_5 : i32
    scf.if %17 {
      %c0 = arith.constant 0 : index
      %c0_6 = arith.constant 0 : index
      %18 = vector.load %arg12[%c0, %c0_6] : memref<256x256xf32, #tpu.memory_space<vmem>>, vector<256x256xf32>
      %19 = arith.truncf %18 : vector<256x256xf32> to vector<256x256xbf16>
      %c0_7 = arith.constant 0 : index
      %c0_8 = arith.constant 0 : index
      %20 = vector.load %arg2[%c0_7, %c0_8] : memref<256x256xbf16, #tpu.memory_space<vmem>>, vector<256x256xbf16>
      %cst = arith.constant dense<0.000000e+00> : vector<256x256xf32>
      %21 = tpu.matmul %19, %20, %cst {dimension_numbers = #tpu.dot_dimension_numbers<[1], [0], [0], [1], [0, 0, 1, 1], [], []>} : vector<256x256xbf16>, vector<256x256xbf16>, vector<256x256xf32> -> vector<256x256xf32>
      %c0_9 = arith.constant 0 : index
      %c0_10 = arith.constant 0 : index
      %22 = vector.load %arg11[%c0_9, %c0_10] : memref<256x256xf32, #tpu.memory_space<vmem>>, vector<256x256xf32>
      %23 = arith.addf %22, %21 : vector<256x256xf32>
      %c0_11 = arith.constant 0 : index
      %c0_12 = arith.constant 0 : index
      %24 = vector.load %arg6[%c0_11, %c0_12] : memref<256x256xf32, #tpu.memory_space<vmem>>, vector<256x256xf32>
      tpu.vector_store %arg6[%c0_11, %c0_12], %23 {strides = array<i32>} : memref<256x256xf32, #tpu.memory_space<vmem>>, vector<256x256xf32>,
    } else {
    }
    return
  }
  func.func @transform_0(%arg0: i32) -> (i32, i32) {
    %c0_i32 = arith.constant 0 : i32
    %c0_i32_0 = arith.constant 0 : i32
    %c0_i32_1 = arith.constant 0 : i32
    return %c0_i32, %c0_i32_0 : i32, i32
  }
  func.func @transform_1(%arg0: i32) -> (i32, i32) {
    %c0_i32 = arith.constant 0 : i32
    %c0_i32_0 = arith.constant 0 : i32
    return %c0_i32, %arg0 : i32, i32
  }
  func.func @transform_2(%arg0: i32) -> (i32, i32) {
    %c0_i32 = arith.constant 0 : i32
    %c0_i32_0 = arith.constant 0 : i32
    %c0_i32_1 = arith.constant 0 : i32
    return %c0_i32, %c0_i32_0 : i32, i32
  }
  func.func @transform_3(%arg0: i32) -> (i32, i32) {
    %c0_i32 = arith.constant 0 : i32
    %c0_i32_0 = arith.constant 0 : i32
    %c0_i32_1 = arith.constant 0 : i32
    return %c0_i32, %c0_i32_0 : i32, i32
  }
  func.func @transform_4(%arg0: i32) -> (i32, i32) {
    %c0_i32 = arith.constant 0 : i32
    %c0_i32_0 = arith.constant 0 : i32
    %c0_i32_1 = arith.constant 0 : i32
    return %c0_i32, %c0_i32_0 : i32, i32
  }
  func.func @transform_5(%arg0: i32) -> (i32, i32) {
    %c0_i32 = arith.constant 0 : i32
    %c0_i32_0 = arith.constant 0 : i32
    %c0_i32_1 = arith.constant 0 : i32
    return %c0_i32, %c0_i32_0 : i32, i32
  }
}

</mosaic_0001>

<llo_original>
// kernel: tpu_custom_call.1
$region0: #{tpu_custom_call.1}
  #allocation0 [shape = 'u32[]', space=smem, size = 0x4, offset = 0x4, fixed_abs, tag = 'smem constant byte address 0x4 - core index']
  #allocation1 [shape = 'u32[144,128]{1,0:T(1,128)}', space=vmem, size = 0x12000, scoped, tag = 'internal scratch']
  #allocation2 [shape = 'f32[256,256]{1,0:T(8,128)}', space=vmem, size = 0x40000, scoped, tag = 'scratch operand']
  #allocation3 [shape = 'f32[256,256]{1,0:T(8,128)}', space=vmem, size = 0x40000, scoped, tag = 'scratch operand']
  #allocation4 [shape = 'f32[256,256]{1,0:T(8,128)}', space=vmem, size = 0x40000, scoped, tag = 'scratch operand']
  #allocation5 [shape = 'f32[256,256]{1,0:T(8,128)}', space=vmem, size = 0x40000, scoped, tag = 'scratch operand']
  #allocation6 [shape = 'f32[256,256]{1,0:T(8,128)}', space=vmem, size = 0x40000, scoped, tag = 'scratch operand']
  #allocation7 [shape = 'f32[256,256]{1,0:T(8,128)}', space=vmem, size = 0x40000, scoped, tag = 'scratch operand']
  %s0 = inlined_call_operand.hbm [shape: bf16[256,256], index: 0, kind: input, shape index: {}]
  %s1 = inlined_call_operand.hbm [shape: bf16[256,1536], index: 1, kind: input, shape index: {}]
  %s2 = inlined_call_operand.hbm [shape: bf16[256,256], index: 2, kind: input, shape index: {}]
  %s3 = inlined_call_operand.vmem [shape: f32[1,256], index: 3, kind: input, shape index: {}]
  %s4 = inlined_call_operand.vmem [shape: f32[1,256], index: 4, kind: input, shape index: {}]
  %s5 = inlined_call_operand.hbm [shape: f32[256,256], index: 5, kind: output, shape index: {}]
  %s6 = sld [smem:[#allocation0]]
  $region89: #{tpu_custom_call.1} parent=0
    _
  %s8 = ssub.s32 1, %s6
  %s9 = scalar_select 0, %s8, %s6
  $region1: #{tpu_custom_call.1} parent=0
    #allocation8 [shape = 'u8[131072]{0}', space=vmem, size = 0x20000, scoped, tag = 'input window, operand 0, single buffered']
    #allocation9 [shape = 's32[2]{0}', space=sflag, size = 0x8, scoped, tag = 'scoped memory for tpu_custom_call.1']
    #allocation10 [shape = 's32[2]{0}', space=sflag, size = 0x8, scoped, tag = 'scoped memory for tpu_custom_call.1']
    #allocation11 [shape = 'u8[262144]{0}', space=vmem, size = 0x40000, scoped, tag = 'input window, operand 1']
    #allocation12 [shape = 's32[2]{0}', space=sflag, size = 0x8, scoped, tag = 'scoped memory for tpu_custom_call.1']
    #allocation13 [shape = 'u8[131072]{0}', space=vmem, size = 0x20000, scoped, tag = 'input window, operand 2, single buffered']
    #allocation14 [shape = 'u8[262144]{0}', space=vmem, size = 0x40000, scoped, tag = 'output window, operand 0, single buffered']
    %10 = vsyncpa [#allocation9], 0
    %11 = vsyncpa [#allocation12], 0
    %s12 = scalar_lea.sflag [#allocation12], 1
    %13 = vsyncpa %s12, 0
    %14 = vsyncpa [#allocation10], 0
    loop: start=0, step=1, limit=8
    $region2: #{tpu_custom_call.1} parent=1 // loop_pre_header
      _
    $region3: #{tpu_custom_call.1} parent=1 // loop_header
      %s16 = sphi 0, %s20
      %p17 = scmp.ge.s32.totalorder %s16, 8
      %s24 = sphi 0, %s24
      %s26 = sphi 0, %s24
      %s27 = sphi 0, %s26
      %s41 = sphi 0, %s27
      %s47 = sphi 0, %s49
      %s50 = sphi 0, %s47
      %s51 = sphi 0, %s50
      %s67 = sphi 0, %s51
      %s71 = sphi 0, %s71
      %s73 = sphi 0, %s71
      %s74 = sphi 0, %s73
      %s88 = sphi 0, %s74
      %s92 = sphi 0, %s92
      %s94 = sphi 0, %s92
      %s95 = sphi 0, %s94
      %s109 = sphi 0, %s95
      %s113 = sphi 0, %s113
      %s115 = sphi 0, %s113
      %s116 = sphi 0, %s115
      %s130 = sphi 0, %s116
      %s134 = sphi 0, %s134
      %s136 = sphi 0, %s134
      %s137 = sphi 0, %s136
      %s151 = sphi 0, %s137
    $region4: #{tpu_custom_call.1} parent=1 // loop_header_branch
      %19 = sbr.rel (%p17) target = $region8
    $region5: #{tpu_custom_call.1} parent=1 // loop_body
      %s21 = ssub.s32 %s16, 1
      %s22 = ssub.s32 %s16, 2
      %s23 = sadd.s32 %s16, 1
      %s25 = sadd.s32 %s24, 1
      %p28 = scmp.eq.s32.totalorder %s16, 5
      %p29 = scmp.ne.s32.totalorder %s24, %s26
      %p30 = scmp.eq.s32.totalorder %s16, 0
      %p31 = por %p29, %p30
      %p32 = scmp.ne.s32.totalorder %s24, %s26
      %p33 = scmp.eq.s32.totalorder %s21, 5
      %p34 = por %p32, %p33
      %p35 = scmp.ne.s32.totalorder %s26, %s27
      %p36 = scmp.eq.s32.totalorder %s21, 0
      %p37 = por %p35, %p36
      %p38 = scmp.ne.s32.totalorder %s26, %s27
      %p39 = scmp.eq.s32.totalorder %s22, 5
      %p40 = por %p38, %p39
      %p42 = scmp.ne.s32.totalorder %s27, %s41
      %p43 = scmp.eq.s32.totalorder %s22, 0
      %p44 = por %p42, %p43
      %s45 = ssub.s32 %s16, %s23
      %p46 = scmp.eq.s32.totalorder %s45, 0
      %s48 = sadd.s32 %s47, 1
      %s49 = scalar_select %p46, %s47, %s48
      %p52 = pneg %p46
      %p53 = scmp.eq.s32.totalorder %s16, 5
      %p54 = por %p52, %p53
      %p55 = scmp.ne.s32.totalorder %s47, %s50
      %p56 = scmp.eq.s32.totalorder %s16, 0
      %p57 = por %p55, %p56
      %p58 = scmp.ne.s32.totalorder %s47, %s50
      %p59 = scmp.eq.s32.totalorder %s21, 5
      %p60 = por %p58, %p59
      %p61 = scmp.ne.s32.totalorder %s50, %s51
      %p62 = scmp.eq.s32.totalorder %s21, 0
      %p63 = por %p61, %p62
      %p64 = scmp.ne.s32.totalorder %s50, %s51
      %p65 = scmp.eq.s32.totalorder %s22, 5
      %p66 = por %p64, %p65
      %p68 = scmp.ne.s32.totalorder %s51, %s67
      %p69 = scmp.eq.s32.totalorder %s22, 0
      %p70 = por %p68, %p69
      %s72 = sadd.s32 %s71, 1
      %p75 = scmp.eq.s32.totalorder %s16, 5
      %p76 = scmp.ne.s32.totalorder %s71, %s73
      %p77 = scmp.eq.s32.totalorder %s16, 0
      %p78 = por %p76, %p77
      %p79 = scmp.ne.s32.totalorder %s71, %s73
      %p80 = scmp.eq.s32.totalorder %s21, 5
      %p81 = por %p79, %p80
      %p82 = scmp.ne.s32.totalorder %s73, %s74
      %p83 = scmp.eq.s32.totalorder %s21, 0
      %p84 = por %p82, %p83
      %p85 = scmp.ne.s32.totalorder %s73, %s74
      %p86 = scmp.eq.s32.totalorder %s22, 5
      %p87 = por %p85, %p86
      %p89 = scmp.ne.s32.totalorder %s74, %s88
      %p90 = scmp.eq.s32.totalorder %s22, 0
      %p91 = por %p89, %p90
      %s93 = sadd.s32 %s92, 1
      %p96 = scmp.eq.s32.totalorder %s16, 5
      %p97 = scmp.ne.s32.totalorder %s92, %s94
      %p98 = scmp.eq.s32.totalorder %s16, 0
      %p99 = por %p97, %p98
      %p100 = scmp.ne.s32.totalorder %s92, %s94
      %p101 = scmp.eq.s32.totalorder %s21, 5
      %p102 = por %p100, %p101
      %p103 = scmp.ne.s32.totalorder %s94, %s95
      %p104 = scmp.eq.s32.totalorder %s21, 0
      %p105 = por %p103, %p104
      %p106 = scmp.ne.s32.totalorder %s94, %s95
      %p107 = scmp.eq.s32.totalorder %s22, 5
      %p108 = por %p106, %p107
      %p110 = scmp.ne.s32.totalorder %s95, %s109
      %p111 = scmp.eq.s32.totalorder %s22, 0
      %p112 = por %p110, %p111
      %s114 = sadd.s32 %s113, 1
      %p117 = scmp.eq.s32.totalorder %s16, 5
      %p118 = scmp.ne.s32.totalorder %s113, %s115
      %p119 = scmp.eq.s32.totalorder %s16, 0
      %p120 = por %p118, %p119
      %p121 = scmp.ne.s32.totalorder %s113, %s115
      %p122 = scmp.eq.s32.totalorder %s21, 5
      %p123 = por %p121, %p122
      %p124 = scmp.ne.s32.totalorder %s115, %s116
      %p125 = scmp.eq.s32.totalorder %s21, 0
      %p126 = por %p124, %p125
      %p127 = scmp.ne.s32.totalorder %s115, %s116
      %p128 = scmp.eq.s32.totalorder %s22, 5
      %p129 = por %p127, %p128
      %p131 = scmp.ne.s32.totalorder %s116, %s130
      %p132 = scmp.eq.s32.totalorder %s22, 0
      %p133 = por %p131, %p132
      %s135 = sadd.s32 %s134, 1
      %p138 = scmp.eq.s32.totalorder %s16, 5
      %p139 = scmp.ne.s32.totalorder %s134, %s136
      %p140 = scmp.eq.s32.totalorder %s16, 0
      %p141 = por %p139, %p140
      %p142 = scmp.ne.s32.totalorder %s134, %s136
      %p143 = scmp.eq.s32.totalorder %s21, 5
      %p144 = por %p142, %p143
      %p145 = scmp.ne.s32.totalorder %s136, %s137
      %p146 = scmp.eq.s32.totalorder %s21, 0
      %p147 = por %p145, %p146
      %p148 = scmp.ne.s32.totalorder %s136, %s137
      %p149 = scmp.eq.s32.totalorder %s22, 5
      %p150 = por %p148, %p149
      %p152 = scmp.ne.s32.totalorder %s137, %s151
      %p153 = scmp.eq.s32.totalorder %s22, 0
      %p154 = por %p152, %p153
      %p155 = scmp.le.s32.totalorder 1, %s16
      %p156 = scmp.lt.s32.totalorder %s16, 7
      %p157 = pnand %p155, %p156
      %p158 = pneg %p157
      // Predicated region
      $region9: #{tpu_custom_call.1} parent=5 // pred_check
        _
      $region10: #{tpu_custom_call.1} parent=5 // pred_check_branch
        %160 = sbr.rel (%p157) target = $region12
      $region11: #{tpu_custom_call.1} parent=5 // pred_region
        %s161 = ssub.s32 %s16, 1
        // Predicated region
        $region13: #{tpu_custom_call.1} parent=11 // pred_check
          %p162 = pneg %p37
        $region14: #{tpu_custom_call.1} parent=11 // pred_check_branch
          %164 = sbr.rel (%p162) target = $region16
        $region15: #{tpu_custom_call.1} parent=11 // pred_region
          %s166 = ssub.s32 4096, 4096
          %167 = vsyncadd [#allocation9], %s166
          %s168 = sshll.u32 [#allocation8], 4
          %s169 = int_to_ptr.vmem [resolvable:$true] %s168
          %174 = dma.hbm_to_vmem [thread:$0]  %s0, 4096, %s169, [#allocation9], 128, 128, 8
        $region16: #{tpu_custom_call.1} parent=11 // pred_fallthru
          _
        // Predicated region
        $region17: #{tpu_custom_call.1} parent=11 // pred_check
          %p175 = pneg %p84
        $region18: #{tpu_custom_call.1} parent=11 // pred_check_branch
          %177 = sbr.rel (%p175) target = $region20
        $region19: #{tpu_custom_call.1} parent=11 // pred_region
          %s179 = ssub.s32 4096, 4096
          %180 = vsyncadd [#allocation12], %s179
          %s181 = sshll.u32 [#allocation13], 4
          %s182 = int_to_ptr.vmem [resolvable:$true] %s181
          %187 = dma.hbm_to_vmem [thread:$0]  %s2, 4096, %s182, [#allocation12], 128, 128, 8
        $region20: #{tpu_custom_call.1} parent=11 // pred_fallthru
          _
        // Predicated region
        $region21: #{tpu_custom_call.1} parent=11 // pred_check
          %p188 = pneg %p105
        $region22: #{tpu_custom_call.1} parent=11 // pred_check_branch
          %190 = sbr.rel (%p188) target = $region24
        $region23: #{tpu_custom_call.1} parent=11 // pred_region
          _
        $region24: #{tpu_custom_call.1} parent=11 // pred_fallthru
          _
        // Predicated region
        $region25: #{tpu_custom_call.1} parent=11 // pred_check
          %p191 = pneg %p126
        $region26: #{tpu_custom_call.1} parent=11 // pred_check_branch
          %193 = sbr.rel (%p191) target = $region28
        $region27: #{tpu_custom_call.1} parent=11 // pred_region
          _
        $region28: #{tpu_custom_call.1} parent=11 // pred_fallthru
          _
      $region12: #{tpu_custom_call.1} parent=5 // pred_fallthru
        _
      %p194 = scmp.lt.s32.totalorder %s16, 6
      // Predicated region
      $region29: #{tpu_custom_call.1} parent=5 // pred_check
        %p195 = pneg %p194
      $region30: #{tpu_custom_call.1} parent=5 // pred_check_branch
        %197 = sbr.rel (%p195) target = $region32
      $region31: #{tpu_custom_call.1} parent=5 // pred_region
        // Predicated region
        $region33: #{tpu_custom_call.1} parent=31 // pred_check
          %p198 = pneg %p57
        $region34: #{tpu_custom_call.1} parent=31 // pred_check_branch
          %200 = sbr.rel (%p198) target = $region36
        $region35: #{tpu_custom_call.1} parent=31 // pred_region
          %s201 = sand.u32 %s16, 1
          %s202 = scalar_lea.sflag [#allocation12], %s201
          %s203 = sand.u32 %s47, 1
          %s204 = smul.addr %s203, 256
          %s205 = scalar_lea.vmem [#allocation11], %s204
          %s206 = smul.u32 2, %s16
          %s208 = ssub.s32 4096, 4096
          %209 = vsyncadd %s202, %s208
          %s210 = smul.addr %s206, 64
          %s211 = scalar_lea.hbm %s1, %s210
          %s212 = sshll.u32 %s205, 4
          %s213 = int_to_ptr.vmem [resolvable:$true] %s212
          %218 = dma.hbm_to_vmem [thread:$0]  %s211, 4096, %s213, %s202, 768, 128, 8
        $region36: #{tpu_custom_call.1} parent=31 // pred_fallthru
          _
      $region32: #{tpu_custom_call.1} parent=5 // pred_fallthru
        _
      %p219 = scmp.le.s32.totalorder 1, %s16
      %p220 = scmp.lt.s32.totalorder %s16, 7
      %p221 = pnand %p219, %p220
      %p222 = pneg %p221
      // Predicated region
      $region37: #{tpu_custom_call.1} parent=5 // pred_check
        _
      $region38: #{tpu_custom_call.1} parent=5 // pred_check_branch
        %224 = sbr.rel (%p221) target = $region40
      $region39: #{tpu_custom_call.1} parent=5 // pred_region
        %s225 = ssub.s32 %s16, 1
        // Predicated region
        $region41: #{tpu_custom_call.1} parent=39 // pred_check
          %p226 = pneg %p37
        $region42: #{tpu_custom_call.1} parent=39 // pred_check_branch
          %228 = sbr.rel (%p226) target = $region44
        $region43: #{tpu_custom_call.1} parent=39 // pred_region
          %229 = dma.done [#allocation9], 4096
        $region44: #{tpu_custom_call.1} parent=39 // pred_fallthru
          _
        %s230 = sand.u32 %s21, 1
        %s231 = scalar_lea.sflag [#allocation12], %s230
        %s232 = sand.u32 %s50, 1
        %s233 = smul.addr %s232, 256
        %s234 = scalar_lea.vmem [#allocation11], %s233
        // Predicated region
        $region45: #{tpu_custom_call.1} parent=39 // pred_check
          %p235 = pneg %p63
        $region46: #{tpu_custom_call.1} parent=39 // pred_check_branch
          %237 = sbr.rel (%p235) target = $region48
        $region47: #{tpu_custom_call.1} parent=39 // pred_region
          %238 = dma.done %s231, 4096
        $region48: #{tpu_custom_call.1} parent=39 // pred_fallthru
          _
        // Predicated region
        $region49: #{tpu_custom_call.1} parent=39 // pred_check
          %p239 = pneg %p84
        $region50: #{tpu_custom_call.1} parent=39 // pred_check_branch
          %241 = sbr.rel (%p239) target = $region52
        $region51: #{tpu_custom_call.1} parent=39 // pred_region
          %242 = dma.done [#allocation12], 4096
        $region52: #{tpu_custom_call.1} parent=39 // pred_fallthru
          _
        %p243 = pneg %p37
        %p244 = pneg %p34
        %s245 = sand.u32 %s21, 1
        %s246 = scalar_lea.sflag [#allocation12], %s245
        %s247 = sand.u32 %s50, 1
        %s248 = smul.addr %s247, 256
        %s249 = scalar_lea.vmem [#allocation11], %s248
        %p250 = pneg %p63
        %p251 = pneg %p60
        %p252 = pneg %p84
        %p253 = pneg %p81
        %p254 = pneg %p105
        %p255 = pneg %p102
        %p256 = pneg %p126
        %p257 = pneg %p123
        %p258 = pneg %p147
        %p259 = pneg %p144
        %s260 = smul.u32 2, %s21
        %p261 = scmp.eq.s32.totalorder %s21, 0
        // Predicated region
        $region53: #{tpu_custom_call.1} parent=39 // pred_check
          %p262 = pneg %p261
        $region54: #{tpu_custom_call.1} parent=39 // pred_check_branch
          %264 = sbr.rel (%p262) target = $region56
        $region55: #{tpu_custom_call.1} parent=39 // pred_region
          %v265 = vld [vmem:[#allocation8] sm:$0xff]
          %v266 = vld [vmem:[#allocation8 + $0x8] sm:$0xff]
          %v267 = vld [vmem:[#allocation8 + $0x10] sm:$0xff]
          %v268 = vld [vmem:[#allocation8 + $0x18] sm:$0xff]
          %v269 = vld [vmem:[#allocation8 + $0x20] sm:$0xff]
          %v270 = vld [vmem:[#allocation8 + $0x28] sm:$0xff]
          %v271 = vld [vmem:[#allocation8 + $0x30] sm:$0xff]
          %v272 = vld [vmem:[#allocation8 + $0x38] sm:$0xff]
          %v273 = vld [vmem:[#allocation8 + $0x40] sm:$0xff]
          %v274 = vld [vmem:[#allocation8 + $0x48] sm:$0xff]
          %v275 = vld [vmem:[#allocation8 + $0x50] sm:$0xff]
          %v276 = vld [vmem:[#allocation8 + $0x58] sm:$0xff]
          %v277 = vld [vmem:[#allocation8 + $0x60] sm:$0xff]
          %v278 = vld [vmem:[#allocation8 + $0x68] sm:$0xff]
          %v279 = vld [vmem:[#allocation8 + $0x70] sm:$0xff]
          %v280 = vld [vmem:[#allocation8 + $0x78] sm:$0xff]
          %v281 = vld [vmem:[#allocation8 + $0x80] sm:$0xff]
          %v282 = vld [vmem:[#allocation8 + $0x88] sm:$0xff]
          %v283 = vld [vmem:[#allocation8 + $0x90] sm:$0xff]
          %v284 = vld [vmem:[#allocation8 + $0x98] sm:$0xff]
          %v285 = vld [vmem:[#allocation8 + $0xa0] sm:$0xff]
          %v286 = vld [vmem:[#allocation8 + $0xa8] sm:$0xff]
          %v287 = vld [vmem:[#allocation8 + $0xb0] sm:$0xff]
          %v288 = vld [vmem:[#allocation8 + $0xb8] sm:$0xff]
          %v289 = vld [vmem:[#allocation8 + $0xc0] sm:$0xff]
          %v290 = vld [vmem:[#allocation8 + $0xc8] sm:$0xff]
          %v291 = vld [vmem:[#allocation8 + $0xd0] sm:$0xff]
          %v292 = vld [vmem:[#allocation8 + $0xd8] sm:$0xff]
          %v293 = vld [vmem:[#allocation8 + $0xe0] sm:$0xff]
          %v294 = vld [vmem:[#allocation8 + $0xe8] sm:$0xff]
          %v295 = vld [vmem:[#allocation8 + $0xf0] sm:$0xff]
          %v296 = vld [vmem:[#allocation8 + $0xf8] sm:$0xff]
          %v297 = vld [vmem:[%s234] sm:$0xff]
          %v298 = vld [vmem:[%s234 + $0x8] sm:$0xff]
          %v299 = vld [vmem:[%s234 + $0x10] sm:$0xff]
          %v300 = vld [vmem:[%s234 + $0x18] sm:$0xff]
          %v301 = vld [vmem:[%s234 + $0x20] sm:$0xff]
          %v302 = vld [vmem:[%s234 + $0x28] sm:$0xff]
          %v303 = vld [vmem:[%s234 + $0x30] sm:$0xff]
          %v304 = vld [vmem:[%s234 + $0x38] sm:$0xff]
          %v305 = vld [vmem:[%s234 + $0x40] sm:$0xff]
          %v306 = vld [vmem:[%s234 + $0x48] sm:$0xff]
          %v307 = vld [vmem:[%s234 + $0x50] sm:$0xff]
          %v308 = vld [vmem:[%s234 + $0x58] sm:$0xff]
          %v309 = vld [vmem:[%s234 + $0x60] sm:$0xff]
          %v310 = vld [vmem:[%s234 + $0x68] sm:$0xff]
          %v311 = vld [vmem:[%s234 + $0x70] sm:$0xff]
          %v312 = vld [vmem:[%s234 + $0x78] sm:$0xff]
          %v313 = vld [vmem:[%s234 + $0x80] sm:$0xff]
          %v314 = vld [vmem:[%s234 + $0x88] sm:$0xff]
          %v315 = vld [vmem:[%s234 + $0x90] sm:$0xff]
          %v316 = vld [vmem:[%s234 + $0x98] sm:$0xff]
          %v317 = vld [vmem:[%s234 + $0xa0] sm:$0xff]
          %v318 = vld [vmem:[%s234 + $0xa8] sm:$0xff]
          %v319 = vld [vmem:[%s234 + $0xb0] sm:$0xff]
          %v320 = vld [vmem:[%s234 + $0xb8] sm:$0xff]
          %v321 = vld [vmem:[%s234 + $0xc0] sm:$0xff]
          %v322 = vld [vmem:[%s234 + $0xc8] sm:$0xff]
          %v323 = vld [vmem:[%s234 + $0xd0] sm:$0xff]
          %v324 = vld [vmem:[%s234 + $0xd8] sm:$0xff]
          %v325 = vld [vmem:[%s234 + $0xe0] sm:$0xff]
          %v326 = vld [vmem:[%s234 + $0xe8] sm:$0xff]
          %v327 = vld [vmem:[%s234 + $0xf0] sm:$0xff]
          %v328 = vld [vmem:[%s234 + $0xf8] sm:$0xff]
          %v361 = vunpack.c.l.b16 %v265
          %v362 = vunpack.c.h.b16 %v265
          %v363 = vunpack.c.l.b16 %v266
          %v364 = vunpack.c.h.b16 %v266
          %v365 = vunpack.c.l.b16 %v267
          %v366 = vunpack.c.h.b16 %v267
          %v367 = vunpack.c.l.b16 %v268
          %v368 = vunpack.c.h.b16 %v268
          %v369 = vunpack.c.l.b16 %v269
          %v370 = vunpack.c.h.b16 %v269
          %v371 = vunpack.c.l.b16 %v270
          %v372 = vunpack.c.h.b16 %v270
          %v373 = vunpack.c.l.b16 %v271
          %v374 = vunpack.c.h.b16 %v271
          %v375 = vunpack.c.l.b16 %v272
          %v376 = vunpack.c.h.b16 %v272
          %v377 = vunpack.c.l.b16 %v273
          %v378 = vunpack.c.h.b16 %v273
          %v379 = vunpack.c.l.b16 %v274
          %v380 = vunpack.c.h.b16 %v274
          %v381 = vunpack.c.l.b16 %v275
          %v382 = vunpack.c.h.b16 %v275
          %v383 = vunpack.c.l.b16 %v276
          %v384 = vunpack.c.h.b16 %v276
          %v385 = vunpack.c.l.b16 %v277
          %v386 = vunpack.c.h.b16 %v277
          %v387 = vunpack.c.l.b16 %v278
          %v388 = vunpack.c.h.b16 %v278
          %v389 = vunpack.c.l.b16 %v279
          %v390 = vunpack.c.h.b16 %v279
          %v391 = vunpack.c.l.b16 %v280
          %v392 = vunpack.c.h.b16 %v280
          %v393 = vunpack.c.l.b16 %v281
          %v394 = vunpack.c.h.b16 %v281
          %v395 = vunpack.c.l.b16 %v282
          %v396 = vunpack.c.h.b16 %v282
          %v397 = vunpack.c.l.b16 %v283
          %v398 = vunpack.c.h.b16 %v283
          %v399 = vunpack.c.l.b16 %v284
          %v400 = vunpack.c.h.b16 %v284
          %v401 = vunpack.c.l.b16 %v285
          %v402 = vunpack.c.h.b16 %v285
          %v403 = vunpack.c.l.b16 %v286
          %v404 = vunpack.c.h.b16 %v286
          %v405 = vunpack.c.l.b16 %v287
          %v406 = vunpack.c.h.b16 %v287
          %v407 = vunpack.c.l.b16 %v288
          %v408 = vunpack.c.h.b16 %v288
          %v409 = vunpack.c.l.b16 %v289
          %v410 = vunpack.c.h.b16 %v289
          %v411 = vunpack.c.l.b16 %v290
          %v412 = vunpack.c.h.b16 %v290
          %v413 = vunpack.c.l.b16 %v291
          %v414 = vunpack.c.h.b16 %v291
          %v415 = vunpack.c.l.b16 %v292
          %v416 = vunpack.c.h.b16 %v292
          %v417 = vunpack.c.l.b16 %v293
          %v418 = vunpack.c.h.b16 %v293
          %v419 = vunpack.c.l.b16 %v294
          %v420 = vunpack.c.h.b16 %v294
          %v421 = vunpack.c.l.b16 %v295
          %v422 = vunpack.c.h.b16 %v295
          %v423 = vunpack.c.l.b16 %v296
          %v424 = vunpack.c.h.b16 %v296
          %v425 = vpack.c.b16 %v363, %v361
          %v426 = vpack.c.b16 %v364, %v362
          %v427 = vpack.c.b16 %v367, %v365
          %v428 = vpack.c.b16 %v368, %v366
          %v429 = vpack.c.b16 %v371, %v369
          %v430 = vpack.c.b16 %v372, %v370
          %v431 = vpack.c.b16 %v375, %v373
          %v432 = vpack.c.b16 %v376, %v374
          %v433 = vpack.c.b16 %v379, %v377
          %v434 = vpack.c.b16 %v380, %v378
          %v435 = vpack.c.b16 %v383, %v381
          %v436 = vpack.c.b16 %v384, %v382
          %v437 = vpack.c.b16 %v387, %v385
          %v438 = vpack.c.b16 %v388, %v386
          %v439 = vpack.c.b16 %v391, %v389
          %v440 = vpack.c.b16 %v392, %v390
          %v441 = vpack.c.b16 %v395, %v393
          %v442 = vpack.c.b16 %v396, %v394
          %v443 = vpack.c.b16 %v399, %v397
          %v444 = vpack.c.b16 %v400, %v398
          %v445 = vpack.c.b16 %v403, %v401
          %v446 = vpack.c.b16 %v404, %v402
          %v447 = vpack.c.b16 %v407, %v405
          %v448 = vpack.c.b16 %v408, %v406
          %v449 = vpack.c.b16 %v411, %v409
          %v450 = vpack.c.b16 %v412, %v410
          %v451 = vpack.c.b16 %v415, %v413
          %v452 = vpack.c.b16 %v416, %v414
          %v453 = vpack.c.b16 %v419, %v417
          %v454 = vpack.c.b16 %v420, %v418
          %v455 = vpack.c.b16 %v423, %v421
          %v456 = vpack.c.b16 %v424, %v422
          %v521 = vunpack.c.l.b16 %v297
          %v522 = vunpack.c.h.b16 %v297
          %v523 = vunpack.c.l.b16 %v298
          %v524 = vunpack.c.h.b16 %v298
          %v525 = vunpack.c.l.b16 %v299
          %v526 = vunpack.c.h.b16 %v299
          %v527 = vunpack.c.l.b16 %v300
          %v528 = vunpack.c.h.b16 %v300
          %v529 = vunpack.c.l.b16 %v301
          %v530 = vunpack.c.h.b16 %v301
          %v531 = vunpack.c.l.b16 %v302
          %v532 = vunpack.c.h.b16 %v302
          %v533 = vunpack.c.l.b16 %v303
          %v534 = vunpack.c.h.b16 %v303
          %v535 = vunpack.c.l.b16 %v304
          %v536 = vunpack.c.h.b16 %v304
          %v537 = vunpack.c.l.b16 %v305
          %v538 = vunpack.c.h.b16 %v305
          %v539 = vunpack.c.l.b16 %v306
          %v540 = vunpack.c.h.b16 %v306
          %v541 = vunpack.c.l.b16 %v307
          %v542 = vunpack.c.h.b16 %v307
          %v543 = vunpack.c.l.b16 %v308
          %v544 = vunpack.c.h.b16 %v308
          %v545 = vunpack.c.l.b16 %v309
          %v546 = vunpack.c.h.b16 %v309
          %v547 = vunpack.c.l.b16 %v310
          %v548 = vunpack.c.h.b16 %v310
          %v549 = vunpack.c.l.b16 %v311
          %v550 = vunpack.c.h.b16 %v311
          %v551 = vunpack.c.l.b16 %v312
          %v552 = vunpack.c.h.b16 %v312
          %v553 = vunpack.c.l.b16 %v313
          %v554 = vunpack.c.h.b16 %v313
          %v555 = vunpack.c.l.b16 %v314
          %v556 = vunpack.c.h.b16 %v314
          %v557 = vunpack.c.l.b16 %v315
          %v558 = vunpack.c.h.b16 %v315
          %v559 = vunpack.c.l.b16 %v316
          %v560 = vunpack.c.h.b16 %v316
          %v561 = vunpack.c.l.b16 %v317
          %v562 = vunpack.c.h.b16 %v317
          %v563 = vunpack.c.l.b16 %v318
          %v564 = vunpack.c.h.b16 %v318
          %v565 = vunpack.c.l.b16 %v319
          %v566 = vunpack.c.h.b16 %v319
          %v567 = vunpack.c.l.b16 %v320
          %v568 = vunpack.c.h.b16 %v320
          %v569 = vunpack.c.l.b16 %v321
          %v570 = vunpack.c.h.b16 %v321
          %v571 = vunpack.c.l.b16 %v322
          %v572 = vunpack.c.h.b16 %v322
          %v573 = vunpack.c.l.b16 %v323
          %v574 = vunpack.c.h.b16 %v323
          %v575 = vunpack.c.l.b16 %v324
          %v576 = vunpack.c.h.b16 %v324
          %v577 = vunpack.c.l.b16 %v325
          %v578 = vunpack.c.h.b16 %v325
          %v579 = vunpack.c.l.b16 %v326
          %v580 = vunpack.c.h.b16 %v326
          %v581 = vunpack.c.l.b16 %v327
          %v582 = vunpack.c.h.b16 %v327
          %v583 = vunpack.c.l.b16 %v328
          %v584 = vunpack.c.h.b16 %v328
          %v585 = vpack.c.b16 %v523, %v521
          %v586 = vpack.c.b16 %v524, %v522
          %v587 = vpack.c.b16 %v527, %v525
          %v588 = vpack.c.b16 %v528, %v526
          %v589 = vpack.c.b16 %v531, %v529
          %v590 = vpack.c.b16 %v532, %v530
          %v591 = vpack.c.b16 %v535, %v533
          %v592 = vpack.c.b16 %v536, %v534
          %v593 = vpack.c.b16 %v539, %v537
          %v594 = vpack.c.b16 %v540, %v538
          %v595 = vpack.c.b16 %v543, %v541
          %v596 = vpack.c.b16 %v544, %v542
          %v597 = vpack.c.b16 %v547, %v545
          %v598 = vpack.c.b16 %v548, %v546
          %v599 = vpack.c.b16 %v551, %v549
          %v600 = vpack.c.b16 %v552, %v550
          %v601 = vpack.c.b16 %v555, %v553
          %v602 = vpack.c.b16 %v556, %v554
          %v603 = vpack.c.b16 %v559, %v557
          %v604 = vpack.c.b16 %v560, %v558
          %v605 = vpack.c.b16 %v563, %v561
          %v606 = vpack.c.b16 %v564, %v562
          %v607 = vpack.c.b16 %v567, %v565
          %v608 = vpack.c.b16 %v568, %v566
          %v609 = vpack.c.b16 %v571, %v569
          %v610 = vpack.c.b16 %v572, %v570
          %v611 = vpack.c.b16 %v575, %v573
          %v612 = vpack.c.b16 %v576, %v574
          %v613 = vpack.c.b16 %v579, %v577
          %v614 = vpack.c.b16 %v580, %v578
          %v615 = vpack.c.b16 %v583, %v581
          %v616 = vpack.c.b16 %v584, %v582
          %649 = vmatprep.subr.bf16.mxu0 %v586
          %650 = vmatpush1.bf16.msra.mxu0 %v585
          %651 = vmatprep.subr.bf16.mxu0 %v588
          %652 = vmatpush1.bf16.msra.mxu0 %v587
          %653 = vmatprep.subr.bf16.mxu0 %v590
          %654 = vmatpush1.bf16.msra.mxu0 %v589
          %655 = vmatprep.subr.bf16.mxu0 %v592
          %656 = vmatpush1.bf16.msra.mxu0 %v591
          %657 = vmatprep.subr.bf16.mxu0 %v594
          %658 = vmatpush1.bf16.msra.mxu0 %v593
          %659 = vmatprep.subr.bf16.mxu0 %v596
          %660 = vmatpush1.bf16.msra.mxu0 %v595
          %661 = vmatprep.subr.bf16.mxu0 %v598
          %662 = vmatpush1.bf16.msra.mxu0 %v597
          %663 = vmatprep.subr.bf16.mxu0 %v600
          %664 = vmatpush1.bf16.msra.mxu0 %v599
          %665 = vmatprep.subr.bf16.mxu0 %v602
          %666 = vmatpush1.bf16.msra.mxu0 %v601
          %667 = vmatprep.subr.bf16.mxu0 %v604
          %668 = vmatpush1.bf16.msra.mxu0 %v603
          %669 = vmatprep.subr.bf16.mxu0 %v606
          %670 = vmatpush1.bf16.msra.mxu0 %v605
          %671 = vmatprep.subr.bf16.mxu0 %v608
          %672 = vmatpush1.bf16.msra.mxu0 %v607
          %673 = vmatprep.subr.bf16.mxu0 %v610
          %674 = vmatpush1.bf16.msra.mxu0 %v609
          %675 = vmatprep.subr.bf16.mxu0 %v612
          %676 = vmatpush1.bf16.msra.mxu0 %v611
          %677 = vmatprep.subr.bf16.mxu0 %v614
          %678 = vmatpush1.bf16.msra.mxu0 %v613
          %679 = vmatprep.subr.bf16.mxu0 %v616
          %680 = vmatpush1.bf16.msra.mxu0 %v615
          %681 = vmatprep.mubr.bf16.mxu0 %v426
          %682 = vmatmul.mubr.bf16.gmra.mrb[0].mxu0 %v425
          %v683 = vpop.f32.mrb[0].mxu0
          %v684 = vadd.f32 0.0, %v683
          %v685 = vpop.f32.mrb[0].mxu0
          %v686 = vadd.f32 0.0, %v685
          %v687 = vpop.f32.mrb[0].mxu0
          %v688 = vadd.f32 0.0, %v687
          %v689 = vpop.f32.mrb[0].mxu0
          %v690 = vadd.f32 0.0, %v689
          %691 = vmatprep.mubr.bf16.mxu0 %v428
          %692 = vmatmul.mubr.bf16.gmra.mrb[0].mxu0 %v427
          %v693 = vpop.f32.mrb[0].mxu0
          %v694 = vadd.f32 0.0, %v693
          %v695 = vpop.f32.mrb[0].mxu0
          %v696 = vadd.f32 0.0, %v695
          %v697 = vpop.f32.mrb[0].mxu0
          %v698 = vadd.f32 0.0, %v697
          %v699 = vpop.f32.mrb[0].mxu0
          %v700 = vadd.f32 0.0, %v699
          %701 = vmatprep.mubr.bf16.mxu0 %v430
          %702 = vmatmul.mubr.bf16.gmra.mrb[0].mxu0 %v429
          %v703 = vpop.f32.mrb[0].mxu0
          %v704 = vadd.f32 0.0, %v703
          %v705 = vpop.f32.mrb[0].mxu0
          %v706 = vadd.f32 0.0, %v705
          %v707 = vpop.f32.mrb[0].mxu0
          %v708 = vadd.f32 0.0, %v707
          %v709 = vpop.f32.mrb[0].mxu0
          %v710 = vadd.f32 0.0, %v709
          %711 = vmatprep.mubr.bf16.mxu0 %v432
          %712 = vmatmul.mubr.bf16.gmra.mrb[0].mxu0 %v431
          %v713 = vpop.f32.mrb[0].mxu0
          %v714 = vadd.f32 0.0, %v713
          %v715 = vpop.f32.mrb[0].mxu0
          %v716 = vadd.f32 0.0, %v715
          %v717 = vpop.f32.mrb[0].mxu0
          %v718 = vadd.f32 0.0, %v717
          %v719 = vpop.f32.mrb[0].mxu0
          %v720 = vadd.f32 0.0, %v719
          %721 = vmatprep.mubr.bf16.mxu0 %v434
          %722 = vmatmul.mubr.bf16.gmra.mrb[0].mxu0 %v433
          %v723 = vpop.f32.mrb[0].mxu0
          %v724 = vadd.f32 0.0, %v723
          %v725 = vpop.f32.mrb[0].mxu0
          %v726 = vadd.f32 0.0, %v725
          %v727 = vpop.f32.mrb[0].mxu0
          %v728 = vadd.f32 0.0, %v727
          %v729 = vpop.f32.mrb[0].mxu0
          %v730 = vadd.f32 0.0, %v729
          %731 = vmatprep.mubr.bf16.mxu0 %v436
          %732 = vmatmul.mubr.bf16.gmra.mrb[0].mxu0 %v435
          %v733 = vpop.f32.mrb[0].mxu0
          %v734 = vadd.f32 0.0, %v733
          %v735 = vpop.f32.mrb[0].mxu0
          %v736 = vadd.f32 0.0, %v735
          %v737 = vpop.f32.mrb[0].mxu0
          %v738 = vadd.f32 0.0, %v737
          %v739 = vpop.f32.mrb[0].mxu0
          %v740 = vadd.f32 0.0, %v739
          %741 = vmatprep.mubr.bf16.mxu0 %v438
          %742 = vmatmul.mubr.bf16.gmra.mrb[0].mxu0 %v437
          %v743 = vpop.f32.mrb[0].mxu0
          %v744 = vadd.f32 0.0, %v743
          %v745 = vpop.f32.mrb[0].mxu0
          %v746 = vadd.f32 0.0, %v745
          %v747 = vpop.f32.mrb[0].mxu0
          %v748 = vadd.f32 0.0, %v747
          %v749 = vpop.f32.mrb[0].mxu0
          %v750 = vadd.f32 0.0, %v749
          %751 = vmatprep.mubr.bf16.mxu0 %v440
          %752 = vmatmul.mubr.bf16.gmra.mrb[0].mxu0 %v439
          %v753 = vpop.f32.mrb[0].mxu0
          %v754 = vadd.f32 0.0, %v753
          %v755 = vpop.f32.mrb[0].mxu0
          %v756 = vadd.f32 0.0, %v755
          %v757 = vpop.f32.mrb[0].mxu0
          %v758 = vadd.f32 0.0, %v757
          %v759 = vpop.f32.mrb[0].mxu0
          %v760 = vadd.f32 0.0, %v759
          %761 = vmatprep.mubr.bf16.mxu0 %v442
          %762 = vmatmul.mubr.bf16.gmra.mrb[0].mxu0 %v441
          %v763 = vpop.f32.mrb[0].mxu0
          %v764 = vadd.f32 0.0, %v763
          %v765 = vpop.f32.mrb[0].mxu0
          %v766 = vadd.f32 0.0, %v765
          %v767 = vpop.f32.mrb[0].mxu0
          %v768 = vadd.f32 0.0, %v767
          %v769 = vpop.f32.mrb[0].mxu0
          %v770 = vadd.f32 0.0, %v769
          %771 = vmatprep.mubr.bf16.mxu0 %v444
          %772 = vmatmul.mubr.bf16.gmra.mrb[0].mxu0 %v443
          %v773 = vpop.f32.mrb[0].mxu0
          %v774 = vadd.f32 0.0, %v773
          %v775 = vpop.f32.mrb[0].mxu0
          %v776 = vadd.f32 0.0, %v775
          %v777 = vpop.f32.mrb[0].mxu0
          %v778 = vadd.f32 0.0, %v777
          %v779 = vpop.f32.mrb[0].mxu0
          %v780 = vadd.f32 0.0, %v779
          %781 = vmatprep.mubr.bf16.mxu0 %v446
          %782 = vmatmul.mubr.bf16.gmra.mrb[0].mxu0 %v445
          %v783 = vpop.f32.mrb[0].mxu0
          %v784 = vadd.f32 0.0, %v783
          %v785 = vpop.f32.mrb[0].mxu0
          %v786 = vadd.f32 0.0, %v785
          %v787 = vpop.f32.mrb[0].mxu0
          %v788 = vadd.f32 0.0, %v787
          %v789 = vpop.f32.mrb[0].mxu0
          %v790 = vadd.f32 0.0, %v789
          %791 = vmatprep.mubr.bf16.mxu0 %v448
          %792 = vmatmul.mubr.bf16.gmra.mrb[0].mxu0 %v447
          %v793 = vpop.f32.mrb[0].mxu0
          %v794 = vadd.f32 0.0, %v793
          %v795 = vpop.f32.mrb[0].mxu0
          %v796 = vadd.f32 0.0, %v795
          %v797 = vpop.f32.mrb[0].mxu0
          %v798 = vadd.f32 0.0, %v797
          %v799 = vpop.f32.mrb[0].mxu0
          %v800 = vadd.f32 0.0, %v799
          %801 = vmatprep.mubr.bf16.mxu0 %v450
          %802 = vmatmul.mubr.bf16.gmra.mrb[0].mxu0 %v449
          %v803 = vpop.f32.mrb[0].mxu0
          %v804 = vadd.f32 0.0, %v803
          %v805 = vpop.f32.mrb[0].mxu0
          %v806 = vadd.f32 0.0, %v805
          %v807 = vpop.f32.mrb[0].mxu0
          %v808 = vadd.f32 0.0, %v807
          %v809 = vpop.f32.mrb[0].mxu0
          %v810 = vadd.f32 0.0, %v809
          %811 = vmatprep.mubr.bf16.mxu0 %v452
          %812 = vmatmul.mubr.bf16.gmra.mrb[0].mxu0 %v451
          %v813 = vpop.f32.mrb[0].mxu0
          %v814 = vadd.f32 0.0, %v813
          %v815 = vpop.f32.mrb[0].mxu0
          %v816 = vadd.f32 0.0, %v815
          %v817 = vpop.f32.mrb[0].mxu0
          %v818 = vadd.f32 0.0, %v817
          %v819 = vpop.f32.mrb[0].mxu0
          %v820 = vadd.f32 0.0, %v819
          %821 = vmatprep.mubr.bf16.mxu0 %v454
          %822 = vmatmul.mubr.bf16.gmra.mrb[0].mxu0 %v453
          %v823 = vpop.f32.mrb[0].mxu0
          %v824 = vadd.f32 0.0, %v823
          %v825 = vpop.f32.mrb[0].mxu0
          %v826 = vadd.f32 0.0, %v825
          %v827 = vpop.f32.mrb[0].mxu0
          %v828 = vadd.f32 0.0, %v827
          %v829 = vpop.f32.mrb[0].mxu0
          %v830 = vadd.f32 0.0, %v829
          %831 = vmatprep.mubr.bf16.mxu0 %v456
          %832 = vmatmul.mubr.bf16.gmra.mrb[0].mxu0 %v455
          %v833 = vpop.f32.mrb[0].mxu0
          %v834 = vadd.f32 0.0, %v833
          %v835 = vpop.f32.mrb[0].mxu0
          %v836 = vadd.f32 0.0, %v835
          %v837 = vpop.f32.mrb[0].mxu0
          %v838 = vadd.f32 0.0, %v837
          %v839 = vpop.f32.mrb[0].mxu0
          %v840 = vadd.f32 0.0, %v839
          %841 = vdwg.mxu0
          %842 = vst [vmem:[#allocation2] sm:$0xff] %v684
          %843 = vst [vmem:[#allocation2 + $0x8] sm:$0xff] %v686
          %844 = vst [vmem:[#allocation2 + $0x10] sm:$0xff] %v688
          %845 = vst [vmem:[#allocation2 + $0x18] sm:$0xff] %v690
          %846 = vst [vmem:[#allocation2 + $0x20] sm:$0xff] %v694
          %847 = vst [vmem:[#allocation2 + $0x28] sm:$0xff] %v696
          %848 = vst [vmem:[#allocation2 + $0x30] sm:$0xff] %v698
          %849 = vst [vmem:[#allocation2 + $0x38] sm:$0xff] %v700
          %850 = vst [vmem:[#allocation2 + $0x40] sm:$0xff] %v704
          %851 = vst [vmem:[#allocation2 + $0x48] sm:$0xff] %v706
          %852 = vst [vmem:[#allocation2 + $0x50] sm:$0xff] %v708
          %853 = vst [vmem:[#allocation2 + $0x58] sm:$0xff] %v710
          %854 = vst [vmem:[#allocation2 + $0x60] sm:$0xff] %v714
          %855 = vst [vmem:[#allocation2 + $0x68] sm:$0xff] %v716
          %856 = vst [vmem:[#allocation2 + $0x70] sm:$0xff] %v718
          %857 = vst [vmem:[#allocation2 + $0x78] sm:$0xff] %v720
          %858 = vst [vmem:[#allocation2 + $0x80] sm:$0xff] %v724
          %859 = vst [vmem:[#allocation2 + $0x88] sm:$0xff] %v726
          %860 = vst [vmem:[#allocation2 + $0x90] sm:$0xff] %v728
          %861 = vst [vmem:[#allocation2 + $0x98] sm:$0xff] %v730
          %862 = vst [vmem:[#allocation2 + $0xa0] sm:$0xff] %v734
          %863 = vst [vmem:[#allocation2 + $0xa8] sm:$0xff] %v736
          %864 = vst [vmem:[#allocation2 + $0xb0] sm:$0xff] %v738
          %865 = vst [vmem:[#allocation2 + $0xb8] sm:$0xff] %v740
          %866 = vst [vmem:[#allocation2 + $0xc0] sm:$0xff] %v744
          %867 = vst [vmem:[#allocation2 + $0xc8] sm:$0xff] %v746
          %868 = vst [vmem:[#allocation2 + $0xd0] sm:$0xff] %v748
          %869 = vst [vmem:[#allocation2 + $0xd8] sm:$0xff] %v750
          %870 = vst [vmem:[#allocation2 + $0xe0] sm:$0xff] %v754
          %871 = vst [vmem:[#allocation2 + $0xe8] sm:$0xff] %v756
          %872 = vst [vmem:[#allocation2 + $0xf0] sm:$0xff] %v758
          %873 = vst [vmem:[#allocation2 + $0xf8] sm:$0xff] %v760
          %874 = vst [vmem:[#allocation2 + $0x100] sm:$0xff] %v764
          %875 = vst [vmem:[#allocation2 + $0x108] sm:$0xff] %v766
          %876 = vst [vmem:[#allocation2 + $0x110] sm:$0xff] %v768
          %877 = vst [vmem:[#allocation2 + $0x118] sm:$0xff] %v770
          %878 = vst [vmem:[#allocation2 + $0x120] sm:$0xff] %v774
          %879 = vst [vmem:[#allocation2 + $0x128] sm:$0xff] %v776
          %880 = vst [vmem:[#allocation2 + $0x130] sm:$0xff] %v778
          %881 = vst [vmem:[#allocation2 + $0x138] sm:$0xff] %v780
          %882 = vst [vmem:[#allocation2 + $0x140] sm:$0xff] %v784
          %883 = vst [vmem:[#allocation2 + $0x148] sm:$0xff] %v786
          %884 = vst [vmem:[#allocation2 + $0x150] sm:$0xff] %v788
          %885 = vst [vmem:[#allocation2 + $0x158] sm:$0xff] %v790
          %886 = vst [vmem:[#allocation2 + $0x160] sm:$0xff] %v794
          %887 = vst [vmem:[#allocation2 + $0x168] sm:$0xff] %v796
          %888 = vst [vmem:[#allocation2 + $0x170] sm:$0xff] %v798
          %889 = vst [vmem:[#allocation2 + $0x178] sm:$0xff] %v800
          %890 = vst [vmem:[#allocation2 + $0x180] sm:$0xff] %v804
          %891 = vst [vmem:[#allocation2 + $0x188] sm:$0xff] %v806
          %892 = vst [vmem:[#allocation2 + $0x190] sm:$0xff] %v808
          %893 = vst [vmem:[#allocation2 + $0x198] sm:$0xff] %v810
          %894 = vst [vmem:[#allocation2 + $0x1a0] sm:$0xff] %v814
          %895 = vst [vmem:[#allocation2 + $0x1a8] sm:$0xff] %v816
          %896 = vst [vmem:[#allocation2 + $0x1b0] sm:$0xff] %v818
          %897 = vst [vmem:[#allocation2 + $0x1b8] sm:$0xff] %v820
          %898 = vst [vmem:[#allocation2 + $0x1c0] sm:$0xff] %v824
          %899 = vst [vmem:[#allocation2 + $0x1c8] sm:$0xff] %v826
          %900 = vst [vmem:[#allocation2 + $0x1d0] sm:$0xff] %v828
          %901 = vst [vmem:[#allocation2 + $0x1d8] sm:$0xff] %v830
          %902 = vst [vmem:[#allocation2 + $0x1e0] sm:$0xff] %v834
          %903 = vst [vmem:[#allocation2 + $0x1e8] sm:$0xff] %v836
          %904 = vst [vmem:[#allocation2 + $0x1f0] sm:$0xff] %v838
          %905 = vst [vmem:[#allocation2 + $0x1f8] sm:$0xff] %v840
        $region56: #{tpu_custom_call.1} parent=39 // pred_fallthru
          _
        %p906 = scmp.eq.s32.totalorder %s21, 1
        // Predicated region
        $region57: #{tpu_custom_call.1} parent=39 // pred_check
          %p907 = pneg %p906
        $region58: #{tpu_custom_call.1} parent=39 // pred_check_branch
          %909 = sbr.rel (%p907) target = $region60
        $region59: #{tpu_custom_call.1} parent=39 // pred_region
          %v910 = vld [vmem:[#allocation8] sm:$0xff]
          %v911 = vld [vmem:[#allocation8 + $0x8] sm:$0xff]
          %v912 = vld [vmem:[#allocation8 + $0x10] sm:$0xff]
          %v913 = vld [vmem:[#allocation8 + $0x18] sm:$0xff]
          %v914 = vld [vmem:[#allocation8 + $0x20] sm:$0xff]
          %v915 = vld [vmem:[#allocation8 + $0x28] sm:$0xff]
          %v916 = vld [vmem:[#allocation8 + $0x30] sm:$0xff]
          %v917 = vld [vmem:[#allocation8 + $0x38] sm:$0xff]
          %v918 = vld [vmem:[#allocation8 + $0x40] sm:$0xff]
          %v919 = vld [vmem:[#allocation8 + $0x48] sm:$0xff]
          %v920 = vld [vmem:[#allocation8 + $0x50] sm:$0xff]
          %v921 = vld [vmem:[#allocation8 + $0x58] sm:$0xff]
          %v922 = vld [vmem:[#allocation8 + $0x60] sm:$0xff]
          %v923 = vld [vmem:[#allocation8 + $0x68] sm:$0xff]
          %v924 = vld [vmem:[#allocation8 + $0x70] sm:$0xff]
          %v925 = vld [vmem:[#allocation8 + $0x78] sm:$0xff]
          %v926 = vld [vmem:[#allocation8 + $0x80] sm:$0xff]
          %v927 = vld [vmem:[#allocation8 + $0x88] sm:$0xff]
          %v928 = vld [vmem:[#allocation8 + $0x90] sm:$0xff]
          %v929 = vld [vmem:[#allocation8 + $0x98] sm:$0xff]
          %v930 = vld [vmem:[#allocation8 + $0xa0] sm:$0xff]
          %v931 = vld [vmem:[#allocation8 + $0xa8] sm:$0xff]
          %v932 = vld [vmem:[#allocation8 + $0xb0] sm:$0xff]
          %v933 = vld [vmem:[#allocation8 + $0xb8] sm:$0xff]
          %v934 = vld [vmem:[#allocation8 + $0xc0] sm:$0xff]
          %v935 = vld [vmem:[#allocation8 + $0xc8] sm:$0xff]
          %v936 = vld [vmem:[#allocation8 + $0xd0] sm:$0xff]
          %v937 = vld [vmem:[#allocation8 + $0xd8] sm:$0xff]
          %v938 = vld [vmem:[#allocation8 + $0xe0] sm:$0xff]
          %v939 = vld [vmem:[#allocation8 + $0xe8] sm:$0xff]
          %v940 = vld [vmem:[#allocation8 + $0xf0] sm:$0xff]
          %v941 = vld [vmem:[#allocation8 + $0xf8] sm:$0xff]
          %v942 = vld [vmem:[%s234] sm:$0xff]
          %v943 = vld [vmem:[%s234 + $0x8] sm:$0xff]
          %v944 = vld [vmem:[%s234 + $0x10] sm:$0xff]
          %v945 = vld [vmem:[%s234 + $0x18] sm:$0xff]
          %v946 = vld [vmem:[%s234 + $0x20] sm:$0xff]
          %v947 = vld [vmem:[%s234 + $0x28] sm:$0xff]
          %v948 = vld [vmem:[%s234 + $0x30] sm:$0xff]
          %v949 = vld [vmem:[%s234 + $0x38] sm:$0xff]
          %v950 = vld [vmem:[%s234 + $0x40] sm:$0xff]
          %v951 = vld [vmem:[%s234 + $0x48] sm:$0xff]
          %v952 = vld [vmem:[%s234 + $0x50] sm:$0xff]
          %v953 = vld [vmem:[%s234 + $0x58] sm:$0xff]
          %v954 = vld [vmem:[%s234 + $0x60] sm:$0xff]
          %v955 = vld [vmem:[%s234 + $0x68] sm:$0xff]
          %v956 = vld [vmem:[%s234 + $0x70] sm:$0xff]
          %v957 = vld [vmem:[%s234 + $0x78] sm:$0xff]
          %v958 = vld [vmem:[%s234 + $0x80] sm:$0xff]
          %v959 = vld [vmem:[%s234 + $0x88] sm:$0xff]
          %v960 = vld [vmem:[%s234 + $0x90] sm:$0xff]
          %v961 = vld [vmem:[%s234 + $0x98] sm:$0xff]
          %v962 = vld [vmem:[%s234 + $0xa0] sm:$0xff]
          %v963 = vld [vmem:[%s234 + $0xa8] sm:$0xff]
          %v964 = vld [vmem:[%s234 + $0xb0] sm:$0xff]
          %v965 = vld [vmem:[%s234 + $0xb8] sm:$0xff]
          %v966 = vld [vmem:[%s234 + $0xc0] sm:$0xff]
          %v967 = vld [vmem:[%s234 + $0xc8] sm:$0xff]
          %v968 = vld [vmem:[%s234 + $0xd0] sm:$0xff]
          %v969 = vld [vmem:[%s234 + $0xd8] sm:$0xff]
          %v970 = vld [vmem:[%s234 + $0xe0] sm:$0xff]
          %v971 = vld [vmem:[%s234 + $0xe8] sm:$0xff]
          %v972 = vld [vmem:[%s234 + $0xf0] sm:$0xff]
          %v973 = vld [vmem:[%s234 + $0xf8] sm:$0xff]
          %v1006 = vunpack.c.l.b16 %v910
          %v1007 = vunpack.c.h.b16 %v910
          %v1008 = vunpack.c.l.b16 %v911
          %v1009 = vunpack.c.h.b16 %v911
          %v1010 = vunpack.c.l.b16 %v912
          %v1011 = vunpack.c.h.b16 %v912
          %v1012 = vunpack.c.l.b16 %v913
          %v1013 = vunpack.c.h.b16 %v913
          %v1014 = vunpack.c.l.b16 %v914
          %v1015 = vunpack.c.h.b16 %v914
          %v1016 = vunpack.c.l.b16 %v915
          %v1017 = vunpack.c.h.b16 %v915
          %v1018 = vunpack.c.l.b16 %v916
          %v1019 = vunpack.c.h.b16 %v916
          %v1020 = vunpack.c.l.b16 %v917
          %v1021 = vunpack.c.h.b16 %v917
          %v1022 = vunpack.c.l.b16 %v918
          %v1023 = vunpack.c.h.b16 %v918
          %v1024 = vunpack.c.l.b16 %v919
          %v1025 = vunpack.c.h.b16 %v919
          %v1026 = vunpack.c.l.b16 %v920
          %v1027 = vunpack.c.h.b16 %v920
          %v1028 = vunpack.c.l.b16 %v921
          %v1029 = vunpack.c.h.b16 %v921
          %v1030 = vunpack.c.l.b16 %v922
          %v1031 = vunpack.c.h.b16 %v922
          %v1032 = vunpack.c.l.b16 %v923
          %v1033 = vunpack.c.h.b16 %v923
          %v1034 = vunpack.c.l.b16 %v924
          %v1035 = vunpack.c.h.b16 %v924
          %v1036 = vunpack.c.l.b16 %v925
          %v1037 = vunpack.c.h.b16 %v925
          %v1038 = vunpack.c.l.b16 %v926
          %v1039 = vunpack.c.h.b16 %v926
          %v1040 = vunpack.c.l.b16 %v927
          %v1041 = vunpack.c.h.b16 %v927
          %v1042 = vunpack.c.l.b16 %v928
          %v1043 = vunpack.c.h.b16 %v928
          %v1044 = vunpack.c.l.b16 %v929
          %v1045 = vunpack.c.h.b16 %v929
          %v1046 = vunpack.c.l.b16 %v930
          %v1047 = vunpack.c.h.b16 %v930
          %v1048 = vunpack.c.l.b16 %v931
          %v1049 = vunpack.c.h.b16 %v931
          %v1050 = vunpack.c.l.b16 %v932
          %v1051 = vunpack.c.h.b16 %v932
          %v1052 = vunpack.c.l.b16 %v933
          %v1053 = vunpack.c.h.b16 %v933
          %v1054 = vunpack.c.l.b16 %v934
          %v1055 = vunpack.c.h.b16 %v934
          %v1056 = vunpack.c.l.b16 %v935
          %v1057 = vunpack.c.h.b16 %v935
          %v1058 = vunpack.c.l.b16 %v936
          %v1059 = vunpack.c.h.b16 %v936
          %v1060 = vunpack.c.l.b16 %v937
          %v1061 = vunpack.c.h.b16 %v937
          %v1062 = vunpack.c.l.b16 %v938
          %v1063 = vunpack.c.h.b16 %v938
          %v1064 = vunpack.c.l.b16 %v939
          %v1065 = vunpack.c.h.b16 %v939
          %v1066 = vunpack.c.l.b16 %v940
          %v1067 = vunpack.c.h.b16 %v940
          %v1068 = vunpack.c.l.b16 %v941
          %v1069 = vunpack.c.h.b16 %v941
          %v1070 = vpack.c.b16 %v1008, %v1006
          %v1071 = vpack.c.b16 %v1009, %v1007
          %v1072 = vpack.c.b16 %v1012, %v1010
          %v1073 = vpack.c.b16 %v1013, %v1011
          %v1074 = vpack.c.b16 %v1016, %v1014
          %v1075 = vpack.c.b16 %v1017, %v1015
          %v1076 = vpack.c.b16 %v1020, %v1018
          %v1077 = vpack.c.b16 %v1021, %v1019
          %v1078 = vpack.c.b16 %v1024, %v1022
          %v1079 = vpack.c.b16 %v1025, %v1023
          %v1080 = vpack.c.b16 %v1028, %v1026
          %v1081 = vpack.c.b16 %v1029, %v1027
          %v1082 = vpack.c.b16 %v1032, %v1030
          %v1083 = vpack.c.b16 %v1033, %v1031
          %v1084 = vpack.c.b16 %v1036, %v1034
          %v1085 = vpack.c.b16 %v1037, %v1035
          %v1086 = vpack.c.b16 %v1040, %v1038
          %v1087 = vpack.c.b16 %v1041, %v1039
          %v1088 = vpack.c.b16 %v1044, %v1042
          %v1089 = vpack.c.b16 %v1045, %v1043
          %v1090 = vpack.c.b16 %v1048, %v1046
          %v1091 = vpack.c.b16 %v1049, %v1047
          %v1092 = vpack.c.b16 %v1052, %v1050
          %v1093 = vpack.c.b16 %v1053, %v1051
          %v1094 = vpack.c.b16 %v1056, %v1054
          %v1095 = vpack.c.b16 %v1057, %v1055
          %v1096 = vpack.c.b16 %v1060, %v1058
          %v1097 = vpack.c.b16 %v1061, %v1059
          %v1098 = vpack.c.b16 %v1064, %v1062
          %v1099 = vpack.c.b16 %v1065, %v1063
          %v1100 = vpack.c.b16 %v1068, %v1066
          %v1101 = vpack.c.b16 %v1069, %v1067
          %v1166 = vunpack.c.l.b16 %v942
          %v1167 = vunpack.c.h.b16 %v942
          %v1168 = vunpack.c.l.b16 %v943
          %v1169 = vunpack.c.h.b16 %v943
          %v1170 = vunpack.c.l.b16 %v944
          %v1171 = vunpack.c.h.b16 %v944
          %v1172 = vunpack.c.l.b16 %v945
          %v1173 = vunpack.c.h.b16 %v945
          %v1174 = vunpack.c.l.b16 %v946
          %v1175 = vunpack.c.h.b16 %v946
          %v1176 = vunpack.c.l.b16 %v947
          %v1177 = vunpack.c.h.b16 %v947
          %v1178 = vunpack.c.l.b16 %v948
          %v1179 = vunpack.c.h.b16 %v948
          %v1180 = vunpack.c.l.b16 %v949
          %v1181 = vunpack.c.h.b16 %v949
          %v1182 = vunpack.c.l.b16 %v950
          %v1183 = vunpack.c.h.b16 %v950
          %v1184 = vunpack.c.l.b16 %v951
          %v1185 = vunpack.c.h.b16 %v951
          %v1186 = vunpack.c.l.b16 %v952
          %v1187 = vunpack.c.h.b16 %v952
          %v1188 = vunpack.c.l.b16 %v953
          %v1189 = vunpack.c.h.b16 %v953
          %v1190 = vunpack.c.l.b16 %v954
          %v1191 = vunpack.c.h.b16 %v954
          %v1192 = vunpack.c.l.b16 %v955
          %v1193 = vunpack.c.h.b16 %v955
          %v1194 = vunpack.c.l.b16 %v956
          %v1195 = vunpack.c.h.b16 %v956
          %v1196 = vunpack.c.l.b16 %v957
          %v1197 = vunpack.c.h.b16 %v957
          %v1198 = vunpack.c.l.b16 %v958
          %v1199 = vunpack.c.h.b16 %v958
          %v1200 = vunpack.c.l.b16 %v959
          %v1201 = vunpack.c.h.b16 %v959
          %v1202 = vunpack.c.l.b16 %v960
          %v1203 = vunpack.c.h.b16 %v960
          %v1204 = vunpack.c.l.b16 %v961
          %v1205 = vunpack.c.h.b16 %v961
          %v1206 = vunpack.c.l.b16 %v962
          %v1207 = vunpack.c.h.b16 %v962
          %v1208 = vunpack.c.l.b16 %v963
          %v1209 = vunpack.c.h.b16 %v963
          %v1210 = vunpack.c.l.b16 %v964
          %v1211 = vunpack.c.h.b16 %v964
          %v1212 = vunpack.c.l.b16 %v965
          %v1213 = vunpack.c.h.b16 %v965
          %v1214 = vunpack.c.l.b16 %v966
          %v1215 = vunpack.c.h.b16 %v966
          %v1216 = vunpack.c.l.b16 %v967
          %v1217 = vunpack.c.h.b16 %v967
          %v1218 = vunpack.c.l.b16 %v968
          %v1219 = vunpack.c.h.b16 %v968
          %v1220 = vunpack.c.l.b16 %v969
          %v1221 = vunpack.c.h.b16 %v969
          %v1222 = vunpack.c.l.b16 %v970
          %v1223 = vunpack.c.h.b16 %v970
          %v1224 = vunpack.c.l.b16 %v971
          %v1225 = vunpack.c.h.b16 %v971
          %v1226 = vunpack.c.l.b16 %v972
          %v1227 = vunpack.c.h.b16 %v972
          %v1228 = vunpack.c.l.b16 %v973
          %v1229 = vunpack.c.h.b16 %v973
          %v1230 = vpack.c.b16 %v1168, %v1166
          %v1231 = vpack.c.b16 %v1169, %v1167
          %v1232 = vpack.c.b16 %v1172, %v1170
          %v1233 = vpack.c.b16 %v1173, %v1171
          %v1234 = vpack.c.b16 %v1176, %v1174
          %v1235 = vpack.c.b16 %v1177, %v1175
          %v1236 = vpack.c.b16 %v1180, %v1178
          %v1237 = vpack.c.b16 %v1181, %v1179
          %v1238 = vpack.c.b16 %v1184, %v1182
          %v1239 = vpack.c.b16 %v1185, %v1183
          %v1240 = vpack.c.b16 %v1188, %v1186
          %v1241 = vpack.c.b16 %v1189, %v1187
          %v1242 = vpack.c.b16 %v1192, %v1190
          %v1243 = vpack.c.b16 %v1193, %v1191
          %v1244 = vpack.c.b16 %v1196, %v1194
          %v1245 = vpack.c.b16 %v1197, %v1195
          %v1246 = vpack.c.b16 %v1200, %v1198
          %v1247 = vpack.c.b16 %v1201, %v1199
          %v1248 = vpack.c.b16 %v1204, %v1202
          %v1249 = vpack.c.b16 %v1205, %v1203
          %v1250 = vpack.c.b16 %v1208, %v1206
          %v1251 = vpack.c.b16 %v1209, %v1207
          %v1252 = vpack.c.b16 %v1212, %v1210
          %v1253 = vpack.c.b16 %v1213, %v1211
          %v1254 = vpack.c.b16 %v1216, %v1214
          %v1255 = vpack.c.b16 %v1217, %v1215
          %v1256 = vpack.c.b16 %v1220, %v1218
          %v1257 = vpack.c.b16 %v1221, %v1219
          %v1258 = vpack.c.b16 %v1224, %v1222
          %v1259 = vpack.c.b16 %v1225, %v1223
          %v1260 = vpack.c.b16 %v1228, %v1226
          %v1261 = vpack.c.b16 %v1229, %v1227
          %1294 = vmatprep.subr.bf16.mxu0 %v1231
          %1295 = vmatpush1.bf16.msra.mxu0 %v1230
          %1296 = vmatprep.subr.bf16.mxu0 %v1233
          %1297 = vmatpush1.bf16.msra.mxu0 %v1232
          %1298 = vmatprep.subr.bf16.mxu0 %v1235
          %1299 = vmatpush1.bf16.msra.mxu0 %v1234
          %1300 = vmatprep.subr.bf16.mxu0 %v1237
          %1301 = vmatpush1.bf16.msra.mxu0 %v1236
          %1302 = vmatprep.subr.bf16.mxu0 %v1239
          %1303 = vmatpush1.bf16.msra.mxu0 %v1238
          %1304 = vmatprep.subr.bf16.mxu0 %v1241
          %1305 = vmatpush1.bf16.msra.mxu0 %v1240
          %1306 = vmatprep.subr.bf16.mxu0 %v1243
          %1307 = vmatpush1.bf16.msra.mxu0 %v1242
          %1308 = vmatprep.subr.bf16.mxu0 %v1245
          %1309 = vmatpush1.bf16.msra.mxu0 %v1244
          %1310 = vmatprep.subr.bf16.mxu0 %v1247
          %1311 = vmatpush1.bf16.msra.mxu0 %v1246
          %1312 = vmatprep.subr.bf16.mxu0 %v1249
          %1313 = vmatpush1.bf16.msra.mxu0 %v1248
          %1314 = vmatprep.subr.bf16.mxu0 %v1251
          %1315 = vmatpush1.bf16.msra.mxu0 %v1250
          %1316 = vmatprep.subr.bf16.mxu0 %v1253
          %1317 = vmatpush1.bf16.msra.mxu0 %v1252
          %1318 = vmatprep.subr.bf16.mxu0 %v1255
          %1319 = vmatpush1.bf16.msra.mxu0 %v1254
          %1320 = vmatprep.subr.bf16.mxu0 %v1257
          %1321 = vmatpush1.bf16.msra.mxu0 %v1256
          %1322 = vmatprep.subr.bf16.mxu0 %v1259
          %1323 = vmatpush1.bf16.msra.mxu0 %v1258
          %1324 = vmatprep.subr.bf16.mxu0 %v1261
          %1325 = vmatpush1.bf16.msra.mxu0 %v1260
          %1326 = vmatprep.mubr.bf16.mxu0 %v1071
          %1327 = vmatmul.mubr.bf16.gmra.mrb[0].mxu0 %v1070
          %v1328 = vpop.f32.mrb[0].mxu0
          %v1329 = vadd.f32 0.0, %v1328
          %v1330 = vpop.f32.mrb[0].mxu0
          %v1331 = vadd.f32 0.0, %v1330
          %v1332 = vpop.f32.mrb[0].mxu0
          %v1333 = vadd.f32 0.0, %v1332
          %v1334 = vpop.f32.mrb[0].mxu0
          %v1335 = vadd.f32 0.0, %v1334
          %1336 = vmatprep.mubr.bf16.mxu0 %v1073
          %1337 = vmatmul.mubr.bf16.gmra.mrb[0].mxu0 %v1072
          %v1338 = vpop.f32.mrb[0].mxu0
          %v1339 = vadd.f32 0.0, %v1338
          %v1340 = vpop.f32.mrb[0].mxu0
          %v1341 = vadd.f32 0.0, %v1340
          %v1342 = vpop.f32.mrb[0].mxu0
          %v1343 = vadd.f32 0.0, %v1342
          %v1344 = vpop.f32.mrb[0].mxu0
          %v1345 = vadd.f32 0.0, %v1344
          %1346 = vmatprep.mubr.bf16.mxu0 %v1075
          %1347 = vmatmul.mubr.bf16.gmra.mrb[0].mxu0 %v1074
          %v1348 = vpop.f32.mrb[0].mxu0
          %v1349 = vadd.f32 0.0, %v1348
          %v1350 = vpop.f32.mrb[0].mxu0
          %v1351 = vadd.f32 0.0, %v1350
          %v1352 = vpop.f32.mrb[0].mxu0
          %v1353 = vadd.f32 0.0, %v1352
          %v1354 = vpop.f32.mrb[0].mxu0
          %v1355 = vadd.f32 0.0, %v1354
          %1356 = vmatprep.mubr.bf16.mxu0 %v1077
          %1357 = vmatmul.mubr.bf16.gmra.mrb[0].mxu0 %v1076
          %v1358 = vpop.f32.mrb[0].mxu0
          %v1359 = vadd.f32 0.0, %v1358
          %v1360 = vpop.f32.mrb[0].mxu0
          %v1361 = vadd.f32 0.0, %v1360
          %v1362 = vpop.f32.mrb[0].mxu0
          %v1363 = vadd.f32 0.0, %v1362
          %v1364 = vpop.f32.mrb[0].mxu0
          %v1365 = vadd.f32 0.0, %v1364
          %1366 = vmatprep.mubr.bf16.mxu0 %v1079
          %1367 = vmatmul.mubr.bf16.gmra.mrb[0].mxu0 %v1078
          %v1368 = vpop.f32.mrb[0].mxu0
          %v1369 = vadd.f32 0.0, %v1368
          %v1370 = vpop.f32.mrb[0].mxu0
          %v1371 = vadd.f32 0.0, %v1370
          %v1372 = vpop.f32.mrb[0].mxu0
          %v1373 = vadd.f32 0.0, %v1372
          %v1374 = vpop.f32.mrb[0].mxu0
          %v1375 = vadd.f32 0.0, %v1374
          %1376 = vmatprep.mubr.bf16.mxu0 %v1081
          %1377 = vmatmul.mubr.bf16.gmra.mrb[0].mxu0 %v1080
          %v1378 = vpop.f32.mrb[0].mxu0
          %v1379 = vadd.f32 0.0, %v1378
          %v1380 = vpop.f32.mrb[0].mxu0
          %v1381 = vadd.f32 0.0, %v1380
          %v1382 = vpop.f32.mrb[0].mxu0
          %v1383 = vadd.f32 0.0, %v1382
          %v1384 = vpop.f32.mrb[0].mxu0
          %v1385 = vadd.f32 0.0, %v1384
          %1386 = vmatprep.mubr.bf16.mxu0 %v1083
          %1387 = vmatmul.mubr.bf16.gmra.mrb[0].mxu0 %v1082
          %v1388 = vpop.f32.mrb[0].mxu0
          %v1389 = vadd.f32 0.0, %v1388
          %v1390 = vpop.f32.mrb[0].mxu0
          %v1391 = vadd.f32 0.0, %v1390
          %v1392 = vpop.f32.mrb[0].mxu0
          %v1393 = vadd.f32 0.0, %v1392
          %v1394 = vpop.f32.mrb[0].mxu0
          %v1395 = vadd.f32 0.0, %v1394
          %1396 = vmatprep.mubr.bf16.mxu0 %v1085
          %1397 = vmatmul.mubr.bf16.gmra.mrb[0].mxu0 %v1084
          %v1398 = vpop.f32.mrb[0].mxu0
          %v1399 = vadd.f32 0.0, %v1398
          %v1400 = vpop.f32.mrb[0].mxu0
          %v1401 = vadd.f32 0.0, %v1400
          %v1402 = vpop.f32.mrb[0].mxu0
          %v1403 = vadd.f32 0.0, %v1402
          %v1404 = vpop.f32.mrb[0].mxu0
          %v1405 = vadd.f32 0.0, %v1404
          %1406 = vmatprep.mubr.bf16.mxu0 %v1087
          %1407 = vmatmul.mubr.bf16.gmra.mrb[0].mxu0 %v1086
          %v1408 = vpop.f32.mrb[0].mxu0
          %v1409 = vadd.f32 0.0, %v1408
          %v1410 = vpop.f32.mrb[0].mxu0
          %v1411 = vadd.f32 0.0, %v1410
          %v1412 = vpop.f32.mrb[0].mxu0
          %v1413 = vadd.f32 0.0, %v1412
          %v1414 = vpop.f32.mrb[0].mxu0
          %v1415 = vadd.f32 0.0, %v1414
          %1416 = vmatprep.mubr.bf16.mxu0 %v1089
          %1417 = vmatmul.mubr.bf16.gmra.mrb[0].mxu0 %v1088
          %v1418 = vpop.f32.mrb[0].mxu0
          %v1419 = vadd.f32 0.0, %v1418
          %v1420 = vpop.f32.mrb[0].mxu0
          %v1421 = vadd.f32 0.0, %v1420
          %v1422 = vpop.f32.mrb[0].mxu0
          %v1423 = vadd.f32 0.0, %v1422
          %v1424 = vpop.f32.mrb[0].mxu0
          %v1425 = vadd.f32 0.0, %v1424
          %1426 = vmatprep.mubr.bf16.mxu0 %v1091
          %1427 = vmatmul.mubr.bf16.gmra.mrb[0].mxu0 %v1090
          %v1428 = vpop.f32.mrb[0].mxu0
          %v1429 = vadd.f32 0.0, %v1428
          %v1430 = vpop.f32.mrb[0].mxu0
          %v1431 = vadd.f32 0.0, %v1430
          %v1432 = vpop.f32.mrb[0].mxu0
          %v1433 = vadd.f32 0.0, %v1432
          %v1434 = vpop.f32.mrb[0].mxu0
          %v1435 = vadd.f32 0.0, %v1434
          %1436 = vmatprep.mubr.bf16.mxu0 %v1093
          %1437 = vmatmul.mubr.bf16.gmra.mrb[0].mxu0 %v1092
          %v1438 = vpop.f32.mrb[0].mxu0
          %v1439 = vadd.f32 0.0, %v1438
          %v1440 = vpop.f32.mrb[0].mxu0
          %v1441 = vadd.f32 0.0, %v1440
          %v1442 = vpop.f32.mrb[0].mxu0
          %v1443 = vadd.f32 0.0, %v1442
          %v1444 = vpop.f32.mrb[0].mxu0
          %v1445 = vadd.f32 0.0, %v1444
          %1446 = vmatprep.mubr.bf16.mxu0 %v1095
          %1447 = vmatmul.mubr.bf16.gmra.mrb[0].mxu0 %v1094
          %v1448 = vpop.f32.mrb[0].mxu0
          %v1449 = vadd.f32 0.0, %v1448
          %v1450 = vpop.f32.mrb[0].mxu0
          %v1451 = vadd.f32 0.0, %v1450
          %v1452 = vpop.f32.mrb[0].mxu0
          %v1453 = vadd.f32 0.0, %v1452
          %v1454 = vpop.f32.mrb[0].mxu0
          %v1455 = vadd.f32 0.0, %v1454
          %1456 = vmatprep.mubr.bf16.mxu0 %v1097
          %1457 = vmatmul.mubr.bf16.gmra.mrb[0].mxu0 %v1096
          %v1458 = vpop.f32.mrb[0].mxu0
          %v1459 = vadd.f32 0.0, %v1458
          %v1460 = vpop.f32.mrb[0].mxu0
          %v1461 = vadd.f32 0.0, %v1460
          %v1462 = vpop.f32.mrb[0].mxu0
          %v1463 = vadd.f32 0.0, %v1462
          %v1464 = vpop.f32.mrb[0].mxu0
          %v1465 = vadd.f32 0.0, %v1464
          %1466 = vmatprep.mubr.bf16.mxu0 %v1099
          %1467 = vmatmul.mubr.bf16.gmra.mrb[0].mxu0 %v1098
          %v1468 = vpop.f32.mrb[0].mxu0
          %v1469 = vadd.f32 0.0, %v1468
          %v1470 = vpop.f32.mrb[0].mxu0
          %v1471 = vadd.f32 0.0, %v1470
          %v1472 = vpop.f32.mrb[0].mxu0
          %v1473 = vadd.f32 0.0, %v1472
          %v1474 = vpop.f32.mrb[0].mxu0
          %v1475 = vadd.f32 0.0, %v1474
          %1476 = vmatprep.mubr.bf16.mxu0 %v1101
          %1477 = vmatmul.mubr.bf16.gmra.mrb[0].mxu0 %v1100
          %v1478 = vpop.f32.mrb[0].mxu0
          %v1479 = vadd.f32 0.0, %v1478
          %v1480 = vpop.f32.mrb[0].mxu0
          %v1481 = vadd.f32 0.0, %v1480
          %v1482 = vpop.f32.mrb[0].mxu0
          %v1483 = vadd.f32 0.0, %v1482
          %v1484 = vpop.f32.mrb[0].mxu0
          %v1485 = vadd.f32 0.0, %v1484
          %1486 = vdwg.mxu0
          %1487 = vst [vmem:[#allocation3] sm:$0xff] %v1329
          %1488 = vst [vmem:[#allocation3 + $0x8] sm:$0xff] %v1331
          %1489 = vst [vmem:[#allocation3 + $0x10] sm:$0xff] %v1333
          %1490 = vst [vmem:[#allocation3 + $0x18] sm:$0xff] %v1335
          %1491 = vst [vmem:[#allocation3 + $0x20] sm:$0xff] %v1339
          %1492 = vst [vmem:[#allocation3 + $0x28] sm:$0xff] %v1341
          %1493 = vst [vmem:[#allocation3 + $0x30] sm:$0xff] %v1343
          %1494 = vst [vmem:[#allocation3 + $0x38] sm:$0xff] %v1345
          %1495 = vst [vmem:[#allocation3 + $0x40] sm:$0xff] %v1349
          %1496 = vst [vmem:[#allocation3 + $0x48] sm:$0xff] %v1351
          %1497 = vst [vmem:[#allocation3 + $0x50] sm:$0xff] %v1353
          %1498 = vst [vmem:[#allocation3 + $0x58] sm:$0xff] %v1355
          %1499 = vst [vmem:[#allocation3 + $0x60] sm:$0xff] %v1359
          %1500 = vst [vmem:[#allocation3 + $0x68] sm:$0xff] %v1361
          %1501 = vst [vmem:[#allocation3 + $0x70] sm:$0xff] %v1363
          %1502 = vst [vmem:[#allocation3 + $0x78] sm:$0xff] %v1365
          %1503 = vst [vmem:[#allocation3 + $0x80] sm:$0xff] %v1369
          %1504 = vst [vmem:[#allocation3 + $0x88] sm:$0xff] %v1371
          %1505 = vst [vmem:[#allocation3 + $0x90] sm:$0xff] %v1373
          %1506 = vst [vmem:[#allocation3 + $0x98] sm:$0xff] %v1375
          %1507 = vst [vmem:[#allocation3 + $0xa0] sm:$0xff] %v1379
          %1508 = vst [vmem:[#allocation3 + $0xa8] sm:$0xff] %v1381
          %1509 = vst [vmem:[#allocation3 + $0xb0] sm:$0xff] %v1383
          %1510 = vst [vmem:[#allocation3 + $0xb8] sm:$0xff] %v1385
          %1511 = vst [vmem:[#allocation3 + $0xc0] sm:$0xff] %v1389
          %1512 = vst [vmem:[#allocation3 + $0xc8] sm:$0xff] %v1391
          %1513 = vst [vmem:[#allocation3 + $0xd0] sm:$0xff] %v1393
          %1514 = vst [vmem:[#allocation3 + $0xd8] sm:$0xff] %v1395
          %1515 = vst [vmem:[#allocation3 + $0xe0] sm:$0xff] %v1399
          %1516 = vst [vmem:[#allocation3 + $0xe8] sm:$0xff] %v1401
          %1517 = vst [vmem:[#allocation3 + $0xf0] sm:$0xff] %v1403
          %1518 = vst [vmem:[#allocation3 + $0xf8] sm:$0xff] %v1405
          %1519 = vst [vmem:[#allocation3 + $0x100] sm:$0xff] %v1409
          %1520 = vst [vmem:[#allocation3 + $0x108] sm:$0xff] %v1411
          %1521 = vst [vmem:[#allocation3 + $0x110] sm:$0xff] %v1413
          %1522 = vst [vmem:[#allocation3 + $0x118] sm:$0xff] %v1415
          %1523 = vst [vmem:[#allocation3 + $0x120] sm:$0xff] %v1419
          %1524 = vst [vmem:[#allocation3 + $0x128] sm:$0xff] %v1421
          %1525 = vst [vmem:[#allocation3 + $0x130] sm:$0xff] %v1423
          %1526 = vst [vmem:[#allocation3 + $0x138] sm:$0xff] %v1425
          %1527 = vst [vmem:[#allocation3 + $0x140] sm:$0xff] %v1429
          %1528 = vst [vmem:[#allocation3 + $0x148] sm:$0xff] %v1431
          %1529 = vst [vmem:[#allocation3 + $0x150] sm:$0xff] %v1433
          %1530 = vst [vmem:[#allocation3 + $0x158] sm:$0xff] %v1435
          %1531 = vst [vmem:[#allocation3 + $0x160] sm:$0xff] %v1439
          %1532 = vst [vmem:[#allocation3 + $0x168] sm:$0xff] %v1441
          %1533 = vst [vmem:[#allocation3 + $0x170] sm:$0xff] %v1443
          %1534 = vst [vmem:[#allocation3 + $0x178] sm:$0xff] %v1445
          %1535 = vst [vmem:[#allocation3 + $0x180] sm:$0xff] %v1449
          %1536 = vst [vmem:[#allocation3 + $0x188] sm:$0xff] %v1451
          %1537 = vst [vmem:[#allocation3 + $0x190] sm:$0xff] %v1453
          %1538 = vst [vmem:[#allocation3 + $0x198] sm:$0xff] %v1455
          %1539 = vst [vmem:[#allocation3 + $0x1a0] sm:$0xff] %v1459
          %1540 = vst [vmem:[#allocation3 + $0x1a8] sm:$0xff] %v1461
          %1541 = vst [vmem:[#allocation3 + $0x1b0] sm:$0xff] %v1463
          %1542 = vst [vmem:[#allocation3 + $0x1b8] sm:$0xff] %v1465
          %1543 = vst [vmem:[#allocation3 + $0x1c0] sm:$0xff] %v1469
          %1544 = vst [vmem:[#allocation3 + $0x1c8] sm:$0xff] %v1471
          %1545 = vst [vmem:[#allocation3 + $0x1d0] sm:$0xff] %v1473
          %1546 = vst [vmem:[#allocation3 + $0x1d8] sm:$0xff] %v1475
          %1547 = vst [vmem:[#allocation3 + $0x1e0] sm:$0xff] %v1479
          %1548 = vst [vmem:[#allocation3 + $0x1e8] sm:$0xff] %v1481
          %1549 = vst [vmem:[#allocation3 + $0x1f0] sm:$0xff] %v1483
          %1550 = vst [vmem:[#allocation3 + $0x1f8] sm:$0xff] %v1485
        $region60: #{tpu_custom_call.1} parent=39 // pred_fallthru
          _
        %p1551 = scmp.eq.s32.totalorder %s21, 2
        // Predicated region
        $region61: #{tpu_custom_call.1} parent=39 // pred_check
          %p1552 = pneg %p1551
        $region62: #{tpu_custom_call.1} parent=39 // pred_check_branch
          %1554 = sbr.rel (%p1552) target = $region64
        $region63: #{tpu_custom_call.1} parent=39 // pred_region
          %v1555 = vld [vmem:[#allocation8] sm:$0xff]
          %v1556 = vld [vmem:[#allocation8 + $0x8] sm:$0xff]
          %v1557 = vld [vmem:[#allocation8 + $0x10] sm:$0xff]
          %v1558 = vld [vmem:[#allocation8 + $0x18] sm:$0xff]
          %v1559 = vld [vmem:[#allocation8 + $0x20] sm:$0xff]
          %v1560 = vld [vmem:[#allocation8 + $0x28] sm:$0xff]
          %v1561 = vld [vmem:[#allocation8 + $0x30] sm:$0xff]
          %v1562 = vld [vmem:[#allocation8 + $0x38] sm:$0xff]
          %v1563 = vld [vmem:[#allocation8 + $0x40] sm:$0xff]
          %v1564 = vld [vmem:[#allocation8 + $0x48] sm:$0xff]
          %v1565 = vld [vmem:[#allocation8 + $0x50] sm:$0xff]
          %v1566 = vld [vmem:[#allocation8 + $0x58] sm:$0xff]
          %v1567 = vld [vmem:[#allocation8 + $0x60] sm:$0xff]
          %v1568 = vld [vmem:[#allocation8 + $0x68] sm:$0xff]
          %v1569 = vld [vmem:[#allocation8 + $0x70] sm:$0xff]
          %v1570 = vld [vmem:[#allocation8 + $0x78] sm:$0xff]
          %v1571 = vld [vmem:[#allocation8 + $0x80] sm:$0xff]
          %v1572 = vld [vmem:[#allocation8 + $0x88] sm:$0xff]
          %v1573 = vld [vmem:[#allocation8 + $0x90] sm:$0xff]
          %v1574 = vld [vmem:[#allocation8 + $0x98] sm:$0xff]
          %v1575 = vld [vmem:[#allocation8 + $0xa0] sm:$0xff]
          %v1576 = vld [vmem:[#allocation8 + $0xa8] sm:$0xff]
          %v1577 = vld [vmem:[#allocation8 + $0xb0] sm:$0xff]
          %v1578 = vld [vmem:[#allocation8 + $0xb8] sm:$0xff]
          %v1579 = vld [vmem:[#allocation8 + $0xc0] sm:$0xff]
          %v1580 = vld [vmem:[#allocation8 + $0xc8] sm:$0xff]
          %v1581 = vld [vmem:[#allocation8 + $0xd0] sm:$0xff]
          %v1582 = vld [vmem:[#allocation8 + $0xd8] sm:$0xff]
          %v1583 = vld [vmem:[#allocation8 + $0xe0] sm:$0xff]
          %v1584 = vld [vmem:[#allocation8 + $0xe8] sm:$0xff]
          %v1585 = vld [vmem:[#allocation8 + $0xf0] sm:$0xff]
          %v1586 = vld [vmem:[#allocation8 + $0xf8] sm:$0xff]
          %v1587 = vld [vmem:[%s234] sm:$0xff]
          %v1588 = vld [vmem:[%s234 + $0x8] sm:$0xff]
          %v1589 = vld [vmem:[%s234 + $0x10] sm:$0xff]
          %v1590 = vld [vmem:[%s234 + $0x18] sm:$0xff]
          %v1591 = vld [vmem:[%s234 + $0x20] sm:$0xff]
          %v1592 = vld [vmem:[%s234 + $0x28] sm:$0xff]
          %v1593 = vld [vmem:[%s234 + $0x30] sm:$0xff]
          %v1594 = vld [vmem:[%s234 + $0x38] sm:$0xff]
          %v1595 = vld [vmem:[%s234 + $0x40] sm:$0xff]
          %v1596 = vld [vmem:[%s234 + $0x48] sm:$0xff]
          %v1597 = vld [vmem:[%s234 + $0x50] sm:$0xff]
          %v1598 = vld [vmem:[%s234 + $0x58] sm:$0xff]
          %v1599 = vld [vmem:[%s234 + $0x60] sm:$0xff]
          %v1600 = vld [vmem:[%s234 + $0x68] sm:$0xff]
          %v1601 = vld [vmem:[%s234 + $0x70] sm:$0xff]
          %v1602 = vld [vmem:[%s234 + $0x78] sm:$0xff]
          %v1603 = vld [vmem:[%s234 + $0x80] sm:$0xff]
          %v1604 = vld [vmem:[%s234 + $0x88] sm:$0xff]
          %v1605 = vld [vmem:[%s234 + $0x90] sm:$0xff]
          %v1606 = vld [vmem:[%s234 + $0x98] sm:$0xff]
          %v1607 = vld [vmem:[%s234 + $0xa0] sm:$0xff]
          %v1608 = vld [vmem:[%s234 + $0xa8] sm:$0xff]
          %v1609 = vld [vmem:[%s234 + $0xb0] sm:$0xff]
          %v1610 = vld [vmem:[%s234 + $0xb8] sm:$0xff]
          %v1611 = vld [vmem:[%s234 + $0xc0] sm:$0xff]
          %v1612 = vld [vmem:[%s234 + $0xc8] sm:$0xff]
          %v1613 = vld [vmem:[%s234 + $0xd0] sm:$0xff]
          %v1614 = vld [vmem:[%s234 + $0xd8] sm:$0xff]
          %v1615 = vld [vmem:[%s234 + $0xe0] sm:$0xff]
          %v1616 = vld [vmem:[%s234 + $0xe8] sm:$0xff]
          %v1617 = vld [vmem:[%s234 + $0xf0] sm:$0xff]
          %v1618 = vld [vmem:[%s234 + $0xf8] sm:$0xff]
          %v1651 = vunpack.c.l.b16 %v1555
          %v1652 = vunpack.c.h.b16 %v1555
          %v1653 = vunpack.c.l.b16 %v1556
          %v1654 = vunpack.c.h.b16 %v1556
          %v1655 = vunpack.c.l.b16 %v1557
          %v1656 = vunpack.c.h.b16 %v1557
          %v1657 = vunpack.c.l.b16 %v1558
          %v1658 = vunpack.c.h.b16 %v1558
          %v1659 = vunpack.c.l.b16 %v1559
          %v1660 = vunpack.c.h.b16 %v1559
          %v1661 = vunpack.c.l.b16 %v1560
          %v1662 = vunpack.c.h.b16 %v1560
          %v1663 = vunpack.c.l.b16 %v1561
          %v1664 = vunpack.c.h.b16 %v1561
          %v1665 = vunpack.c.l.b16 %v1562
          %v1666 = vunpack.c.h.b16 %v1562
          %v1667 = vunpack.c.l.b16 %v1563
          %v1668 = vunpack.c.h.b16 %v1563
          %v1669 = vunpack.c.l.b16 %v1564
          %v1670 = vunpack.c.h.b16 %v1564
          %v1671 = vunpack.c.l.b16 %v1565
          %v1672 = vunpack.c.h.b16 %v1565
          %v1673 = vunpack.c.l.b16 %v1566
          %v1674 = vunpack.c.h.b16 %v1566
          %v1675 = vunpack.c.l.b16 %v1567
          %v1676 = vunpack.c.h.b16 %v1567
          %v1677 = vunpack.c.l.b16 %v1568
          %v1678 = vunpack.c.h.b16 %v1568
          %v1679 = vunpack.c.l.b16 %v1569
          %v1680 = vunpack.c.h.b16 %v1569
          %v1681 = vunpack.c.l.b16 %v1570
          %v1682 = vunpack.c.h.b16 %v1570
          %v1683 = vunpack.c.l.b16 %v1571
          %v1684 = vunpack.c.h.b16 %v1571
          %v1685 = vunpack.c.l.b16 %v1572
          %v1686 = vunpack.c.h.b16 %v1572
          %v1687 = vunpack.c.l.b16 %v1573
          %v1688 = vunpack.c.h.b16 %v1573
          %v1689 = vunpack.c.l.b16 %v1574
          %v1690 = vunpack.c.h.b16 %v1574
          %v1691 = vunpack.c.l.b16 %v1575
          %v1692 = vunpack.c.h.b16 %v1575
          %v1693 = vunpack.c.l.b16 %v1576
          %v1694 = vunpack.c.h.b16 %v1576
          %v1695 = vunpack.c.l.b16 %v1577
          %v1696 = vunpack.c.h.b16 %v1577
          %v1697 = vunpack.c.l.b16 %v1578
          %v1698 = vunpack.c.h.b16 %v1578
          %v1699 = vunpack.c.l.b16 %v1579
          %v1700 = vunpack.c.h.b16 %v1579
          %v1701 = vunpack.c.l.b16 %v1580
          %v1702 = vunpack.c.h.b16 %v1580
          %v1703 = vunpack.c.l.b16 %v1581
          %v1704 = vunpack.c.h.b16 %v1581
          %v1705 = vunpack.c.l.b16 %v1582
          %v1706 = vunpack.c.h.b16 %v1582
          %v1707 = vunpack.c.l.b16 %v1583
          %v1708 = vunpack.c.h.b16 %v1583
          %v1709 = vunpack.c.l.b16 %v1584
          %v1710 = vunpack.c.h.b16 %v1584
          %v1711 = vunpack.c.l.b16 %v1585
          %v1712 = vunpack.c.h.b16 %v1585
          %v1713 = vunpack.c.l.b16 %v1586
          %v1714 = vunpack.c.h.b16 %v1586
          %v1715 = vpack.c.b16 %v1653, %v1651
          %v1716 = vpack.c.b16 %v1654, %v1652
          %v1717 = vpack.c.b16 %v1657, %v1655
          %v1718 = vpack.c.b16 %v1658, %v1656
          %v1719 = vpack.c.b16 %v1661, %v1659
          %v1720 = vpack.c.b16 %v1662, %v1660
          %v1721 = vpack.c.b16 %v1665, %v1663
          %v1722 = vpack.c.b16 %v1666, %v1664
          %v1723 = vpack.c.b16 %v1669, %v1667
          %v1724 = vpack.c.b16 %v1670, %v1668
          %v1725 = vpack.c.b16 %v1673, %v1671
          %v1726 = vpack.c.b16 %v1674, %v1672
          %v1727 = vpack.c.b16 %v1677, %v1675
          %v1728 = vpack.c.b16 %v1678, %v1676
          %v1729 = vpack.c.b16 %v1681, %v1679
          %v1730 = vpack.c.b16 %v1682, %v1680
          %v1731 = vpack.c.b16 %v1685, %v1683
          %v1732 = vpack.c.b16 %v1686, %v1684
          %v1733 = vpack.c.b16 %v1689, %v1687
          %v1734 = vpack.c.b16 %v1690, %v1688
          %v1735 = vpack.c.b16 %v1693, %v1691
          %v1736 = vpack.c.b16 %v1694, %v1692
          %v1737 = vpack.c.b16 %v1697, %v1695
          %v1738 = vpack.c.b16 %v1698, %v1696
          %v1739 = vpack.c.b16 %v1701, %v1699
          %v1740 = vpack.c.b16 %v1702, %v1700
          %v1741 = vpack.c.b16 %v1705, %v1703
          %v1742 = vpack.c.b16 %v1706, %v1704
          %v1743 = vpack.c.b16 %v1709, %v1707
          %v1744 = vpack.c.b16 %v1710, %v1708
          %v1745 = vpack.c.b16 %v1713, %v1711
          %v1746 = vpack.c.b16 %v1714, %v1712
          %v1811 = vunpack.c.l.b16 %v1587
          %v1812 = vunpack.c.h.b16 %v1587
          %v1813 = vunpack.c.l.b16 %v1588
          %v1814 = vunpack.c.h.b16 %v1588
          %v1815 = vunpack.c.l.b16 %v1589
          %v1816 = vunpack.c.h.b16 %v1589
          %v1817 = vunpack.c.l.b16 %v1590
          %v1818 = vunpack.c.h.b16 %v1590
          %v1819 = vunpack.c.l.b16 %v1591
          %v1820 = vunpack.c.h.b16 %v1591
          %v1821 = vunpack.c.l.b16 %v1592
          %v1822 = vunpack.c.h.b16 %v1592
          %v1823 = vunpack.c.l.b16 %v1593
          %v1824 = vunpack.c.h.b16 %v1593
          %v1825 = vunpack.c.l.b16 %v1594
          %v1826 = vunpack.c.h.b16 %v1594
          %v1827 = vunpack.c.l.b16 %v1595
          %v1828 = vunpack.c.h.b16 %v1595
          %v1829 = vunpack.c.l.b16 %v1596
          %v1830 = vunpack.c.h.b16 %v1596
          %v1831 = vunpack.c.l.b16 %v1597
          %v1832 = vunpack.c.h.b16 %v1597
          %v1833 = vunpack.c.l.b16 %v1598
          %v1834 = vunpack.c.h.b16 %v1598
          %v1835 = vunpack.c.l.b16 %v1599
          %v1836 = vunpack.c.h.b16 %v1599
          %v1837 = vunpack.c.l.b16 %v1600
          %v1838 = vunpack.c.h.b16 %v1600
          %v1839 = vunpack.c.l.b16 %v1601
          %v1840 = vunpack.c.h.b16 %v1601
          %v1841 = vunpack.c.l.b16 %v1602
          %v1842 = vunpack.c.h.b16 %v1602
          %v1843 = vunpack.c.l.b16 %v1603
          %v1844 = vunpack.c.h.b16 %v1603
          %v1845 = vunpack.c.l.b16 %v1604
          %v1846 = vunpack.c.h.b16 %v1604
          %v1847 = vunpack.c.l.b16 %v1605
          %v1848 = vunpack.c.h.b16 %v1605
          %v1849 = vunpack.c.l.b16 %v1606
          %v1850 = vunpack.c.h.b16 %v1606
          %v1851 = vunpack.c.l.b16 %v1607
          %v1852 = vunpack.c.h.b16 %v1607
          %v1853 = vunpack.c.l.b16 %v1608
          %v1854 = vunpack.c.h.b16 %v1608
          %v1855 = vunpack.c.l.b16 %v1609
          %v1856 = vunpack.c.h.b16 %v1609
          %v1857 = vunpack.c.l.b16 %v1610
          %v1858 = vunpack.c.h.b16 %v1610
          %v1859 = vunpack.c.l.b16 %v1611
          %v1860 = vunpack.c.h.b16 %v1611
          %v1861 = vunpack.c.l.b16 %v1612
          %v1862 = vunpack.c.h.b16 %v1612
          %v1863 = vunpack.c.l.b16 %v1613
          %v1864 = vunpack.c.h.b16 %v1613
          %v1865 = vunpack.c.l.b16 %v1614
          %v1866 = vunpack.c.h.b16 %v1614
          %v1867 = vunpack.c.l.b16 %v1615
          %v1868 = vunpack.c.h.b16 %v1615
          %v1869 = vunpack.c.l.b16 %v1616
          %v1870 = vunpack.c.h.b16 %v1616
          %v1871 = vunpack.c.l.b16 %v1617
          %v1872 = vunpack.c.h.b16 %v1617
          %v1873 = vunpack.c.l.b16 %v1618
          %v1874 = vunpack.c.h.b16 %v1618
          %v1875 = vpack.c.b16 %v1813, %v1811
          %v1876 = vpack.c.b16 %v1814, %v1812
          %v1877 = vpack.c.b16 %v1817, %v1815
          %v1878 = vpack.c.b16 %v1818, %v1816
          %v1879 = vpack.c.b16 %v1821, %v1819
          %v1880 = vpack.c.b16 %v1822, %v1820
          %v1881 = vpack.c.b16 %v1825, %v1823
          %v1882 = vpack.c.b16 %v1826, %v1824
          %v1883 = vpack.c.b16 %v1829, %v1827
          %v1884 = vpack.c.b16 %v1830, %v1828
          %v1885 = vpack.c.b16 %v1833, %v1831
          %v1886 = vpack.c.b16 %v1834, %v1832
          %v1887 = vpack.c.b16 %v1837, %v1835
          %v1888 = vpack.c.b16 %v1838, %v1836
          %v1889 = vpack.c.b16 %v1841, %v1839
          %v1890 = vpack.c.b16 %v1842, %v1840
          %v1891 = vpack.c.b16 %v1845, %v1843
          %v1892 = vpack.c.b16 %v1846, %v1844
          %v1893 = vpack.c.b16 %v1849, %v1847
          %v1894 = vpack.c.b16 %v1850, %v1848
          %v1895 = vpack.c.b16 %v1853, %v1851
          %v1896 = vpack.c.b16 %v1854, %v1852
          %v1897 = vpack.c.b16 %v1857, %v1855
          %v1898 = vpack.c.b16 %v1858, %v1856
          %v1899 = vpack.c.b16 %v1861, %v1859
          %v1900 = vpack.c.b16 %v1862, %v1860
          %v1901 = vpack.c.b16 %v1865, %v1863
          %v1902 = vpack.c.b16 %v1866, %v1864
          %v1903 = vpack.c.b16 %v1869, %v1867
          %v1904 = vpack.c.b16 %v1870, %v1868
          %v1905 = vpack.c.b16 %v1873, %v1871
          %v1906 = vpack.c.b16 %v1874, %v1872
          %1939 = vmatprep.subr.bf16.mxu0 %v1876
          %1940 = vmatpush1.bf16.msra.mxu0 %v1875
          %1941 = vmatprep.subr.bf16.mxu0 %v1878
          %1942 = vmatpush1.bf16.msra.mxu0 %v1877
          %1943 = vmatprep.subr.bf16.mxu0 %v1880
          %1944 = vmatpush1.bf16.msra.mxu0 %v1879
          %1945 = vmatprep.subr.bf16.mxu0 %v1882
          %1946 = vmatpush1.bf16.msra.mxu0 %v1881
          %1947 = vmatprep.subr.bf16.mxu0 %v1884
          %1948 = vmatpush1.bf16.msra.mxu0 %v1883
          %1949 = vmatprep.subr.bf16.mxu0 %v1886
          %1950 = vmatpush1.bf16.msra.mxu0 %v1885
          %1951 = vmatprep.subr.bf16.mxu0 %v1888
          %1952 = vmatpush1.bf16.msra.mxu0 %v1887
          %1953 = vmatprep.subr.bf16.mxu0 %v1890
          %1954 = vmatpush1.bf16.msra.mxu0 %v1889
          %1955 = vmatprep.subr.bf16.mxu0 %v1892
          %1956 = vmatpush1.bf16.msra.mxu0 %v1891
          %1957 = vmatprep.subr.bf16.mxu0 %v1894
          %1958 = vmatpush1.bf16.msra.mxu0 %v1893
          %1959 = vmatprep.subr.bf16.mxu0 %v1896
          %1960 = vmatpush1.bf16.msra.mxu0 %v1895
          %1961 = vmatprep.subr.bf16.mxu0 %v1898
          %1962 = vmatpush1.bf16.msra.mxu0 %v1897
          %1963 = vmatprep.subr.bf16.mxu0 %v1900
          %1964 = vmatpush1.bf16.msra.mxu0 %v1899
          %1965 = vmatprep.subr.bf16.mxu0 %v1902
          %1966 = vmatpush1.bf16.msra.mxu0 %v1901
          %1967 = vmatprep.subr.bf16.mxu0 %v1904
          %1968 = vmatpush1.bf16.msra.mxu0 %v1903
          %1969 = vmatprep.subr.bf16.mxu0 %v1906
          %1970 = vmatpush1.bf16.msra.mxu0 %v1905
          %1971 = vmatprep.mubr.bf16.mxu0 %v1716
          %1972 = vmatmul.mubr.bf16.gmra.mrb[0].mxu0 %v1715
          %v1973 = vpop.f32.mrb[0].mxu0
          %v1974 = vadd.f32 0.0, %v1973
          %v1975 = vpop.f32.mrb[0].mxu0
          %v1976 = vadd.f32 0.0, %v1975
          %v1977 = vpop.f32.mrb[0].mxu0
          %v1978 = vadd.f32 0.0, %v1977
          %v1979 = vpop.f32.mrb[0].mxu0
          %v1980 = vadd.f32 0.0, %v1979
          %1981 = vmatprep.mubr.bf16.mxu0 %v1718
          %1982 = vmatmul.mubr.bf16.gmra.mrb[0].mxu0 %v1717
          %v1983 = vpop.f32.mrb[0].mxu0
          %v1984 = vadd.f32 0.0, %v1983
          %v1985 = vpop.f32.mrb[0].mxu0
          %v1986 = vadd.f32 0.0, %v1985
          %v1987 = vpop.f32.mrb[0].mxu0
          %v1988 = vadd.f32 0.0, %v1987
          %v1989 = vpop.f32.mrb[0].mxu0
          %v1990 = vadd.f32 0.0, %v1989
          %1991 = vmatprep.mubr.bf16.mxu0 %v1720
          %1992 = vmatmul.mubr.bf16.gmra.mrb[0].mxu0 %v1719
          %v1993 = vpop.f32.mrb[0].mxu0
          %v1994 = vadd.f32 0.0, %v1993
          %v1995 = vpop.f32.mrb[0].mxu0
          %v1996 = vadd.f32 0.0, %v1995
          %v1997 = vpop.f32.mrb[0].mxu0
          %v1998 = vadd.f32 0.0, %v1997
          %v1999 = vpop.f32.mrb[0].mxu0
          %v2000 = vadd.f32 0.0, %v1999
          %2001 = vmatprep.mubr.bf16.mxu0 %v1722
          %2002 = vmatmul.mubr.bf16.gmra.mrb[0].mxu0 %v1721
          %v2003 = vpop.f32.mrb[0].mxu0
          %v2004 = vadd.f32 0.0, %v2003
          %v2005 = vpop.f32.mrb[0].mxu0
          %v2006 = vadd.f32 0.0, %v2005
          %v2007 = vpop.f32.mrb[0].mxu0
          %v2008 = vadd.f32 0.0, %v2007
          %v2009 = vpop.f32.mrb[0].mxu0
          %v2010 = vadd.f32 0.0, %v2009
          %2011 = vmatprep.mubr.bf16.mxu0 %v1724
          %2012 = vmatmul.mubr.bf16.gmra.mrb[0].mxu0 %v1723
          %v2013 = vpop.f32.mrb[0].mxu0
          %v2014 = vadd.f32 0.0, %v2013
          %v2015 = vpop.f32.mrb[0].mxu0
          %v2016 = vadd.f32 0.0, %v2015
          %v2017 = vpop.f32.mrb[0].mxu0
          %v2018 = vadd.f32 0.0, %v2017
          %v2019 = vpop.f32.mrb[0].mxu0
          %v2020 = vadd.f32 0.0, %v2019
          %2021 = vmatprep.mubr.bf16.mxu0 %v1726
          %2022 = vmatmul.mubr.bf16.gmra.mrb[0].mxu0 %v1725
          %v2023 = vpop.f32.mrb[0].mxu0
          %v2024 = vadd.f32 0.0, %v2023
          %v2025 = vpop.f32.mrb[0].mxu0
          %v2026 = vadd.f32 0.0, %v2025
          %v2027 = vpop.f32.mrb[0].mxu0
          %v2028 = vadd.f32 0.0, %v2027
          %v2029 = vpop.f32.mrb[0].mxu0
          %v2030 = vadd.f32 0.0, %v2029
          %2031 = vmatprep.mubr.bf16.mxu0 %v1728
          %2032 = vmatmul.mubr.bf16.gmra.mrb[0].mxu0 %v1727
          %v2033 = vpop.f32.mrb[0].mxu0
          %v2034 = vadd.f32 0.0, %v2033
          %v2035 = vpop.f32.mrb[0].mxu0
          %v2036 = vadd.f32 0.0, %v2035
          %v2037 = vpop.f32.mrb[0].mxu0
          %v2038 = vadd.f32 0.0, %v2037
          %v2039 = vpop.f32.mrb[0].mxu0
          %v2040 = vadd.f32 0.0, %v2039
          %2041 = vmatprep.mubr.bf16.mxu0 %v1730
          %2042 = vmatmul.mubr.bf16.gmra.mrb[0].mxu0 %v1729
          %v2043 = vpop.f32.mrb[0].mxu0
          %v2044 = vadd.f32 0.0, %v2043
          %v2045 = vpop.f32.mrb[0].mxu0
          %v2046 = vadd.f32 0.0, %v2045
          %v2047 = vpop.f32.mrb[0].mxu0
          %v2048 = vadd.f32 0.0, %v2047
          %v2049 = vpop.f32.mrb[0].mxu0
          %v2050 = vadd.f32 0.0, %v2049
          %2051 = vmatprep.mubr.bf16.mxu0 %v1732
          %2052 = vmatmul.mubr.bf16.gmra.mrb[0].mxu0 %v1731
          %v2053 = vpop.f32.mrb[0].mxu0
          %v2054 = vadd.f32 0.0, %v2053
          %v2055 = vpop.f32.mrb[0].mxu0
          %v2056 = vadd.f32 0.0, %v2055
          %v2057 = vpop.f32.mrb[0].mxu0
          %v2058 = vadd.f32 0.0, %v2057
          %v2059 = vpop.f32.mrb[0].mxu0
          %v2060 = vadd.f32 0.0, %v2059
          %2061 = vmatprep.mubr.bf16.mxu0 %v1734
          %2062 = vmatmul.mubr.bf16.gmra.mrb[0].mxu0 %v1733
          %v2063 = vpop.f32.mrb[0].mxu0
          %v2064 = vadd.f32 0.0, %v2063
          %v2065 = vpop.f32.mrb[0].mxu0
          %v2066 = vadd.f32 0.0, %v2065
          %v2067 = vpop.f32.mrb[0].mxu0
          %v2068 = vadd.f32 0.0, %v2067
          %v2069 = vpop.f32.mrb[0].mxu0
          %v2070 = vadd.f32 0.0, %v2069
          %2071 = vmatprep.mubr.bf16.mxu0 %v1736
          %2072 = vmatmul.mubr.bf16.gmra.mrb[0].mxu0 %v1735
          %v2073 = vpop.f32.mrb[0].mxu0
          %v2074 = vadd.f32 0.0, %v2073
          %v2075 = vpop.f32.mrb[0].mxu0
          %v2076 = vadd.f32 0.0, %v2075
          %v2077 = vpop.f32.mrb[0].mxu0
          %v2078 = vadd.f32 0.0, %v2077
          %v2079 = vpop.f32.mrb[0].mxu0
          %v2080 = vadd.f32 0.0, %v2079
          %2081 = vmatprep.mubr.bf16.mxu0 %v1738
          %2082 = vmatmul.mubr.bf16.gmra.mrb[0].mxu0 %v1737
          %v2083 = vpop.f32.mrb[0].mxu0
          %v2084 = vadd.f32 0.0, %v2083
          %v2085 = vpop.f32.mrb[0].mxu0
          %v2086 = vadd.f32 0.0, %v2085
          %v2087 = vpop.f32.mrb[0].mxu0
          %v2088 = vadd.f32 0.0, %v2087
          %v2089 = vpop.f32.mrb[0].mxu0
          %v2090 = vadd.f32 0.0, %v2089
          %2091 = vmatprep.mubr.bf16.mxu0 %v1740
          %2092 = vmatmul.mubr.bf16.gmra.mrb[0].mxu0 %v1739
          %v2093 = vpop.f32.mrb[0].mxu0
          %v2094 = vadd.f32 0.0, %v2093
          %v2095 = vpop.f32.mrb[0].mxu0
          %v2096 = vadd.f32 0.0, %v2095
          %v2097 = vpop.f32.mrb[0].mxu0
          %v2098 = vadd.f32 0.0, %v2097
          %v2099 = vpop.f32.mrb[0].mxu0
          %v2100 = vadd.f32 0.0, %v2099
          %2101 = vmatprep.mubr.bf16.mxu0 %v1742
          %2102 = vmatmul.mubr.bf16.gmra.mrb[0].mxu0 %v1741
          %v2103 = vpop.f32.mrb[0].mxu0
          %v2104 = vadd.f32 0.0, %v2103
          %v2105 = vpop.f32.mrb[0].mxu0
          %v2106 = vadd.f32 0.0, %v2105
          %v2107 = vpop.f32.mrb[0].mxu0
          %v2108 = vadd.f32 0.0, %v2107
          %v2109 = vpop.f32.mrb[0].mxu0
          %v2110 = vadd.f32 0.0, %v2109
          %2111 = vmatprep.mubr.bf16.mxu0 %v1744
          %2112 = vmatmul.mubr.bf16.gmra.mrb[0].mxu0 %v1743
          %v2113 = vpop.f32.mrb[0].mxu0
          %v2114 = vadd.f32 0.0, %v2113
          %v2115 = vpop.f32.mrb[0].mxu0
          %v2116 = vadd.f32 0.0, %v2115
          %v2117 = vpop.f32.mrb[0].mxu0
          %v2118 = vadd.f32 0.0, %v2117
          %v2119 = vpop.f32.mrb[0].mxu0
          %v2120 = vadd.f32 0.0, %v2119
          %2121 = vmatprep.mubr.bf16.mxu0 %v1746
          %2122 = vmatmul.mubr.bf16.gmra.mrb[0].mxu0 %v1745
          %v2123 = vpop.f32.mrb[0].mxu0
          %v2124 = vadd.f32 0.0, %v2123
          %v2125 = vpop.f32.mrb[0].mxu0
          %v2126 = vadd.f32 0.0, %v2125
          %v2127 = vpop.f32.mrb[0].mxu0
          %v2128 = vadd.f32 0.0, %v2127
          %v2129 = vpop.f32.mrb[0].mxu0
          %v2130 = vadd.f32 0.0, %v2129
          %2131 = vdwg.mxu0
          %v2132 = vld [vmem:[#allocation13] sm:$0xff]
          %v2133 = vld [vmem:[#allocation13 + $0x8] sm:$0xff]
          %v2134 = vld [vmem:[#allocation13 + $0x10] sm:$0xff]
          %v2135 = vld [vmem:[#allocation13 + $0x18] sm:$0xff]
          %v2136 = vld [vmem:[#allocation13 + $0x20] sm:$0xff]
          %v2137 = vld [vmem:[#allocation13 + $0x28] sm:$0xff]
          %v2138 = vld [vmem:[#allocation13 + $0x30] sm:$0xff]
          %v2139 = vld [vmem:[#allocation13 + $0x38] sm:$0xff]
          %v2140 = vld [vmem:[#allocation13 + $0x40] sm:$0xff]
          %v2141 = vld [vmem:[#allocation13 + $0x48] sm:$0xff]
          %v2142 = vld [vmem:[#allocation13 + $0x50] sm:$0xff]
          %v2143 = vld [vmem:[#allocation13 + $0x58] sm:$0xff]
          %v2144 = vld [vmem:[#allocation13 + $0x60] sm:$0xff]
          %v2145 = vld [vmem:[#allocation13 + $0x68] sm:$0xff]
          %v2146 = vld [vmem:[#allocation13 + $0x70] sm:$0xff]
          %v2147 = vld [vmem:[#allocation13 + $0x78] sm:$0xff]
          %v2148 = vld [vmem:[#allocation13 + $0x80] sm:$0xff]
          %v2149 = vld [vmem:[#allocation13 + $0x88] sm:$0xff]
          %v2150 = vld [vmem:[#allocation13 + $0x90] sm:$0xff]
          %v2151 = vld [vmem:[#allocation13 + $0x98] sm:$0xff]
          %v2152 = vld [vmem:[#allocation13 + $0xa0] sm:$0xff]
          %v2153 = vld [vmem:[#allocation13 + $0xa8] sm:$0xff]
          %v2154 = vld [vmem:[#allocation13 + $0xb0] sm:$0xff]
          %v2155 = vld [vmem:[#allocation13 + $0xb8] sm:$0xff]
          %v2156 = vld [vmem:[#allocation13 + $0xc0] sm:$0xff]
          %v2157 = vld [vmem:[#allocation13 + $0xc8] sm:$0xff]
          %v2158 = vld [vmem:[#allocation13 + $0xd0] sm:$0xff]
          %v2159 = vld [vmem:[#allocation13 + $0xd8] sm:$0xff]
          %v2160 = vld [vmem:[#allocation13 + $0xe0] sm:$0xff]
          %v2161 = vld [vmem:[#allocation13 + $0xe8] sm:$0xff]
          %v2162 = vld [vmem:[#allocation13 + $0xf0] sm:$0xff]
          %v2163 = vld [vmem:[#allocation13 + $0xf8] sm:$0xff]
          %v2164 = vpack.c.bf16 %v1978, %v1974
          %v2165 = vpack.c.bf16 %v1980, %v1976
          %v2166 = vpack.c.bf16 %v1988, %v1984
          %v2167 = vpack.c.bf16 %v1990, %v1986
          %v2168 = vpack.c.bf16 %v1998, %v1994
          %v2169 = vpack.c.bf16 %v2000, %v1996
          %v2170 = vpack.c.bf16 %v2008, %v2004
          %v2171 = vpack.c.bf16 %v2010, %v2006
          %v2172 = vpack.c.bf16 %v2018, %v2014
          %v2173 = vpack.c.bf16 %v2020, %v2016
          %v2174 = vpack.c.bf16 %v2028, %v2024
          %v2175 = vpack.c.bf16 %v2030, %v2026
          %v2176 = vpack.c.bf16 %v2038, %v2034
          %v2177 = vpack.c.bf16 %v2040, %v2036
          %v2178 = vpack.c.bf16 %v2048, %v2044
          %v2179 = vpack.c.bf16 %v2050, %v2046
          %v2180 = vpack.c.bf16 %v2058, %v2054
          %v2181 = vpack.c.bf16 %v2060, %v2056
          %v2182 = vpack.c.bf16 %v2068, %v2064
          %v2183 = vpack.c.bf16 %v2070, %v2066
          %v2184 = vpack.c.bf16 %v2078, %v2074
          %v2185 = vpack.c.bf16 %v2080, %v2076
          %v2186 = vpack.c.bf16 %v2088, %v2084
          %v2187 = vpack.c.bf16 %v2090, %v2086
          %v2188 = vpack.c.bf16 %v2098, %v2094
          %v2189 = vpack.c.bf16 %v2100, %v2096
          %v2190 = vpack.c.bf16 %v2108, %v2104
          %v2191 = vpack.c.bf16 %v2110, %v2106
          %v2192 = vpack.c.bf16 %v2118, %v2114
          %v2193 = vpack.c.bf16 %v2120, %v2116
          %v2194 = vpack.c.bf16 %v2128, %v2124
          %v2195 = vpack.c.bf16 %v2130, %v2126
          %v2228 = vunpack.c.l.b16 %v2132
          %v2229 = vunpack.c.h.b16 %v2132
          %v2230 = vunpack.c.l.b16 %v2133
          %v2231 = vunpack.c.h.b16 %v2133
          %v2232 = vunpack.c.l.b16 %v2134
          %v2233 = vunpack.c.h.b16 %v2134
          %v2234 = vunpack.c.l.b16 %v2135
          %v2235 = vunpack.c.h.b16 %v2135
          %v2236 = vunpack.c.l.b16 %v2136
          %v2237 = vunpack.c.h.b16 %v2136
          %v2238 = vunpack.c.l.b16 %v2137
          %v2239 = vunpack.c.h.b16 %v2137
          %v2240 = vunpack.c.l.b16 %v2138
          %v2241 = vunpack.c.h.b16 %v2138
          %v2242 = vunpack.c.l.b16 %v2139
          %v2243 = vunpack.c.h.b16 %v2139
          %v2244 = vunpack.c.l.b16 %v2140
          %v2245 = vunpack.c.h.b16 %v2140
          %v2246 = vunpack.c.l.b16 %v2141
          %v2247 = vunpack.c.h.b16 %v2141
          %v2248 = vunpack.c.l.b16 %v2142
          %v2249 = vunpack.c.h.b16 %v2142
          %v2250 = vunpack.c.l.b16 %v2143
          %v2251 = vunpack.c.h.b16 %v2143
          %v2252 = vunpack.c.l.b16 %v2144
          %v2253 = vunpack.c.h.b16 %v2144
          %v2254 = vunpack.c.l.b16 %v2145
          %v2255 = vunpack.c.h.b16 %v2145
          %v2256 = vunpack.c.l.b16 %v2146
          %v2257 = vunpack.c.h.b16 %v2146
          %v2258 = vunpack.c.l.b16 %v2147
          %v2259 = vunpack.c.h.b16 %v2147
          %v2260 = vunpack.c.l.b16 %v2148
          %v2261 = vunpack.c.h.b16 %v2148
          %v2262 = vunpack.c.l.b16 %v2149
          %v2263 = vunpack.c.h.b16 %v2149
          %v2264 = vunpack.c.l.b16 %v2150
          %v2265 = vunpack.c.h.b16 %v2150
          %v2266 = vunpack.c.l.b16 %v2151
          %v2267 = vunpack.c.h.b16 %v2151
          %v2268 = vunpack.c.l.b16 %v2152
          %v2269 = vunpack.c.h.b16 %v2152
          %v2270 = vunpack.c.l.b16 %v2153
          %v2271 = vunpack.c.h.b16 %v2153
          %v2272 = vunpack.c.l.b16 %v2154
          %v2273 = vunpack.c.h.b16 %v2154
          %v2274 = vunpack.c.l.b16 %v2155
          %v2275 = vunpack.c.h.b16 %v2155
          %v2276 = vunpack.c.l.b16 %v2156
          %v2277 = vunpack.c.h.b16 %v2156
          %v2278 = vunpack.c.l.b16 %v2157
          %v2279 = vunpack.c.h.b16 %v2157
          %v2280 = vunpack.c.l.b16 %v2158
          %v2281 = vunpack.c.h.b16 %v2158
          %v2282 = vunpack.c.l.b16 %v2159
          %v2283 = vunpack.c.h.b16 %v2159
          %v2284 = vunpack.c.l.b16 %v2160
          %v2285 = vunpack.c.h.b16 %v2160
          %v2286 = vunpack.c.l.b16 %v2161
          %v2287 = vunpack.c.h.b16 %v2161
          %v2288 = vunpack.c.l.b16 %v2162
          %v2289 = vunpack.c.h.b16 %v2162
          %v2290 = vunpack.c.l.b16 %v2163
          %v2291 = vunpack.c.h.b16 %v2163
          %v2292 = vpack.c.b16 %v2230, %v2228
          %v2293 = vpack.c.b16 %v2231, %v2229
          %v2294 = vpack.c.b16 %v2234, %v2232
          %v2295 = vpack.c.b16 %v2235, %v2233
          %v2296 = vpack.c.b16 %v2238, %v2236
          %v2297 = vpack.c.b16 %v2239, %v2237
          %v2298 = vpack.c.b16 %v2242, %v2240
          %v2299 = vpack.c.b16 %v2243, %v2241
          %v2300 = vpack.c.b16 %v2246, %v2244
          %v2301 = vpack.c.b16 %v2247, %v2245
          %v2302 = vpack.c.b16 %v2250, %v2248
          %v2303 = vpack.c.b16 %v2251, %v2249
          %v2304 = vpack.c.b16 %v2254, %v2252
          %v2305 = vpack.c.b16 %v2255, %v2253
          %v2306 = vpack.c.b16 %v2258, %v2256
          %v2307 = vpack.c.b16 %v2259, %v2257
          %v2308 = vpack.c.b16 %v2262, %v2260
          %v2309 = vpack.c.b16 %v2263, %v2261
          %v2310 = vpack.c.b16 %v2266, %v2264
          %v2311 = vpack.c.b16 %v2267, %v2265
          %v2312 = vpack.c.b16 %v2270, %v2268
          %v2313 = vpack.c.b16 %v2271, %v2269
          %v2314 = vpack.c.b16 %v2274, %v2272
          %v2315 = vpack.c.b16 %v2275, %v2273
          %v2316 = vpack.c.b16 %v2278, %v2276
          %v2317 = vpack.c.b16 %v2279, %v2277
          %v2318 = vpack.c.b16 %v2282, %v2280
          %v2319 = vpack.c.b16 %v2283, %v2281
          %v2320 = vpack.c.b16 %v2286, %v2284
          %v2321 = vpack.c.b16 %v2287, %v2285
          %v2322 = vpack.c.b16 %v2290, %v2288
          %v2323 = vpack.c.b16 %v2291, %v2289
          %2356 = vmatprep.subr.bf16.mxu0 %v2165
          %2357 = vmatpush1.bf16.msra.mxu0 %v2164
          %2358 = vmatprep.subr.bf16.mxu0 %v2167
          %2359 = vmatpush1.bf16.msra.mxu0 %v2166
          %2360 = vmatprep.subr.bf16.mxu0 %v2169
          %2361 = vmatpush1.bf16.msra.mxu0 %v2168
          %2362 = vmatprep.subr.bf16.mxu0 %v2171
          %2363 = vmatpush1.bf16.msra.mxu0 %v2170
          %2364 = vmatprep.subr.bf16.mxu0 %v2173
          %2365 = vmatpush1.bf16.msra.mxu0 %v2172
          %2366 = vmatprep.subr.bf16.mxu0 %v2175
          %2367 = vmatpush1.bf16.msra.mxu0 %v2174
          %2368 = vmatprep.subr.bf16.mxu0 %v2177
          %2369 = vmatpush1.bf16.msra.mxu0 %v2176
          %2370 = vmatprep.subr.bf16.mxu0 %v2179
          %2371 = vmatpush1.bf16.msra.mxu0 %v2178
          %2372 = vmatprep.subr.bf16.mxu0 %v2181
          %2373 = vmatpush1.bf16.msra.mxu0 %v2180
          %2374 = vmatprep.subr.bf16.mxu0 %v2183
          %2375 = vmatpush1.bf16.msra.mxu0 %v2182
          %2376 = vmatprep.subr.bf16.mxu0 %v2185
          %2377 = vmatpush1.bf16.msra.mxu0 %v2184
          %2378 = vmatprep.subr.bf16.mxu0 %v2187
          %2379 = vmatpush1.bf16.msra.mxu0 %v2186
          %2380 = vmatprep.subr.bf16.mxu0 %v2189
          %2381 = vmatpush1.bf16.msra.mxu0 %v2188
          %2382 = vmatprep.subr.bf16.mxu0 %v2191
          %2383 = vmatpush1.bf16.msra.mxu0 %v2190
          %2384 = vmatprep.subr.bf16.mxu0 %v2193
          %2385 = vmatpush1.bf16.msra.mxu0 %v2192
          %2386 = vmatprep.subr.bf16.mxu0 %v2195
          %2387 = vmatpush1.bf16.msra.mxu0 %v2194
          %2388 = vmatprep.mubr.bf16.mxu0 %v2293
          %2389 = vmatmul.mubr.bf16.gmra.mrb[0].mxu0 %v2292
          %v2390 = vpop.f32.mrb[0].mxu0
          %v2391 = vadd.f32 0.0, %v2390
          %v2392 = vpop.f32.mrb[0].mxu0
          %v2393 = vadd.f32 0.0, %v2392
          %v2394 = vpop.f32.mrb[0].mxu0
          %v2395 = vadd.f32 0.0, %v2394
          %v2396 = vpop.f32.mrb[0].mxu0
          %v2397 = vadd.f32 0.0, %v2396
          %2398 = vmatprep.mubr.bf16.mxu0 %v2295
          %2399 = vmatmul.mubr.bf16.gmra.mrb[0].mxu0 %v2294
          %v2400 = vpop.f32.mrb[0].mxu0
          %v2401 = vadd.f32 0.0, %v2400
          %v2402 = vpop.f32.mrb[0].mxu0
          %v2403 = vadd.f32 0.0, %v2402
          %v2404 = vpop.f32.mrb[0].mxu0
          %v2405 = vadd.f32 0.0, %v2404
          %v2406 = vpop.f32.mrb[0].mxu0
          %v2407 = vadd.f32 0.0, %v2406
          %2408 = vmatprep.mubr.bf16.mxu0 %v2297
          %2409 = vmatmul.mubr.bf16.gmra.mrb[0].mxu0 %v2296
          %v2410 = vpop.f32.mrb[0].mxu0
          %v2411 = vadd.f32 0.0, %v2410
          %v2412 = vpop.f32.mrb[0].mxu0
          %v2413 = vadd.f32 0.0, %v2412
          %v2414 = vpop.f32.mrb[0].mxu0
          %v2415 = vadd.f32 0.0, %v2414
          %v2416 = vpop.f32.mrb[0].mxu0
          %v2417 = vadd.f32 0.0, %v2416
          %2418 = vmatprep.mubr.bf16.mxu0 %v2299
          %2419 = vmatmul.mubr.bf16.gmra.mrb[0].mxu0 %v2298
          %v2420 = vpop.f32.mrb[0].mxu0
          %v2421 = vadd.f32 0.0, %v2420
          %v2422 = vpop.f32.mrb[0].mxu0
          %v2423 = vadd.f32 0.0, %v2422
          %v2424 = vpop.f32.mrb[0].mxu0
          %v2425 = vadd.f32 0.0, %v2424
          %v2426 = vpop.f32.mrb[0].mxu0
          %v2427 = vadd.f32 0.0, %v2426
          %2428 = vmatprep.mubr.bf16.mxu0 %v2301
          %2429 = vmatmul.mubr.bf16.gmra.mrb[0].mxu0 %v2300
          %v2430 = vpop.f32.mrb[0].mxu0
          %v2431 = vadd.f32 0.0, %v2430
          %v2432 = vpop.f32.mrb[0].mxu0
          %v2433 = vadd.f32 0.0, %v2432
          %v2434 = vpop.f32.mrb[0].mxu0
          %v2435 = vadd.f32 0.0, %v2434
          %v2436 = vpop.f32.mrb[0].mxu0
          %v2437 = vadd.f32 0.0, %v2436
          %2438 = vmatprep.mubr.bf16.mxu0 %v2303
          %2439 = vmatmul.mubr.bf16.gmra.mrb[0].mxu0 %v2302
          %v2440 = vpop.f32.mrb[0].mxu0
          %v2441 = vadd.f32 0.0, %v2440
          %v2442 = vpop.f32.mrb[0].mxu0
          %v2443 = vadd.f32 0.0, %v2442
          %v2444 = vpop.f32.mrb[0].mxu0
          %v2445 = vadd.f32 0.0, %v2444
          %v2446 = vpop.f32.mrb[0].mxu0
          %v2447 = vadd.f32 0.0, %v2446
          %2448 = vmatprep.mubr.bf16.mxu0 %v2305
          %2449 = vmatmul.mubr.bf16.gmra.mrb[0].mxu0 %v2304
          %v2450 = vpop.f32.mrb[0].mxu0
          %v2451 = vadd.f32 0.0, %v2450
          %v2452 = vpop.f32.mrb[0].mxu0
          %v2453 = vadd.f32 0.0, %v2452
          %v2454 = vpop.f32.mrb[0].mxu0
          %v2455 = vadd.f32 0.0, %v2454
          %v2456 = vpop.f32.mrb[0].mxu0
          %v2457 = vadd.f32 0.0, %v2456
          %2458 = vmatprep.mubr.bf16.mxu0 %v2307
          %2459 = vmatmul.mubr.bf16.gmra.mrb[0].mxu0 %v2306
          %v2460 = vpop.f32.mrb[0].mxu0
          %v2461 = vadd.f32 0.0, %v2460
          %v2462 = vpop.f32.mrb[0].mxu0
          %v2463 = vadd.f32 0.0, %v2462
          %v2464 = vpop.f32.mrb[0].mxu0
          %v2465 = vadd.f32 0.0, %v2464
          %v2466 = vpop.f32.mrb[0].mxu0
          %v2467 = vadd.f32 0.0, %v2466
          %2468 = vmatprep.mubr.bf16.mxu0 %v2309
          %2469 = vmatmul.mubr.bf16.gmra.mrb[0].mxu0 %v2308
          %v2470 = vpop.f32.mrb[0].mxu0
          %v2471 = vadd.f32 0.0, %v2470
          %v2472 = vpop.f32.mrb[0].mxu0
          %v2473 = vadd.f32 0.0, %v2472
          %v2474 = vpop.f32.mrb[0].mxu0
          %v2475 = vadd.f32 0.0, %v2474
          %v2476 = vpop.f32.mrb[0].mxu0
          %v2477 = vadd.f32 0.0, %v2476
          %2478 = vmatprep.mubr.bf16.mxu0 %v2311
          %2479 = vmatmul.mubr.bf16.gmra.mrb[0].mxu0 %v2310
          %v2480 = vpop.f32.mrb[0].mxu0
          %v2481 = vadd.f32 0.0, %v2480
          %v2482 = vpop.f32.mrb[0].mxu0
          %v2483 = vadd.f32 0.0, %v2482
          %v2484 = vpop.f32.mrb[0].mxu0
          %v2485 = vadd.f32 0.0, %v2484
          %v2486 = vpop.f32.mrb[0].mxu0
          %v2487 = vadd.f32 0.0, %v2486
          %2488 = vmatprep.mubr.bf16.mxu0 %v2313
          %2489 = vmatmul.mubr.bf16.gmra.mrb[0].mxu0 %v2312
          %v2490 = vpop.f32.mrb[0].mxu0
          %v2491 = vadd.f32 0.0, %v2490
          %v2492 = vpop.f32.mrb[0].mxu0
          %v2493 = vadd.f32 0.0, %v2492
          %v2494 = vpop.f32.mrb[0].mxu0
          %v2495 = vadd.f32 0.0, %v2494
          %v2496 = vpop.f32.mrb[0].mxu0
          %v2497 = vadd.f32 0.0, %v2496
          %2498 = vmatprep.mubr.bf16.mxu0 %v2315
          %2499 = vmatmul.mubr.bf16.gmra.mrb[0].mxu0 %v2314
          %v2500 = vpop.f32.mrb[0].mxu0
          %v2501 = vadd.f32 0.0, %v2500
          %v2502 = vpop.f32.mrb[0].mxu0
          %v2503 = vadd.f32 0.0, %v2502
          %v2504 = vpop.f32.mrb[0].mxu0
          %v2505 = vadd.f32 0.0, %v2504
          %v2506 = vpop.f32.mrb[0].mxu0
          %v2507 = vadd.f32 0.0, %v2506
          %2508 = vmatprep.mubr.bf16.mxu0 %v2317
          %2509 = vmatmul.mubr.bf16.gmra.mrb[0].mxu0 %v2316
          %v2510 = vpop.f32.mrb[0].mxu0
          %v2511 = vadd.f32 0.0, %v2510
          %v2512 = vpop.f32.mrb[0].mxu0
          %v2513 = vadd.f32 0.0, %v2512
          %v2514 = vpop.f32.mrb[0].mxu0
          %v2515 = vadd.f32 0.0, %v2514
          %v2516 = vpop.f32.mrb[0].mxu0
          %v2517 = vadd.f32 0.0, %v2516
          %2518 = vmatprep.mubr.bf16.mxu0 %v2319
          %2519 = vmatmul.mubr.bf16.gmra.mrb[0].mxu0 %v2318
          %v2520 = vpop.f32.mrb[0].mxu0
          %v2521 = vadd.f32 0.0, %v2520
          %v2522 = vpop.f32.mrb[0].mxu0
          %v2523 = vadd.f32 0.0, %v2522
          %v2524 = vpop.f32.mrb[0].mxu0
          %v2525 = vadd.f32 0.0, %v2524
          %v2526 = vpop.f32.mrb[0].mxu0
          %v2527 = vadd.f32 0.0, %v2526
          %2528 = vmatprep.mubr.bf16.mxu0 %v2321
          %2529 = vmatmul.mubr.bf16.gmra.mrb[0].mxu0 %v2320
          %v2530 = vpop.f32.mrb[0].mxu0
          %v2531 = vadd.f32 0.0, %v2530
          %v2532 = vpop.f32.mrb[0].mxu0
          %v2533 = vadd.f32 0.0, %v2532
          %v2534 = vpop.f32.mrb[0].mxu0
          %v2535 = vadd.f32 0.0, %v2534
          %v2536 = vpop.f32.mrb[0].mxu0
          %v2537 = vadd.f32 0.0, %v2536
          %2538 = vmatprep.mubr.bf16.mxu0 %v2323
          %2539 = vmatmul.mubr.bf16.gmra.mrb[0].mxu0 %v2322
          %v2540 = vpop.f32.mrb[0].mxu0
          %v2541 = vadd.f32 0.0, %v2540
          %v2542 = vpop.f32.mrb[0].mxu0
          %v2543 = vadd.f32 0.0, %v2542
          %v2544 = vpop.f32.mrb[0].mxu0
          %v2545 = vadd.f32 0.0, %v2544
          %v2546 = vpop.f32.mrb[0].mxu0
          %v2547 = vadd.f32 0.0, %v2546
          %2548 = vdwg.mxu0
          %v2549 = vld [vmem:[#allocation2] sm:$0xff]
          %v2550 = vld [vmem:[#allocation2 + $0x8] sm:$0xff]
          %v2551 = vld [vmem:[#allocation2 + $0x10] sm:$0xff]
          %v2552 = vld [vmem:[#allocation2 + $0x18] sm:$0xff]
          %v2553 = vld [vmem:[#allocation2 + $0x20] sm:$0xff]
          %v2554 = vld [vmem:[#allocation2 + $0x28] sm:$0xff]
          %v2555 = vld [vmem:[#allocation2 + $0x30] sm:$0xff]
          %v2556 = vld [vmem:[#allocation2 + $0x38] sm:$0xff]
          %v2557 = vld [vmem:[#allocation2 + $0x40] sm:$0xff]
          %v2558 = vld [vmem:[#allocation2 + $0x48] sm:$0xff]
          %v2559 = vld [vmem:[#allocation2 + $0x50] sm:$0xff]
          %v2560 = vld [vmem:[#allocation2 + $0x58] sm:$0xff]
          %v2561 = vld [vmem:[#allocation2 + $0x60] sm:$0xff]
          %v2562 = vld [vmem:[#allocation2 + $0x68] sm:$0xff]
          %v2563 = vld [vmem:[#allocation2 + $0x70] sm:$0xff]
          %v2564 = vld [vmem:[#allocation2 + $0x78] sm:$0xff]
          %v2565 = vld [vmem:[#allocation2 + $0x80] sm:$0xff]
          %v2566 = vld [vmem:[#allocation2 + $0x88] sm:$0xff]
          %v2567 = vld [vmem:[#allocation2 + $0x90] sm:$0xff]
          %v2568 = vld [vmem:[#allocation2 + $0x98] sm:$0xff]
          %v2569 = vld [vmem:[#allocation2 + $0xa0] sm:$0xff]
          %v2570 = vld [vmem:[#allocation2 + $0xa8] sm:$0xff]
          %v2571 = vld [vmem:[#allocation2 + $0xb0] sm:$0xff]
          %v2572 = vld [vmem:[#allocation2 + $0xb8] sm:$0xff]
          %v2573 = vld [vmem:[#allocation2 + $0xc0] sm:$0xff]
          %v2574 = vld [vmem:[#allocation2 + $0xc8] sm:$0xff]
          %v2575 = vld [vmem:[#allocation2 + $0xd0] sm:$0xff]
          %v2576 = vld [vmem:[#allocation2 + $0xd8] sm:$0xff]
          %v2577 = vld [vmem:[#allocation2 + $0xe0] sm:$0xff]
          %v2578 = vld [vmem:[#allocation2 + $0xe8] sm:$0xff]
          %v2579 = vld [vmem:[#allocation2 + $0xf0] sm:$0xff]
          %v2580 = vld [vmem:[#allocation2 + $0xf8] sm:$0xff]
          %v2581 = vld [vmem:[#allocation2 + $0x100] sm:$0xff]
          %v2582 = vld [vmem:[#allocation2 + $0x108] sm:$0xff]
          %v2583 = vld [vmem:[#allocation2 + $0x110] sm:$0xff]
          %v2584 = vld [vmem:[#allocation2 + $0x118] sm:$0xff]
          %v2585 = vld [vmem:[#allocation2 + $0x120] sm:$0xff]
          %v2586 = vld [vmem:[#allocation2 + $0x128] sm:$0xff]
          %v2587 = vld [vmem:[#allocation2 + $0x130] sm:$0xff]
          %v2588 = vld [vmem:[#allocation2 + $0x138] sm:$0xff]
          %v2589 = vld [vmem:[#allocation2 + $0x140] sm:$0xff]
          %v2590 = vld [vmem:[#allocation2 + $0x148] sm:$0xff]
          %v2591 = vld [vmem:[#allocation2 + $0x150] sm:$0xff]
          %v2592 = vld [vmem:[#allocation2 + $0x158] sm:$0xff]
          %v2593 = vld [vmem:[#allocation2 + $0x160] sm:$0xff]
          %v2594 = vld [vmem:[#allocation2 + $0x168] sm:$0xff]
          %v2595 = vld [vmem:[#allocation2 + $0x170] sm:$0xff]
          %v2596 = vld [vmem:[#allocation2 + $0x178] sm:$0xff]
          %v2597 = vld [vmem:[#allocation2 + $0x180] sm:$0xff]
          %v2598 = vld [vmem:[#allocation2 + $0x188] sm:$0xff]
          %v2599 = vld [vmem:[#allocation2 + $0x190] sm:$0xff]
          %v2600 = vld [vmem:[#allocation2 + $0x198] sm:$0xff]
          %v2601 = vld [vmem:[#allocation2 + $0x1a0] sm:$0xff]
          %v2602 = vld [vmem:[#allocation2 + $0x1a8] sm:$0xff]
          %v2603 = vld [vmem:[#allocation2 + $0x1b0] sm:$0xff]
          %v2604 = vld [vmem:[#allocation2 + $0x1b8] sm:$0xff]
          %v2605 = vld [vmem:[#allocation2 + $0x1c0] sm:$0xff]
          %v2606 = vld [vmem:[#allocation2 + $0x1c8] sm:$0xff]
          %v2607 = vld [vmem:[#allocation2 + $0x1d0] sm:$0xff]
          %v2608 = vld [vmem:[#allocation2 + $0x1d8] sm:$0xff]
          %v2609 = vld [vmem:[#allocation2 + $0x1e0] sm:$0xff]
          %v2610 = vld [vmem:[#allocation2 + $0x1e8] sm:$0xff]
          %v2611 = vld [vmem:[#allocation2 + $0x1f0] sm:$0xff]
          %v2612 = vld [vmem:[#allocation2 + $0x1f8] sm:$0xff]
          %v2613 = vld [vmem:[#allocation3] sm:$0xff]
          %v2614 = vld [vmem:[#allocation3 + $0x8] sm:$0xff]
          %v2615 = vld [vmem:[#allocation3 + $0x10] sm:$0xff]
          %v2616 = vld [vmem:[#allocation3 + $0x18] sm:$0xff]
          %v2617 = vld [vmem:[#allocation3 + $0x20] sm:$0xff]
          %v2618 = vld [vmem:[#allocation3 + $0x28] sm:$0xff]
          %v2619 = vld [vmem:[#allocation3 + $0x30] sm:$0xff]
          %v2620 = vld [vmem:[#allocation3 + $0x38] sm:$0xff]
          %v2621 = vld [vmem:[#allocation3 + $0x40] sm:$0xff]
          %v2622 = vld [vmem:[#allocation3 + $0x48] sm:$0xff]
          %v2623 = vld [vmem:[#allocation3 + $0x50] sm:$0xff]
          %v2624 = vld [vmem:[#allocation3 + $0x58] sm:$0xff]
          %v2625 = vld [vmem:[#allocation3 + $0x60] sm:$0xff]
          %v2626 = vld [vmem:[#allocation3 + $0x68] sm:$0xff]
          %v2627 = vld [vmem:[#allocation3 + $0x70] sm:$0xff]
          %v2628 = vld [vmem:[#allocation3 + $0x78] sm:$0xff]
          %v2629 = vld [vmem:[#allocation3 + $0x80] sm:$0xff]
          %v2630 = vld [vmem:[#allocation3 + $0x88] sm:$0xff]
          %v2631 = vld [vmem:[#allocation3 + $0x90] sm:$0xff]
          %v2632 = vld [vmem:[#allocation3 + $0x98] sm:$0xff]
          %v2633 = vld [vmem:[#allocation3 + $0xa0] sm:$0xff]
          %v2634 = vld [vmem:[#allocation3 + $0xa8] sm:$0xff]
          %v2635 = vld [vmem:[#allocation3 + $0xb0] sm:$0xff]
          %v2636 = vld [vmem:[#allocation3 + $0xb8] sm:$0xff]
          %v2637 = vld [vmem:[#allocation3 + $0xc0] sm:$0xff]
          %v2638 = vld [vmem:[#allocation3 + $0xc8] sm:$0xff]
          %v2639 = vld [vmem:[#allocation3 + $0xd0] sm:$0xff]
          %v2640 = vld [vmem:[#allocation3 + $0xd8] sm:$0xff]
          %v2641 = vld [vmem:[#allocation3 + $0xe0] sm:$0xff]
          %v2642 = vld [vmem:[#allocation3 + $0xe8] sm:$0xff]
          %v2643 = vld [vmem:[#allocation3 + $0xf0] sm:$0xff]
          %v2644 = vld [vmem:[#allocation3 + $0xf8] sm:$0xff]
          %v2645 = vld [vmem:[#allocation3 + $0x100] sm:$0xff]
          %v2646 = vld [vmem:[#allocation3 + $0x108] sm:$0xff]
          %v2647 = vld [vmem:[#allocation3 + $0x110] sm:$0xff]
          %v2648 = vld [vmem:[#allocation3 + $0x118] sm:$0xff]
          %v2649 = vld [vmem:[#allocation3 + $0x120] sm:$0xff]
          %v2650 = vld [vmem:[#allocation3 + $0x128] sm:$0xff]
          %v2651 = vld [vmem:[#allocation3 + $0x130] sm:$0xff]
          %v2652 = vld [vmem:[#allocation3 + $0x138] sm:$0xff]
          %v2653 = vld [vmem:[#allocation3 + $0x140] sm:$0xff]
          %v2654 = vld [vmem:[#allocation3 + $0x148] sm:$0xff]
          %v2655 = vld [vmem:[#allocation3 + $0x150] sm:$0xff]
          %v2656 = vld [vmem:[#allocation3 + $0x158] sm:$0xff]
          %v2657 = vld [vmem:[#allocation3 + $0x160] sm:$0xff]
          %v2658 = vld [vmem:[#allocation3 + $0x168] sm:$0xff]
          %v2659 = vld [vmem:[#allocation3 + $0x170] sm:$0xff]
          %v2660 = vld [vmem:[#allocation3 + $0x178] sm:$0xff]
          %v2661 = vld [vmem:[#allocation3 + $0x180] sm:$0xff]
          %v2662 = vld [vmem:[#allocation3 + $0x188] sm:$0xff]
          %v2663 = vld [vmem:[#allocation3 + $0x190] sm:$0xff]
          %v2664 = vld [vmem:[#allocation3 + $0x198] sm:$0xff]
          %v2665 = vld [vmem:[#allocation3 + $0x1a0] sm:$0xff]
          %v2666 = vld [vmem:[#allocation3 + $0x1a8] sm:$0xff]
          %v2667 = vld [vmem:[#allocation3 + $0x1b0] sm:$0xff]
          %v2668 = vld [vmem:[#allocation3 + $0x1b8] sm:$0xff]
          %v2669 = vld [vmem:[#allocation3 + $0x1c0] sm:$0xff]
          %v2670 = vld [vmem:[#allocation3 + $0x1c8] sm:$0xff]
          %v2671 = vld [vmem:[#allocation3 + $0x1d0] sm:$0xff]
          %v2672 = vld [vmem:[#allocation3 + $0x1d8] sm:$0xff]
          %v2673 = vld [vmem:[#allocation3 + $0x1e0] sm:$0xff]
          %v2674 = vld [vmem:[#allocation3 + $0x1e8] sm:$0xff]
          %v2675 = vld [vmem:[#allocation3 + $0x1f0] sm:$0xff]
          %v2676 = vld [vmem:[#allocation3 + $0x1f8] sm:$0xff]
          %v2677 = vmul.f32 %v2549, %v2549
          %v2678 = vmul.f32 %v2550, %v2550
          %v2679 = vmul.f32 %v2551, %v2551
          %v2680 = vmul.f32 %v2552, %v2552
          %v2681 = vmul.f32 %v2553, %v2553
          %v2682 = vmul.f32 %v2554, %v2554
          %v2683 = vmul.f32 %v2555, %v2555
          %v2684 = vmul.f32 %v2556, %v2556
          %v2685 = vmul.f32 %v2557, %v2557
          %v2686 = vmul.f32 %v2558, %v2558
          %v2687 = vmul.f32 %v2559, %v2559
          %v2688 = vmul.f32 %v2560, %v2560
          %v2689 = vmul.f32 %v2561, %v2561
          %v2690 = vmul.f32 %v2562, %v2562
          %v2691 = vmul.f32 %v2563, %v2563
          %v2692 = vmul.f32 %v2564, %v2564
          %v2693 = vmul.f32 %v2565, %v2565
          %v2694 = vmul.f32 %v2566, %v2566
          %v2695 = vmul.f32 %v2567, %v2567
          %v2696 = vmul.f32 %v2568, %v2568
          %v2697 = vmul.f32 %v2569, %v2569
          %v2698 = vmul.f32 %v2570, %v2570
          %v2699 = vmul.f32 %v2571, %v2571
          %v2700 = vmul.f32 %v2572, %v2572
          %v2701 = vmul.f32 %v2573, %v2573
          %v2702 = vmul.f32 %v2574, %v2574
          %v2703 = vmul.f32 %v2575, %v2575
          %v2704 = vmul.f32 %v2576, %v2576
          %v2705 = vmul.f32 %v2577, %v2577
          %v2706 = vmul.f32 %v2578, %v2578
          %v2707 = vmul.f32 %v2579, %v2579
          %v2708 = vmul.f32 %v2580, %v2580
          %v2709 = vmul.f32 %v2581, %v2581
          %v2710 = vmul.f32 %v2582, %v2582
          %v2711 = vmul.f32 %v2583, %v2583
          %v2712 = vmul.f32 %v2584, %v2584
          %v2713 = vmul.f32 %v2585, %v2585
          %v2714 = vmul.f32 %v2586, %v2586
          %v2715 = vmul.f32 %v2587, %v2587
          %v2716 = vmul.f32 %v2588, %v2588
          %v2717 = vmul.f32 %v2589, %v2589
          %v2718 = vmul.f32 %v2590, %v2590
          %v2719 = vmul.f32 %v2591, %v2591
          %v2720 = vmul.f32 %v2592, %v2592
          %v2721 = vmul.f32 %v2593, %v2593
          %v2722 = vmul.f32 %v2594, %v2594
          %v2723 = vmul.f32 %v2595, %v2595
          %v2724 = vmul.f32 %v2596, %v2596
          %v2725 = vmul.f32 %v2597, %v2597
          %v2726 = vmul.f32 %v2598, %v2598
          %v2727 = vmul.f32 %v2599, %v2599
          %v2728 = vmul.f32 %v2600, %v2600
          %v2729 = vmul.f32 %v2601, %v2601
          %v2730 = vmul.f32 %v2602, %v2602
          %v2731 = vmul.f32 %v2603, %v2603
          %v2732 = vmul.f32 %v2604, %v2604
          %v2733 = vmul.f32 %v2605, %v2605
          %v2734 = vmul.f32 %v2606, %v2606
          %v2735 = vmul.f32 %v2607, %v2607
          %v2736 = vmul.f32 %v2608, %v2608
          %v2737 = vmul.f32 %v2609, %v2609
          %v2738 = vmul.f32 %v2610, %v2610
          %v2739 = vmul.f32 %v2611, %v2611
          %v2740 = vmul.f32 %v2612, %v2612
          %v2741 = vadd.f32 %v2677, %v2679
          %v2742 = vadd.f32 %v2741, %v2681
          %v2743 = vadd.f32 %v2742, %v2683
          %v2744 = vadd.f32 %v2743, %v2685
          %v2745 = vadd.f32 %v2744, %v2687
          %v2746 = vadd.f32 %v2745, %v2689
          %v2747 = vadd.f32 %v2746, %v2691
          %v2748 = vadd.f32 %v2747, %v2693
          %v2749 = vadd.f32 %v2748, %v2695
          %v2750 = vadd.f32 %v2749, %v2697
          %v2751 = vadd.f32 %v2750, %v2699
          %v2752 = vadd.f32 %v2751, %v2701
          %v2753 = vadd.f32 %v2752, %v2703
          %v2754 = vadd.f32 %v2753, %v2705
          %v2755 = vadd.f32 %v2754, %v2707
          %v2756 = vadd.f32 %v2755, %v2709
          %v2757 = vadd.f32 %v2756, %v2711
          %v2758 = vadd.f32 %v2757, %v2713
          %v2759 = vadd.f32 %v2758, %v2715
          %v2760 = vadd.f32 %v2759, %v2717
          %v2761 = vadd.f32 %v2760, %v2719
          %v2762 = vadd.f32 %v2761, %v2721
          %v2763 = vadd.f32 %v2762, %v2723
          %v2764 = vadd.f32 %v2763, %v2725
          %v2765 = vadd.f32 %v2764, %v2727
          %v2766 = vadd.f32 %v2765, %v2729
          %v2767 = vadd.f32 %v2766, %v2731
          %v2768 = vadd.f32 %v2767, %v2733
          %v2769 = vadd.f32 %v2768, %v2735
          %v2770 = vadd.f32 %v2769, %v2737
          %v2771 = vadd.f32 %v2770, %v2739
          %v2772 = vrot.slane %v2771, 4
          %v2773 = vadd.f32 %v2771, %v2772
          %v2774 = vrot.slane %v2773, 2
          %v2775 = vadd.f32 %v2773, %v2774
          %v2776 = vrot.slane %v2775, 1
          %v2777 = vadd.f32 %v2775, %v2776
          %v2778 = vadd.f32 %v2678, %v2680
          %v2779 = vadd.f32 %v2778, %v2682
          %v2780 = vadd.f32 %v2779, %v2684
          %v2781 = vadd.f32 %v2780, %v2686
          %v2782 = vadd.f32 %v2781, %v2688
          %v2783 = vadd.f32 %v2782, %v2690
          %v2784 = vadd.f32 %v2783, %v2692
          %v2785 = vadd.f32 %v2784, %v2694
          %v2786 = vadd.f32 %v2785, %v2696
          %v2787 = vadd.f32 %v2786, %v2698
          %v2788 = vadd.f32 %v2787, %v2700
          %v2789 = vadd.f32 %v2788, %v2702
          %v2790 = vadd.f32 %v2789, %v2704
          %v2791 = vadd.f32 %v2790, %v2706
          %v2792 = vadd.f32 %v2791, %v2708
          %v2793 = vadd.f32 %v2792, %v2710
          %v2794 = vadd.f32 %v2793, %v2712
          %v2795 = vadd.f32 %v2794, %v2714
          %v2796 = vadd.f32 %v2795, %v2716
          %v2797 = vadd.f32 %v2796, %v2718
          %v2798 = vadd.f32 %v2797, %v2720
          %v2799 = vadd.f32 %v2798, %v2722
          %v2800 = vadd.f32 %v2799, %v2724
          %v2801 = vadd.f32 %v2800, %v2726
          %v2802 = vadd.f32 %v2801, %v2728
          %v2803 = vadd.f32 %v2802, %v2730
          %v2804 = vadd.f32 %v2803, %v2732
          %v2805 = vadd.f32 %v2804, %v2734
          %v2806 = vadd.f32 %v2805, %v2736
          %v2807 = vadd.f32 %v2806, %v2738
          %v2808 = vadd.f32 %v2807, %v2740
          %v2809 = vrot.slane %v2808, 4
          %v2810 = vadd.f32 %v2808, %v2809
          %v2811 = vrot.slane %v2810, 2
          %v2812 = vadd.f32 %v2810, %v2811
          %v2813 = vrot.slane %v2812, 1
          %v2814 = vadd.f32 %v2812, %v2813
          %v2815 = vmax.f32 %v2777, 1e-24
          %v2816 = vmax.f32 %v2814, 1e-24
          %v2817 = vrsqrt.pop %v2815
          %v2818 = vrsqrt.pop %v2816
          %v2819 = vmul.f32 %v2549, %v2817
          %v2820 = vmul.f32 %v2550, %v2818
          %v2821 = vmul.f32 %v2551, %v2817
          %v2822 = vmul.f32 %v2552, %v2818
          %v2823 = vmul.f32 %v2553, %v2817
          %v2824 = vmul.f32 %v2554, %v2818
          %v2825 = vmul.f32 %v2555, %v2817
          %v2826 = vmul.f32 %v2556, %v2818
          %v2827 = vmul.f32 %v2557, %v2817
          %v2828 = vmul.f32 %v2558, %v2818
          %v2829 = vmul.f32 %v2559, %v2817
          %v2830 = vmul.f32 %v2560, %v2818
          %v2831 = vmul.f32 %v2561, %v2817
          %v2832 = vmul.f32 %v2562, %v2818
          %v2833 = vmul.f32 %v2563, %v2817
          %v2834 = vmul.f32 %v2564, %v2818
          %v2835 = vmul.f32 %v2565, %v2817
          %v2836 = vmul.f32 %v2566, %v2818
          %v2837 = vmul.f32 %v2567, %v2817
          %v2838 = vmul.f32 %v2568, %v2818
          %v2839 = vmul.f32 %v2569, %v2817
          %v2840 = vmul.f32 %v2570, %v2818
          %v2841 = vmul.f32 %v2571, %v2817
          %v2842 = vmul.f32 %v2572, %v2818
          %v2843 = vmul.f32 %v2573, %v2817
          %v2844 = vmul.f32 %v2574, %v2818
          %v2845 = vmul.f32 %v2575, %v2817
          %v2846 = vmul.f32 %v2576, %v2818
          %v2847 = vmul.f32 %v2577, %v2817
          %v2848 = vmul.f32 %v2578, %v2818
          %v2849 = vmul.f32 %v2579, %v2817
          %v2850 = vmul.f32 %v2580, %v2818
          %v2851 = vmul.f32 %v2581, %v2817
          %v2852 = vmul.f32 %v2582, %v2818
          %v2853 = vmul.f32 %v2583, %v2817
          %v2854 = vmul.f32 %v2584, %v2818
          %v2855 = vmul.f32 %v2585, %v2817
          %v2856 = vmul.f32 %v2586, %v2818
          %v2857 = vmul.f32 %v2587, %v2817
          %v2858 = vmul.f32 %v2588, %v2818
          %v2859 = vmul.f32 %v2589, %v2817
          %v2860 = vmul.f32 %v2590, %v2818
          %v2861 = vmul.f32 %v2591, %v2817
          %v2862 = vmul.f32 %v2592, %v2818
          %v2863 = vmul.f32 %v2593, %v2817
          %v2864 = vmul.f32 %v2594, %v2818
          %v2865 = vmul.f32 %v2595, %v2817
          %v2866 = vmul.f32 %v2596, %v2818
          %v2867 = vmul.f32 %v2597, %v2817
          %v2868 = vmul.f32 %v2598, %v2818
          %v2869 = vmul.f32 %v2599, %v2817
          %v2870 = vmul.f32 %v2600, %v2818
          %v2871 = vmul.f32 %v2601, %v2817
          %v2872 = vmul.f32 %v2602, %v2818
          %v2873 = vmul.f32 %v2603, %v2817
          %v2874 = vmul.f32 %v2604, %v2818
          %v2875 = vmul.f32 %v2605, %v2817
          %v2876 = vmul.f32 %v2606, %v2818
          %v2877 = vmul.f32 %v2607, %v2817
          %v2878 = vmul.f32 %v2608, %v2818
          %v2879 = vmul.f32 %v2609, %v2817
          %v2880 = vmul.f32 %v2610, %v2818
          %v2881 = vmul.f32 %v2611, %v2817
          %v2882 = vmul.f32 %v2612, %v2818
          %v2883 = vmul.f32 %v2613, %v2613
          %v2884 = vmul.f32 %v2614, %v2614
          %v2885 = vmul.f32 %v2615, %v2615
          %v2886 = vmul.f32 %v2616, %v2616
          %v2887 = vmul.f32 %v2617, %v2617
          %v2888 = vmul.f32 %v2618, %v2618
          %v2889 = vmul.f32 %v2619, %v2619
          %v2890 = vmul.f32 %v2620, %v2620
          %v2891 = vmul.f32 %v2621, %v2621
          %v2892 = vmul.f32 %v2622, %v2622
          %v2893 = vmul.f32 %v2623, %v2623
          %v2894 = vmul.f32 %v2624, %v2624
          %v2895 = vmul.f32 %v2625, %v2625
          %v2896 = vmul.f32 %v2626, %v2626
          %v2897 = vmul.f32 %v2627, %v2627
          %v2898 = vmul.f32 %v2628, %v2628
          %v2899 = vmul.f32 %v2629, %v2629
          %v2900 = vmul.f32 %v2630, %v2630
          %v2901 = vmul.f32 %v2631, %v2631
          %v2902 = vmul.f32 %v2632, %v2632
          %v2903 = vmul.f32 %v2633, %v2633
          %v2904 = vmul.f32 %v2634, %v2634
          %v2905 = vmul.f32 %v2635, %v2635
          %v2906 = vmul.f32 %v2636, %v2636
          %v2907 = vmul.f32 %v2637, %v2637
          %v2908 = vmul.f32 %v2638, %v2638
          %v2909 = vmul.f32 %v2639, %v2639
          %v2910 = vmul.f32 %v2640, %v2640
          %v2911 = vmul.f32 %v2641, %v2641
          %v2912 = vmul.f32 %v2642, %v2642
          %v2913 = vmul.f32 %v2643, %v2643
          %v2914 = vmul.f32 %v2644, %v2644
          %v2915 = vmul.f32 %v2645, %v2645
          %v2916 = vmul.f32 %v2646, %v2646
          %v2917 = vmul.f32 %v2647, %v2647
          %v2918 = vmul.f32 %v2648, %v2648
          %v2919 = vmul.f32 %v2649, %v2649
          %v2920 = vmul.f32 %v2650, %v2650
          %v2921 = vmul.f32 %v2651, %v2651
          %v2922 = vmul.f32 %v2652, %v2652
          %v2923 = vmul.f32 %v2653, %v2653
          %v2924 = vmul.f32 %v2654, %v2654
          %v2925 = vmul.f32 %v2655, %v2655
          %v2926 = vmul.f32 %v2656, %v2656
          %v2927 = vmul.f32 %v2657, %v2657
          %v2928 = vmul.f32 %v2658, %v2658
          %v2929 = vmul.f32 %v2659, %v2659
          %v2930 = vmul.f32 %v2660, %v2660
          %v2931 = vmul.f32 %v2661, %v2661
          %v2932 = vmul.f32 %v2662, %v2662
          %v2933 = vmul.f32 %v2663, %v2663
          %v2934 = vmul.f32 %v2664, %v2664
          %v2935 = vmul.f32 %v2665, %v2665
          %v2936 = vmul.f32 %v2666, %v2666
          %v2937 = vmul.f32 %v2667, %v2667
          %v2938 = vmul.f32 %v2668, %v2668
          %v2939 = vmul.f32 %v2669, %v2669
          %v2940 = vmul.f32 %v2670, %v2670
          %v2941 = vmul.f32 %v2671, %v2671
          %v2942 = vmul.f32 %v2672, %v2672
          %v2943 = vmul.f32 %v2673, %v2673
          %v2944 = vmul.f32 %v2674, %v2674
          %v2945 = vmul.f32 %v2675, %v2675
          %v2946 = vmul.f32 %v2676, %v2676
          %v2947 = vadd.f32 %v2883, %v2885
          %v2948 = vadd.f32 %v2947, %v2887
          %v2949 = vadd.f32 %v2948, %v2889
          %v2950 = vadd.f32 %v2949, %v2891
          %v2951 = vadd.f32 %v2950, %v2893
          %v2952 = vadd.f32 %v2951, %v2895
          %v2953 = vadd.f32 %v2952, %v2897
          %v2954 = vadd.f32 %v2953, %v2899
          %v2955 = vadd.f32 %v2954, %v2901
          %v2956 = vadd.f32 %v2955, %v2903
          %v2957 = vadd.f32 %v2956, %v2905
          %v2958 = vadd.f32 %v2957, %v2907
          %v2959 = vadd.f32 %v2958, %v2909
          %v2960 = vadd.f32 %v2959, %v2911
          %v2961 = vadd.f32 %v2960, %v2913
          %v2962 = vadd.f32 %v2961, %v2915
          %v2963 = vadd.f32 %v2962, %v2917
          %v2964 = vadd.f32 %v2963, %v2919
          %v2965 = vadd.f32 %v2964, %v2921
          %v2966 = vadd.f32 %v2965, %v2923
          %v2967 = vadd.f32 %v2966, %v2925
          %v2968 = vadd.f32 %v2967, %v2927
          %v2969 = vadd.f32 %v2968, %v2929
          %v2970 = vadd.f32 %v2969, %v2931
          %v2971 = vadd.f32 %v2970, %v2933
          %v2972 = vadd.f32 %v2971, %v2935
          %v2973 = vadd.f32 %v2972, %v2937
          %v2974 = vadd.f32 %v2973, %v2939
          %v2975 = vadd.f32 %v2974, %v2941
          %v2976 = vadd.f32 %v2975, %v2943
          %v2977 = vadd.f32 %v2976, %v2945
          %v2978 = vrot.slane %v2977, 4
          %v2979 = vadd.f32 %v2977, %v2978
          %v2980 = vrot.slane %v2979, 2
          %v2981 = vadd.f32 %v2979, %v2980
          %v2982 = vrot.slane %v2981, 1
          %v2983 = vadd.f32 %v2981, %v2982
          %v2984 = vadd.f32 %v2884, %v2886
          %v2985 = vadd.f32 %v2984, %v2888
          %v2986 = vadd.f32 %v2985, %v2890
          %v2987 = vadd.f32 %v2986, %v2892
          %v2988 = vadd.f32 %v2987, %v2894
          %v2989 = vadd.f32 %v2988, %v2896
          %v2990 = vadd.f32 %v2989, %v2898
          %v2991 = vadd.f32 %v2990, %v2900
          %v2992 = vadd.f32 %v2991, %v2902
          %v2993 = vadd.f32 %v2992, %v2904
          %v2994 = vadd.f32 %v2993, %v2906
          %v2995 = vadd.f32 %v2994, %v2908
          %v2996 = vadd.f32 %v2995, %v2910
          %v2997 = vadd.f32 %v2996, %v2912
          %v2998 = vadd.f32 %v2997, %v2914
          %v2999 = vadd.f32 %v2998, %v2916
          %v3000 = vadd.f32 %v2999, %v2918
          %v3001 = vadd.f32 %v3000, %v2920
          %v3002 = vadd.f32 %v3001, %v2922
          %v3003 = vadd.f32 %v3002, %v2924
          %v3004 = vadd.f32 %v3003, %v2926
          %v3005 = vadd.f32 %v3004, %v2928
          %v3006 = vadd.f32 %v3005, %v2930
          %v3007 = vadd.f32 %v3006, %v2932
          %v3008 = vadd.f32 %v3007, %v2934
          %v3009 = vadd.f32 %v3008, %v2936
          %v3010 = vadd.f32 %v3009, %v2938
          %v3011 = vadd.f32 %v3010, %v2940
          %v3012 = vadd.f32 %v3011, %v2942
          %v3013 = vadd.f32 %v3012, %v2944
          %v3014 = vadd.f32 %v3013, %v2946
          %v3015 = vrot.slane %v3014, 4
          %v3016 = vadd.f32 %v3014, %v3015
          %v3017 = vrot.slane %v3016, 2
          %v3018 = vadd.f32 %v3016, %v3017
          %v3019 = vrot.slane %v3018, 1
          %v3020 = vadd.f32 %v3018, %v3019
          %v3021 = vmax.f32 %v2983, 1e-24
          %v3022 = vmax.f32 %v3020, 1e-24
          %v3023 = vrsqrt.pop %v3021
          %v3024 = vrsqrt.pop %v3022
          %v3025 = vld [vmem:[%s3] sm:$0x3]
          %v3027 = vlaneseq
          %v3028 = vshrl.u32 %v3027, 7
          %v3029 = vsub.s32 0, %v3028
          %v3030 = vrot.slane %v3025, %v3029
          %v3031 = vlaneseq
          %v3032 = vshrl.u32 %v3031, 7
          %v3033 = vsub.s32 1, %v3032
          %v3034 = vrot.slane %v3025, %v3033
          %v3037 = vmul.f32 %v3023, %v3030
          %v3038 = vmul.f32 %v3024, %v3034
          %v3039 = vlaneseq
          %v3040 = vshrl.u32 %v3039, 7
          %v3041 = vsub.s32 0, %v3040
          %v3042 = vrot.slane %v3037, %v3041
          %v3043 = vlaneseq
          %v3044 = vshrl.u32 %v3043, 7
          %v3045 = vsub.s32 0, %v3044
          %v3046 = vrot.slane %v3038, %v3045
          %v3047 = vmul.f32 %v2613, %v3042
          %v3048 = vmul.f32 %v2614, %v3046
          %v3049 = vmul.f32 %v2615, %v3042
          %v3050 = vmul.f32 %v2616, %v3046
          %v3051 = vmul.f32 %v2617, %v3042
          %v3052 = vmul.f32 %v2618, %v3046
          %v3053 = vmul.f32 %v2619, %v3042
          %v3054 = vmul.f32 %v2620, %v3046
          %v3055 = vmul.f32 %v2621, %v3042
          %v3056 = vmul.f32 %v2622, %v3046
          %v3057 = vmul.f32 %v2623, %v3042
          %v3058 = vmul.f32 %v2624, %v3046
          %v3059 = vmul.f32 %v2625, %v3042
          %v3060 = vmul.f32 %v2626, %v3046
          %v3061 = vmul.f32 %v2627, %v3042
          %v3062 = vmul.f32 %v2628, %v3046
          %v3063 = vmul.f32 %v2629, %v3042
          %v3064 = vmul.f32 %v2630, %v3046
          %v3065 = vmul.f32 %v2631, %v3042
          %v3066 = vmul.f32 %v2632, %v3046
          %v3067 = vmul.f32 %v2633, %v3042
          %v3068 = vmul.f32 %v2634, %v3046
          %v3069 = vmul.f32 %v2635, %v3042
          %v3070 = vmul.f32 %v2636, %v3046
          %v3071 = vmul.f32 %v2637, %v3042
          %v3072 = vmul.f32 %v2638, %v3046
          %v3073 = vmul.f32 %v2639, %v3042
          %v3074 = vmul.f32 %v2640, %v3046
          %v3075 = vmul.f32 %v2641, %v3042
          %v3076 = vmul.f32 %v2642, %v3046
          %v3077 = vmul.f32 %v2643, %v3042
          %v3078 = vmul.f32 %v2644, %v3046
          %v3079 = vmul.f32 %v2645, %v3042
          %v3080 = vmul.f32 %v2646, %v3046
          %v3081 = vmul.f32 %v2647, %v3042
          %v3082 = vmul.f32 %v2648, %v3046
          %v3083 = vmul.f32 %v2649, %v3042
          %v3084 = vmul.f32 %v2650, %v3046
          %v3085 = vmul.f32 %v2651, %v3042
          %v3086 = vmul.f32 %v2652, %v3046
          %v3087 = vmul.f32 %v2653, %v3042
          %v3088 = vmul.f32 %v2654, %v3046
          %v3089 = vmul.f32 %v2655, %v3042
          %v3090 = vmul.f32 %v2656, %v3046
          %v3091 = vmul.f32 %v2657, %v3042
          %v3092 = vmul.f32 %v2658, %v3046
          %v3093 = vmul.f32 %v2659, %v3042
          %v3094 = vmul.f32 %v2660, %v3046
          %v3095 = vmul.f32 %v2661, %v3042
          %v3096 = vmul.f32 %v2662, %v3046
          %v3097 = vmul.f32 %v2663, %v3042
          %v3098 = vmul.f32 %v2664, %v3046
          %v3099 = vmul.f32 %v2665, %v3042
          %v3100 = vmul.f32 %v2666, %v3046
          %v3101 = vmul.f32 %v2667, %v3042
          %v3102 = vmul.f32 %v2668, %v3046
          %v3103 = vmul.f32 %v2669, %v3042
          %v3104 = vmul.f32 %v2670, %v3046
          %v3105 = vmul.f32 %v2671, %v3042
          %v3106 = vmul.f32 %v2672, %v3046
          %v3107 = vmul.f32 %v2673, %v3042
          %v3108 = vmul.f32 %v2674, %v3046
          %v3109 = vmul.f32 %v2675, %v3042
          %v3110 = vmul.f32 %v2676, %v3046
          %v3111 = vmul.f32 %v2391, %v2391
          %v3112 = vmul.f32 %v2393, %v2393
          %v3113 = vmul.f32 %v2395, %v2395
          %v3114 = vmul.f32 %v2397, %v2397
          %v3115 = vmul.f32 %v2401, %v2401
          %v3116 = vmul.f32 %v2403, %v2403
          %v3117 = vmul.f32 %v2405, %v2405
          %v3118 = vmul.f32 %v2407, %v2407
          %v3119 = vmul.f32 %v2411, %v2411
          %v3120 = vmul.f32 %v2413, %v2413
          %v3121 = vmul.f32 %v2415, %v2415
          %v3122 = vmul.f32 %v2417, %v2417
          %v3123 = vmul.f32 %v2421, %v2421
          %v3124 = vmul.f32 %v2423, %v2423
          %v3125 = vmul.f32 %v2425, %v2425
          %v3126 = vmul.f32 %v2427, %v2427
          %v3127 = vmul.f32 %v2431, %v2431
          %v3128 = vmul.f32 %v2433, %v2433
          %v3129 = vmul.f32 %v2435, %v2435
          %v3130 = vmul.f32 %v2437, %v2437
          %v3131 = vmul.f32 %v2441, %v2441
          %v3132 = vmul.f32 %v2443, %v2443
          %v3133 = vmul.f32 %v2445, %v2445
          %v3134 = vmul.f32 %v2447, %v2447
          %v3135 = vmul.f32 %v2451, %v2451
          %v3136 = vmul.f32 %v2453, %v2453
          %v3137 = vmul.f32 %v2455, %v2455
          %v3138 = vmul.f32 %v2457, %v2457
          %v3139 = vmul.f32 %v2461, %v2461
          %v3140 = vmul.f32 %v2463, %v2463
          %v3141 = vmul.f32 %v2465, %v2465
          %v3142 = vmul.f32 %v2467, %v2467
          %v3143 = vmul.f32 %v2471, %v2471
          %v3144 = vmul.f32 %v2473, %v2473
          %v3145 = vmul.f32 %v2475, %v2475
          %v3146 = vmul.f32 %v2477, %v2477
          %v3147 = vmul.f32 %v2481, %v2481
          %v3148 = vmul.f32 %v2483, %v2483
          %v3149 = vmul.f32 %v2485, %v2485
          %v3150 = vmul.f32 %v2487, %v2487
          %v3151 = vmul.f32 %v2491, %v2491
          %v3152 = vmul.f32 %v2493, %v2493
          %v3153 = vmul.f32 %v2495, %v2495
          %v3154 = vmul.f32 %v2497, %v2497
          %v3155 = vmul.f32 %v2501, %v2501
          %v3156 = vmul.f32 %v2503, %v2503
          %v3157 = vmul.f32 %v2505, %v2505
          %v3158 = vmul.f32 %v2507, %v2507
          %v3159 = vmul.f32 %v2511, %v2511
          %v3160 = vmul.f32 %v2513, %v2513
          %v3161 = vmul.f32 %v2515, %v2515
          %v3162 = vmul.f32 %v2517, %v2517
          %v3163 = vmul.f32 %v2521, %v2521
          %v3164 = vmul.f32 %v2523, %v2523
          %v3165 = vmul.f32 %v2525, %v2525
          %v3166 = vmul.f32 %v2527, %v2527
          %v3167 = vmul.f32 %v2531, %v2531
          %v3168 = vmul.f32 %v2533, %v2533
          %v3169 = vmul.f32 %v2535, %v2535
          %v3170 = vmul.f32 %v2537, %v2537
          %v3171 = vmul.f32 %v2541, %v2541
          %v3172 = vmul.f32 %v2543, %v2543
          %v3173 = vmul.f32 %v2545, %v2545
          %v3174 = vmul.f32 %v2547, %v2547
          %v3175 = vadd.f32 %v3111, %v3112
          %3176 = vadd.xlane.f32.xlu0 %v3175
          %v3177 = vpop.xlane.xlu0 %3176
          %v3178 = vadd.f32 %v3113, %v3114
          %3179 = vadd.xlane.f32.xlu0 %v3178
          %v3180 = vpop.xlane.xlu0 %3179
          %v3181 = vadd.f32 %v3115, %v3116
          %3182 = vadd.xlane.f32.xlu0 %v3181
          %v3183 = vpop.xlane.xlu0 %3182
          %v3184 = vadd.f32 %v3117, %v3118
          %3185 = vadd.xlane.f32.xlu0 %v3184
          %v3186 = vpop.xlane.xlu0 %3185
          %v3187 = vadd.f32 %v3119, %v3120
          %3188 = vadd.xlane.f32.xlu0 %v3187
          %v3189 = vpop.xlane.xlu0 %3188
          %v3190 = vadd.f32 %v3121, %v3122
          %3191 = vadd.xlane.f32.xlu0 %v3190
          %v3192 = vpop.xlane.xlu0 %3191
          %v3193 = vadd.f32 %v3123, %v3124
          %3194 = vadd.xlane.f32.xlu0 %v3193
          %v3195 = vpop.xlane.xlu0 %3194
          %v3196 = vadd.f32 %v3125, %v3126
          %3197 = vadd.xlane.f32.xlu0 %v3196
          %v3198 = vpop.xlane.xlu0 %3197
          %v3199 = vadd.f32 %v3127, %v3128
          %3200 = vadd.xlane.f32.xlu0 %v3199
          %v3201 = vpop.xlane.xlu0 %3200
          %v3202 = vadd.f32 %v3129, %v3130
          %3203 = vadd.xlane.f32.xlu0 %v3202
          %v3204 = vpop.xlane.xlu0 %3203
          %v3205 = vadd.f32 %v3131, %v3132
          %3206 = vadd.xlane.f32.xlu0 %v3205
          %v3207 = vpop.xlane.xlu0 %3206
          %v3208 = vadd.f32 %v3133, %v3134
          %3209 = vadd.xlane.f32.xlu0 %v3208
          %v3210 = vpop.xlane.xlu0 %3209
          %v3211 = vadd.f32 %v3135, %v3136
          %3212 = vadd.xlane.f32.xlu0 %v3211
          %v3213 = vpop.xlane.xlu0 %3212
          %v3214 = vadd.f32 %v3137, %v3138
          %3215 = vadd.xlane.f32.xlu0 %v3214
          %v3216 = vpop.xlane.xlu0 %3215
          %v3217 = vadd.f32 %v3139, %v3140
          %3218 = vadd.xlane.f32.xlu0 %v3217
          %v3219 = vpop.xlane.xlu0 %3218
          %v3220 = vadd.f32 %v3141, %v3142
          %3221 = vadd.xlane.f32.xlu0 %v3220
          %v3222 = vpop.xlane.xlu0 %3221
          %v3223 = vadd.f32 %v3143, %v3144
          %3224 = vadd.xlane.f32.xlu0 %v3223
          %v3225 = vpop.xlane.xlu0 %3224
          %v3226 = vadd.f32 %v3145, %v3146
          %3227 = vadd.xlane.f32.xlu0 %v3226
          %v3228 = vpop.xlane.xlu0 %3227
          %v3229 = vadd.f32 %v3147, %v3148
          %3230 = vadd.xlane.f32.xlu0 %v3229
          %v3231 = vpop.xlane.xlu0 %3230
          %v3232 = vadd.f32 %v3149, %v3150
          %3233 = vadd.xlane.f32.xlu0 %v3232
          %v3234 = vpop.xlane.xlu0 %3233
          %v3235 = vadd.f32 %v3151, %v3152
          %3236 = vadd.xlane.f32.xlu0 %v3235
          %v3237 = vpop.xlane.xlu0 %3236
          %v3238 = vadd.f32 %v3153, %v3154
          %3239 = vadd.xlane.f32.xlu0 %v3238
          %v3240 = vpop.xlane.xlu0 %3239
          %v3241 = vadd.f32 %v3155, %v3156
          %3242 = vadd.xlane.f32.xlu0 %v3241
          %v3243 = vpop.xlane.xlu0 %3242
          %v3244 = vadd.f32 %v3157, %v3158
          %3245 = vadd.xlane.f32.xlu0 %v3244
          %v3246 = vpop.xlane.xlu0 %3245
          %v3247 = vadd.f32 %v3159, %v3160
          %3248 = vadd.xlane.f32.xlu0 %v3247
          %v3249 = vpop.xlane.xlu0 %3248
          %v3250 = vadd.f32 %v3161, %v3162
          %3251 = vadd.xlane.f32.xlu0 %v3250
          %v3252 = vpop.xlane.xlu0 %3251
          %v3253 = vadd.f32 %v3163, %v3164
          %3254 = vadd.xlane.f32.xlu0 %v3253
          %v3255 = vpop.xlane.xlu0 %3254
          %v3256 = vadd.f32 %v3165, %v3166
          %3257 = vadd.xlane.f32.xlu0 %v3256
          %v3258 = vpop.xlane.xlu0 %3257
          %v3259 = vadd.f32 %v3167, %v3168
          %3260 = vadd.xlane.f32.xlu0 %v3259
          %v3261 = vpop.xlane.xlu0 %3260
          %v3262 = vadd.f32 %v3169, %v3170
          %3263 = vadd.xlane.f32.xlu0 %v3262
          %v3264 = vpop.xlane.xlu0 %3263
          %v3265 = vadd.f32 %v3171, %v3172
          %3266 = vadd.xlane.f32.xlu0 %v3265
          %v3267 = vpop.xlane.xlu0 %3266
          %v3268 = vadd.f32 %v3173, %v3174
          %3269 = vadd.xlane.f32.xlu0 %v3268
          %v3270 = vpop.xlane.xlu0 %3269
          %v3271 = vmax.f32 %v3177, 1e-24
          %v3272 = vmax.f32 %v3180, 1e-24
          %v3273 = vmax.f32 %v3183, 1e-24
          %v3274 = vmax.f32 %v3186, 1e-24
          %v3275 = vmax.f32 %v3189, 1e-24
          %v3276 = vmax.f32 %v3192, 1e-24
          %v3277 = vmax.f32 %v3195, 1e-24
          %v3278 = vmax.f32 %v3198, 1e-24
          %v3279 = vmax.f32 %v3201, 1e-24
          %v3280 = vmax.f32 %v3204, 1e-24
          %v3281 = vmax.f32 %v3207, 1e-24
          %v3282 = vmax.f32 %v3210, 1e-24
          %v3283 = vmax.f32 %v3213, 1e-24
          %v3284 = vmax.f32 %v3216, 1e-24
          %v3285 = vmax.f32 %v3219, 1e-24
          %v3286 = vmax.f32 %v3222, 1e-24
          %v3287 = vmax.f32 %v3225, 1e-24
          %v3288 = vmax.f32 %v3228, 1e-24
          %v3289 = vmax.f32 %v3231, 1e-24
          %v3290 = vmax.f32 %v3234, 1e-24
          %v3291 = vmax.f32 %v3237, 1e-24
          %v3292 = vmax.f32 %v3240, 1e-24
          %v3293 = vmax.f32 %v3243, 1e-24
          %v3294 = vmax.f32 %v3246, 1e-24
          %v3295 = vmax.f32 %v3249, 1e-24
          %v3296 = vmax.f32 %v3252, 1e-24
          %v3297 = vmax.f32 %v3255, 1e-24
          %v3298 = vmax.f32 %v3258, 1e-24
          %v3299 = vmax.f32 %v3261, 1e-24
          %v3300 = vmax.f32 %v3264, 1e-24
          %v3301 = vmax.f32 %v3267, 1e-24
          %v3302 = vmax.f32 %v3270, 1e-24
          %v3303 = vrsqrt.pop %v3271
          %v3304 = vrsqrt.pop %v3272
          %v3305 = vrsqrt.pop %v3273
          %v3306 = vrsqrt.pop %v3274
          %v3307 = vrsqrt.pop %v3275
          %v3308 = vrsqrt.pop %v3276
          %v3309 = vrsqrt.pop %v3277
          %v3310 = vrsqrt.pop %v3278
          %v3311 = vrsqrt.pop %v3279
          %v3312 = vrsqrt.pop %v3280
          %v3313 = vrsqrt.pop %v3281
          %v3314 = vrsqrt.pop %v3282
          %v3315 = vrsqrt.pop %v3283
          %v3316 = vrsqrt.pop %v3284
          %v3317 = vrsqrt.pop %v3285
          %v3318 = vrsqrt.pop %v3286
          %v3319 = vrsqrt.pop %v3287
          %v3320 = vrsqrt.pop %v3288
          %v3321 = vrsqrt.pop %v3289
          %v3322 = vrsqrt.pop %v3290
          %v3323 = vrsqrt.pop %v3291
          %v3324 = vrsqrt.pop %v3292
          %v3325 = vrsqrt.pop %v3293
          %v3326 = vrsqrt.pop %v3294
          %v3327 = vrsqrt.pop %v3295
          %v3328 = vrsqrt.pop %v3296
          %v3329 = vrsqrt.pop %v3297
          %v3330 = vrsqrt.pop %v3298
          %v3331 = vrsqrt.pop %v3299
          %v3332 = vrsqrt.pop %v3300
          %v3333 = vrsqrt.pop %v3301
          %v3334 = vrsqrt.pop %v3302
          %v3335 = vmul.f32 %v2391, %v3303
          %v3336 = vmul.f32 %v2393, %v3303
          %v3337 = vmul.f32 %v2395, %v3304
          %v3338 = vmul.f32 %v2397, %v3304
          %v3339 = vmul.f32 %v2401, %v3305
          %v3340 = vmul.f32 %v2403, %v3305
          %v3341 = vmul.f32 %v2405, %v3306
          %v3342 = vmul.f32 %v2407, %v3306
          %v3343 = vmul.f32 %v2411, %v3307
          %v3344 = vmul.f32 %v2413, %v3307
          %v3345 = vmul.f32 %v2415, %v3308
          %v3346 = vmul.f32 %v2417, %v3308
          %v3347 = vmul.f32 %v2421, %v3309
          %v3348 = vmul.f32 %v2423, %v3309
          %v3349 = vmul.f32 %v2425, %v3310
          %v3350 = vmul.f32 %v2427, %v3310
          %v3351 = vmul.f32 %v2431, %v3311
          %v3352 = vmul.f32 %v2433, %v3311
          %v3353 = vmul.f32 %v2435, %v3312
          %v3354 = vmul.f32 %v2437, %v3312
          %v3355 = vmul.f32 %v2441, %v3313
          %v3356 = vmul.f32 %v2443, %v3313
          %v3357 = vmul.f32 %v2445, %v3314
          %v3358 = vmul.f32 %v2447, %v3314
          %v3359 = vmul.f32 %v2451, %v3315
          %v3360 = vmul.f32 %v2453, %v3315
          %v3361 = vmul.f32 %v2455, %v3316
          %v3362 = vmul.f32 %v2457, %v3316
          %v3363 = vmul.f32 %v2461, %v3317
          %v3364 = vmul.f32 %v2463, %v3317
          %v3365 = vmul.f32 %v2465, %v3318
          %v3366 = vmul.f32 %v2467, %v3318
          %v3367 = vmul.f32 %v2471, %v3319
          %v3368 = vmul.f32 %v2473, %v3319
          %v3369 = vmul.f32 %v2475, %v3320
          %v3370 = vmul.f32 %v2477, %v3320
          %v3371 = vmul.f32 %v2481, %v3321
          %v3372 = vmul.f32 %v2483, %v3321
          %v3373 = vmul.f32 %v2485, %v3322
          %v3374 = vmul.f32 %v2487, %v3322
          %v3375 = vmul.f32 %v2491, %v3323
          %v3376 = vmul.f32 %v2493, %v3323
          %v3377 = vmul.f32 %v2495, %v3324
          %v3378 = vmul.f32 %v2497, %v3324
          %v3379 = vmul.f32 %v2501, %v3325
          %v3380 = vmul.f32 %v2503, %v3325
          %v3381 = vmul.f32 %v2505, %v3326
          %v3382 = vmul.f32 %v2507, %v3326
          %v3383 = vmul.f32 %v2511, %v3327
          %v3384 = vmul.f32 %v2513, %v3327
          %v3385 = vmul.f32 %v2515, %v3328
          %v3386 = vmul.f32 %v2517, %v3328
          %v3387 = vmul.f32 %v2521, %v3329
          %v3388 = vmul.f32 %v2523, %v3329
          %v3389 = vmul.f32 %v2525, %v3330
          %v3390 = vmul.f32 %v2527, %v3330
          %v3391 = vmul.f32 %v2531, %v3331
          %v3392 = vmul.f32 %v2533, %v3331
          %v3393 = vmul.f32 %v2535, %v3332
          %v3394 = vmul.f32 %v2537, %v3332
          %v3395 = vmul.f32 %v2541, %v3333
          %v3396 = vmul.f32 %v2543, %v3333
          %v3397 = vmul.f32 %v2545, %v3334
          %v3398 = vmul.f32 %v2547, %v3334
          %3399 = vst [vmem:[#allocation4] sm:$0xff] %v3335
          %3400 = vst [vmem:[#allocation4 + $0x8] sm:$0xff] %v3336
          %3401 = vst [vmem:[#allocation4 + $0x10] sm:$0xff] %v3337
          %3402 = vst [vmem:[#allocation4 + $0x18] sm:$0xff] %v3338
          %3403 = vst [vmem:[#allocation4 + $0x20] sm:$0xff] %v3339
          %3404 = vst [vmem:[#allocation4 + $0x28] sm:$0xff] %v3340
          %3405 = vst [vmem:[#allocation4 + $0x30] sm:$0xff] %v3341
          %3406 = vst [vmem:[#allocation4 + $0x38] sm:$0xff] %v3342
          %3407 = vst [vmem:[#allocation4 + $0x40] sm:$0xff] %v3343
          %3408 = vst [vmem:[#allocation4 + $0x48] sm:$0xff] %v3344
          %3409 = vst [vmem:[#allocation4 + $0x50] sm:$0xff] %v3345
          %3410 = vst [vmem:[#allocation4 + $0x58] sm:$0xff] %v3346
          %3411 = vst [vmem:[#allocation4 + $0x60] sm:$0xff] %v3347
          %3412 = vst [vmem:[#allocation4 + $0x68] sm:$0xff] %v3348
          %3413 = vst [vmem:[#allocation4 + $0x70] sm:$0xff] %v3349
          %3414 = vst [vmem:[#allocation4 + $0x78] sm:$0xff] %v3350
          %3415 = vst [vmem:[#allocation4 + $0x80] sm:$0xff] %v3351
          %3416 = vst [vmem:[#allocation4 + $0x88] sm:$0xff] %v3352
          %3417 = vst [vmem:[#allocation4 + $0x90] sm:$0xff] %v3353
          %3418 = vst [vmem:[#allocation4 + $0x98] sm:$0xff] %v3354
          %3419 = vst [vmem:[#allocation4 + $0xa0] sm:$0xff] %v3355
          %3420 = vst [vmem:[#allocation4 + $0xa8] sm:$0xff] %v3356
          %3421 = vst [vmem:[#allocation4 + $0xb0] sm:$0xff] %v3357
          %3422 = vst [vmem:[#allocation4 + $0xb8] sm:$0xff] %v3358
          %3423 = vst [vmem:[#allocation4 + $0xc0] sm:$0xff] %v3359
          %3424 = vst [vmem:[#allocation4 + $0xc8] sm:$0xff] %v3360
          %3425 = vst [vmem:[#allocation4 + $0xd0] sm:$0xff] %v3361
          %3426 = vst [vmem:[#allocation4 + $0xd8] sm:$0xff] %v3362
          %3427 = vst [vmem:[#allocation4 + $0xe0] sm:$0xff] %v3363
          %3428 = vst [vmem:[#allocation4 + $0xe8] sm:$0xff] %v3364
          %3429 = vst [vmem:[#allocation4 + $0xf0] sm:$0xff] %v3365
          %3430 = vst [vmem:[#allocation4 + $0xf8] sm:$0xff] %v3366
          %3431 = vst [vmem:[#allocation4 + $0x100] sm:$0xff] %v3367
          %3432 = vst [vmem:[#allocation4 + $0x108] sm:$0xff] %v3368
          %3433 = vst [vmem:[#allocation4 + $0x110] sm:$0xff] %v3369
          %3434 = vst [vmem:[#allocation4 + $0x118] sm:$0xff] %v3370
          %3435 = vst [vmem:[#allocation4 + $0x120] sm:$0xff] %v3371
          %3436 = vst [vmem:[#allocation4 + $0x128] sm:$0xff] %v3372
          %3437 = vst [vmem:[#allocation4 + $0x130] sm:$0xff] %v3373
          %3438 = vst [vmem:[#allocation4 + $0x138] sm:$0xff] %v3374
          %3439 = vst [vmem:[#allocation4 + $0x140] sm:$0xff] %v3375
          %3440 = vst [vmem:[#allocation4 + $0x148] sm:$0xff] %v3376
          %3441 = vst [vmem:[#allocation4 + $0x150] sm:$0xff] %v3377
          %3442 = vst [vmem:[#allocation4 + $0x158] sm:$0xff] %v3378
          %3443 = vst [vmem:[#allocation4 + $0x160] sm:$0xff] %v3379
          %3444 = vst [vmem:[#allocation4 + $0x168] sm:$0xff] %v3380
          %3445 = vst [vmem:[#allocation4 + $0x170] sm:$0xff] %v3381
          %3446 = vst [vmem:[#allocation4 + $0x178] sm:$0xff] %v3382
          %3447 = vst [vmem:[#allocation4 + $0x180] sm:$0xff] %v3383
          %3448 = vst [vmem:[#allocation4 + $0x188] sm:$0xff] %v3384
          %3449 = vst [vmem:[#allocation4 + $0x190] sm:$0xff] %v3385
          %3450 = vst [vmem:[#allocation4 + $0x198] sm:$0xff] %v3386
          %3451 = vst [vmem:[#allocation4 + $0x1a0] sm:$0xff] %v3387
          %3452 = vst [vmem:[#allocation4 + $0x1a8] sm:$0xff] %v3388
          %3453 = vst [vmem:[#allocation4 + $0x1b0] sm:$0xff] %v3389
          %3454 = vst [vmem:[#allocation4 + $0x1b8] sm:$0xff] %v3390
          %3455 = vst [vmem:[#allocation4 + $0x1c0] sm:$0xff] %v3391
          %3456 = vst [vmem:[#allocation4 + $0x1c8] sm:$0xff] %v3392
          %3457 = vst [vmem:[#allocation4 + $0x1d0] sm:$0xff] %v3393
          %3458 = vst [vmem:[#allocation4 + $0x1d8] sm:$0xff] %v3394
          %3459 = vst [vmem:[#allocation4 + $0x1e0] sm:$0xff] %v3395
          %3460 = vst [vmem:[#allocation4 + $0x1e8] sm:$0xff] %v3396
          %3461 = vst [vmem:[#allocation4 + $0x1f0] sm:$0xff] %v3397
          %3462 = vst [vmem:[#allocation4 + $0x1f8] sm:$0xff] %v3398
          %v3463 = vpack.c.bf16 %v3049, %v3047
          %v3464 = vpack.c.bf16 %v3050, %v3048
          %v3465 = vpack.c.bf16 %v3053, %v3051
          %v3466 = vpack.c.bf16 %v3054, %v3052
          %v3467 = vpack.c.bf16 %v3057, %v3055
          %v3468 = vpack.c.bf16 %v3058, %v3056
          %v3469 = vpack.c.bf16 %v3061, %v3059
          %v3470 = vpack.c.bf16 %v3062, %v3060
          %v3471 = vpack.c.bf16 %v3065, %v3063
          %v3472 = vpack.c.bf16 %v3066, %v3064
          %v3473 = vpack.c.bf16 %v3069, %v3067
          %v3474 = vpack.c.bf16 %v3070, %v3068
          %v3475 = vpack.c.bf16 %v3073, %v3071
          %v3476 = vpack.c.bf16 %v3074, %v3072
          %v3477 = vpack.c.bf16 %v3077, %v3075
          %v3478 = vpack.c.bf16 %v3078, %v3076
          %v3479 = vpack.c.bf16 %v3081, %v3079
          %v3480 = vpack.c.bf16 %v3082, %v3080
          %v3481 = vpack.c.bf16 %v3085, %v3083
          %v3482 = vpack.c.bf16 %v3086, %v3084
          %v3483 = vpack.c.bf16 %v3089, %v3087
          %v3484 = vpack.c.bf16 %v3090, %v3088
          %v3485 = vpack.c.bf16 %v3093, %v3091
          %v3486 = vpack.c.bf16 %v3094, %v3092
          %v3487 = vpack.c.bf16 %v3097, %v3095
          %v3488 = vpack.c.bf16 %v3098, %v3096
          %v3489 = vpack.c.bf16 %v3101, %v3099
          %v3490 = vpack.c.bf16 %v3102, %v3100
          %v3491 = vpack.c.bf16 %v3105, %v3103
          %v3492 = vpack.c.bf16 %v3106, %v3104
          %v3493 = vpack.c.bf16 %v3109, %v3107
          %v3494 = vpack.c.bf16 %v3110, %v3108
          %v3495 = vpack.c.bf16 %v2821, %v2819
          %v3496 = vpack.c.bf16 %v2822, %v2820
          %v3497 = vpack.c.bf16 %v2825, %v2823
          %v3498 = vpack.c.bf16 %v2826, %v2824
          %v3499 = vpack.c.bf16 %v2829, %v2827
          %v3500 = vpack.c.bf16 %v2830, %v2828
          %v3501 = vpack.c.bf16 %v2833, %v2831
          %v3502 = vpack.c.bf16 %v2834, %v2832
          %v3503 = vpack.c.bf16 %v2837, %v2835
          %v3504 = vpack.c.bf16 %v2838, %v2836
          %v3505 = vpack.c.bf16 %v2841, %v2839
          %v3506 = vpack.c.bf16 %v2842, %v2840
          %v3507 = vpack.c.bf16 %v2845, %v2843
          %v3508 = vpack.c.bf16 %v2846, %v2844
          %v3509 = vpack.c.bf16 %v2849, %v2847
          %v3510 = vpack.c.bf16 %v2850, %v2848
          %v3511 = vpack.c.bf16 %v2853, %v2851
          %v3512 = vpack.c.bf16 %v2854, %v2852
          %v3513 = vpack.c.bf16 %v2857, %v2855
          %v3514 = vpack.c.bf16 %v2858, %v2856
          %v3515 = vpack.c.bf16 %v2861, %v2859
          %v3516 = vpack.c.bf16 %v2862, %v2860
          %v3517 = vpack.c.bf16 %v2865, %v2863
          %v3518 = vpack.c.bf16 %v2866, %v2864
          %v3519 = vpack.c.bf16 %v2869, %v2867
          %v3520 = vpack.c.bf16 %v2870, %v2868
          %v3521 = vpack.c.bf16 %v2873, %v2871
          %v3522 = vpack.c.bf16 %v2874, %v2872
          %v3523 = vpack.c.bf16 %v2877, %v2875
          %v3524 = vpack.c.bf16 %v2878, %v2876
          %v3525 = vpack.c.bf16 %v2881, %v2879
          %v3526 = vpack.c.bf16 %v2882, %v2880
          %3527 = vxpose.xlu0.c.b16.start [1/8] %v3463, 128
          %3528 = vxpose.xlu0.c.b16.cont [2/8] %v3465, 128
          %3529 = vxpose.xlu0.c.b16.cont [3/8] %v3467, 128
          %3530 = vxpose.xlu0.c.b16.cont [4/8] %v3469, 128
          %3531 = vxpose.xlu0.c.b16.cont [5/8] %v3471, 128
          %3532 = vxpose.xlu0.c.b16.cont [6/8] %v3473, 128
          %3533 = vxpose.xlu0.c.b16.cont [7/8] %v3475, 128
          %3534 = vxpose.xlu0.c.b16.end [8/8] %v3477, 128
          %v3535 = vpop.trf.xlu0
          %v3536 = vpop.trf.xlu0
          %v3537 = vpop.trf.xlu0
          %v3538 = vpop.trf.xlu0
          %v3539 = vpop.trf.xlu0
          %v3540 = vpop.trf.xlu0
          %v3541 = vpop.trf.xlu0
          %v3542 = vpop.trf.xlu0
          %3543 = vxpose.xlu0.c.b16.start [1/8] %v3464, 128
          %3544 = vxpose.xlu0.c.b16.cont [2/8] %v3466, 128
          %3545 = vxpose.xlu0.c.b16.cont [3/8] %v3468, 128
          %3546 = vxpose.xlu0.c.b16.cont [4/8] %v3470, 128
          %3547 = vxpose.xlu0.c.b16.cont [5/8] %v3472, 128
          %3548 = vxpose.xlu0.c.b16.cont [6/8] %v3474, 128
          %3549 = vxpose.xlu0.c.b16.cont [7/8] %v3476, 128
          %3550 = vxpose.xlu0.c.b16.end [8/8] %v3478, 128
          %v3551 = vpop.trf.xlu0
          %v3552 = vpop.trf.xlu0
          %v3553 = vpop.trf.xlu0
          %v3554 = vpop.trf.xlu0
          %v3555 = vpop.trf.xlu0
          %v3556 = vpop.trf.xlu0
          %v3557 = vpop.trf.xlu0
          %v3558 = vpop.trf.xlu0
          %3559 = vxpose.xlu0.c.b16.start [1/8] %v3479, 128
          %3560 = vxpose.xlu0.c.b16.cont [2/8] %v3481, 128
          %3561 = vxpose.xlu0.c.b16.cont [3/8] %v3483, 128
          %3562 = vxpose.xlu0.c.b16.cont [4/8] %v3485, 128
          %3563 = vxpose.xlu0.c.b16.cont [5/8] %v3487, 128
          %3564 = vxpose.xlu0.c.b16.cont [6/8] %v3489, 128
          %3565 = vxpose.xlu0.c.b16.cont [7/8] %v3491, 128
          %3566 = vxpose.xlu0.c.b16.end [8/8] %v3493, 128
          %v3567 = vpop.trf.xlu0
          %v3568 = vpop.trf.xlu0
          %v3569 = vpop.trf.xlu0
          %v3570 = vpop.trf.xlu0
          %v3571 = vpop.trf.xlu0
          %v3572 = vpop.trf.xlu0
          %v3573 = vpop.trf.xlu0
          %v3574 = vpop.trf.xlu0
          %3575 = vxpose.xlu0.c.b16.start [1/8] %v3480, 128
          %3576 = vxpose.xlu0.c.b16.cont [2/8] %v3482, 128
          %3577 = vxpose.xlu0.c.b16.cont [3/8] %v3484, 128
          %3578 = vxpose.xlu0.c.b16.cont [4/8] %v3486, 128
          %3579 = vxpose.xlu0.c.b16.cont [5/8] %v3488, 128
          %3580 = vxpose.xlu0.c.b16.cont [6/8] %v3490, 128
          %3581 = vxpose.xlu0.c.b16.cont [7/8] %v3492, 128
          %3582 = vxpose.xlu0.c.b16.end [8/8] %v3494, 128
          %v3583 = vpop.trf.xlu0
          %v3584 = vpop.trf.xlu0
          %v3585 = vpop.trf.xlu0
          %v3586 = vpop.trf.xlu0
          %v3587 = vpop.trf.xlu0
          %v3588 = vpop.trf.xlu0
          %v3589 = vpop.trf.xlu0
          %v3590 = vpop.trf.xlu0
          %3591 = vmatprep.subr.bf16.mxu0 %v3496
          %3592 = vmatpush1.bf16.msra.mxu0 %v3495
          %3593 = vmatprep.subr.bf16.mxu0 %v3498
          %3594 = vmatpush1.bf16.msra.mxu0 %v3497
          %3595 = vmatprep.subr.bf16.mxu0 %v3500
          %3596 = vmatpush1.bf16.msra.mxu0 %v3499
          %3597 = vmatprep.subr.bf16.mxu0 %v3502
          %3598 = vmatpush1.bf16.msra.mxu0 %v3501
          %3599 = vmatprep.subr.bf16.mxu0 %v3504
          %3600 = vmatpush1.bf16.msra.mxu0 %v3503
          %3601 = vmatprep.subr.bf16.mxu0 %v3506
          %3602 = vmatpush1.bf16.msra.mxu0 %v3505
          %3603 = vmatprep.subr.bf16.mxu0 %v3508
          %3604 = vmatpush1.bf16.msra.mxu0 %v3507
          %3605 = vmatprep.subr.bf16.mxu0 %v3510
          %3606 = vmatpush1.bf16.msra.mxu0 %v3509
          %3607 = vmatprep.subr.bf16.mxu0 %v3512
          %3608 = vmatpush1.bf16.msra.mxu0 %v3511
          %3609 = vmatprep.subr.bf16.mxu0 %v3514
          %3610 = vmatpush1.bf16.msra.mxu0 %v3513
          %3611 = vmatprep.subr.bf16.mxu0 %v3516
          %3612 = vmatpush1.bf16.msra.mxu0 %v3515
          %3613 = vmatprep.subr.bf16.mxu0 %v3518
          %3614 = vmatpush1.bf16.msra.mxu0 %v3517
          %3615 = vmatprep.subr.bf16.mxu0 %v3520
          %3616 = vmatpush1.bf16.msra.mxu0 %v3519
          %3617 = vmatprep.subr.bf16.mxu0 %v3522
          %3618 = vmatpush1.bf16.msra.mxu0 %v3521
          %3619 = vmatprep.subr.bf16.mxu0 %v3524
          %3620 = vmatpush1.bf16.msra.mxu0 %v3523
          %3621 = vmatprep.subr.bf16.mxu0 %v3526
          %3622 = vmatpush1.bf16.msra.mxu0 %v3525
          %3623 = vmatprep.mubr.bf16.mxu0 %v3567
          %3624 = vmatmul.mubr.bf16.gmra.mrb[0].mxu0 %v3535
          %v3625 = vpop.f32.mrb[0].mxu0
          %v3626 = vadd.f32 0.0, %v3625
          %v3627 = vpop.f32.mrb[0].mxu0
          %v3628 = vadd.f32 0.0, %v3627
          %v3629 = vpop.f32.mrb[0].mxu0
          %v3630 = vadd.f32 0.0, %v3629
          %v3631 = vpop.f32.mrb[0].mxu0
          %v3632 = vadd.f32 0.0, %v3631
          %3633 = vmatprep.mubr.bf16.mxu0 %v3568
          %3634 = vmatmul.mubr.bf16.gmra.mrb[0].mxu0 %v3536
          %v3635 = vpop.f32.mrb[0].mxu0
          %v3636 = vadd.f32 0.0, %v3635
          %v3637 = vpop.f32.mrb[0].mxu0
          %v3638 = vadd.f32 0.0, %v3637
          %v3639 = vpop.f32.mrb[0].mxu0
          %v3640 = vadd.f32 0.0, %v3639
          %v3641 = vpop.f32.mrb[0].mxu0
          %v3642 = vadd.f32 0.0, %v3641
          %3643 = vmatprep.mubr.bf16.mxu0 %v3569
          %3644 = vmatmul.mubr.bf16.gmra.mrb[0].mxu0 %v3537
          %v3645 = vpop.f32.mrb[0].mxu0
          %v3646 = vadd.f32 0.0, %v3645
          %v3647 = vpop.f32.mrb[0].mxu0
          %v3648 = vadd.f32 0.0, %v3647
          %v3649 = vpop.f32.mrb[0].mxu0
          %v3650 = vadd.f32 0.0, %v3649
          %v3651 = vpop.f32.mrb[0].mxu0
          %v3652 = vadd.f32 0.0, %v3651
          %3653 = vmatprep.mubr.bf16.mxu0 %v3570
          %3654 = vmatmul.mubr.bf16.gmra.mrb[0].mxu0 %v3538
          %v3655 = vpop.f32.mrb[0].mxu0
          %v3656 = vadd.f32 0.0, %v3655
          %v3657 = vpop.f32.mrb[0].mxu0
          %v3658 = vadd.f32 0.0, %v3657
          %v3659 = vpop.f32.mrb[0].mxu0
          %v3660 = vadd.f32 0.0, %v3659
          %v3661 = vpop.f32.mrb[0].mxu0
          %v3662 = vadd.f32 0.0, %v3661
          %3663 = vmatprep.mubr.bf16.mxu0 %v3571
          %3664 = vmatmul.mubr.bf16.gmra.mrb[0].mxu0 %v3539
          %v3665 = vpop.f32.mrb[0].mxu0
          %v3666 = vadd.f32 0.0, %v3665
          %v3667 = vpop.f32.mrb[0].mxu0
          %v3668 = vadd.f32 0.0, %v3667
          %v3669 = vpop.f32.mrb[0].mxu0
          %v3670 = vadd.f32 0.0, %v3669
          %v3671 = vpop.f32.mrb[0].mxu0
          %v3672 = vadd.f32 0.0, %v3671
          %3673 = vmatprep.mubr.bf16.mxu0 %v3572
          %3674 = vmatmul.mubr.bf16.gmra.mrb[0].mxu0 %v3540
          %v3675 = vpop.f32.mrb[0].mxu0
          %v3676 = vadd.f32 0.0, %v3675
          %v3677 = vpop.f32.mrb[0].mxu0
          %v3678 = vadd.f32 0.0, %v3677
          %v3679 = vpop.f32.mrb[0].mxu0
          %v3680 = vadd.f32 0.0, %v3679
          %v3681 = vpop.f32.mrb[0].mxu0
          %v3682 = vadd.f32 0.0, %v3681
          %3683 = vmatprep.mubr.bf16.mxu0 %v3573
          %3684 = vmatmul.mubr.bf16.gmra.mrb[0].mxu0 %v3541
          %v3685 = vpop.f32.mrb[0].mxu0
          %v3686 = vadd.f32 0.0, %v3685
          %v3687 = vpop.f32.mrb[0].mxu0
          %v3688 = vadd.f32 0.0, %v3687
          %v3689 = vpop.f32.mrb[0].mxu0
          %v3690 = vadd.f32 0.0, %v3689
          %v3691 = vpop.f32.mrb[0].mxu0
          %v3692 = vadd.f32 0.0, %v3691
          %3693 = vmatprep.mubr.bf16.mxu0 %v3574
          %3694 = vmatmul.mubr.bf16.gmra.mrb[0].mxu0 %v3542
          %v3695 = vpop.f32.mrb[0].mxu0
          %v3696 = vadd.f32 0.0, %v3695
          %v3697 = vpop.f32.mrb[0].mxu0
          %v3698 = vadd.f32 0.0, %v3697
          %v3699 = vpop.f32.mrb[0].mxu0
          %v3700 = vadd.f32 0.0, %v3699
          %v3701 = vpop.f32.mrb[0].mxu0
          %v3702 = vadd.f32 0.0, %v3701
          %3703 = vmatprep.mubr.bf16.mxu0 %v3583
          %3704 = vmatmul.mubr.bf16.gmra.mrb[0].mxu0 %v3551
          %v3705 = vpop.f32.mrb[0].mxu0
          %v3706 = vadd.f32 0.0, %v3705
          %v3707 = vpop.f32.mrb[0].mxu0
          %v3708 = vadd.f32 0.0, %v3707
          %v3709 = vpop.f32.mrb[0].mxu0
          %v3710 = vadd.f32 0.0, %v3709
          %v3711 = vpop.f32.mrb[0].mxu0
          %v3712 = vadd.f32 0.0, %v3711
          %3713 = vmatprep.mubr.bf16.mxu0 %v3584
          %3714 = vmatmul.mubr.bf16.gmra.mrb[0].mxu0 %v3552
          %v3715 = vpop.f32.mrb[0].mxu0
          %v3716 = vadd.f32 0.0, %v3715
          %v3717 = vpop.f32.mrb[0].mxu0
          %v3718 = vadd.f32 0.0, %v3717
          %v3719 = vpop.f32.mrb[0].mxu0
          %v3720 = vadd.f32 0.0, %v3719
          %v3721 = vpop.f32.mrb[0].mxu0
          %v3722 = vadd.f32 0.0, %v3721
          %3723 = vmatprep.mubr.bf16.mxu0 %v3585
          %3724 = vmatmul.mubr.bf16.gmra.mrb[0].mxu0 %v3553
          %v3725 = vpop.f32.mrb[0].mxu0
          %v3726 = vadd.f32 0.0, %v3725
          %v3727 = vpop.f32.mrb[0].mxu0
          %v3728 = vadd.f32 0.0, %v3727
          %v3729 = vpop.f32.mrb[0].mxu0
          %v3730 = vadd.f32 0.0, %v3729
          %v3731 = vpop.f32.mrb[0].mxu0
          %v3732 = vadd.f32 0.0, %v3731
          %3733 = vmatprep.mubr.bf16.mxu0 %v3586
          %3734 = vmatmul.mubr.bf16.gmra.mrb[0].mxu0 %v3554
          %v3735 = vpop.f32.mrb[0].mxu0
          %v3736 = vadd.f32 0.0, %v3735
          %v3737 = vpop.f32.mrb[0].mxu0
          %v3738 = vadd.f32 0.0, %v3737
          %v3739 = vpop.f32.mrb[0].mxu0
          %v3740 = vadd.f32 0.0, %v3739
          %v3741 = vpop.f32.mrb[0].mxu0
          %v3742 = vadd.f32 0.0, %v3741
          %3743 = vmatprep.mubr.bf16.mxu0 %v3587
          %3744 = vmatmul.mubr.bf16.gmra.mrb[0].mxu0 %v3555
          %v3745 = vpop.f32.mrb[0].mxu0
          %v3746 = vadd.f32 0.0, %v3745
          %v3747 = vpop.f32.mrb[0].mxu0
          %v3748 = vadd.f32 0.0, %v3747
          %v3749 = vpop.f32.mrb[0].mxu0
          %v3750 = vadd.f32 0.0, %v3749
          %v3751 = vpop.f32.mrb[0].mxu0
          %v3752 = vadd.f32 0.0, %v3751
          %3753 = vmatprep.mubr.bf16.mxu0 %v3588
          %3754 = vmatmul.mubr.bf16.gmra.mrb[0].mxu0 %v3556
          %v3755 = vpop.f32.mrb[0].mxu0
          %v3756 = vadd.f32 0.0, %v3755
          %v3757 = vpop.f32.mrb[0].mxu0
          %v3758 = vadd.f32 0.0, %v3757
          %v3759 = vpop.f32.mrb[0].mxu0
          %v3760 = vadd.f32 0.0, %v3759
          %v3761 = vpop.f32.mrb[0].mxu0
          %v3762 = vadd.f32 0.0, %v3761
          %3763 = vmatprep.mubr.bf16.mxu0 %v3589
          %3764 = vmatmul.mubr.bf16.gmra.mrb[0].mxu0 %v3557
          %v3765 = vpop.f32.mrb[0].mxu0
          %v3766 = vadd.f32 0.0, %v3765
          %v3767 = vpop.f32.mrb[0].mxu0
          %v3768 = vadd.f32 0.0, %v3767
          %v3769 = vpop.f32.mrb[0].mxu0
          %v3770 = vadd.f32 0.0, %v3769
          %v3771 = vpop.f32.mrb[0].mxu0
          %v3772 = vadd.f32 0.0, %v3771
          %3773 = vmatprep.mubr.bf16.mxu0 %v3590
          %3774 = vmatmul.mubr.bf16.gmra.mrb[0].mxu0 %v3558
          %v3775 = vpop.f32.mrb[0].mxu0
          %v3776 = vadd.f32 0.0, %v3775
          %v3777 = vpop.f32.mrb[0].mxu0
          %v3778 = vadd.f32 0.0, %v3777
          %v3779 = vpop.f32.mrb[0].mxu0
          %v3780 = vadd.f32 0.0, %v3779
          %v3781 = vpop.f32.mrb[0].mxu0
          %v3782 = vadd.f32 0.0, %v3781
          %3783 = vdwg.mxu0
          %v3784 = vmax.f32 %v3626, %v3628
          %3785 = vmax.xlane.f32.xlu0 %v3784
          %v3786 = vpop.xlane.xlu0 %3785
          %v3787 = vmax.f32 %v3630, %v3632
          %3788 = vmax.xlane.f32.xlu0 %v3787
          %v3789 = vpop.xlane.xlu0 %3788
          %v3790 = vmax.f32 %v3636, %v3638
          %3791 = vmax.xlane.f32.xlu0 %v3790
          %v3792 = vpop.xlane.xlu0 %3791
          %v3793 = vmax.f32 %v3640, %v3642
          %3794 = vmax.xlane.f32.xlu0 %v3793
          %v3795 = vpop.xlane.xlu0 %3794
          %v3796 = vmax.f32 %v3646, %v3648
          %3797 = vmax.xlane.f32.xlu0 %v3796
          %v3798 = vpop.xlane.xlu0 %3797
          %v3799 = vmax.f32 %v3650, %v3652
          %3800 = vmax.xlane.f32.xlu0 %v3799
          %v3801 = vpop.xlane.xlu0 %3800
          %v3802 = vmax.f32 %v3656, %v3658
          %3803 = vmax.xlane.f32.xlu0 %v3802
          %v3804 = vpop.xlane.xlu0 %3803
          %v3805 = vmax.f32 %v3660, %v3662
          %3806 = vmax.xlane.f32.xlu0 %v3805
          %v3807 = vpop.xlane.xlu0 %3806
          %v3808 = vmax.f32 %v3666, %v3668
          %3809 = vmax.xlane.f32.xlu0 %v3808
          %v3810 = vpop.xlane.xlu0 %3809
          %v3811 = vmax.f32 %v3670, %v3672
          %3812 = vmax.xlane.f32.xlu0 %v3811
          %v3813 = vpop.xlane.xlu0 %3812
          %v3814 = vmax.f32 %v3676, %v3678
          %3815 = vmax.xlane.f32.xlu0 %v3814
          %v3816 = vpop.xlane.xlu0 %3815
          %v3817 = vmax.f32 %v3680, %v3682
          %3818 = vmax.xlane.f32.xlu0 %v3817
          %v3819 = vpop.xlane.xlu0 %3818
          %v3820 = vmax.f32 %v3686, %v3688
          %3821 = vmax.xlane.f32.xlu0 %v3820
          %v3822 = vpop.xlane.xlu0 %3821
          %v3823 = vmax.f32 %v3690, %v3692
          %3824 = vmax.xlane.f32.xlu0 %v3823
          %v3825 = vpop.xlane.xlu0 %3824
          %v3826 = vmax.f32 %v3696, %v3698
          %3827 = vmax.xlane.f32.xlu0 %v3826
          %v3828 = vpop.xlane.xlu0 %3827
          %v3829 = vmax.f32 %v3700, %v3702
          %3830 = vmax.xlane.f32.xlu0 %v3829
          %v3831 = vpop.xlane.xlu0 %3830
          %v3832 = vmax.f32 %v3706, %v3708
          %3833 = vmax.xlane.f32.xlu0 %v3832
          %v3834 = vpop.xlane.xlu0 %3833
          %v3835 = vmax.f32 %v3710, %v3712
          %3836 = vmax.xlane.f32.xlu0 %v3835
          %v3837 = vpop.xlane.xlu0 %3836
          %v3838 = vmax.f32 %v3716, %v3718
          %3839 = vmax.xlane.f32.xlu0 %v3838
          %v3840 = vpop.xlane.xlu0 %3839
          %v3841 = vmax.f32 %v3720, %v3722
          %3842 = vmax.xlane.f32.xlu0 %v3841
          %v3843 = vpop.xlane.xlu0 %3842
          %v3844 = vmax.f32 %v3726, %v3728
          %3845 = vmax.xlane.f32.xlu0 %v3844
          %v3846 = vpop.xlane.xlu0 %3845
          %v3847 = vmax.f32 %v3730, %v3732
          %3848 = vmax.xlane.f32.xlu0 %v3847
          %v3849 = vpop.xlane.xlu0 %3848
          %v3850 = vmax.f32 %v3736, %v3738
          %3851 = vmax.xlane.f32.xlu0 %v3850
          %v3852 = vpop.xlane.xlu0 %3851
          %v3853 = vmax.f32 %v3740, %v3742
          %3854 = vmax.xlane.f32.xlu0 %v3853
          %v3855 = vpop.xlane.xlu0 %3854
          %v3856 = vmax.f32 %v3746, %v3748
          %3857 = vmax.xlane.f32.xlu0 %v3856
          %v3858 = vpop.xlane.xlu0 %3857
          %v3859 = vmax.f32 %v3750, %v3752
          %3860 = vmax.xlane.f32.xlu0 %v3859
          %v3861 = vpop.xlane.xlu0 %3860
          %v3862 = vmax.f32 %v3756, %v3758
          %3863 = vmax.xlane.f32.xlu0 %v3862
          %v3864 = vpop.xlane.xlu0 %3863
          %v3865 = vmax.f32 %v3760, %v3762
          %3866 = vmax.xlane.f32.xlu0 %v3865
          %v3867 = vpop.xlane.xlu0 %3866
          %v3868 = vmax.f32 %v3766, %v3768
          %3869 = vmax.xlane.f32.xlu0 %v3868
          %v3870 = vpop.xlane.xlu0 %3869
          %v3871 = vmax.f32 %v3770, %v3772
          %3872 = vmax.xlane.f32.xlu0 %v3871
          %v3873 = vpop.xlane.xlu0 %3872
          %v3874 = vmax.f32 %v3776, %v3778
          %3875 = vmax.xlane.f32.xlu0 %v3874
          %v3876 = vpop.xlane.xlu0 %3875
          %v3877 = vmax.f32 %v3780, %v3782
          %3878 = vmax.xlane.f32.xlu0 %v3877
          %v3879 = vpop.xlane.xlu0 %3878
          %v3880 = vsub.f32 %v3626, %v3786
          %v3881 = vsub.f32 %v3628, %v3786
          %v3882 = vsub.f32 %v3630, %v3789
          %v3883 = vsub.f32 %v3632, %v3789
          %v3884 = vsub.f32 %v3636, %v3792
          %v3885 = vsub.f32 %v3638, %v3792
          %v3886 = vsub.f32 %v3640, %v3795
          %v3887 = vsub.f32 %v3642, %v3795
          %v3888 = vsub.f32 %v3646, %v3798
          %v3889 = vsub.f32 %v3648, %v3798
          %v3890 = vsub.f32 %v3650, %v3801
          %v3891 = vsub.f32 %v3652, %v3801
          %v3892 = vsub.f32 %v3656, %v3804
          %v3893 = vsub.f32 %v3658, %v3804
          %v3894 = vsub.f32 %v3660, %v3807
          %v3895 = vsub.f32 %v3662, %v3807
          %v3896 = vsub.f32 %v3666, %v3810
          %v3897 = vsub.f32 %v3668, %v3810
          %v3898 = vsub.f32 %v3670, %v3813
          %v3899 = vsub.f32 %v3672, %v3813
          %v3900 = vsub.f32 %v3676, %v3816
          %v3901 = vsub.f32 %v3678, %v3816
          %v3902 = vsub.f32 %v3680, %v3819
          %v3903 = vsub.f32 %v3682, %v3819
          %v3904 = vsub.f32 %v3686, %v3822
          %v3905 = vsub.f32 %v3688, %v3822
          %v3906 = vsub.f32 %v3690, %v3825
          %v3907 = vsub.f32 %v3692, %v3825
          %v3908 = vsub.f32 %v3696, %v3828
          %v3909 = vsub.f32 %v3698, %v3828
          %v3910 = vsub.f32 %v3700, %v3831
          %v3911 = vsub.f32 %v3702, %v3831
          %v3912 = vsub.f32 %v3706, %v3834
          %v3913 = vsub.f32 %v3708, %v3834
          %v3914 = vsub.f32 %v3710, %v3837
          %v3915 = vsub.f32 %v3712, %v3837
          %v3916 = vsub.f32 %v3716, %v3840
          %v3917 = vsub.f32 %v3718, %v3840
          %v3918 = vsub.f32 %v3720, %v3843
          %v3919 = vsub.f32 %v3722, %v3843
          %v3920 = vsub.f32 %v3726, %v3846
          %v3921 = vsub.f32 %v3728, %v3846
          %v3922 = vsub.f32 %v3730, %v3849
          %v3923 = vsub.f32 %v3732, %v3849
          %v3924 = vsub.f32 %v3736, %v3852
          %v3925 = vsub.f32 %v3738, %v3852
          %v3926 = vsub.f32 %v3740, %v3855
          %v3927 = vsub.f32 %v3742, %v3855
          %v3928 = vsub.f32 %v3746, %v3858
          %v3929 = vsub.f32 %v3748, %v3858
          %v3930 = vsub.f32 %v3750, %v3861
          %v3931 = vsub.f32 %v3752, %v3861
          %v3932 = vsub.f32 %v3756, %v3864
          %v3933 = vsub.f32 %v3758, %v3864
          %v3934 = vsub.f32 %v3760, %v3867
          %v3935 = vsub.f32 %v3762, %v3867
          %v3936 = vsub.f32 %v3766, %v3870
          %v3937 = vsub.f32 %v3768, %v3870
          %v3938 = vsub.f32 %v3770, %v3873
          %v3939 = vsub.f32 %v3772, %v3873
          %v3940 = vsub.f32 %v3776, %v3876
          %v3941 = vsub.f32 %v3778, %v3876
          %v3942 = vsub.f32 %v3780, %v3879
          %v3943 = vsub.f32 %v3782, %v3879
          %v3944 = vmul.f32 %v3880, 1.442695
          %v3945 = vpow.pop %v3944
          %v3946 = vmul.f32 %v3881, 1.442695
          %v3947 = vpow.pop %v3946
          %v3948 = vmul.f32 %v3882, 1.442695
          %v3949 = vpow.pop %v3948
          %v3950 = vmul.f32 %v3883, 1.442695
          %v3951 = vpow.pop %v3950
          %v3952 = vmul.f32 %v3884, 1.442695
          %v3953 = vpow.pop %v3952
          %v3954 = vmul.f32 %v3885, 1.442695
          %v3955 = vpow.pop %v3954
          %v3956 = vmul.f32 %v3886, 1.442695
          %v3957 = vpow.pop %v3956
          %v3958 = vmul.f32 %v3887, 1.442695
          %v3959 = vpow.pop %v3958
          %v3960 = vmul.f32 %v3888, 1.442695
          %v3961 = vpow.pop %v3960
          %v3962 = vmul.f32 %v3889, 1.442695
          %v3963 = vpow.pop %v3962
          %v3964 = vmul.f32 %v3890, 1.442695
          %v3965 = vpow.pop %v3964
          %v3966 = vmul.f32 %v3891, 1.442695
          %v3967 = vpow.pop %v3966
          %v3968 = vmul.f32 %v3892, 1.442695
          %v3969 = vpow.pop %v3968
          %v3970 = vmul.f32 %v3893, 1.442695
          %v3971 = vpow.pop %v3970
          %v3972 = vmul.f32 %v3894, 1.442695
          %v3973 = vpow.pop %v3972
          %v3974 = vmul.f32 %v3895, 1.442695
          %v3975 = vpow.pop %v3974
          %v3976 = vmul.f32 %v3896, 1.442695
          %v3977 = vpow.pop %v3976
          %v3978 = vmul.f32 %v3897, 1.442695
          %v3979 = vpow.pop %v3978
          %v3980 = vmul.f32 %v3898, 1.442695
          %v3981 = vpow.pop %v3980
          %v3982 = vmul.f32 %v3899, 1.442695
          %v3983 = vpow.pop %v3982
          %v3984 = vmul.f32 %v3900, 1.442695
          %v3985 = vpow.pop %v3984
          %v3986 = vmul.f32 %v3901, 1.442695
          %v3987 = vpow.pop %v3986
          %v3988 = vmul.f32 %v3902, 1.442695
          %v3989 = vpow.pop %v3988
          %v3990 = vmul.f32 %v3903, 1.442695
          %v3991 = vpow.pop %v3990
          %v3992 = vmul.f32 %v3904, 1.442695
          %v3993 = vpow.pop %v3992
          %v3994 = vmul.f32 %v3905, 1.442695
          %v3995 = vpow.pop %v3994
          %v3996 = vmul.f32 %v3906, 1.442695
          %v3997 = vpow.pop %v3996
          %v3998 = vmul.f32 %v3907, 1.442695
          %v3999 = vpow.pop %v3998
          %v4000 = vmul.f32 %v3908, 1.442695
          %v4001 = vpow.pop %v4000
          %v4002 = vmul.f32 %v3909, 1.442695
          %v4003 = vpow.pop %v4002
          %v4004 = vmul.f32 %v3910, 1.442695
          %v4005 = vpow.pop %v4004
          %v4006 = vmul.f32 %v3911, 1.442695
          %v4007 = vpow.pop %v4006
          %v4008 = vmul.f32 %v3912, 1.442695
          %v4009 = vpow.pop %v4008
          %v4010 = vmul.f32 %v3913, 1.442695
          %v4011 = vpow.pop %v4010
          %v4012 = vmul.f32 %v3914, 1.442695
          %v4013 = vpow.pop %v4012
          %v4014 = vmul.f32 %v3915, 1.442695
          %v4015 = vpow.pop %v4014
          %v4016 = vmul.f32 %v3916, 1.442695
          %v4017 = vpow.pop %v4016
          %v4018 = vmul.f32 %v3917, 1.442695
          %v4019 = vpow.pop %v4018
          %v4020 = vmul.f32 %v3918, 1.442695
          %v4021 = vpow.pop %v4020
          %v4022 = vmul.f32 %v3919, 1.442695
          %v4023 = vpow.pop %v4022
          %v4024 = vmul.f32 %v3920, 1.442695
          %v4025 = vpow.pop %v4024
          %v4026 = vmul.f32 %v3921, 1.442695
          %v4027 = vpow.pop %v4026
          %v4028 = vmul.f32 %v3922, 1.442695
          %v4029 = vpow.pop %v4028
          %v4030 = vmul.f32 %v3923, 1.442695
          %v4031 = vpow.pop %v4030
          %v4032 = vmul.f32 %v3924, 1.442695
          %v4033 = vpow.pop %v4032
          %v4034 = vmul.f32 %v3925, 1.442695
          %v4035 = vpow.pop %v4034
          %v4036 = vmul.f32 %v3926, 1.442695
          %v4037 = vpow.pop %v4036
          %v4038 = vmul.f32 %v3927, 1.442695
          %v4039 = vpow.pop %v4038
          %v4040 = vmul.f32 %v3928, 1.442695
          %v4041 = vpow.pop %v4040
          %v4042 = vmul.f32 %v3929, 1.442695
          %v4043 = vpow.pop %v4042
          %v4044 = vmul.f32 %v3930, 1.442695
          %v4045 = vpow.pop %v4044
          %v4046 = vmul.f32 %v3931, 1.442695
          %v4047 = vpow.pop %v4046
          %v4048 = vmul.f32 %v3932, 1.442695
          %v4049 = vpow.pop %v4048
          %v4050 = vmul.f32 %v3933, 1.442695
          %v4051 = vpow.pop %v4050
          %v4052 = vmul.f32 %v3934, 1.442695
          %v4053 = vpow.pop %v4052
          %v4054 = vmul.f32 %v3935, 1.442695
          %v4055 = vpow.pop %v4054
          %v4056 = vmul.f32 %v3936, 1.442695
          %v4057 = vpow.pop %v4056
          %v4058 = vmul.f32 %v3937, 1.442695
          %v4059 = vpow.pop %v4058
          %v4060 = vmul.f32 %v3938, 1.442695
          %v4061 = vpow.pop %v4060
          %v4062 = vmul.f32 %v3939, 1.442695
          %v4063 = vpow.pop %v4062
          %v4064 = vmul.f32 %v3940, 1.442695
          %v4065 = vpow.pop %v4064
          %v4066 = vmul.f32 %v3941, 1.442695
          %v4067 = vpow.pop %v4066
          %v4068 = vmul.f32 %v3942, 1.442695
          %v4069 = vpow.pop %v4068
          %v4070 = vmul.f32 %v3943, 1.442695
          %v4071 = vpow.pop %v4070
          %v4072 = vadd.f32 %v3945, %v3947
          %4073 = vadd.xlane.f32.xlu0 %v4072
          %v4074 = vpop.xlane.xlu0 %4073
          %v4075 = vadd.f32 %v3949, %v3951
          %4076 = vadd.xlane.f32.xlu0 %v4075
          %v4077 = vpop.xlane.xlu0 %4076
          %v4078 = vadd.f32 %v3953, %v3955
          %4079 = vadd.xlane.f32.xlu0 %v4078
          %v4080 = vpop.xlane.xlu0 %4079
          %v4081 = vadd.f32 %v3957, %v3959
          %4082 = vadd.xlane.f32.xlu0 %v4081
          %v4083 = vpop.xlane.xlu0 %4082
          %v4084 = vadd.f32 %v3961, %v3963
          %4085 = vadd.xlane.f32.xlu0 %v4084
          %v4086 = vpop.xlane.xlu0 %4085
          %v4087 = vadd.f32 %v3965, %v3967
          %4088 = vadd.xlane.f32.xlu0 %v4087
          %v4089 = vpop.xlane.xlu0 %4088
          %v4090 = vadd.f32 %v3969, %v3971
          %4091 = vadd.xlane.f32.xlu0 %v4090
          %v4092 = vpop.xlane.xlu0 %4091
          %v4093 = vadd.f32 %v3973, %v3975
          %4094 = vadd.xlane.f32.xlu0 %v4093
          %v4095 = vpop.xlane.xlu0 %4094
          %v4096 = vadd.f32 %v3977, %v3979
          %4097 = vadd.xlane.f32.xlu0 %v4096
          %v4098 = vpop.xlane.xlu0 %4097
          %v4099 = vadd.f32 %v3981, %v3983
          %4100 = vadd.xlane.f32.xlu0 %v4099
          %v4101 = vpop.xlane.xlu0 %4100
          %v4102 = vadd.f32 %v3985, %v3987
          %4103 = vadd.xlane.f32.xlu0 %v4102
          %v4104 = vpop.xlane.xlu0 %4103
          %v4105 = vadd.f32 %v3989, %v3991
          %4106 = vadd.xlane.f32.xlu0 %v4105
          %v4107 = vpop.xlane.xlu0 %4106
          %v4108 = vadd.f32 %v3993, %v3995
          %4109 = vadd.xlane.f32.xlu0 %v4108
          %v4110 = vpop.xlane.xlu0 %4109
          %v4111 = vadd.f32 %v3997, %v3999
          %4112 = vadd.xlane.f32.xlu0 %v4111
          %v4113 = vpop.xlane.xlu0 %4112
          %v4114 = vadd.f32 %v4001, %v4003
          %4115 = vadd.xlane.f32.xlu0 %v4114
          %v4116 = vpop.xlane.xlu0 %4115
          %v4117 = vadd.f32 %v4005, %v4007
          %4118 = vadd.xlane.f32.xlu0 %v4117
          %v4119 = vpop.xlane.xlu0 %4118
          %v4120 = vadd.f32 %v4009, %v4011
          %4121 = vadd.xlane.f32.xlu0 %v4120
          %v4122 = vpop.xlane.xlu0 %4121
          %v4123 = vadd.f32 %v4013, %v4015
          %4124 = vadd.xlane.f32.xlu0 %v4123
          %v4125 = vpop.xlane.xlu0 %4124
          %v4126 = vadd.f32 %v4017, %v4019
          %4127 = vadd.xlane.f32.xlu0 %v4126
          %v4128 = vpop.xlane.xlu0 %4127
          %v4129 = vadd.f32 %v4021, %v4023
          %4130 = vadd.xlane.f32.xlu0 %v4129
          %v4131 = vpop.xlane.xlu0 %4130
          %v4132 = vadd.f32 %v4025, %v4027
          %4133 = vadd.xlane.f32.xlu0 %v4132
          %v4134 = vpop.xlane.xlu0 %4133
          %v4135 = vadd.f32 %v4029, %v4031
          %4136 = vadd.xlane.f32.xlu0 %v4135
          %v4137 = vpop.xlane.xlu0 %4136
          %v4138 = vadd.f32 %v4033, %v4035
          %4139 = vadd.xlane.f32.xlu0 %v4138
          %v4140 = vpop.xlane.xlu0 %4139
          %v4141 = vadd.f32 %v4037, %v4039
          %4142 = vadd.xlane.f32.xlu0 %v4141
          %v4143 = vpop.xlane.xlu0 %4142
          %v4144 = vadd.f32 %v4041, %v4043
          %4145 = vadd.xlane.f32.xlu0 %v4144
          %v4146 = vpop.xlane.xlu0 %4145
          %v4147 = vadd.f32 %v4045, %v4047
          %4148 = vadd.xlane.f32.xlu0 %v4147
          %v4149 = vpop.xlane.xlu0 %4148
          %v4150 = vadd.f32 %v4049, %v4051
          %4151 = vadd.xlane.f32.xlu0 %v4150
          %v4152 = vpop.xlane.xlu0 %4151
          %v4153 = vadd.f32 %v4053, %v4055
          %4154 = vadd.xlane.f32.xlu0 %v4153
          %v4155 = vpop.xlane.xlu0 %4154
          %v4156 = vadd.f32 %v4057, %v4059
          %4157 = vadd.xlane.f32.xlu0 %v4156
          %v4158 = vpop.xlane.xlu0 %4157
          %v4159 = vadd.f32 %v4061, %v4063
          %4160 = vadd.xlane.f32.xlu0 %v4159
          %v4161 = vpop.xlane.xlu0 %4160
          %v4162 = vadd.f32 %v4065, %v4067
          %4163 = vadd.xlane.f32.xlu0 %v4162
          %v4164 = vpop.xlane.xlu0 %4163
          %v4165 = vadd.f32 %v4069, %v4071
          %4166 = vadd.xlane.f32.xlu0 %v4165
          %v4167 = vpop.xlane.xlu0 %4166
          %v4168 = vrcp.pop %v4074
          %v4169 = vmul.f32 %v3945, %v4168
          %v4170 = vmul.f32 %v3947, %v4168
          %v4171 = vrcp.pop %v4077
          %v4172 = vmul.f32 %v3949, %v4171
          %v4173 = vmul.f32 %v3951, %v4171
          %v4174 = vrcp.pop %v4080
          %v4175 = vmul.f32 %v3953, %v4174
          %v4176 = vmul.f32 %v3955, %v4174
          %v4177 = vrcp.pop %v4083
          %v4178 = vmul.f32 %v3957, %v4177
          %v4179 = vmul.f32 %v3959, %v4177
          %v4180 = vrcp.pop %v4086
          %v4181 = vmul.f32 %v3961, %v4180
          %v4182 = vmul.f32 %v3963, %v4180
          %v4183 = vrcp.pop %v4089
          %v4184 = vmul.f32 %v3965, %v4183
          %v4185 = vmul.f32 %v3967, %v4183
          %v4186 = vrcp.pop %v4092
          %v4187 = vmul.f32 %v3969, %v4186
          %v4188 = vmul.f32 %v3971, %v4186
          %v4189 = vrcp.pop %v4095
          %v4190 = vmul.f32 %v3973, %v4189
          %v4191 = vmul.f32 %v3975, %v4189
          %v4192 = vrcp.pop %v4098
          %v4193 = vmul.f32 %v3977, %v4192
          %v4194 = vmul.f32 %v3979, %v4192
          %v4195 = vrcp.pop %v4101
          %v4196 = vmul.f32 %v3981, %v4195
          %v4197 = vmul.f32 %v3983, %v4195
          %v4198 = vrcp.pop %v4104
          %v4199 = vmul.f32 %v3985, %v4198
          %v4200 = vmul.f32 %v3987, %v4198
          %v4201 = vrcp.pop %v4107
          %v4202 = vmul.f32 %v3989, %v4201
          %v4203 = vmul.f32 %v3991, %v4201
          %v4204 = vrcp.pop %v4110
          %v4205 = vmul.f32 %v3993, %v4204
          %v4206 = vmul.f32 %v3995, %v4204
          %v4207 = vrcp.pop %v4113
          %v4208 = vmul.f32 %v3997, %v4207
          %v4209 = vmul.f32 %v3999, %v4207
          %v4210 = vrcp.pop %v4116
          %v4211 = vmul.f32 %v4001, %v4210
          %v4212 = vmul.f32 %v4003, %v4210
          %v4213 = vrcp.pop %v4119
          %v4214 = vmul.f32 %v4005, %v4213
          %v4215 = vmul.f32 %v4007, %v4213
          %v4216 = vrcp.pop %v4122
          %v4217 = vmul.f32 %v4009, %v4216
          %v4218 = vmul.f32 %v4011, %v4216
          %v4219 = vrcp.pop %v4125
          %v4220 = vmul.f32 %v4013, %v4219
          %v4221 = vmul.f32 %v4015, %v4219
          %v4222 = vrcp.pop %v4128
          %v4223 = vmul.f32 %v4017, %v4222
          %v4224 = vmul.f32 %v4019, %v4222
          %v4225 = vrcp.pop %v4131
          %v4226 = vmul.f32 %v4021, %v4225
          %v4227 = vmul.f32 %v4023, %v4225
          %v4228 = vrcp.pop %v4134
          %v4229 = vmul.f32 %v4025, %v4228
          %v4230 = vmul.f32 %v4027, %v4228
          %v4231 = vrcp.pop %v4137
          %v4232 = vmul.f32 %v4029, %v4231
          %v4233 = vmul.f32 %v4031, %v4231
          %v4234 = vrcp.pop %v4140
          %v4235 = vmul.f32 %v4033, %v4234
          %v4236 = vmul.f32 %v4035, %v4234
          %v4237 = vrcp.pop %v4143
          %v4238 = vmul.f32 %v4037, %v4237
          %v4239 = vmul.f32 %v4039, %v4237
          %v4240 = vrcp.pop %v4146
          %v4241 = vmul.f32 %v4041, %v4240
          %v4242 = vmul.f32 %v4043, %v4240
          %v4243 = vrcp.pop %v4149
          %v4244 = vmul.f32 %v4045, %v4243
          %v4245 = vmul.f32 %v4047, %v4243
          %v4246 = vrcp.pop %v4152
          %v4247 = vmul.f32 %v4049, %v4246
          %v4248 = vmul.f32 %v4051, %v4246
          %v4249 = vrcp.pop %v4155
          %v4250 = vmul.f32 %v4053, %v4249
          %v4251 = vmul.f32 %v4055, %v4249
          %v4252 = vrcp.pop %v4158
          %v4253 = vmul.f32 %v4057, %v4252
          %v4254 = vmul.f32 %v4059, %v4252
          %v4255 = vrcp.pop %v4161
          %v4256 = vmul.f32 %v4061, %v4255
          %v4257 = vmul.f32 %v4063, %v4255
          %v4258 = vrcp.pop %v4164
          %v4259 = vmul.f32 %v4065, %v4258
          %v4260 = vmul.f32 %v4067, %v4258
          %v4261 = vrcp.pop %v4167
          %v4262 = vmul.f32 %v4069, %v4261
          %v4263 = vmul.f32 %v4071, %v4261
          %4264 = vmatprep.subr.mxu0 %v4170
          %4265 = vmatpush1.msra.mxu0 %v4169
          %4266 = vmatprep.subr.mxu0 %v4173
          %4267 = vmatpush1.msra.mxu0 %v4172
          %4268 = vmatprep.subr.mxu0 %v4176
          %4269 = vmatpush1.msra.mxu0 %v4175
          %4270 = vmatprep.subr.mxu0 %v4179
          %4271 = vmatpush1.msra.mxu0 %v4178
          %4272 = vmatprep.subr.mxu0 %v4182
          %4273 = vmatpush1.msra.mxu0 %v4181
          %4274 = vmatprep.subr.mxu0 %v4185
          %4275 = vmatpush1.msra.mxu0 %v4184
          %4276 = vmatprep.subr.mxu0 %v4188
          %4277 = vmatpush1.msra.mxu0 %v4187
          %4278 = vmatprep.subr.mxu0 %v4191
          %4279 = vmatpush1.msra.mxu0 %v4190
          %4280 = vmatprep.subr.mxu0 %v4194
          %4281 = vmatpush1.msra.mxu0 %v4193
          %4282 = vmatprep.subr.mxu0 %v4197
          %4283 = vmatpush1.msra.mxu0 %v4196
          %4284 = vmatprep.subr.mxu0 %v4200
          %4285 = vmatpush1.msra.mxu0 %v4199
          %4286 = vmatprep.subr.mxu0 %v4203
          %4287 = vmatpush1.msra.mxu0 %v4202
          %4288 = vmatprep.subr.mxu0 %v4206
          %4289 = vmatpush1.msra.mxu0 %v4205
          %4290 = vmatprep.subr.mxu0 %v4209
          %4291 = vmatpush1.msra.mxu0 %v4208
          %4292 = vmatprep.subr.mxu0 %v4212
          %4293 = vmatpush1.msra.mxu0 %v4211
          %4294 = vmatprep.subr.mxu0 %v4215
          %4295 = vmatpush1.msra.mxu0 %v4214
          %4296 = vmatprep.subr.mxu0 %v4218
          %4297 = vmatpush1.msra.mxu0 %v4217
          %4298 = vmatprep.subr.mxu0 %v4221
          %4299 = vmatpush1.msra.mxu0 %v4220
          %4300 = vmatprep.subr.mxu0 %v4224
          %4301 = vmatpush1.msra.mxu0 %v4223
          %4302 = vmatprep.subr.mxu0 %v4227
          %4303 = vmatpush1.msra.mxu0 %v4226
          %4304 = vmatprep.subr.mxu0 %v4230
          %4305 = vmatpush1.msra.mxu0 %v4229
          %4306 = vmatprep.subr.mxu0 %v4233
          %4307 = vmatpush1.msra.mxu0 %v4232
          %4308 = vmatprep.subr.mxu0 %v4236
          %4309 = vmatpush1.msra.mxu0 %v4235
          %4310 = vmatprep.subr.mxu0 %v4239
          %4311 = vmatpush1.msra.mxu0 %v4238
          %4312 = vmatprep.subr.mxu0 %v4242
          %4313 = vmatpush1.msra.mxu0 %v4241
          %4314 = vmatprep.subr.mxu0 %v4245
          %4315 = vmatpush1.msra.mxu0 %v4244
          %4316 = vmatprep.subr.mxu0 %v4248
          %4317 = vmatpush1.msra.mxu0 %v4247
          %4318 = vmatprep.subr.mxu0 %v4251
          %4319 = vmatpush1.msra.mxu0 %v4250
          %4320 = vmatprep.subr.mxu0 %v4254
          %4321 = vmatpush1.msra.mxu0 %v4253
          %4322 = vmatprep.subr.mxu0 %v4257
          %4323 = vmatpush1.msra.mxu0 %v4256
          %4324 = vmatprep.subr.mxu0 %v4260
          %4325 = vmatpush1.msra.mxu0 %v4259
          %4326 = vmatprep.subr.mxu0 %v4263
          %4327 = vmatpush1.msra.mxu0 %v4262
          %4328 = vmatprep.mubr.f32.mxu0 %v3336
          %4329 = vmatmul.mubr.f32.gmra.mrb[0].mxu0 %v3335
          %v4330 = vpop.f32.mrb[0].mxu0
          %v4331 = vadd.f32 0.0, %v4330
          %v4332 = vpop.f32.mrb[0].mxu0
          %v4333 = vadd.f32 0.0, %v4332
          %4334 = vmatprep.mubr.f32.mxu0 %v3338
          %4335 = vmatmul.mubr.f32.gmra.mrb[0].mxu0 %v3337
          %v4336 = vpop.f32.mrb[0].mxu0
          %v4337 = vadd.f32 0.0, %v4336
          %v4338 = vpop.f32.mrb[0].mxu0
          %v4339 = vadd.f32 0.0, %v4338
          %4340 = vmatprep.mubr.f32.mxu0 %v3340
          %4341 = vmatmul.mubr.f32.gmra.mrb[0].mxu0 %v3339
          %v4342 = vpop.f32.mrb[0].mxu0
          %v4343 = vadd.f32 0.0, %v4342
          %v4344 = vpop.f32.mrb[0].mxu0
          %v4345 = vadd.f32 0.0, %v4344
          %4346 = vmatprep.mubr.f32.mxu0 %v3342
          %4347 = vmatmul.mubr.f32.gmra.mrb[0].mxu0 %v3341
          %v4348 = vpop.f32.mrb[0].mxu0
          %v4349 = vadd.f32 0.0, %v4348
          %v4350 = vpop.f32.mrb[0].mxu0
          %v4351 = vadd.f32 0.0, %v4350
          %4352 = vmatprep.mubr.f32.mxu0 %v3344
          %4353 = vmatmul.mubr.f32.gmra.mrb[0].mxu0 %v3343
          %v4354 = vpop.f32.mrb[0].mxu0
          %v4355 = vadd.f32 0.0, %v4354
          %v4356 = vpop.f32.mrb[0].mxu0
          %v4357 = vadd.f32 0.0, %v4356
          %4358 = vmatprep.mubr.f32.mxu0 %v3346
          %4359 = vmatmul.mubr.f32.gmra.mrb[0].mxu0 %v3345
          %v4360 = vpop.f32.mrb[0].mxu0
          %v4361 = vadd.f32 0.0, %v4360
          %v4362 = vpop.f32.mrb[0].mxu0
          %v4363 = vadd.f32 0.0, %v4362
          %4364 = vmatprep.mubr.f32.mxu0 %v3348
          %4365 = vmatmul.mubr.f32.gmra.mrb[0].mxu0 %v3347
          %v4366 = vpop.f32.mrb[0].mxu0
          %v4367 = vadd.f32 0.0, %v4366
          %v4368 = vpop.f32.mrb[0].mxu0
          %v4369 = vadd.f32 0.0, %v4368
          %4370 = vmatprep.mubr.f32.mxu0 %v3350
          %4371 = vmatmul.mubr.f32.gmra.mrb[0].mxu0 %v3349
          %v4372 = vpop.f32.mrb[0].mxu0
          %v4373 = vadd.f32 0.0, %v4372
          %v4374 = vpop.f32.mrb[0].mxu0
          %v4375 = vadd.f32 0.0, %v4374
          %4376 = vmatprep.mubr.f32.mxu0 %v3352
          %4377 = vmatmul.mubr.f32.gmra.mrb[0].mxu0 %v3351
          %v4378 = vpop.f32.mrb[0].mxu0
          %v4379 = vadd.f32 0.0, %v4378
          %v4380 = vpop.f32.mrb[0].mxu0
          %v4381 = vadd.f32 0.0, %v4380
          %4382 = vmatprep.mubr.f32.mxu0 %v3354
          %4383 = vmatmul.mubr.f32.gmra.mrb[0].mxu0 %v3353
          %v4384 = vpop.f32.mrb[0].mxu0
          %v4385 = vadd.f32 0.0, %v4384
          %v4386 = vpop.f32.mrb[0].mxu0
          %v4387 = vadd.f32 0.0, %v4386
          %4388 = vmatprep.mubr.f32.mxu0 %v3356
          %4389 = vmatmul.mubr.f32.gmra.mrb[0].mxu0 %v3355
          %v4390 = vpop.f32.mrb[0].mxu0
          %v4391 = vadd.f32 0.0, %v4390
          %v4392 = vpop.f32.mrb[0].mxu0
          %v4393 = vadd.f32 0.0, %v4392
          %4394 = vmatprep.mubr.f32.mxu0 %v3358
          %4395 = vmatmul.mubr.f32.gmra.mrb[0].mxu0 %v3357
          %v4396 = vpop.f32.mrb[0].mxu0
          %v4397 = vadd.f32 0.0, %v4396
          %v4398 = vpop.f32.mrb[0].mxu0
          %v4399 = vadd.f32 0.0, %v4398
          %4400 = vmatprep.mubr.f32.mxu0 %v3360
          %4401 = vmatmul.mubr.f32.gmra.mrb[0].mxu0 %v3359
          %v4402 = vpop.f32.mrb[0].mxu0
          %v4403 = vadd.f32 0.0, %v4402
          %v4404 = vpop.f32.mrb[0].mxu0
          %v4405 = vadd.f32 0.0, %v4404
          %4406 = vmatprep.mubr.f32.mxu0 %v3362
          %4407 = vmatmul.mubr.f32.gmra.mrb[0].mxu0 %v3361
          %v4408 = vpop.f32.mrb[0].mxu0
          %v4409 = vadd.f32 0.0, %v4408
          %v4410 = vpop.f32.mrb[0].mxu0
          %v4411 = vadd.f32 0.0, %v4410
          %4412 = vmatprep.mubr.f32.mxu0 %v3364
          %4413 = vmatmul.mubr.f32.gmra.mrb[0].mxu0 %v3363
          %v4414 = vpop.f32.mrb[0].mxu0
          %v4415 = vadd.f32 0.0, %v4414
          %v4416 = vpop.f32.mrb[0].mxu0
          %v4417 = vadd.f32 0.0, %v4416
          %4418 = vmatprep.mubr.f32.mxu0 %v3366
          %4419 = vmatmul.mubr.f32.gmra.mrb[0].mxu0 %v3365
          %v4420 = vpop.f32.mrb[0].mxu0
          %v4421 = vadd.f32 0.0, %v4420
          %v4422 = vpop.f32.mrb[0].mxu0
          %v4423 = vadd.f32 0.0, %v4422
          %4424 = vmatprep.mubr.f32.mxu0 %v3368
          %4425 = vmatmul.mubr.f32.gmra.mrb[0].mxu0 %v3367
          %v4426 = vpop.f32.mrb[0].mxu0
          %v4427 = vadd.f32 0.0, %v4426
          %v4428 = vpop.f32.mrb[0].mxu0
          %v4429 = vadd.f32 0.0, %v4428
          %4430 = vmatprep.mubr.f32.mxu0 %v3370
          %4431 = vmatmul.mubr.f32.gmra.mrb[0].mxu0 %v3369
          %v4432 = vpop.f32.mrb[0].mxu0
          %v4433 = vadd.f32 0.0, %v4432
          %v4434 = vpop.f32.mrb[0].mxu0
          %v4435 = vadd.f32 0.0, %v4434
          %4436 = vmatprep.mubr.f32.mxu0 %v3372
          %4437 = vmatmul.mubr.f32.gmra.mrb[0].mxu0 %v3371
          %v4438 = vpop.f32.mrb[0].mxu0
          %v4439 = vadd.f32 0.0, %v4438
          %v4440 = vpop.f32.mrb[0].mxu0
          %v4441 = vadd.f32 0.0, %v4440
          %4442 = vmatprep.mubr.f32.mxu0 %v3374
          %4443 = vmatmul.mubr.f32.gmra.mrb[0].mxu0 %v3373
          %v4444 = vpop.f32.mrb[0].mxu0
          %v4445 = vadd.f32 0.0, %v4444
          %v4446 = vpop.f32.mrb[0].mxu0
          %v4447 = vadd.f32 0.0, %v4446
          %4448 = vmatprep.mubr.f32.mxu0 %v3376
          %4449 = vmatmul.mubr.f32.gmra.mrb[0].mxu0 %v3375
          %v4450 = vpop.f32.mrb[0].mxu0
          %v4451 = vadd.f32 0.0, %v4450
          %v4452 = vpop.f32.mrb[0].mxu0
          %v4453 = vadd.f32 0.0, %v4452
          %4454 = vmatprep.mubr.f32.mxu0 %v3378
          %4455 = vmatmul.mubr.f32.gmra.mrb[0].mxu0 %v3377
          %v4456 = vpop.f32.mrb[0].mxu0
          %v4457 = vadd.f32 0.0, %v4456
          %v4458 = vpop.f32.mrb[0].mxu0
          %v4459 = vadd.f32 0.0, %v4458
          %4460 = vmatprep.mubr.f32.mxu0 %v3380
          %4461 = vmatmul.mubr.f32.gmra.mrb[0].mxu0 %v3379
          %v4462 = vpop.f32.mrb[0].mxu0
          %v4463 = vadd.f32 0.0, %v4462
          %v4464 = vpop.f32.mrb[0].mxu0
          %v4465 = vadd.f32 0.0, %v4464
          %4466 = vmatprep.mubr.f32.mxu0 %v3382
          %4467 = vmatmul.mubr.f32.gmra.mrb[0].mxu0 %v3381
          %v4468 = vpop.f32.mrb[0].mxu0
          %v4469 = vadd.f32 0.0, %v4468
          %v4470 = vpop.f32.mrb[0].mxu0
          %v4471 = vadd.f32 0.0, %v4470
          %4472 = vmatprep.mubr.f32.mxu0 %v3384
          %4473 = vmatmul.mubr.f32.gmra.mrb[0].mxu0 %v3383
          %v4474 = vpop.f32.mrb[0].mxu0
          %v4475 = vadd.f32 0.0, %v4474
          %v4476 = vpop.f32.mrb[0].mxu0
          %v4477 = vadd.f32 0.0, %v4476
          %4478 = vmatprep.mubr.f32.mxu0 %v3386
          %4479 = vmatmul.mubr.f32.gmra.mrb[0].mxu0 %v3385
          %v4480 = vpop.f32.mrb[0].mxu0
          %v4481 = vadd.f32 0.0, %v4480
          %v4482 = vpop.f32.mrb[0].mxu0
          %v4483 = vadd.f32 0.0, %v4482
          %4484 = vmatprep.mubr.f32.mxu0 %v3388
          %4485 = vmatmul.mubr.f32.gmra.mrb[0].mxu0 %v3387
          %v4486 = vpop.f32.mrb[0].mxu0
          %v4487 = vadd.f32 0.0, %v4486
          %v4488 = vpop.f32.mrb[0].mxu0
          %v4489 = vadd.f32 0.0, %v4488
          %4490 = vmatprep.mubr.f32.mxu0 %v3390
          %4491 = vmatmul.mubr.f32.gmra.mrb[0].mxu0 %v3389
          %v4492 = vpop.f32.mrb[0].mxu0
          %v4493 = vadd.f32 0.0, %v4492
          %v4494 = vpop.f32.mrb[0].mxu0
          %v4495 = vadd.f32 0.0, %v4494
          %4496 = vmatprep.mubr.f32.mxu0 %v3392
          %4497 = vmatmul.mubr.f32.gmra.mrb[0].mxu0 %v3391
          %v4498 = vpop.f32.mrb[0].mxu0
          %v4499 = vadd.f32 0.0, %v4498
          %v4500 = vpop.f32.mrb[0].mxu0
          %v4501 = vadd.f32 0.0, %v4500
          %4502 = vmatprep.mubr.f32.mxu0 %v3394
          %4503 = vmatmul.mubr.f32.gmra.mrb[0].mxu0 %v3393
          %v4504 = vpop.f32.mrb[0].mxu0
          %v4505 = vadd.f32 0.0, %v4504
          %v4506 = vpop.f32.mrb[0].mxu0
          %v4507 = vadd.f32 0.0, %v4506
          %4508 = vmatprep.mubr.f32.mxu0 %v3396
          %4509 = vmatmul.mubr.f32.gmra.mrb[0].mxu0 %v3395
          %v4510 = vpop.f32.mrb[0].mxu0
          %v4511 = vadd.f32 0.0, %v4510
          %v4512 = vpop.f32.mrb[0].mxu0
          %v4513 = vadd.f32 0.0, %v4512
          %4514 = vmatprep.mubr.f32.mxu0 %v3398
          %4515 = vmatmul.mubr.f32.gmra.mrb[0].mxu0 %v3397
          %v4516 = vpop.f32.mrb[0].mxu0
          %v4517 = vadd.f32 0.0, %v4516
          %v4518 = vpop.f32.mrb[0].mxu0
          %v4519 = vadd.f32 0.0, %v4518
          %4520 = vdwg.mxu0
          %4521 = vst [vmem:[#allocation5] sm:$0xff] %v4331
          %4522 = vst [vmem:[#allocation5 + $0x8] sm:$0xff] %v4333
          %4523 = vst [vmem:[#allocation5 + $0x10] sm:$0xff] %v4337
          %4524 = vst [vmem:[#allocation5 + $0x18] sm:$0xff] %v4339
          %4525 = vst [vmem:[#allocation5 + $0x20] sm:$0xff] %v4343
          %4526 = vst [vmem:[#allocation5 + $0x28] sm:$0xff] %v4345
          %4527 = vst [vmem:[#allocation5 + $0x30] sm:$0xff] %v4349
          %4528 = vst [vmem:[#allocation5 + $0x38] sm:$0xff] %v4351
          %4529 = vst [vmem:[#allocation5 + $0x40] sm:$0xff] %v4355
          %4530 = vst [vmem:[#allocation5 + $0x48] sm:$0xff] %v4357
          %4531 = vst [vmem:[#allocation5 + $0x50] sm:$0xff] %v4361
          %4532 = vst [vmem:[#allocation5 + $0x58] sm:$0xff] %v4363
          %4533 = vst [vmem:[#allocation5 + $0x60] sm:$0xff] %v4367
          %4534 = vst [vmem:[#allocation5 + $0x68] sm:$0xff] %v4369
          %4535 = vst [vmem:[#allocation5 + $0x70] sm:$0xff] %v4373
          %4536 = vst [vmem:[#allocation5 + $0x78] sm:$0xff] %v4375
          %4537 = vst [vmem:[#allocation5 + $0x80] sm:$0xff] %v4379
          %4538 = vst [vmem:[#allocation5 + $0x88] sm:$0xff] %v4381
          %4539 = vst [vmem:[#allocation5 + $0x90] sm:$0xff] %v4385
          %4540 = vst [vmem:[#allocation5 + $0x98] sm:$0xff] %v4387
          %4541 = vst [vmem:[#allocation5 + $0xa0] sm:$0xff] %v4391
          %4542 = vst [vmem:[#allocation5 + $0xa8] sm:$0xff] %v4393
          %4543 = vst [vmem:[#allocation5 + $0xb0] sm:$0xff] %v4397
          %4544 = vst [vmem:[#allocation5 + $0xb8] sm:$0xff] %v4399
          %4545 = vst [vmem:[#allocation5 + $0xc0] sm:$0xff] %v4403
          %4546 = vst [vmem:[#allocation5 + $0xc8] sm:$0xff] %v4405
          %4547 = vst [vmem:[#allocation5 + $0xd0] sm:$0xff] %v4409
          %4548 = vst [vmem:[#allocation5 + $0xd8] sm:$0xff] %v4411
          %4549 = vst [vmem:[#allocation5 + $0xe0] sm:$0xff] %v4415
          %4550 = vst [vmem:[#allocation5 + $0xe8] sm:$0xff] %v4417
          %4551 = vst [vmem:[#allocation5 + $0xf0] sm:$0xff] %v4421
          %4552 = vst [vmem:[#allocation5 + $0xf8] sm:$0xff] %v4423
          %4553 = vst [vmem:[#allocation5 + $0x100] sm:$0xff] %v4427
          %4554 = vst [vmem:[#allocation5 + $0x108] sm:$0xff] %v4429
          %4555 = vst [vmem:[#allocation5 + $0x110] sm:$0xff] %v4433
          %4556 = vst [vmem:[#allocation5 + $0x118] sm:$0xff] %v4435
          %4557 = vst [vmem:[#allocation5 + $0x120] sm:$0xff] %v4439
          %4558 = vst [vmem:[#allocation5 + $0x128] sm:$0xff] %v4441
          %4559 = vst [vmem:[#allocation5 + $0x130] sm:$0xff] %v4445
          %4560 = vst [vmem:[#allocation5 + $0x138] sm:$0xff] %v4447
          %4561 = vst [vmem:[#allocation5 + $0x140] sm:$0xff] %v4451
          %4562 = vst [vmem:[#allocation5 + $0x148] sm:$0xff] %v4453
          %4563 = vst [vmem:[#allocation5 + $0x150] sm:$0xff] %v4457
          %4564 = vst [vmem:[#allocation5 + $0x158] sm:$0xff] %v4459
          %4565 = vst [vmem:[#allocation5 + $0x160] sm:$0xff] %v4463
          %4566 = vst [vmem:[#allocation5 + $0x168] sm:$0xff] %v4465
          %4567 = vst [vmem:[#allocation5 + $0x170] sm:$0xff] %v4469
          %4568 = vst [vmem:[#allocation5 + $0x178] sm:$0xff] %v4471
          %4569 = vst [vmem:[#allocation5 + $0x180] sm:$0xff] %v4475
          %4570 = vst [vmem:[#allocation5 + $0x188] sm:$0xff] %v4477
          %4571 = vst [vmem:[#allocation5 + $0x190] sm:$0xff] %v4481
          %4572 = vst [vmem:[#allocation5 + $0x198] sm:$0xff] %v4483
          %4573 = vst [vmem:[#allocation5 + $0x1a0] sm:$0xff] %v4487
          %4574 = vst [vmem:[#allocation5 + $0x1a8] sm:$0xff] %v4489
          %4575 = vst [vmem:[#allocation5 + $0x1b0] sm:$0xff] %v4493
          %4576 = vst [vmem:[#allocation5 + $0x1b8] sm:$0xff] %v4495
          %4577 = vst [vmem:[#allocation5 + $0x1c0] sm:$0xff] %v4499
          %4578 = vst [vmem:[#allocation5 + $0x1c8] sm:$0xff] %v4501
          %4579 = vst [vmem:[#allocation5 + $0x1d0] sm:$0xff] %v4505
          %4580 = vst [vmem:[#allocation5 + $0x1d8] sm:$0xff] %v4507
          %4581 = vst [vmem:[#allocation5 + $0x1e0] sm:$0xff] %v4511
          %4582 = vst [vmem:[#allocation5 + $0x1e8] sm:$0xff] %v4513
          %4583 = vst [vmem:[#allocation5 + $0x1f0] sm:$0xff] %v4517
          %4584 = vst [vmem:[#allocation5 + $0x1f8] sm:$0xff] %v4519
        $region64: #{tpu_custom_call.1} parent=39 // pred_fallthru
          _
        %p4585 = scmp.eq.s32.totalorder %s21, 3
        // Predicated region
        $region65: #{tpu_custom_call.1} parent=39 // pred_check
          %p4586 = pneg %p4585
        $region66: #{tpu_custom_call.1} parent=39 // pred_check_branch
          %4588 = sbr.rel (%p4586) target = $region68
        $region67: #{tpu_custom_call.1} parent=39 // pred_region
          %v4589 = vld [vmem:[#allocation5] sm:$0xff]
          %v4590 = vld [vmem:[#allocation5 + $0x8] sm:$0xff]
          %v4591 = vld [vmem:[#allocation5 + $0x10] sm:$0xff]
          %v4592 = vld [vmem:[#allocation5 + $0x18] sm:$0xff]
          %v4593 = vld [vmem:[#allocation5 + $0x20] sm:$0xff]
          %v4594 = vld [vmem:[#allocation5 + $0x28] sm:$0xff]
          %v4595 = vld [vmem:[#allocation5 + $0x30] sm:$0xff]
          %v4596 = vld [vmem:[#allocation5 + $0x38] sm:$0xff]
          %v4597 = vld [vmem:[#allocation5 + $0x40] sm:$0xff]
          %v4598 = vld [vmem:[#allocation5 + $0x48] sm:$0xff]
          %v4599 = vld [vmem:[#allocation5 + $0x50] sm:$0xff]
          %v4600 = vld [vmem:[#allocation5 + $0x58] sm:$0xff]
          %v4601 = vld [vmem:[#allocation5 + $0x60] sm:$0xff]
          %v4602 = vld [vmem:[#allocation5 + $0x68] sm:$0xff]
          %v4603 = vld [vmem:[#allocation5 + $0x70] sm:$0xff]
          %v4604 = vld [vmem:[#allocation5 + $0x78] sm:$0xff]
          %v4605 = vld [vmem:[#allocation5 + $0x80] sm:$0xff]
          %v4606 = vld [vmem:[#allocation5 + $0x88] sm:$0xff]
          %v4607 = vld [vmem:[#allocation5 + $0x90] sm:$0xff]
          %v4608 = vld [vmem:[#allocation5 + $0x98] sm:$0xff]
          %v4609 = vld [vmem:[#allocation5 + $0xa0] sm:$0xff]
          %v4610 = vld [vmem:[#allocation5 + $0xa8] sm:$0xff]
          %v4611 = vld [vmem:[#allocation5 + $0xb0] sm:$0xff]
          %v4612 = vld [vmem:[#allocation5 + $0xb8] sm:$0xff]
          %v4613 = vld [vmem:[#allocation5 + $0xc0] sm:$0xff]
          %v4614 = vld [vmem:[#allocation5 + $0xc8] sm:$0xff]
          %v4615 = vld [vmem:[#allocation5 + $0xd0] sm:$0xff]
          %v4616 = vld [vmem:[#allocation5 + $0xd8] sm:$0xff]
          %v4617 = vld [vmem:[#allocation5 + $0xe0] sm:$0xff]
          %v4618 = vld [vmem:[#allocation5 + $0xe8] sm:$0xff]
          %v4619 = vld [vmem:[#allocation5 + $0xf0] sm:$0xff]
          %v4620 = vld [vmem:[#allocation5 + $0xf8] sm:$0xff]
          %v4621 = vld [vmem:[#allocation5 + $0x100] sm:$0xff]
          %v4622 = vld [vmem:[#allocation5 + $0x108] sm:$0xff]
          %v4623 = vld [vmem:[#allocation5 + $0x110] sm:$0xff]
          %v4624 = vld [vmem:[#allocation5 + $0x118] sm:$0xff]
          %v4625 = vld [vmem:[#allocation5 + $0x120] sm:$0xff]
          %v4626 = vld [vmem:[#allocation5 + $0x128] sm:$0xff]
          %v4627 = vld [vmem:[#allocation5 + $0x130] sm:$0xff]
          %v4628 = vld [vmem:[#allocation5 + $0x138] sm:$0xff]
          %v4629 = vld [vmem:[#allocation5 + $0x140] sm:$0xff]
          %v4630 = vld [vmem:[#allocation5 + $0x148] sm:$0xff]
          %v4631 = vld [vmem:[#allocation5 + $0x150] sm:$0xff]
          %v4632 = vld [vmem:[#allocation5 + $0x158] sm:$0xff]
          %v4633 = vld [vmem:[#allocation5 + $0x160] sm:$0xff]
          %v4634 = vld [vmem:[#allocation5 + $0x168] sm:$0xff]
          %v4635 = vld [vmem:[#allocation5 + $0x170] sm:$0xff]
          %v4636 = vld [vmem:[#allocation5 + $0x178] sm:$0xff]
          %v4637 = vld [vmem:[#allocation5 + $0x180] sm:$0xff]
          %v4638 = vld [vmem:[#allocation5 + $0x188] sm:$0xff]
          %v4639 = vld [vmem:[#allocation5 + $0x190] sm:$0xff]
          %v4640 = vld [vmem:[#allocation5 + $0x198] sm:$0xff]
          %v4641 = vld [vmem:[#allocation5 + $0x1a0] sm:$0xff]
          %v4642 = vld [vmem:[#allocation5 + $0x1a8] sm:$0xff]
          %v4643 = vld [vmem:[#allocation5 + $0x1b0] sm:$0xff]
          %v4644 = vld [vmem:[#allocation5 + $0x1b8] sm:$0xff]
          %v4645 = vld [vmem:[#allocation5 + $0x1c0] sm:$0xff]
          %v4646 = vld [vmem:[#allocation5 + $0x1c8] sm:$0xff]
          %v4647 = vld [vmem:[#allocation5 + $0x1d0] sm:$0xff]
          %v4648 = vld [vmem:[#allocation5 + $0x1d8] sm:$0xff]
          %v4649 = vld [vmem:[#allocation5 + $0x1e0] sm:$0xff]
          %v4650 = vld [vmem:[#allocation5 + $0x1e8] sm:$0xff]
          %v4651 = vld [vmem:[#allocation5 + $0x1f0] sm:$0xff]
          %v4652 = vld [vmem:[#allocation5 + $0x1f8] sm:$0xff]
          %v4653 = vpack.c.bf16 %v4591, %v4589
          %v4654 = vpack.c.bf16 %v4592, %v4590
          %v4655 = vpack.c.bf16 %v4595, %v4593
          %v4656 = vpack.c.bf16 %v4596, %v4594
          %v4657 = vpack.c.bf16 %v4599, %v4597
          %v4658 = vpack.c.bf16 %v4600, %v4598
          %v4659 = vpack.c.bf16 %v4603, %v4601
          %v4660 = vpack.c.bf16 %v4604, %v4602
          %v4661 = vpack.c.bf16 %v4607, %v4605
          %v4662 = vpack.c.bf16 %v4608, %v4606
          %v4663 = vpack.c.bf16 %v4611, %v4609
          %v4664 = vpack.c.bf16 %v4612, %v4610
          %v4665 = vpack.c.bf16 %v4615, %v4613
          %v4666 = vpack.c.bf16 %v4616, %v4614
          %v4667 = vpack.c.bf16 %v4619, %v4617
          %v4668 = vpack.c.bf16 %v4620, %v4618
          %v4669 = vpack.c.bf16 %v4623, %v4621
          %v4670 = vpack.c.bf16 %v4624, %v4622
          %v4671 = vpack.c.bf16 %v4627, %v4625
          %v4672 = vpack.c.bf16 %v4628, %v4626
          %v4673 = vpack.c.bf16 %v4631, %v4629
          %v4674 = vpack.c.bf16 %v4632, %v4630
          %v4675 = vpack.c.bf16 %v4635, %v4633
          %v4676 = vpack.c.bf16 %v4636, %v4634
          %v4677 = vpack.c.bf16 %v4639, %v4637
          %v4678 = vpack.c.bf16 %v4640, %v4638
          %v4679 = vpack.c.bf16 %v4643, %v4641
          %v4680 = vpack.c.bf16 %v4644, %v4642
          %v4681 = vpack.c.bf16 %v4647, %v4645
          %v4682 = vpack.c.bf16 %v4648, %v4646
          %v4683 = vpack.c.bf16 %v4651, %v4649
          %v4684 = vpack.c.bf16 %v4652, %v4650
          %v4685 = vld [vmem:[%s234] sm:$0xff]
          %v4686 = vld [vmem:[%s234 + $0x8] sm:$0xff]
          %v4687 = vld [vmem:[%s234 + $0x10] sm:$0xff]
          %v4688 = vld [vmem:[%s234 + $0x18] sm:$0xff]
          %v4689 = vld [vmem:[%s234 + $0x20] sm:$0xff]
          %v4690 = vld [vmem:[%s234 + $0x28] sm:$0xff]
          %v4691 = vld [vmem:[%s234 + $0x30] sm:$0xff]
          %v4692 = vld [vmem:[%s234 + $0x38] sm:$0xff]
          %v4693 = vld [vmem:[%s234 + $0x40] sm:$0xff]
          %v4694 = vld [vmem:[%s234 + $0x48] sm:$0xff]
          %v4695 = vld [vmem:[%s234 + $0x50] sm:$0xff]
          %v4696 = vld [vmem:[%s234 + $0x58] sm:$0xff]
          %v4697 = vld [vmem:[%s234 + $0x60] sm:$0xff]
          %v4698 = vld [vmem:[%s234 + $0x68] sm:$0xff]
          %v4699 = vld [vmem:[%s234 + $0x70] sm:$0xff]
          %v4700 = vld [vmem:[%s234 + $0x78] sm:$0xff]
          %v4701 = vld [vmem:[%s234 + $0x80] sm:$0xff]
          %v4702 = vld [vmem:[%s234 + $0x88] sm:$0xff]
          %v4703 = vld [vmem:[%s234 + $0x90] sm:$0xff]
          %v4704 = vld [vmem:[%s234 + $0x98] sm:$0xff]
          %v4705 = vld [vmem:[%s234 + $0xa0] sm:$0xff]
          %v4706 = vld [vmem:[%s234 + $0xa8] sm:$0xff]
          %v4707 = vld [vmem:[%s234 + $0xb0] sm:$0xff]
          %v4708 = vld [vmem:[%s234 + $0xb8] sm:$0xff]
          %v4709 = vld [vmem:[%s234 + $0xc0] sm:$0xff]
          %v4710 = vld [vmem:[%s234 + $0xc8] sm:$0xff]
          %v4711 = vld [vmem:[%s234 + $0xd0] sm:$0xff]
          %v4712 = vld [vmem:[%s234 + $0xd8] sm:$0xff]
          %v4713 = vld [vmem:[%s234 + $0xe0] sm:$0xff]
          %v4714 = vld [vmem:[%s234 + $0xe8] sm:$0xff]
          %v4715 = vld [vmem:[%s234 + $0xf0] sm:$0xff]
          %v4716 = vld [vmem:[%s234 + $0xf8] sm:$0xff]
          %v4717 = vld [vmem:[%s4] sm:$0x3]
          %v4719 = vlaneseq
          %v4720 = vshrl.u32 %v4719, 7
          %v4721 = vsub.s32 0, %v4720
          %v4722 = vrot.slane %v4717, %v4721
          %v4723 = vlaneseq
          %v4724 = vshrl.u32 %v4723, 7
          %v4725 = vsub.s32 1, %v4724
          %v4726 = vrot.slane %v4717, %v4725
          %v4761 = vunpack.c.l.b16 %v4685
          %v4762 = vunpack.c.h.b16 %v4685
          %v4763 = vunpack.c.l.b16 %v4686
          %v4764 = vunpack.c.h.b16 %v4686
          %v4765 = vunpack.c.l.b16 %v4687
          %v4766 = vunpack.c.h.b16 %v4687
          %v4767 = vunpack.c.l.b16 %v4688
          %v4768 = vunpack.c.h.b16 %v4688
          %v4769 = vunpack.c.l.b16 %v4689
          %v4770 = vunpack.c.h.b16 %v4689
          %v4771 = vunpack.c.l.b16 %v4690
          %v4772 = vunpack.c.h.b16 %v4690
          %v4773 = vunpack.c.l.b16 %v4691
          %v4774 = vunpack.c.h.b16 %v4691
          %v4775 = vunpack.c.l.b16 %v4692
          %v4776 = vunpack.c.h.b16 %v4692
          %v4777 = vunpack.c.l.b16 %v4693
          %v4778 = vunpack.c.h.b16 %v4693
          %v4779 = vunpack.c.l.b16 %v4694
          %v4780 = vunpack.c.h.b16 %v4694
          %v4781 = vunpack.c.l.b16 %v4695
          %v4782 = vunpack.c.h.b16 %v4695
          %v4783 = vunpack.c.l.b16 %v4696
          %v4784 = vunpack.c.h.b16 %v4696
          %v4785 = vunpack.c.l.b16 %v4697
          %v4786 = vunpack.c.h.b16 %v4697
          %v4787 = vunpack.c.l.b16 %v4698
          %v4788 = vunpack.c.h.b16 %v4698
          %v4789 = vunpack.c.l.b16 %v4699
          %v4790 = vunpack.c.h.b16 %v4699
          %v4791 = vunpack.c.l.b16 %v4700
          %v4792 = vunpack.c.h.b16 %v4700
          %v4793 = vunpack.c.l.b16 %v4701
          %v4794 = vunpack.c.h.b16 %v4701
          %v4795 = vunpack.c.l.b16 %v4702
          %v4796 = vunpack.c.h.b16 %v4702
          %v4797 = vunpack.c.l.b16 %v4703
          %v4798 = vunpack.c.h.b16 %v4703
          %v4799 = vunpack.c.l.b16 %v4704
          %v4800 = vunpack.c.h.b16 %v4704
          %v4801 = vunpack.c.l.b16 %v4705
          %v4802 = vunpack.c.h.b16 %v4705
          %v4803 = vunpack.c.l.b16 %v4706
          %v4804 = vunpack.c.h.b16 %v4706
          %v4805 = vunpack.c.l.b16 %v4707
          %v4806 = vunpack.c.h.b16 %v4707
          %v4807 = vunpack.c.l.b16 %v4708
          %v4808 = vunpack.c.h.b16 %v4708
          %v4809 = vunpack.c.l.b16 %v4709
          %v4810 = vunpack.c.h.b16 %v4709
          %v4811 = vunpack.c.l.b16 %v4710
          %v4812 = vunpack.c.h.b16 %v4710
          %v4813 = vunpack.c.l.b16 %v4711
          %v4814 = vunpack.c.h.b16 %v4711
          %v4815 = vunpack.c.l.b16 %v4712
          %v4816 = vunpack.c.h.b16 %v4712
          %v4817 = vunpack.c.l.b16 %v4713
          %v4818 = vunpack.c.h.b16 %v4713
          %v4819 = vunpack.c.l.b16 %v4714
          %v4820 = vunpack.c.h.b16 %v4714
          %v4821 = vunpack.c.l.b16 %v4715
          %v4822 = vunpack.c.h.b16 %v4715
          %v4823 = vunpack.c.l.b16 %v4716
          %v4824 = vunpack.c.h.b16 %v4716
          %v4825 = vpack.c.b16 %v4763, %v4761
          %v4826 = vpack.c.b16 %v4764, %v4762
          %v4827 = vpack.c.b16 %v4767, %v4765
          %v4828 = vpack.c.b16 %v4768, %v4766
          %v4829 = vpack.c.b16 %v4771, %v4769
          %v4830 = vpack.c.b16 %v4772, %v4770
          %v4831 = vpack.c.b16 %v4775, %v4773
          %v4832 = vpack.c.b16 %v4776, %v4774
          %v4833 = vpack.c.b16 %v4779, %v4777
          %v4834 = vpack.c.b16 %v4780, %v4778
          %v4835 = vpack.c.b16 %v4783, %v4781
          %v4836 = vpack.c.b16 %v4784, %v4782
          %v4837 = vpack.c.b16 %v4787, %v4785
          %v4838 = vpack.c.b16 %v4788, %v4786
          %v4839 = vpack.c.b16 %v4791, %v4789
          %v4840 = vpack.c.b16 %v4792, %v4790
          %v4841 = vpack.c.b16 %v4795, %v4793
          %v4842 = vpack.c.b16 %v4796, %v4794
          %v4843 = vpack.c.b16 %v4799, %v4797
          %v4844 = vpack.c.b16 %v4800, %v4798
          %v4845 = vpack.c.b16 %v4803, %v4801
          %v4846 = vpack.c.b16 %v4804, %v4802
          %v4847 = vpack.c.b16 %v4807, %v4805
          %v4848 = vpack.c.b16 %v4808, %v4806
          %v4849 = vpack.c.b16 %v4811, %v4809
          %v4850 = vpack.c.b16 %v4812, %v4810
          %v4851 = vpack.c.b16 %v4815, %v4813
          %v4852 = vpack.c.b16 %v4816, %v4814
          %v4853 = vpack.c.b16 %v4819, %v4817
          %v4854 = vpack.c.b16 %v4820, %v4818
          %v4855 = vpack.c.b16 %v4823, %v4821
          %v4856 = vpack.c.b16 %v4824, %v4822
          %4889 = vmatprep.subr.bf16.mxu0 %v4826
          %4890 = vmatpush1.bf16.msra.mxu0 %v4825
          %4891 = vmatprep.subr.bf16.mxu0 %v4828
          %4892 = vmatpush1.bf16.msra.mxu0 %v4827
          %4893 = vmatprep.subr.bf16.mxu0 %v4830
          %4894 = vmatpush1.bf16.msra.mxu0 %v4829
          %4895 = vmatprep.subr.bf16.mxu0 %v4832
          %4896 = vmatpush1.bf16.msra.mxu0 %v4831
          %4897 = vmatprep.subr.bf16.mxu0 %v4834
          %4898 = vmatpush1.bf16.msra.mxu0 %v4833
          %4899 = vmatprep.subr.bf16.mxu0 %v4836
          %4900 = vmatpush1.bf16.msra.mxu0 %v4835
          %4901 = vmatprep.subr.bf16.mxu0 %v4838
          %4902 = vmatpush1.bf16.msra.mxu0 %v4837
          %4903 = vmatprep.subr.bf16.mxu0 %v4840
          %4904 = vmatpush1.bf16.msra.mxu0 %v4839
          %4905 = vmatprep.subr.bf16.mxu0 %v4842
          %4906 = vmatpush1.bf16.msra.mxu0 %v4841
          %4907 = vmatprep.subr.bf16.mxu0 %v4844
          %4908 = vmatpush1.bf16.msra.mxu0 %v4843
          %4909 = vmatprep.subr.bf16.mxu0 %v4846
          %4910 = vmatpush1.bf16.msra.mxu0 %v4845
          %4911 = vmatprep.subr.bf16.mxu0 %v4848
          %4912 = vmatpush1.bf16.msra.mxu0 %v4847
          %4913 = vmatprep.subr.bf16.mxu0 %v4850
          %4914 = vmatpush1.bf16.msra.mxu0 %v4849
          %4915 = vmatprep.subr.bf16.mxu0 %v4852
          %4916 = vmatpush1.bf16.msra.mxu0 %v4851
          %4917 = vmatprep.subr.bf16.mxu0 %v4854
          %4918 = vmatpush1.bf16.msra.mxu0 %v4853
          %4919 = vmatprep.subr.bf16.mxu0 %v4856
          %4920 = vmatpush1.bf16.msra.mxu0 %v4855
          %4921 = vmatprep.mubr.bf16.mxu0 %v4654
          %4922 = vmatmul.mubr.bf16.gmra.mrb[0].mxu0 %v4653
          %v4923 = vpop.f32.mrb[0].mxu0
          %v4924 = vadd.f32 %v4722, %v4923
          %v4925 = vpop.f32.mrb[0].mxu0
          %v4926 = vadd.f32 %v4726, %v4925
          %v4927 = vpop.f32.mrb[0].mxu0
          %v4928 = vadd.f32 %v4722, %v4927
          %v4929 = vpop.f32.mrb[0].mxu0
          %v4930 = vadd.f32 %v4726, %v4929
          %4931 = vmatprep.mubr.bf16.mxu0 %v4656
          %4932 = vmatmul.mubr.bf16.gmra.mrb[0].mxu0 %v4655
          %v4933 = vpop.f32.mrb[0].mxu0
          %v4934 = vadd.f32 %v4722, %v4933
          %v4935 = vpop.f32.mrb[0].mxu0
          %v4936 = vadd.f32 %v4726, %v4935
          %v4937 = vpop.f32.mrb[0].mxu0
          %v4938 = vadd.f32 %v4722, %v4937
          %v4939 = vpop.f32.mrb[0].mxu0
          %v4940 = vadd.f32 %v4726, %v4939
          %4941 = vmatprep.mubr.bf16.mxu0 %v4658
          %4942 = vmatmul.mubr.bf16.gmra.mrb[0].mxu0 %v4657
          %v4943 = vpop.f32.mrb[0].mxu0
          %v4944 = vadd.f32 %v4722, %v4943
          %v4945 = vpop.f32.mrb[0].mxu0
          %v4946 = vadd.f32 %v4726, %v4945
          %v4947 = vpop.f32.mrb[0].mxu0
          %v4948 = vadd.f32 %v4722, %v4947
          %v4949 = vpop.f32.mrb[0].mxu0
          %v4950 = vadd.f32 %v4726, %v4949
          %4951 = vmatprep.mubr.bf16.mxu0 %v4660
          %4952 = vmatmul.mubr.bf16.gmra.mrb[0].mxu0 %v4659
          %v4953 = vpop.f32.mrb[0].mxu0
          %v4954 = vadd.f32 %v4722, %v4953
          %v4955 = vpop.f32.mrb[0].mxu0
          %v4956 = vadd.f32 %v4726, %v4955
          %v4957 = vpop.f32.mrb[0].mxu0
          %v4958 = vadd.f32 %v4722, %v4957
          %v4959 = vpop.f32.mrb[0].mxu0
          %v4960 = vadd.f32 %v4726, %v4959
          %4961 = vmatprep.mubr.bf16.mxu0 %v4662
          %4962 = vmatmul.mubr.bf16.gmra.mrb[0].mxu0 %v4661
          %v4963 = vpop.f32.mrb[0].mxu0
          %v4964 = vadd.f32 %v4722, %v4963
          %v4965 = vpop.f32.mrb[0].mxu0
          %v4966 = vadd.f32 %v4726, %v4965
          %v4967 = vpop.f32.mrb[0].mxu0
          %v4968 = vadd.f32 %v4722, %v4967
          %v4969 = vpop.f32.mrb[0].mxu0
          %v4970 = vadd.f32 %v4726, %v4969
          %4971 = vmatprep.mubr.bf16.mxu0 %v4664
          %4972 = vmatmul.mubr.bf16.gmra.mrb[0].mxu0 %v4663
          %v4973 = vpop.f32.mrb[0].mxu0
          %v4974 = vadd.f32 %v4722, %v4973
          %v4975 = vpop.f32.mrb[0].mxu0
          %v4976 = vadd.f32 %v4726, %v4975
          %v4977 = vpop.f32.mrb[0].mxu0
          %v4978 = vadd.f32 %v4722, %v4977
          %v4979 = vpop.f32.mrb[0].mxu0
          %v4980 = vadd.f32 %v4726, %v4979
          %4981 = vmatprep.mubr.bf16.mxu0 %v4666
          %4982 = vmatmul.mubr.bf16.gmra.mrb[0].mxu0 %v4665
          %v4983 = vpop.f32.mrb[0].mxu0
          %v4984 = vadd.f32 %v4722, %v4983
          %v4985 = vpop.f32.mrb[0].mxu0
          %v4986 = vadd.f32 %v4726, %v4985
          %v4987 = vpop.f32.mrb[0].mxu0
          %v4988 = vadd.f32 %v4722, %v4987
          %v4989 = vpop.f32.mrb[0].mxu0
          %v4990 = vadd.f32 %v4726, %v4989
          %4991 = vmatprep.mubr.bf16.mxu0 %v4668
          %4992 = vmatmul.mubr.bf16.gmra.mrb[0].mxu0 %v4667
          %v4993 = vpop.f32.mrb[0].mxu0
          %v4994 = vadd.f32 %v4722, %v4993
          %v4995 = vpop.f32.mrb[0].mxu0
          %v4996 = vadd.f32 %v4726, %v4995
          %v4997 = vpop.f32.mrb[0].mxu0
          %v4998 = vadd.f32 %v4722, %v4997
          %v4999 = vpop.f32.mrb[0].mxu0
          %v5000 = vadd.f32 %v4726, %v4999
          %5001 = vmatprep.mubr.bf16.mxu0 %v4670
          %5002 = vmatmul.mubr.bf16.gmra.mrb[0].mxu0 %v4669
          %v5003 = vpop.f32.mrb[0].mxu0
          %v5004 = vadd.f32 %v4722, %v5003
          %v5005 = vpop.f32.mrb[0].mxu0
          %v5006 = vadd.f32 %v4726, %v5005
          %v5007 = vpop.f32.mrb[0].mxu0
          %v5008 = vadd.f32 %v4722, %v5007
          %v5009 = vpop.f32.mrb[0].mxu0
          %v5010 = vadd.f32 %v4726, %v5009
          %5011 = vmatprep.mubr.bf16.mxu0 %v4672
          %5012 = vmatmul.mubr.bf16.gmra.mrb[0].mxu0 %v4671
          %v5013 = vpop.f32.mrb[0].mxu0
          %v5014 = vadd.f32 %v4722, %v5013
          %v5015 = vpop.f32.mrb[0].mxu0
          %v5016 = vadd.f32 %v4726, %v5015
          %v5017 = vpop.f32.mrb[0].mxu0
          %v5018 = vadd.f32 %v4722, %v5017
          %v5019 = vpop.f32.mrb[0].mxu0
          %v5020 = vadd.f32 %v4726, %v5019
          %5021 = vmatprep.mubr.bf16.mxu0 %v4674
          %5022 = vmatmul.mubr.bf16.gmra.mrb[0].mxu0 %v4673
          %v5023 = vpop.f32.mrb[0].mxu0
          %v5024 = vadd.f32 %v4722, %v5023
          %v5025 = vpop.f32.mrb[0].mxu0
          %v5026 = vadd.f32 %v4726, %v5025
          %v5027 = vpop.f32.mrb[0].mxu0
          %v5028 = vadd.f32 %v4722, %v5027
          %v5029 = vpop.f32.mrb[0].mxu0
          %v5030 = vadd.f32 %v4726, %v5029
          %5031 = vmatprep.mubr.bf16.mxu0 %v4676
          %5032 = vmatmul.mubr.bf16.gmra.mrb[0].mxu0 %v4675
          %v5033 = vpop.f32.mrb[0].mxu0
          %v5034 = vadd.f32 %v4722, %v5033
          %v5035 = vpop.f32.mrb[0].mxu0
          %v5036 = vadd.f32 %v4726, %v5035
          %v5037 = vpop.f32.mrb[0].mxu0
          %v5038 = vadd.f32 %v4722, %v5037
          %v5039 = vpop.f32.mrb[0].mxu0
          %v5040 = vadd.f32 %v4726, %v5039
          %5041 = vmatprep.mubr.bf16.mxu0 %v4678
          %5042 = vmatmul.mubr.bf16.gmra.mrb[0].mxu0 %v4677
          %v5043 = vpop.f32.mrb[0].mxu0
          %v5044 = vadd.f32 %v4722, %v5043
          %v5045 = vpop.f32.mrb[0].mxu0
          %v5046 = vadd.f32 %v4726, %v5045
          %v5047 = vpop.f32.mrb[0].mxu0
          %v5048 = vadd.f32 %v4722, %v5047
          %v5049 = vpop.f32.mrb[0].mxu0
          %v5050 = vadd.f32 %v4726, %v5049
          %5051 = vmatprep.mubr.bf16.mxu0 %v4680
          %5052 = vmatmul.mubr.bf16.gmra.mrb[0].mxu0 %v4679
          %v5053 = vpop.f32.mrb[0].mxu0
          %v5054 = vadd.f32 %v4722, %v5053
          %v5055 = vpop.f32.mrb[0].mxu0
          %v5056 = vadd.f32 %v4726, %v5055
          %v5057 = vpop.f32.mrb[0].mxu0
          %v5058 = vadd.f32 %v4722, %v5057
          %v5059 = vpop.f32.mrb[0].mxu0
          %v5060 = vadd.f32 %v4726, %v5059
          %5061 = vmatprep.mubr.bf16.mxu0 %v4682
          %5062 = vmatmul.mubr.bf16.gmra.mrb[0].mxu0 %v4681
          %v5063 = vpop.f32.mrb[0].mxu0
          %v5064 = vadd.f32 %v4722, %v5063
          %v5065 = vpop.f32.mrb[0].mxu0
          %v5066 = vadd.f32 %v4726, %v5065
          %v5067 = vpop.f32.mrb[0].mxu0
          %v5068 = vadd.f32 %v4722, %v5067
          %v5069 = vpop.f32.mrb[0].mxu0
          %v5070 = vadd.f32 %v4726, %v5069
          %5071 = vmatprep.mubr.bf16.mxu0 %v4684
          %5072 = vmatmul.mubr.bf16.gmra.mrb[0].mxu0 %v4683
          %v5073 = vpop.f32.mrb[0].mxu0
          %v5074 = vadd.f32 %v4722, %v5073
          %v5075 = vpop.f32.mrb[0].mxu0
          %v5076 = vadd.f32 %v4726, %v5075
          %v5077 = vpop.f32.mrb[0].mxu0
          %v5078 = vadd.f32 %v4722, %v5077
          %v5079 = vpop.f32.mrb[0].mxu0
          %v5080 = vadd.f32 %v4726, %v5079
          %5081 = vdwg.mxu0
          %5082 = vst [vmem:[#allocation6] sm:$0xff] %v4924
          %5083 = vst [vmem:[#allocation6 + $0x8] sm:$0xff] %v4926
          %5084 = vst [vmem:[#allocation6 + $0x10] sm:$0xff] %v4928
          %5085 = vst [vmem:[#allocation6 + $0x18] sm:$0xff] %v4930
          %5086 = vst [vmem:[#allocation6 + $0x20] sm:$0xff] %v4934
          %5087 = vst [vmem:[#allocation6 + $0x28] sm:$0xff] %v4936
          %5088 = vst [vmem:[#allocation6 + $0x30] sm:$0xff] %v4938
          %5089 = vst [vmem:[#allocation6 + $0x38] sm:$0xff] %v4940
          %5090 = vst [vmem:[#allocation6 + $0x40] sm:$0xff] %v4944
          %5091 = vst [vmem:[#allocation6 + $0x48] sm:$0xff] %v4946
          %5092 = vst [vmem:[#allocation6 + $0x50] sm:$0xff] %v4948
          %5093 = vst [vmem:[#allocation6 + $0x58] sm:$0xff] %v4950
          %5094 = vst [vmem:[#allocation6 + $0x60] sm:$0xff] %v4954
          %5095 = vst [vmem:[#allocation6 + $0x68] sm:$0xff] %v4956
          %5096 = vst [vmem:[#allocation6 + $0x70] sm:$0xff] %v4958
          %5097 = vst [vmem:[#allocation6 + $0x78] sm:$0xff] %v4960
          %5098 = vst [vmem:[#allocation6 + $0x80] sm:$0xff] %v4964
          %5099 = vst [vmem:[#allocation6 + $0x88] sm:$0xff] %v4966
          %5100 = vst [vmem:[#allocation6 + $0x90] sm:$0xff] %v4968
          %5101 = vst [vmem:[#allocation6 + $0x98] sm:$0xff] %v4970
          %5102 = vst [vmem:[#allocation6 + $0xa0] sm:$0xff] %v4974
          %5103 = vst [vmem:[#allocation6 + $0xa8] sm:$0xff] %v4976
          %5104 = vst [vmem:[#allocation6 + $0xb0] sm:$0xff] %v4978
          %5105 = vst [vmem:[#allocation6 + $0xb8] sm:$0xff] %v4980
          %5106 = vst [vmem:[#allocation6 + $0xc0] sm:$0xff] %v4984
          %5107 = vst [vmem:[#allocation6 + $0xc8] sm:$0xff] %v4986
          %5108 = vst [vmem:[#allocation6 + $0xd0] sm:$0xff] %v4988
          %5109 = vst [vmem:[#allocation6 + $0xd8] sm:$0xff] %v4990
          %5110 = vst [vmem:[#allocation6 + $0xe0] sm:$0xff] %v4994
          %5111 = vst [vmem:[#allocation6 + $0xe8] sm:$0xff] %v4996
          %5112 = vst [vmem:[#allocation6 + $0xf0] sm:$0xff] %v4998
          %5113 = vst [vmem:[#allocation6 + $0xf8] sm:$0xff] %v5000
          %5114 = vst [vmem:[#allocation6 + $0x100] sm:$0xff] %v5004
          %5115 = vst [vmem:[#allocation6 + $0x108] sm:$0xff] %v5006
          %5116 = vst [vmem:[#allocation6 + $0x110] sm:$0xff] %v5008
          %5117 = vst [vmem:[#allocation6 + $0x118] sm:$0xff] %v5010
          %5118 = vst [vmem:[#allocation6 + $0x120] sm:$0xff] %v5014
          %5119 = vst [vmem:[#allocation6 + $0x128] sm:$0xff] %v5016
          %5120 = vst [vmem:[#allocation6 + $0x130] sm:$0xff] %v5018
          %5121 = vst [vmem:[#allocation6 + $0x138] sm:$0xff] %v5020
          %5122 = vst [vmem:[#allocation6 + $0x140] sm:$0xff] %v5024
          %5123 = vst [vmem:[#allocation6 + $0x148] sm:$0xff] %v5026
          %5124 = vst [vmem:[#allocation6 + $0x150] sm:$0xff] %v5028
          %5125 = vst [vmem:[#allocation6 + $0x158] sm:$0xff] %v5030
          %5126 = vst [vmem:[#allocation6 + $0x160] sm:$0xff] %v5034
          %5127 = vst [vmem:[#allocation6 + $0x168] sm:$0xff] %v5036
          %5128 = vst [vmem:[#allocation6 + $0x170] sm:$0xff] %v5038
          %5129 = vst [vmem:[#allocation6 + $0x178] sm:$0xff] %v5040
          %5130 = vst [vmem:[#allocation6 + $0x180] sm:$0xff] %v5044
          %5131 = vst [vmem:[#allocation6 + $0x188] sm:$0xff] %v5046
          %5132 = vst [vmem:[#allocation6 + $0x190] sm:$0xff] %v5048
          %5133 = vst [vmem:[#allocation6 + $0x198] sm:$0xff] %v5050
          %5134 = vst [vmem:[#allocation6 + $0x1a0] sm:$0xff] %v5054
          %5135 = vst [vmem:[#allocation6 + $0x1a8] sm:$0xff] %v5056
          %5136 = vst [vmem:[#allocation6 + $0x1b0] sm:$0xff] %v5058
          %5137 = vst [vmem:[#allocation6 + $0x1b8] sm:$0xff] %v5060
          %5138 = vst [vmem:[#allocation6 + $0x1c0] sm:$0xff] %v5064
          %5139 = vst [vmem:[#allocation6 + $0x1c8] sm:$0xff] %v5066
          %5140 = vst [vmem:[#allocation6 + $0x1d0] sm:$0xff] %v5068
          %5141 = vst [vmem:[#allocation6 + $0x1d8] sm:$0xff] %v5070
          %5142 = vst [vmem:[#allocation6 + $0x1e0] sm:$0xff] %v5074
          %5143 = vst [vmem:[#allocation6 + $0x1e8] sm:$0xff] %v5076
          %5144 = vst [vmem:[#allocation6 + $0x1f0] sm:$0xff] %v5078
          %5145 = vst [vmem:[#allocation6 + $0x1f8] sm:$0xff] %v5080
        $region68: #{tpu_custom_call.1} parent=39 // pred_fallthru
          _
        %p5146 = scmp.eq.s32.totalorder %s21, 4
        // Predicated region
        $region69: #{tpu_custom_call.1} parent=39 // pred_check
          %p5147 = pneg %p5146
        $region70: #{tpu_custom_call.1} parent=39 // pred_check_branch
          %5149 = sbr.rel (%p5147) target = $region72
        $region71: #{tpu_custom_call.1} parent=39 // pred_region
          %v5150 = vld [vmem:[#allocation4] sm:$0xff]
          %v5151 = vld [vmem:[#allocation4 + $0x8] sm:$0xff]
          %v5152 = vld [vmem:[#allocation4 + $0x10] sm:$0xff]
          %v5153 = vld [vmem:[#allocation4 + $0x18] sm:$0xff]
          %v5154 = vld [vmem:[#allocation4 + $0x20] sm:$0xff]
          %v5155 = vld [vmem:[#allocation4 + $0x28] sm:$0xff]
          %v5156 = vld [vmem:[#allocation4 + $0x30] sm:$0xff]
          %v5157 = vld [vmem:[#allocation4 + $0x38] sm:$0xff]
          %v5158 = vld [vmem:[#allocation4 + $0x40] sm:$0xff]
          %v5159 = vld [vmem:[#allocation4 + $0x48] sm:$0xff]
          %v5160 = vld [vmem:[#allocation4 + $0x50] sm:$0xff]
          %v5161 = vld [vmem:[#allocation4 + $0x58] sm:$0xff]
          %v5162 = vld [vmem:[#allocation4 + $0x60] sm:$0xff]
          %v5163 = vld [vmem:[#allocation4 + $0x68] sm:$0xff]
          %v5164 = vld [vmem:[#allocation4 + $0x70] sm:$0xff]
          %v5165 = vld [vmem:[#allocation4 + $0x78] sm:$0xff]
          %v5166 = vld [vmem:[#allocation4 + $0x80] sm:$0xff]
          %v5167 = vld [vmem:[#allocation4 + $0x88] sm:$0xff]
          %v5168 = vld [vmem:[#allocation4 + $0x90] sm:$0xff]
          %v5169 = vld [vmem:[#allocation4 + $0x98] sm:$0xff]
          %v5170 = vld [vmem:[#allocation4 + $0xa0] sm:$0xff]
          %v5171 = vld [vmem:[#allocation4 + $0xa8] sm:$0xff]
          %v5172 = vld [vmem:[#allocation4 + $0xb0] sm:$0xff]
          %v5173 = vld [vmem:[#allocation4 + $0xb8] sm:$0xff]
          %v5174 = vld [vmem:[#allocation4 + $0xc0] sm:$0xff]
          %v5175 = vld [vmem:[#allocation4 + $0xc8] sm:$0xff]
          %v5176 = vld [vmem:[#allocation4 + $0xd0] sm:$0xff]
          %v5177 = vld [vmem:[#allocation4 + $0xd8] sm:$0xff]
          %v5178 = vld [vmem:[#allocation4 + $0xe0] sm:$0xff]
          %v5179 = vld [vmem:[#allocation4 + $0xe8] sm:$0xff]
          %v5180 = vld [vmem:[#allocation4 + $0xf0] sm:$0xff]
          %v5181 = vld [vmem:[#allocation4 + $0xf8] sm:$0xff]
          %v5182 = vld [vmem:[#allocation4 + $0x100] sm:$0xff]
          %v5183 = vld [vmem:[#allocation4 + $0x108] sm:$0xff]
          %v5184 = vld [vmem:[#allocation4 + $0x110] sm:$0xff]
          %v5185 = vld [vmem:[#allocation4 + $0x118] sm:$0xff]
          %v5186 = vld [vmem:[#allocation4 + $0x120] sm:$0xff]
          %v5187 = vld [vmem:[#allocation4 + $0x128] sm:$0xff]
          %v5188 = vld [vmem:[#allocation4 + $0x130] sm:$0xff]
          %v5189 = vld [vmem:[#allocation4 + $0x138] sm:$0xff]
          %v5190 = vld [vmem:[#allocation4 + $0x140] sm:$0xff]
          %v5191 = vld [vmem:[#allocation4 + $0x148] sm:$0xff]
          %v5192 = vld [vmem:[#allocation4 + $0x150] sm:$0xff]
          %v5193 = vld [vmem:[#allocation4 + $0x158] sm:$0xff]
          %v5194 = vld [vmem:[#allocation4 + $0x160] sm:$0xff]
          %v5195 = vld [vmem:[#allocation4 + $0x168] sm:$0xff]
          %v5196 = vld [vmem:[#allocation4 + $0x170] sm:$0xff]
          %v5197 = vld [vmem:[#allocation4 + $0x178] sm:$0xff]
          %v5198 = vld [vmem:[#allocation4 + $0x180] sm:$0xff]
          %v5199 = vld [vmem:[#allocation4 + $0x188] sm:$0xff]
          %v5200 = vld [vmem:[#allocation4 + $0x190] sm:$0xff]
          %v5201 = vld [vmem:[#allocation4 + $0x198] sm:$0xff]
          %v5202 = vld [vmem:[#allocation4 + $0x1a0] sm:$0xff]
          %v5203 = vld [vmem:[#allocation4 + $0x1a8] sm:$0xff]
          %v5204 = vld [vmem:[#allocation4 + $0x1b0] sm:$0xff]
          %v5205 = vld [vmem:[#allocation4 + $0x1b8] sm:$0xff]
          %v5206 = vld [vmem:[#allocation4 + $0x1c0] sm:$0xff]
          %v5207 = vld [vmem:[#allocation4 + $0x1c8] sm:$0xff]
          %v5208 = vld [vmem:[#allocation4 + $0x1d0] sm:$0xff]
          %v5209 = vld [vmem:[#allocation4 + $0x1d8] sm:$0xff]
          %v5210 = vld [vmem:[#allocation4 + $0x1e0] sm:$0xff]
          %v5211 = vld [vmem:[#allocation4 + $0x1e8] sm:$0xff]
          %v5212 = vld [vmem:[#allocation4 + $0x1f0] sm:$0xff]
          %v5213 = vld [vmem:[#allocation4 + $0x1f8] sm:$0xff]
          %v5214 = vpack.c.bf16 %v5152, %v5150
          %v5215 = vpack.c.bf16 %v5153, %v5151
          %v5216 = vpack.c.bf16 %v5156, %v5154
          %v5217 = vpack.c.bf16 %v5157, %v5155
          %v5218 = vpack.c.bf16 %v5160, %v5158
          %v5219 = vpack.c.bf16 %v5161, %v5159
          %v5220 = vpack.c.bf16 %v5164, %v5162
          %v5221 = vpack.c.bf16 %v5165, %v5163
          %v5222 = vpack.c.bf16 %v5168, %v5166
          %v5223 = vpack.c.bf16 %v5169, %v5167
          %v5224 = vpack.c.bf16 %v5172, %v5170
          %v5225 = vpack.c.bf16 %v5173, %v5171
          %v5226 = vpack.c.bf16 %v5176, %v5174
          %v5227 = vpack.c.bf16 %v5177, %v5175
          %v5228 = vpack.c.bf16 %v5180, %v5178
          %v5229 = vpack.c.bf16 %v5181, %v5179
          %v5230 = vpack.c.bf16 %v5184, %v5182
          %v5231 = vpack.c.bf16 %v5185, %v5183
          %v5232 = vpack.c.bf16 %v5188, %v5186
          %v5233 = vpack.c.bf16 %v5189, %v5187
          %v5234 = vpack.c.bf16 %v5192, %v5190
          %v5235 = vpack.c.bf16 %v5193, %v5191
          %v5236 = vpack.c.bf16 %v5196, %v5194
          %v5237 = vpack.c.bf16 %v5197, %v5195
          %v5238 = vpack.c.bf16 %v5200, %v5198
          %v5239 = vpack.c.bf16 %v5201, %v5199
          %v5240 = vpack.c.bf16 %v5204, %v5202
          %v5241 = vpack.c.bf16 %v5205, %v5203
          %v5242 = vpack.c.bf16 %v5208, %v5206
          %v5243 = vpack.c.bf16 %v5209, %v5207
          %v5244 = vpack.c.bf16 %v5212, %v5210
          %v5245 = vpack.c.bf16 %v5213, %v5211
          %v5246 = vld [vmem:[%s234] sm:$0xff]
          %v5247 = vld [vmem:[%s234 + $0x8] sm:$0xff]
          %v5248 = vld [vmem:[%s234 + $0x10] sm:$0xff]
          %v5249 = vld [vmem:[%s234 + $0x18] sm:$0xff]
          %v5250 = vld [vmem:[%s234 + $0x20] sm:$0xff]
          %v5251 = vld [vmem:[%s234 + $0x28] sm:$0xff]
          %v5252 = vld [vmem:[%s234 + $0x30] sm:$0xff]
          %v5253 = vld [vmem:[%s234 + $0x38] sm:$0xff]
          %v5254 = vld [vmem:[%s234 + $0x40] sm:$0xff]
          %v5255 = vld [vmem:[%s234 + $0x48] sm:$0xff]
          %v5256 = vld [vmem:[%s234 + $0x50] sm:$0xff]
          %v5257 = vld [vmem:[%s234 + $0x58] sm:$0xff]
          %v5258 = vld [vmem:[%s234 + $0x60] sm:$0xff]
          %v5259 = vld [vmem:[%s234 + $0x68] sm:$0xff]
          %v5260 = vld [vmem:[%s234 + $0x70] sm:$0xff]
          %v5261 = vld [vmem:[%s234 + $0x78] sm:$0xff]
          %v5262 = vld [vmem:[%s234 + $0x80] sm:$0xff]
          %v5263 = vld [vmem:[%s234 + $0x88] sm:$0xff]
          %v5264 = vld [vmem:[%s234 + $0x90] sm:$0xff]
          %v5265 = vld [vmem:[%s234 + $0x98] sm:$0xff]
          %v5266 = vld [vmem:[%s234 + $0xa0] sm:$0xff]
          %v5267 = vld [vmem:[%s234 + $0xa8] sm:$0xff]
          %v5268 = vld [vmem:[%s234 + $0xb0] sm:$0xff]
          %v5269 = vld [vmem:[%s234 + $0xb8] sm:$0xff]
          %v5270 = vld [vmem:[%s234 + $0xc0] sm:$0xff]
          %v5271 = vld [vmem:[%s234 + $0xc8] sm:$0xff]
          %v5272 = vld [vmem:[%s234 + $0xd0] sm:$0xff]
          %v5273 = vld [vmem:[%s234 + $0xd8] sm:$0xff]
          %v5274 = vld [vmem:[%s234 + $0xe0] sm:$0xff]
          %v5275 = vld [vmem:[%s234 + $0xe8] sm:$0xff]
          %v5276 = vld [vmem:[%s234 + $0xf0] sm:$0xff]
          %v5277 = vld [vmem:[%s234 + $0xf8] sm:$0xff]
          %v5310 = vunpack.c.l.b16 %v5246
          %v5311 = vunpack.c.h.b16 %v5246
          %v5312 = vunpack.c.l.b16 %v5247
          %v5313 = vunpack.c.h.b16 %v5247
          %v5314 = vunpack.c.l.b16 %v5248
          %v5315 = vunpack.c.h.b16 %v5248
          %v5316 = vunpack.c.l.b16 %v5249
          %v5317 = vunpack.c.h.b16 %v5249
          %v5318 = vunpack.c.l.b16 %v5250
          %v5319 = vunpack.c.h.b16 %v5250
          %v5320 = vunpack.c.l.b16 %v5251
          %v5321 = vunpack.c.h.b16 %v5251
          %v5322 = vunpack.c.l.b16 %v5252
          %v5323 = vunpack.c.h.b16 %v5252
          %v5324 = vunpack.c.l.b16 %v5253
          %v5325 = vunpack.c.h.b16 %v5253
          %v5326 = vunpack.c.l.b16 %v5254
          %v5327 = vunpack.c.h.b16 %v5254
          %v5328 = vunpack.c.l.b16 %v5255
          %v5329 = vunpack.c.h.b16 %v5255
          %v5330 = vunpack.c.l.b16 %v5256
          %v5331 = vunpack.c.h.b16 %v5256
          %v5332 = vunpack.c.l.b16 %v5257
          %v5333 = vunpack.c.h.b16 %v5257
          %v5334 = vunpack.c.l.b16 %v5258
          %v5335 = vunpack.c.h.b16 %v5258
          %v5336 = vunpack.c.l.b16 %v5259
          %v5337 = vunpack.c.h.b16 %v5259
          %v5338 = vunpack.c.l.b16 %v5260
          %v5339 = vunpack.c.h.b16 %v5260
          %v5340 = vunpack.c.l.b16 %v5261
          %v5341 = vunpack.c.h.b16 %v5261
          %v5342 = vunpack.c.l.b16 %v5262
          %v5343 = vunpack.c.h.b16 %v5262
          %v5344 = vunpack.c.l.b16 %v5263
          %v5345 = vunpack.c.h.b16 %v5263
          %v5346 = vunpack.c.l.b16 %v5264
          %v5347 = vunpack.c.h.b16 %v5264
          %v5348 = vunpack.c.l.b16 %v5265
          %v5349 = vunpack.c.h.b16 %v5265
          %v5350 = vunpack.c.l.b16 %v5266
          %v5351 = vunpack.c.h.b16 %v5266
          %v5352 = vunpack.c.l.b16 %v5267
          %v5353 = vunpack.c.h.b16 %v5267
          %v5354 = vunpack.c.l.b16 %v5268
          %v5355 = vunpack.c.h.b16 %v5268
          %v5356 = vunpack.c.l.b16 %v5269
          %v5357 = vunpack.c.h.b16 %v5269
          %v5358 = vunpack.c.l.b16 %v5270
          %v5359 = vunpack.c.h.b16 %v5270
          %v5360 = vunpack.c.l.b16 %v5271
          %v5361 = vunpack.c.h.b16 %v5271
          %v5362 = vunpack.c.l.b16 %v5272
          %v5363 = vunpack.c.h.b16 %v5272
          %v5364 = vunpack.c.l.b16 %v5273
          %v5365 = vunpack.c.h.b16 %v5273
          %v5366 = vunpack.c.l.b16 %v5274
          %v5367 = vunpack.c.h.b16 %v5274
          %v5368 = vunpack.c.l.b16 %v5275
          %v5369 = vunpack.c.h.b16 %v5275
          %v5370 = vunpack.c.l.b16 %v5276
          %v5371 = vunpack.c.h.b16 %v5276
          %v5372 = vunpack.c.l.b16 %v5277
          %v5373 = vunpack.c.h.b16 %v5277
          %v5374 = vpack.c.b16 %v5312, %v5310
          %v5375 = vpack.c.b16 %v5313, %v5311
          %v5376 = vpack.c.b16 %v5316, %v5314
          %v5377 = vpack.c.b16 %v5317, %v5315
          %v5378 = vpack.c.b16 %v5320, %v5318
          %v5379 = vpack.c.b16 %v5321, %v5319
          %v5380 = vpack.c.b16 %v5324, %v5322
          %v5381 = vpack.c.b16 %v5325, %v5323
          %v5382 = vpack.c.b16 %v5328, %v5326
          %v5383 = vpack.c.b16 %v5329, %v5327
          %v5384 = vpack.c.b16 %v5332, %v5330
          %v5385 = vpack.c.b16 %v5333, %v5331
          %v5386 = vpack.c.b16 %v5336, %v5334
          %v5387 = vpack.c.b16 %v5337, %v5335
          %v5388 = vpack.c.b16 %v5340, %v5338
          %v5389 = vpack.c.b16 %v5341, %v5339
          %v5390 = vpack.c.b16 %v5344, %v5342
          %v5391 = vpack.c.b16 %v5345, %v5343
          %v5392 = vpack.c.b16 %v5348, %v5346
          %v5393 = vpack.c.b16 %v5349, %v5347
          %v5394 = vpack.c.b16 %v5352, %v5350
          %v5395 = vpack.c.b16 %v5353, %v5351
          %v5396 = vpack.c.b16 %v5356, %v5354
          %v5397 = vpack.c.b16 %v5357, %v5355
          %v5398 = vpack.c.b16 %v5360, %v5358
          %v5399 = vpack.c.b16 %v5361, %v5359
          %v5400 = vpack.c.b16 %v5364, %v5362
          %v5401 = vpack.c.b16 %v5365, %v5363
          %v5402 = vpack.c.b16 %v5368, %v5366
          %v5403 = vpack.c.b16 %v5369, %v5367
          %v5404 = vpack.c.b16 %v5372, %v5370
          %v5405 = vpack.c.b16 %v5373, %v5371
          %5438 = vmatprep.subr.bf16.mxu0 %v5375
          %5439 = vmatpush1.bf16.msra.mxu0 %v5374
          %5440 = vmatprep.subr.bf16.mxu0 %v5377
          %5441 = vmatpush1.bf16.msra.mxu0 %v5376
          %5442 = vmatprep.subr.bf16.mxu0 %v5379
          %5443 = vmatpush1.bf16.msra.mxu0 %v5378
          %5444 = vmatprep.subr.bf16.mxu0 %v5381
          %5445 = vmatpush1.bf16.msra.mxu0 %v5380
          %5446 = vmatprep.subr.bf16.mxu0 %v5383
          %5447 = vmatpush1.bf16.msra.mxu0 %v5382
          %5448 = vmatprep.subr.bf16.mxu0 %v5385
          %5449 = vmatpush1.bf16.msra.mxu0 %v5384
          %5450 = vmatprep.subr.bf16.mxu0 %v5387
          %5451 = vmatpush1.bf16.msra.mxu0 %v5386
          %5452 = vmatprep.subr.bf16.mxu0 %v5389
          %5453 = vmatpush1.bf16.msra.mxu0 %v5388
          %5454 = vmatprep.subr.bf16.mxu0 %v5391
          %5455 = vmatpush1.bf16.msra.mxu0 %v5390
          %5456 = vmatprep.subr.bf16.mxu0 %v5393
          %5457 = vmatpush1.bf16.msra.mxu0 %v5392
          %5458 = vmatprep.subr.bf16.mxu0 %v5395
          %5459 = vmatpush1.bf16.msra.mxu0 %v5394
          %5460 = vmatprep.subr.bf16.mxu0 %v5397
          %5461 = vmatpush1.bf16.msra.mxu0 %v5396
          %5462 = vmatprep.subr.bf16.mxu0 %v5399
          %5463 = vmatpush1.bf16.msra.mxu0 %v5398
          %5464 = vmatprep.subr.bf16.mxu0 %v5401
          %5465 = vmatpush1.bf16.msra.mxu0 %v5400
          %5466 = vmatprep.subr.bf16.mxu0 %v5403
          %5467 = vmatpush1.bf16.msra.mxu0 %v5402
          %5468 = vmatprep.subr.bf16.mxu0 %v5405
          %5469 = vmatpush1.bf16.msra.mxu0 %v5404
          %5470 = vmatprep.mubr.bf16.mxu0 %v5215
          %5471 = vmatmul.mubr.bf16.gmra.mrb[0].mxu0 %v5214
          %v5472 = vpop.f32.mrb[0].mxu0
          %v5473 = vadd.f32 0.0, %v5472
          %v5474 = vpop.f32.mrb[0].mxu0
          %v5475 = vadd.f32 0.0, %v5474
          %v5476 = vpop.f32.mrb[0].mxu0
          %v5477 = vadd.f32 0.0, %v5476
          %v5478 = vpop.f32.mrb[0].mxu0
          %v5479 = vadd.f32 0.0, %v5478
          %5480 = vmatprep.mubr.bf16.mxu0 %v5217
          %5481 = vmatmul.mubr.bf16.gmra.mrb[0].mxu0 %v5216
          %v5482 = vpop.f32.mrb[0].mxu0
          %v5483 = vadd.f32 0.0, %v5482
          %v5484 = vpop.f32.mrb[0].mxu0
          %v5485 = vadd.f32 0.0, %v5484
          %v5486 = vpop.f32.mrb[0].mxu0
          %v5487 = vadd.f32 0.0, %v5486
          %v5488 = vpop.f32.mrb[0].mxu0
          %v5489 = vadd.f32 0.0, %v5488
          %5490 = vmatprep.mubr.bf16.mxu0 %v5219
          %5491 = vmatmul.mubr.bf16.gmra.mrb[0].mxu0 %v5218
          %v5492 = vpop.f32.mrb[0].mxu0
          %v5493 = vadd.f32 0.0, %v5492
          %v5494 = vpop.f32.mrb[0].mxu0
          %v5495 = vadd.f32 0.0, %v5494
          %v5496 = vpop.f32.mrb[0].mxu0
          %v5497 = vadd.f32 0.0, %v5496
          %v5498 = vpop.f32.mrb[0].mxu0
          %v5499 = vadd.f32 0.0, %v5498
          %5500 = vmatprep.mubr.bf16.mxu0 %v5221
          %5501 = vmatmul.mubr.bf16.gmra.mrb[0].mxu0 %v5220
          %v5502 = vpop.f32.mrb[0].mxu0
          %v5503 = vadd.f32 0.0, %v5502
          %v5504 = vpop.f32.mrb[0].mxu0
          %v5505 = vadd.f32 0.0, %v5504
          %v5506 = vpop.f32.mrb[0].mxu0
          %v5507 = vadd.f32 0.0, %v5506
          %v5508 = vpop.f32.mrb[0].mxu0
          %v5509 = vadd.f32 0.0, %v5508
          %5510 = vmatprep.mubr.bf16.mxu0 %v5223
          %5511 = vmatmul.mubr.bf16.gmra.mrb[0].mxu0 %v5222
          %v5512 = vpop.f32.mrb[0].mxu0
          %v5513 = vadd.f32 0.0, %v5512
          %v5514 = vpop.f32.mrb[0].mxu0
          %v5515 = vadd.f32 0.0, %v5514
          %v5516 = vpop.f32.mrb[0].mxu0
          %v5517 = vadd.f32 0.0, %v5516
          %v5518 = vpop.f32.mrb[0].mxu0
          %v5519 = vadd.f32 0.0, %v5518
          %5520 = vmatprep.mubr.bf16.mxu0 %v5225
          %5521 = vmatmul.mubr.bf16.gmra.mrb[0].mxu0 %v5224
          %v5522 = vpop.f32.mrb[0].mxu0
          %v5523 = vadd.f32 0.0, %v5522
          %v5524 = vpop.f32.mrb[0].mxu0
          %v5525 = vadd.f32 0.0, %v5524
          %v5526 = vpop.f32.mrb[0].mxu0
          %v5527 = vadd.f32 0.0, %v5526
          %v5528 = vpop.f32.mrb[0].mxu0
          %v5529 = vadd.f32 0.0, %v5528
          %5530 = vmatprep.mubr.bf16.mxu0 %v5227
          %5531 = vmatmul.mubr.bf16.gmra.mrb[0].mxu0 %v5226
          %v5532 = vpop.f32.mrb[0].mxu0
          %v5533 = vadd.f32 0.0, %v5532
          %v5534 = vpop.f32.mrb[0].mxu0
          %v5535 = vadd.f32 0.0, %v5534
          %v5536 = vpop.f32.mrb[0].mxu0
          %v5537 = vadd.f32 0.0, %v5536
          %v5538 = vpop.f32.mrb[0].mxu0
          %v5539 = vadd.f32 0.0, %v5538
          %5540 = vmatprep.mubr.bf16.mxu0 %v5229
          %5541 = vmatmul.mubr.bf16.gmra.mrb[0].mxu0 %v5228
          %v5542 = vpop.f32.mrb[0].mxu0
          %v5543 = vadd.f32 0.0, %v5542
          %v5544 = vpop.f32.mrb[0].mxu0
          %v5545 = vadd.f32 0.0, %v5544
          %v5546 = vpop.f32.mrb[0].mxu0
          %v5547 = vadd.f32 0.0, %v5546
          %v5548 = vpop.f32.mrb[0].mxu0
          %v5549 = vadd.f32 0.0, %v5548
          %5550 = vmatprep.mubr.bf16.mxu0 %v5231
          %5551 = vmatmul.mubr.bf16.gmra.mrb[0].mxu0 %v5230
          %v5552 = vpop.f32.mrb[0].mxu0
          %v5553 = vadd.f32 0.0, %v5552
          %v5554 = vpop.f32.mrb[0].mxu0
          %v5555 = vadd.f32 0.0, %v5554
          %v5556 = vpop.f32.mrb[0].mxu0
          %v5557 = vadd.f32 0.0, %v5556
          %v5558 = vpop.f32.mrb[0].mxu0
          %v5559 = vadd.f32 0.0, %v5558
          %5560 = vmatprep.mubr.bf16.mxu0 %v5233
          %5561 = vmatmul.mubr.bf16.gmra.mrb[0].mxu0 %v5232
          %v5562 = vpop.f32.mrb[0].mxu0
          %v5563 = vadd.f32 0.0, %v5562
          %v5564 = vpop.f32.mrb[0].mxu0
          %v5565 = vadd.f32 0.0, %v5564
          %v5566 = vpop.f32.mrb[0].mxu0
          %v5567 = vadd.f32 0.0, %v5566
          %v5568 = vpop.f32.mrb[0].mxu0
          %v5569 = vadd.f32 0.0, %v5568
          %5570 = vmatprep.mubr.bf16.mxu0 %v5235
          %5571 = vmatmul.mubr.bf16.gmra.mrb[0].mxu0 %v5234
          %v5572 = vpop.f32.mrb[0].mxu0
          %v5573 = vadd.f32 0.0, %v5572
          %v5574 = vpop.f32.mrb[0].mxu0
          %v5575 = vadd.f32 0.0, %v5574
          %v5576 = vpop.f32.mrb[0].mxu0
          %v5577 = vadd.f32 0.0, %v5576
          %v5578 = vpop.f32.mrb[0].mxu0
          %v5579 = vadd.f32 0.0, %v5578
          %5580 = vmatprep.mubr.bf16.mxu0 %v5237
          %5581 = vmatmul.mubr.bf16.gmra.mrb[0].mxu0 %v5236
          %v5582 = vpop.f32.mrb[0].mxu0
          %v5583 = vadd.f32 0.0, %v5582
          %v5584 = vpop.f32.mrb[0].mxu0
          %v5585 = vadd.f32 0.0, %v5584
          %v5586 = vpop.f32.mrb[0].mxu0
          %v5587 = vadd.f32 0.0, %v5586
          %v5588 = vpop.f32.mrb[0].mxu0
          %v5589 = vadd.f32 0.0, %v5588
          %5590 = vmatprep.mubr.bf16.mxu0 %v5239
          %5591 = vmatmul.mubr.bf16.gmra.mrb[0].mxu0 %v5238
          %v5592 = vpop.f32.mrb[0].mxu0
          %v5593 = vadd.f32 0.0, %v5592
          %v5594 = vpop.f32.mrb[0].mxu0
          %v5595 = vadd.f32 0.0, %v5594
          %v5596 = vpop.f32.mrb[0].mxu0
          %v5597 = vadd.f32 0.0, %v5596
          %v5598 = vpop.f32.mrb[0].mxu0
          %v5599 = vadd.f32 0.0, %v5598
          %5600 = vmatprep.mubr.bf16.mxu0 %v5241
          %5601 = vmatmul.mubr.bf16.gmra.mrb[0].mxu0 %v5240
          %v5602 = vpop.f32.mrb[0].mxu0
          %v5603 = vadd.f32 0.0, %v5602
          %v5604 = vpop.f32.mrb[0].mxu0
          %v5605 = vadd.f32 0.0, %v5604
          %v5606 = vpop.f32.mrb[0].mxu0
          %v5607 = vadd.f32 0.0, %v5606
          %v5608 = vpop.f32.mrb[0].mxu0
          %v5609 = vadd.f32 0.0, %v5608
          %5610 = vmatprep.mubr.bf16.mxu0 %v5243
          %5611 = vmatmul.mubr.bf16.gmra.mrb[0].mxu0 %v5242
          %v5612 = vpop.f32.mrb[0].mxu0
          %v5613 = vadd.f32 0.0, %v5612
          %v5614 = vpop.f32.mrb[0].mxu0
          %v5615 = vadd.f32 0.0, %v5614
          %v5616 = vpop.f32.mrb[0].mxu0
          %v5617 = vadd.f32 0.0, %v5616
          %v5618 = vpop.f32.mrb[0].mxu0
          %v5619 = vadd.f32 0.0, %v5618
          %5620 = vmatprep.mubr.bf16.mxu0 %v5245
          %5621 = vmatmul.mubr.bf16.gmra.mrb[0].mxu0 %v5244
          %v5622 = vpop.f32.mrb[0].mxu0
          %v5623 = vadd.f32 0.0, %v5622
          %v5624 = vpop.f32.mrb[0].mxu0
          %v5625 = vadd.f32 0.0, %v5624
          %v5626 = vpop.f32.mrb[0].mxu0
          %v5627 = vadd.f32 0.0, %v5626
          %v5628 = vpop.f32.mrb[0].mxu0
          %v5629 = vadd.f32 0.0, %v5628
          %5630 = vdwg.mxu0
          %v5631 = vmul.f32 %v5473, 0.5
          %v5632 = vmul.f32 %v5475, 0.5
          %v5633 = vmul.f32 %v5477, 0.5
          %v5634 = vmul.f32 %v5479, 0.5
          %v5635 = vmul.f32 %v5483, 0.5
          %v5636 = vmul.f32 %v5485, 0.5
          %v5637 = vmul.f32 %v5487, 0.5
          %v5638 = vmul.f32 %v5489, 0.5
          %v5639 = vmul.f32 %v5493, 0.5
          %v5640 = vmul.f32 %v5495, 0.5
          %v5641 = vmul.f32 %v5497, 0.5
          %v5642 = vmul.f32 %v5499, 0.5
          %v5643 = vmul.f32 %v5503, 0.5
          %v5644 = vmul.f32 %v5505, 0.5
          %v5645 = vmul.f32 %v5507, 0.5
          %v5646 = vmul.f32 %v5509, 0.5
          %v5647 = vmul.f32 %v5513, 0.5
          %v5648 = vmul.f32 %v5515, 0.5
          %v5649 = vmul.f32 %v5517, 0.5
          %v5650 = vmul.f32 %v5519, 0.5
          %v5651 = vmul.f32 %v5523, 0.5
          %v5652 = vmul.f32 %v5525, 0.5
          %v5653 = vmul.f32 %v5527, 0.5
          %v5654 = vmul.f32 %v5529, 0.5
          %v5655 = vmul.f32 %v5533, 0.5
          %v5656 = vmul.f32 %v5535, 0.5
          %v5657 = vmul.f32 %v5537, 0.5
          %v5658 = vmul.f32 %v5539, 0.5
          %v5659 = vmul.f32 %v5543, 0.5
          %v5660 = vmul.f32 %v5545, 0.5
          %v5661 = vmul.f32 %v5547, 0.5
          %v5662 = vmul.f32 %v5549, 0.5
          %v5663 = vmul.f32 %v5553, 0.5
          %v5664 = vmul.f32 %v5555, 0.5
          %v5665 = vmul.f32 %v5557, 0.5
          %v5666 = vmul.f32 %v5559, 0.5
          %v5667 = vmul.f32 %v5563, 0.5
          %v5668 = vmul.f32 %v5565, 0.5
          %v5669 = vmul.f32 %v5567, 0.5
          %v5670 = vmul.f32 %v5569, 0.5
          %v5671 = vmul.f32 %v5573, 0.5
          %v5672 = vmul.f32 %v5575, 0.5
          %v5673 = vmul.f32 %v5577, 0.5
          %v5674 = vmul.f32 %v5579, 0.5
          %v5675 = vmul.f32 %v5583, 0.5
          %v5676 = vmul.f32 %v5585, 0.5
          %v5677 = vmul.f32 %v5587, 0.5
          %v5678 = vmul.f32 %v5589, 0.5
          %v5679 = vmul.f32 %v5593, 0.5
          %v5680 = vmul.f32 %v5595, 0.5
          %v5681 = vmul.f32 %v5597, 0.5
          %v5682 = vmul.f32 %v5599, 0.5
          %v5683 = vmul.f32 %v5603, 0.5
          %v5684 = vmul.f32 %v5605, 0.5
          %v5685 = vmul.f32 %v5607, 0.5
          %v5686 = vmul.f32 %v5609, 0.5
          %v5687 = vmul.f32 %v5613, 0.5
          %v5688 = vmul.f32 %v5615, 0.5
          %v5689 = vmul.f32 %v5617, 0.5
          %v5690 = vmul.f32 %v5619, 0.5
          %v5691 = vmul.f32 %v5623, 0.5
          %v5692 = vmul.f32 %v5625, 0.5
          %v5693 = vmul.f32 %v5627, 0.5
          %v5694 = vmul.f32 %v5629, 0.5
          %v5695 = vmul.f32 %v5473, 0.044715
          %v5696 = vmul.f32 %v5475, 0.044715
          %v5697 = vmul.f32 %v5477, 0.044715
          %v5698 = vmul.f32 %v5479, 0.044715
          %v5699 = vmul.f32 %v5483, 0.044715
          %v5700 = vmul.f32 %v5485, 0.044715
          %v5701 = vmul.f32 %v5487, 0.044715
          %v5702 = vmul.f32 %v5489, 0.044715
          %v5703 = vmul.f32 %v5493, 0.044715
          %v5704 = vmul.f32 %v5495, 0.044715
          %v5705 = vmul.f32 %v5497, 0.044715
          %v5706 = vmul.f32 %v5499, 0.044715
          %v5707 = vmul.f32 %v5503, 0.044715
          %v5708 = vmul.f32 %v5505, 0.044715
          %v5709 = vmul.f32 %v5507, 0.044715
          %v5710 = vmul.f32 %v5509, 0.044715
          %v5711 = vmul.f32 %v5513, 0.044715
          %v5712 = vmul.f32 %v5515, 0.044715
          %v5713 = vmul.f32 %v5517, 0.044715
          %v5714 = vmul.f32 %v5519, 0.044715
          %v5715 = vmul.f32 %v5523, 0.044715
          %v5716 = vmul.f32 %v5525, 0.044715
          %v5717 = vmul.f32 %v5527, 0.044715
          %v5718 = vmul.f32 %v5529, 0.044715
          %v5719 = vmul.f32 %v5533, 0.044715
          %v5720 = vmul.f32 %v5535, 0.044715
          %v5721 = vmul.f32 %v5537, 0.044715
          %v5722 = vmul.f32 %v5539, 0.044715
          %v5723 = vmul.f32 %v5543, 0.044715
          %v5724 = vmul.f32 %v5545, 0.044715
          %v5725 = vmul.f32 %v5547, 0.044715
          %v5726 = vmul.f32 %v5549, 0.044715
          %v5727 = vmul.f32 %v5553, 0.044715
          %v5728 = vmul.f32 %v5555, 0.044715
          %v5729 = vmul.f32 %v5557, 0.044715
          %v5730 = vmul.f32 %v5559, 0.044715
          %v5731 = vmul.f32 %v5563, 0.044715
          %v5732 = vmul.f32 %v5565, 0.044715
          %v5733 = vmul.f32 %v5567, 0.044715
          %v5734 = vmul.f32 %v5569, 0.044715
          %v5735 = vmul.f32 %v5573, 0.044715
          %v5736 = vmul.f32 %v5575, 0.044715
          %v5737 = vmul.f32 %v5577, 0.044715
          %v5738 = vmul.f32 %v5579, 0.044715
          %v5739 = vmul.f32 %v5583, 0.044715
          %v5740 = vmul.f32 %v5585, 0.044715
          %v5741 = vmul.f32 %v5587, 0.044715
          %v5742 = vmul.f32 %v5589, 0.044715
          %v5743 = vmul.f32 %v5593, 0.044715
          %v5744 = vmul.f32 %v5595, 0.044715
          %v5745 = vmul.f32 %v5597, 0.044715
          %v5746 = vmul.f32 %v5599, 0.044715
          %v5747 = vmul.f32 %v5603, 0.044715
          %v5748 = vmul.f32 %v5605, 0.044715
          %v5749 = vmul.f32 %v5607, 0.044715
          %v5750 = vmul.f32 %v5609, 0.044715
          %v5751 = vmul.f32 %v5613, 0.044715
          %v5752 = vmul.f32 %v5615, 0.044715
          %v5753 = vmul.f32 %v5617, 0.044715
          %v5754 = vmul.f32 %v5619, 0.044715
          %v5755 = vmul.f32 %v5623, 0.044715
          %v5756 = vmul.f32 %v5625, 0.044715
          %v5757 = vmul.f32 %v5627, 0.044715
          %v5758 = vmul.f32 %v5629, 0.044715
          %v5759 = vmul.f32 %v5695, %v5473
          %v5760 = vmul.f32 %v5696, %v5475
          %v5761 = vmul.f32 %v5697, %v5477
          %v5762 = vmul.f32 %v5698, %v5479
          %v5763 = vmul.f32 %v5699, %v5483
          %v5764 = vmul.f32 %v5700, %v5485
          %v5765 = vmul.f32 %v5701, %v5487
          %v5766 = vmul.f32 %v5702, %v5489
          %v5767 = vmul.f32 %v5703, %v5493
          %v5768 = vmul.f32 %v5704, %v5495
          %v5769 = vmul.f32 %v5705, %v5497
          %v5770 = vmul.f32 %v5706, %v5499
          %v5771 = vmul.f32 %v5707, %v5503
          %v5772 = vmul.f32 %v5708, %v5505
          %v5773 = vmul.f32 %v5709, %v5507
          %v5774 = vmul.f32 %v5710, %v5509
          %v5775 = vmul.f32 %v5711, %v5513
          %v5776 = vmul.f32 %v5712, %v5515
          %v5777 = vmul.f32 %v5713, %v5517
          %v5778 = vmul.f32 %v5714, %v5519
          %v5779 = vmul.f32 %v5715, %v5523
          %v5780 = vmul.f32 %v5716, %v5525
          %v5781 = vmul.f32 %v5717, %v5527
          %v5782 = vmul.f32 %v5718, %v5529
          %v5783 = vmul.f32 %v5719, %v5533
          %v5784 = vmul.f32 %v5720, %v5535
          %v5785 = vmul.f32 %v5721, %v5537
          %v5786 = vmul.f32 %v5722, %v5539
          %v5787 = vmul.f32 %v5723, %v5543
          %v5788 = vmul.f32 %v5724, %v5545
          %v5789 = vmul.f32 %v5725, %v5547
          %v5790 = vmul.f32 %v5726, %v5549
          %v5791 = vmul.f32 %v5727, %v5553
          %v5792 = vmul.f32 %v5728, %v5555
          %v5793 = vmul.f32 %v5729, %v5557
          %v5794 = vmul.f32 %v5730, %v5559
          %v5795 = vmul.f32 %v5731, %v5563
          %v5796 = vmul.f32 %v5732, %v5565
          %v5797 = vmul.f32 %v5733, %v5567
          %v5798 = vmul.f32 %v5734, %v5569
          %v5799 = vmul.f32 %v5735, %v5573
          %v5800 = vmul.f32 %v5736, %v5575
          %v5801 = vmul.f32 %v5737, %v5577
          %v5802 = vmul.f32 %v5738, %v5579
          %v5803 = vmul.f32 %v5739, %v5583
          %v5804 = vmul.f32 %v5740, %v5585
          %v5805 = vmul.f32 %v5741, %v5587
          %v5806 = vmul.f32 %v5742, %v5589
          %v5807 = vmul.f32 %v5743, %v5593
          %v5808 = vmul.f32 %v5744, %v5595
          %v5809 = vmul.f32 %v5745, %v5597
          %v5810 = vmul.f32 %v5746, %v5599
          %v5811 = vmul.f32 %v5747, %v5603
          %v5812 = vmul.f32 %v5748, %v5605
          %v5813 = vmul.f32 %v5749, %v5607
          %v5814 = vmul.f32 %v5750, %v5609
          %v5815 = vmul.f32 %v5751, %v5613
          %v5816 = vmul.f32 %v5752, %v5615
          %v5817 = vmul.f32 %v5753, %v5617
          %v5818 = vmul.f32 %v5754, %v5619
          %v5819 = vmul.f32 %v5755, %v5623
          %v5820 = vmul.f32 %v5756, %v5625
          %v5821 = vmul.f32 %v5757, %v5627
          %v5822 = vmul.f32 %v5758, %v5629
          %v5823 = vmul.f32 %v5759, %v5473
          %v5824 = vmul.f32 %v5760, %v5475
          %v5825 = vmul.f32 %v5761, %v5477
          %v5826 = vmul.f32 %v5762, %v5479
          %v5827 = vmul.f32 %v5763, %v5483
          %v5828 = vmul.f32 %v5764, %v5485
          %v5829 = vmul.f32 %v5765, %v5487
          %v5830 = vmul.f32 %v5766, %v5489
          %v5831 = vmul.f32 %v5767, %v5493
          %v5832 = vmul.f32 %v5768, %v5495
          %v5833 = vmul.f32 %v5769, %v5497
          %v5834 = vmul.f32 %v5770, %v5499
          %v5835 = vmul.f32 %v5771, %v5503
          %v5836 = vmul.f32 %v5772, %v5505
          %v5837 = vmul.f32 %v5773, %v5507
          %v5838 = vmul.f32 %v5774, %v5509
          %v5839 = vmul.f32 %v5775, %v5513
          %v5840 = vmul.f32 %v5776, %v5515
          %v5841 = vmul.f32 %v5777, %v5517
          %v5842 = vmul.f32 %v5778, %v5519
          %v5843 = vmul.f32 %v5779, %v5523
          %v5844 = vmul.f32 %v5780, %v5525
          %v5845 = vmul.f32 %v5781, %v5527
          %v5846 = vmul.f32 %v5782, %v5529
          %v5847 = vmul.f32 %v5783, %v5533
          %v5848 = vmul.f32 %v5784, %v5535
          %v5849 = vmul.f32 %v5785, %v5537
          %v5850 = vmul.f32 %v5786, %v5539
          %v5851 = vmul.f32 %v5787, %v5543
          %v5852 = vmul.f32 %v5788, %v5545
          %v5853 = vmul.f32 %v5789, %v5547
          %v5854 = vmul.f32 %v5790, %v5549
          %v5855 = vmul.f32 %v5791, %v5553
          %v5856 = vmul.f32 %v5792, %v5555
          %v5857 = vmul.f32 %v5793, %v5557
          %v5858 = vmul.f32 %v5794, %v5559
          %v5859 = vmul.f32 %v5795, %v5563
          %v5860 = vmul.f32 %v5796, %v5565
          %v5861 = vmul.f32 %v5797, %v5567
          %v5862 = vmul.f32 %v5798, %v5569
          %v5863 = vmul.f32 %v5799, %v5573
          %v5864 = vmul.f32 %v5800, %v5575
          %v5865 = vmul.f32 %v5801, %v5577
          %v5866 = vmul.f32 %v5802, %v5579
          %v5867 = vmul.f32 %v5803, %v5583
          %v5868 = vmul.f32 %v5804, %v5585
          %v5869 = vmul.f32 %v5805, %v5587
          %v5870 = vmul.f32 %v5806, %v5589
          %v5871 = vmul.f32 %v5807, %v5593
          %v5872 = vmul.f32 %v5808, %v5595
          %v5873 = vmul.f32 %v5809, %v5597
          %v5874 = vmul.f32 %v5810, %v5599
          %v5875 = vmul.f32 %v5811, %v5603
          %v5876 = vmul.f32 %v5812, %v5605
          %v5877 = vmul.f32 %v5813, %v5607
          %v5878 = vmul.f32 %v5814, %v5609
          %v5879 = vmul.f32 %v5815, %v5613
          %v5880 = vmul.f32 %v5816, %v5615
          %v5881 = vmul.f32 %v5817, %v5617
          %v5882 = vmul.f32 %v5818, %v5619
          %v5883 = vmul.f32 %v5819, %v5623
          %v5884 = vmul.f32 %v5820, %v5625
          %v5885 = vmul.f32 %v5821, %v5627
          %v5886 = vmul.f32 %v5822, %v5629
          %v5887 = vadd.f32 %v5473, %v5823
          %v5888 = vadd.f32 %v5475, %v5824
          %v5889 = vadd.f32 %v5477, %v5825
          %v5890 = vadd.f32 %v5479, %v5826
          %v5891 = vadd.f32 %v5483, %v5827
          %v5892 = vadd.f32 %v5485, %v5828
          %v5893 = vadd.f32 %v5487, %v5829
          %v5894 = vadd.f32 %v5489, %v5830
          %v5895 = vadd.f32 %v5493, %v5831
          %v5896 = vadd.f32 %v5495, %v5832
          %v5897 = vadd.f32 %v5497, %v5833
          %v5898 = vadd.f32 %v5499, %v5834
          %v5899 = vadd.f32 %v5503, %v5835
          %v5900 = vadd.f32 %v5505, %v5836
          %v5901 = vadd.f32 %v5507, %v5837
          %v5902 = vadd.f32 %v5509, %v5838
          %v5903 = vadd.f32 %v5513, %v5839
          %v5904 = vadd.f32 %v5515, %v5840
          %v5905 = vadd.f32 %v5517, %v5841
          %v5906 = vadd.f32 %v5519, %v5842
          %v5907 = vadd.f32 %v5523, %v5843
          %v5908 = vadd.f32 %v5525, %v5844
          %v5909 = vadd.f32 %v5527, %v5845
          %v5910 = vadd.f32 %v5529, %v5846
          %v5911 = vadd.f32 %v5533, %v5847
          %v5912 = vadd.f32 %v5535, %v5848
          %v5913 = vadd.f32 %v5537, %v5849
          %v5914 = vadd.f32 %v5539, %v5850
          %v5915 = vadd.f32 %v5543, %v5851
          %v5916 = vadd.f32 %v5545, %v5852
          %v5917 = vadd.f32 %v5547, %v5853
          %v5918 = vadd.f32 %v5549, %v5854
          %v5919 = vadd.f32 %v5553, %v5855
          %v5920 = vadd.f32 %v5555, %v5856
          %v5921 = vadd.f32 %v5557, %v5857
          %v5922 = vadd.f32 %v5559, %v5858
          %v5923 = vadd.f32 %v5563, %v5859
          %v5924 = vadd.f32 %v5565, %v5860
          %v5925 = vadd.f32 %v5567, %v5861
          %v5926 = vadd.f32 %v5569, %v5862
          %v5927 = vadd.f32 %v5573, %v5863
          %v5928 = vadd.f32 %v5575, %v5864
          %v5929 = vadd.f32 %v5577, %v5865
          %v5930 = vadd.f32 %v5579, %v5866
          %v5931 = vadd.f32 %v5583, %v5867
          %v5932 = vadd.f32 %v5585, %v5868
          %v5933 = vadd.f32 %v5587, %v5869
          %v5934 = vadd.f32 %v5589, %v5870
          %v5935 = vadd.f32 %v5593, %v5871
          %v5936 = vadd.f32 %v5595, %v5872
          %v5937 = vadd.f32 %v5597, %v5873
          %v5938 = vadd.f32 %v5599, %v5874
          %v5939 = vadd.f32 %v5603, %v5875
          %v5940 = vadd.f32 %v5605, %v5876
          %v5941 = vadd.f32 %v5607, %v5877
          %v5942 = vadd.f32 %v5609, %v5878
          %v5943 = vadd.f32 %v5613, %v5879
          %v5944 = vadd.f32 %v5615, %v5880
          %v5945 = vadd.f32 %v5617, %v5881
          %v5946 = vadd.f32 %v5619, %v5882
          %v5947 = vadd.f32 %v5623, %v5883
          %v5948 = vadd.f32 %v5625, %v5884
          %v5949 = vadd.f32 %v5627, %v5885
          %v5950 = vadd.f32 %v5629, %v5886
          %v5951 = vmul.f32 %v5887, 0.7978846
          %v5952 = vmul.f32 %v5888, 0.7978846
          %v5953 = vmul.f32 %v5889, 0.7978846
          %v5954 = vmul.f32 %v5890, 0.7978846
          %v5955 = vmul.f32 %v5891, 0.7978846
          %v5956 = vmul.f32 %v5892, 0.7978846
          %v5957 = vmul.f32 %v5893, 0.7978846
          %v5958 = vmul.f32 %v5894, 0.7978846
          %v5959 = vmul.f32 %v5895, 0.7978846
          %v5960 = vmul.f32 %v5896, 0.7978846
          %v5961 = vmul.f32 %v5897, 0.7978846
          %v5962 = vmul.f32 %v5898, 0.7978846
          %v5963 = vmul.f32 %v5899, 0.7978846
          %v5964 = vmul.f32 %v5900, 0.7978846
          %v5965 = vmul.f32 %v5901, 0.7978846
          %v5966 = vmul.f32 %v5902, 0.7978846
          %v5967 = vmul.f32 %v5903, 0.7978846
          %v5968 = vmul.f32 %v5904, 0.7978846
          %v5969 = vmul.f32 %v5905, 0.7978846
          %v5970 = vmul.f32 %v5906, 0.7978846
          %v5971 = vmul.f32 %v5907, 0.7978846
          %v5972 = vmul.f32 %v5908, 0.7978846
          %v5973 = vmul.f32 %v5909, 0.7978846
          %v5974 = vmul.f32 %v5910, 0.7978846
          %v5975 = vmul.f32 %v5911, 0.7978846
          %v5976 = vmul.f32 %v5912, 0.7978846
          %v5977 = vmul.f32 %v5913, 0.7978846
          %v5978 = vmul.f32 %v5914, 0.7978846
          %v5979 = vmul.f32 %v5915, 0.7978846
          %v5980 = vmul.f32 %v5916, 0.7978846
          %v5981 = vmul.f32 %v5917, 0.7978846
          %v5982 = vmul.f32 %v5918, 0.7978846
          %v5983 = vmul.f32 %v5919, 0.7978846
          %v5984 = vmul.f32 %v5920, 0.7978846
          %v5985 = vmul.f32 %v5921, 0.7978846
          %v5986 = vmul.f32 %v5922, 0.7978846
          %v5987 = vmul.f32 %v5923, 0.7978846
          %v5988 = vmul.f32 %v5924, 0.7978846
          %v5989 = vmul.f32 %v5925, 0.7978846
          %v5990 = vmul.f32 %v5926, 0.7978846
          %v5991 = vmul.f32 %v5927, 0.7978846
          %v5992 = vmul.f32 %v5928, 0.7978846
          %v5993 = vmul.f32 %v5929, 0.7978846
          %v5994 = vmul.f32 %v5930, 0.7978846
          %v5995 = vmul.f32 %v5931, 0.7978846
          %v5996 = vmul.f32 %v5932, 0.7978846
          %v5997 = vmul.f32 %v5933, 0.7978846
          %v5998 = vmul.f32 %v5934, 0.7978846
          %v5999 = vmul.f32 %v5935, 0.7978846
          %v6000 = vmul.f32 %v5936, 0.7978846
          %v6001 = vmul.f32 %v5937, 0.7978846
          %v6002 = vmul.f32 %v5938, 0.7978846
          %v6003 = vmul.f32 %v5939, 0.7978846
          %v6004 = vmul.f32 %v5940, 0.7978846
          %v6005 = vmul.f32 %v5941, 0.7978846
          %v6006 = vmul.f32 %v5942, 0.7978846
          %v6007 = vmul.f32 %v5943, 0.7978846
          %v6008 = vmul.f32 %v5944, 0.7978846
          %v6009 = vmul.f32 %v5945, 0.7978846
          %v6010 = vmul.f32 %v5946, 0.7978846
          %v6011 = vmul.f32 %v5947, 0.7978846
          %v6012 = vmul.f32 %v5948, 0.7978846
          %v6013 = vmul.f32 %v5949, 0.7978846
          %v6014 = vmul.f32 %v5950, 0.7978846
          %v6015 = vtanh.pop %v5951
          %v6016 = vtanh.pop %v5952
          %v6017 = vtanh.pop %v5953
          %v6018 = vtanh.pop %v5954
          %v6019 = vtanh.pop %v5955
          %v6020 = vtanh.pop %v5956
          %v6021 = vtanh.pop %v5957
          %v6022 = vtanh.pop %v5958
          %v6023 = vtanh.pop %v5959
          %v6024 = vtanh.pop %v5960
          %v6025 = vtanh.pop %v5961
          %v6026 = vtanh.pop %v5962
          %v6027 = vtanh.pop %v5963
          %v6028 = vtanh.pop %v5964
          %v6029 = vtanh.pop %v5965
          %v6030 = vtanh.pop %v5966
          %v6031 = vtanh.pop %v5967
          %v6032 = vtanh.pop %v5968
          %v6033 = vtanh.pop %v5969
          %v6034 = vtanh.pop %v5970
          %v6035 = vtanh.pop %v5971
          %v6036 = vtanh.pop %v5972
          %v6037 = vtanh.pop %v5973
          %v6038 = vtanh.pop %v5974
          %v6039 = vtanh.pop %v5975
          %v6040 = vtanh.pop %v5976
          %v6041 = vtanh.pop %v5977
          %v6042 = vtanh.pop %v5978
          %v6043 = vtanh.pop %v5979
          %v6044 = vtanh.pop %v5980
          %v6045 = vtanh.pop %v5981
          %v6046 = vtanh.pop %v5982
          %v6047 = vtanh.pop %v5983
          %v6048 = vtanh.pop %v5984
          %v6049 = vtanh.pop %v5985
          %v6050 = vtanh.pop %v5986
          %v6051 = vtanh.pop %v5987
          %v6052 = vtanh.pop %v5988
          %v6053 = vtanh.pop %v5989
          %v6054 = vtanh.pop %v5990
          %v6055 = vtanh.pop %v5991
          %v6056 = vtanh.pop %v5992
          %v6057 = vtanh.pop %v5993
          %v6058 = vtanh.pop %v5994
          %v6059 = vtanh.pop %v5995
          %v6060 = vtanh.pop %v5996
          %v6061 = vtanh.pop %v5997
          %v6062 = vtanh.pop %v5998
          %v6063 = vtanh.pop %v5999
          %v6064 = vtanh.pop %v6000
          %v6065 = vtanh.pop %v6001
          %v6066 = vtanh.pop %v6002
          %v6067 = vtanh.pop %v6003
          %v6068 = vtanh.pop %v6004
          %v6069 = vtanh.pop %v6005
          %v6070 = vtanh.pop %v6006
          %v6071 = vtanh.pop %v6007
          %v6072 = vtanh.pop %v6008
          %v6073 = vtanh.pop %v6009
          %v6074 = vtanh.pop %v6010
          %v6075 = vtanh.pop %v6011
          %v6076 = vtanh.pop %v6012
          %v6077 = vtanh.pop %v6013
          %v6078 = vtanh.pop %v6014
          %v6079 = vadd.f32 %v6015, 1.0
          %v6080 = vadd.f32 %v6016, 1.0
          %v6081 = vadd.f32 %v6017, 1.0
          %v6082 = vadd.f32 %v6018, 1.0
          %v6083 = vadd.f32 %v6019, 1.0
          %v6084 = vadd.f32 %v6020, 1.0
          %v6085 = vadd.f32 %v6021, 1.0
          %v6086 = vadd.f32 %v6022, 1.0
          %v6087 = vadd.f32 %v6023, 1.0
          %v6088 = vadd.f32 %v6024, 1.0
          %v6089 = vadd.f32 %v6025, 1.0
          %v6090 = vadd.f32 %v6026, 1.0
          %v6091 = vadd.f32 %v6027, 1.0
          %v6092 = vadd.f32 %v6028, 1.0
          %v6093 = vadd.f32 %v6029, 1.0
          %v6094 = vadd.f32 %v6030, 1.0
          %v6095 = vadd.f32 %v6031, 1.0
          %v6096 = vadd.f32 %v6032, 1.0
          %v6097 = vadd.f32 %v6033, 1.0
          %v6098 = vadd.f32 %v6034, 1.0
          %v6099 = vadd.f32 %v6035, 1.0
          %v6100 = vadd.f32 %v6036, 1.0
          %v6101 = vadd.f32 %v6037, 1.0
          %v6102 = vadd.f32 %v6038, 1.0
          %v6103 = vadd.f32 %v6039, 1.0
          %v6104 = vadd.f32 %v6040, 1.0
          %v6105 = vadd.f32 %v6041, 1.0
          %v6106 = vadd.f32 %v6042, 1.0
          %v6107 = vadd.f32 %v6043, 1.0
          %v6108 = vadd.f32 %v6044, 1.0
          %v6109 = vadd.f32 %v6045, 1.0
          %v6110 = vadd.f32 %v6046, 1.0
          %v6111 = vadd.f32 %v6047, 1.0
          %v6112 = vadd.f32 %v6048, 1.0
          %v6113 = vadd.f32 %v6049, 1.0
          %v6114 = vadd.f32 %v6050, 1.0
          %v6115 = vadd.f32 %v6051, 1.0
          %v6116 = vadd.f32 %v6052, 1.0
          %v6117 = vadd.f32 %v6053, 1.0
          %v6118 = vadd.f32 %v6054, 1.0
          %v6119 = vadd.f32 %v6055, 1.0
          %v6120 = vadd.f32 %v6056, 1.0
          %v6121 = vadd.f32 %v6057, 1.0
          %v6122 = vadd.f32 %v6058, 1.0
          %v6123 = vadd.f32 %v6059, 1.0
          %v6124 = vadd.f32 %v6060, 1.0
          %v6125 = vadd.f32 %v6061, 1.0
          %v6126 = vadd.f32 %v6062, 1.0
          %v6127 = vadd.f32 %v6063, 1.0
          %v6128 = vadd.f32 %v6064, 1.0
          %v6129 = vadd.f32 %v6065, 1.0
          %v6130 = vadd.f32 %v6066, 1.0
          %v6131 = vadd.f32 %v6067, 1.0
          %v6132 = vadd.f32 %v6068, 1.0
          %v6133 = vadd.f32 %v6069, 1.0
          %v6134 = vadd.f32 %v6070, 1.0
          %v6135 = vadd.f32 %v6071, 1.0
          %v6136 = vadd.f32 %v6072, 1.0
          %v6137 = vadd.f32 %v6073, 1.0
          %v6138 = vadd.f32 %v6074, 1.0
          %v6139 = vadd.f32 %v6075, 1.0
          %v6140 = vadd.f32 %v6076, 1.0
          %v6141 = vadd.f32 %v6077, 1.0
          %v6142 = vadd.f32 %v6078, 1.0
          %v6143 = vmul.f32 %v5631, %v6079
          %v6144 = vmul.f32 %v5632, %v6080
          %v6145 = vmul.f32 %v5633, %v6081
          %v6146 = vmul.f32 %v5634, %v6082
          %v6147 = vmul.f32 %v5635, %v6083
          %v6148 = vmul.f32 %v5636, %v6084
          %v6149 = vmul.f32 %v5637, %v6085
          %v6150 = vmul.f32 %v5638, %v6086
          %v6151 = vmul.f32 %v5639, %v6087
          %v6152 = vmul.f32 %v5640, %v6088
          %v6153 = vmul.f32 %v5641, %v6089
          %v6154 = vmul.f32 %v5642, %v6090
          %v6155 = vmul.f32 %v5643, %v6091
          %v6156 = vmul.f32 %v5644, %v6092
          %v6157 = vmul.f32 %v5645, %v6093
          %v6158 = vmul.f32 %v5646, %v6094
          %v6159 = vmul.f32 %v5647, %v6095
          %v6160 = vmul.f32 %v5648, %v6096
          %v6161 = vmul.f32 %v5649, %v6097
          %v6162 = vmul.f32 %v5650, %v6098
          %v6163 = vmul.f32 %v5651, %v6099
          %v6164 = vmul.f32 %v5652, %v6100
          %v6165 = vmul.f32 %v5653, %v6101
          %v6166 = vmul.f32 %v5654, %v6102
          %v6167 = vmul.f32 %v5655, %v6103
          %v6168 = vmul.f32 %v5656, %v6104
          %v6169 = vmul.f32 %v5657, %v6105
          %v6170 = vmul.f32 %v5658, %v6106
          %v6171 = vmul.f32 %v5659, %v6107
          %v6172 = vmul.f32 %v5660, %v6108
          %v6173 = vmul.f32 %v5661, %v6109
          %v6174 = vmul.f32 %v5662, %v6110
          %v6175 = vmul.f32 %v5663, %v6111
          %v6176 = vmul.f32 %v5664, %v6112
          %v6177 = vmul.f32 %v5665, %v6113
          %v6178 = vmul.f32 %v5666, %v6114
          %v6179 = vmul.f32 %v5667, %v6115
          %v6180 = vmul.f32 %v5668, %v6116
          %v6181 = vmul.f32 %v5669, %v6117
          %v6182 = vmul.f32 %v5670, %v6118
          %v6183 = vmul.f32 %v5671, %v6119
          %v6184 = vmul.f32 %v5672, %v6120
          %v6185 = vmul.f32 %v5673, %v6121
          %v6186 = vmul.f32 %v5674, %v6122
          %v6187 = vmul.f32 %v5675, %v6123
          %v6188 = vmul.f32 %v5676, %v6124
          %v6189 = vmul.f32 %v5677, %v6125
          %v6190 = vmul.f32 %v5678, %v6126
          %v6191 = vmul.f32 %v5679, %v6127
          %v6192 = vmul.f32 %v5680, %v6128
          %v6193 = vmul.f32 %v5681, %v6129
          %v6194 = vmul.f32 %v5682, %v6130
          %v6195 = vmul.f32 %v5683, %v6131
          %v6196 = vmul.f32 %v5684, %v6132
          %v6197 = vmul.f32 %v5685, %v6133
          %v6198 = vmul.f32 %v5686, %v6134
          %v6199 = vmul.f32 %v5687, %v6135
          %v6200 = vmul.f32 %v5688, %v6136
          %v6201 = vmul.f32 %v5689, %v6137
          %v6202 = vmul.f32 %v5690, %v6138
          %v6203 = vmul.f32 %v5691, %v6139
          %v6204 = vmul.f32 %v5692, %v6140
          %v6205 = vmul.f32 %v5693, %v6141
          %v6206 = vmul.f32 %v5694, %v6142
          %6207 = vst [vmem:[#allocation7] sm:$0xff] %v6143
          %6208 = vst [vmem:[#allocation7 + $0x8] sm:$0xff] %v6144
          %6209 = vst [vmem:[#allocation7 + $0x10] sm:$0xff] %v6145
          %6210 = vst [vmem:[#allocation7 + $0x18] sm:$0xff] %v6146
          %6211 = vst [vmem:[#allocation7 + $0x20] sm:$0xff] %v6147
          %6212 = vst [vmem:[#allocation7 + $0x28] sm:$0xff] %v6148
          %6213 = vst [vmem:[#allocation7 + $0x30] sm:$0xff] %v6149
          %6214 = vst [vmem:[#allocation7 + $0x38] sm:$0xff] %v6150
          %6215 = vst [vmem:[#allocation7 + $0x40] sm:$0xff] %v6151
          %6216 = vst [vmem:[#allocation7 + $0x48] sm:$0xff] %v6152
          %6217 = vst [vmem:[#allocation7 + $0x50] sm:$0xff] %v6153
          %6218 = vst [vmem:[#allocation7 + $0x58] sm:$0xff] %v6154
          %6219 = vst [vmem:[#allocation7 + $0x60] sm:$0xff] %v6155
          %6220 = vst [vmem:[#allocation7 + $0x68] sm:$0xff] %v6156
          %6221 = vst [vmem:[#allocation7 + $0x70] sm:$0xff] %v6157
          %6222 = vst [vmem:[#allocation7 + $0x78] sm:$0xff] %v6158
          %6223 = vst [vmem:[#allocation7 + $0x80] sm:$0xff] %v6159
          %6224 = vst [vmem:[#allocation7 + $0x88] sm:$0xff] %v6160
          %6225 = vst [vmem:[#allocation7 + $0x90] sm:$0xff] %v6161
          %6226 = vst [vmem:[#allocation7 + $0x98] sm:$0xff] %v6162
          %6227 = vst [vmem:[#allocation7 + $0xa0] sm:$0xff] %v6163
          %6228 = vst [vmem:[#allocation7 + $0xa8] sm:$0xff] %v6164
          %6229 = vst [vmem:[#allocation7 + $0xb0] sm:$0xff] %v6165
          %6230 = vst [vmem:[#allocation7 + $0xb8] sm:$0xff] %v6166
          %6231 = vst [vmem:[#allocation7 + $0xc0] sm:$0xff] %v6167
          %6232 = vst [vmem:[#allocation7 + $0xc8] sm:$0xff] %v6168
          %6233 = vst [vmem:[#allocation7 + $0xd0] sm:$0xff] %v6169
          %6234 = vst [vmem:[#allocation7 + $0xd8] sm:$0xff] %v6170
          %6235 = vst [vmem:[#allocation7 + $0xe0] sm:$0xff] %v6171
          %6236 = vst [vmem:[#allocation7 + $0xe8] sm:$0xff] %v6172
          %6237 = vst [vmem:[#allocation7 + $0xf0] sm:$0xff] %v6173
          %6238 = vst [vmem:[#allocation7 + $0xf8] sm:$0xff] %v6174
          %6239 = vst [vmem:[#allocation7 + $0x100] sm:$0xff] %v6175
          %6240 = vst [vmem:[#allocation7 + $0x108] sm:$0xff] %v6176
          %6241 = vst [vmem:[#allocation7 + $0x110] sm:$0xff] %v6177
          %6242 = vst [vmem:[#allocation7 + $0x118] sm:$0xff] %v6178
          %6243 = vst [vmem:[#allocation7 + $0x120] sm:$0xff] %v6179
          %6244 = vst [vmem:[#allocation7 + $0x128] sm:$0xff] %v6180
          %6245 = vst [vmem:[#allocation7 + $0x130] sm:$0xff] %v6181
          %6246 = vst [vmem:[#allocation7 + $0x138] sm:$0xff] %v6182
          %6247 = vst [vmem:[#allocation7 + $0x140] sm:$0xff] %v6183
          %6248 = vst [vmem:[#allocation7 + $0x148] sm:$0xff] %v6184
          %6249 = vst [vmem:[#allocation7 + $0x150] sm:$0xff] %v6185
          %6250 = vst [vmem:[#allocation7 + $0x158] sm:$0xff] %v6186
          %6251 = vst [vmem:[#allocation7 + $0x160] sm:$0xff] %v6187
          %6252 = vst [vmem:[#allocation7 + $0x168] sm:$0xff] %v6188
          %6253 = vst [vmem:[#allocation7 + $0x170] sm:$0xff] %v6189
          %6254 = vst [vmem:[#allocation7 + $0x178] sm:$0xff] %v6190
          %6255 = vst [vmem:[#allocation7 + $0x180] sm:$0xff] %v6191
          %6256 = vst [vmem:[#allocation7 + $0x188] sm:$0xff] %v6192
          %6257 = vst [vmem:[#allocation7 + $0x190] sm:$0xff] %v6193
          %6258 = vst [vmem:[#allocation7 + $0x198] sm:$0xff] %v6194
          %6259 = vst [vmem:[#allocation7 + $0x1a0] sm:$0xff] %v6195
          %6260 = vst [vmem:[#allocation7 + $0x1a8] sm:$0xff] %v6196
          %6261 = vst [vmem:[#allocation7 + $0x1b0] sm:$0xff] %v6197
          %6262 = vst [vmem:[#allocation7 + $0x1b8] sm:$0xff] %v6198
          %6263 = vst [vmem:[#allocation7 + $0x1c0] sm:$0xff] %v6199
          %6264 = vst [vmem:[#allocation7 + $0x1c8] sm:$0xff] %v6200
          %6265 = vst [vmem:[#allocation7 + $0x1d0] sm:$0xff] %v6201
          %6266 = vst [vmem:[#allocation7 + $0x1d8] sm:$0xff] %v6202
          %6267 = vst [vmem:[#allocation7 + $0x1e0] sm:$0xff] %v6203
          %6268 = vst [vmem:[#allocation7 + $0x1e8] sm:$0xff] %v6204
          %6269 = vst [vmem:[#allocation7 + $0x1f0] sm:$0xff] %v6205
          %6270 = vst [vmem:[#allocation7 + $0x1f8] sm:$0xff] %v6206
        $region72: #{tpu_custom_call.1} parent=39 // pred_fallthru
          _
        %p6271 = scmp.eq.s32.totalorder %s21, 5
        // Predicated region
        $region73: #{tpu_custom_call.1} parent=39 // pred_check
          %p6272 = pneg %p6271
        $region74: #{tpu_custom_call.1} parent=39 // pred_check_branch
          %6274 = sbr.rel (%p6272) target = $region76
        $region75: #{tpu_custom_call.1} parent=39 // pred_region
          %v6275 = vld [vmem:[#allocation7] sm:$0xff]
          %v6276 = vld [vmem:[#allocation7 + $0x8] sm:$0xff]
          %v6277 = vld [vmem:[#allocation7 + $0x10] sm:$0xff]
          %v6278 = vld [vmem:[#allocation7 + $0x18] sm:$0xff]
          %v6279 = vld [vmem:[#allocation7 + $0x20] sm:$0xff]
          %v6280 = vld [vmem:[#allocation7 + $0x28] sm:$0xff]
          %v6281 = vld [vmem:[#allocation7 + $0x30] sm:$0xff]
          %v6282 = vld [vmem:[#allocation7 + $0x38] sm:$0xff]
          %v6283 = vld [vmem:[#allocation7 + $0x40] sm:$0xff]
          %v6284 = vld [vmem:[#allocation7 + $0x48] sm:$0xff]
          %v6285 = vld [vmem:[#allocation7 + $0x50] sm:$0xff]
          %v6286 = vld [vmem:[#allocation7 + $0x58] sm:$0xff]
          %v6287 = vld [vmem:[#allocation7 + $0x60] sm:$0xff]
          %v6288 = vld [vmem:[#allocation7 + $0x68] sm:$0xff]
          %v6289 = vld [vmem:[#allocation7 + $0x70] sm:$0xff]
          %v6290 = vld [vmem:[#allocation7 + $0x78] sm:$0xff]
          %v6291 = vld [vmem:[#allocation7 + $0x80] sm:$0xff]
          %v6292 = vld [vmem:[#allocation7 + $0x88] sm:$0xff]
          %v6293 = vld [vmem:[#allocation7 + $0x90] sm:$0xff]
          %v6294 = vld [vmem:[#allocation7 + $0x98] sm:$0xff]
          %v6295 = vld [vmem:[#allocation7 + $0xa0] sm:$0xff]
          %v6296 = vld [vmem:[#allocation7 + $0xa8] sm:$0xff]
          %v6297 = vld [vmem:[#allocation7 + $0xb0] sm:$0xff]
          %v6298 = vld [vmem:[#allocation7 + $0xb8] sm:$0xff]
          %v6299 = vld [vmem:[#allocation7 + $0xc0] sm:$0xff]
          %v6300 = vld [vmem:[#allocation7 + $0xc8] sm:$0xff]
          %v6301 = vld [vmem:[#allocation7 + $0xd0] sm:$0xff]
          %v6302 = vld [vmem:[#allocation7 + $0xd8] sm:$0xff]
          %v6303 = vld [vmem:[#allocation7 + $0xe0] sm:$0xff]
          %v6304 = vld [vmem:[#allocation7 + $0xe8] sm:$0xff]
          %v6305 = vld [vmem:[#allocation7 + $0xf0] sm:$0xff]
          %v6306 = vld [vmem:[#allocation7 + $0xf8] sm:$0xff]
          %v6307 = vld [vmem:[#allocation7 + $0x100] sm:$0xff]
          %v6308 = vld [vmem:[#allocation7 + $0x108] sm:$0xff]
          %v6309 = vld [vmem:[#allocation7 + $0x110] sm:$0xff]
          %v6310 = vld [vmem:[#allocation7 + $0x118] sm:$0xff]
          %v6311 = vld [vmem:[#allocation7 + $0x120] sm:$0xff]
          %v6312 = vld [vmem:[#allocation7 + $0x128] sm:$0xff]
          %v6313 = vld [vmem:[#allocation7 + $0x130] sm:$0xff]
          %v6314 = vld [vmem:[#allocation7 + $0x138] sm:$0xff]
          %v6315 = vld [vmem:[#allocation7 + $0x140] sm:$0xff]
          %v6316 = vld [vmem:[#allocation7 + $0x148] sm:$0xff]
          %v6317 = vld [vmem:[#allocation7 + $0x150] sm:$0xff]
          %v6318 = vld [vmem:[#allocation7 + $0x158] sm:$0xff]
          %v6319 = vld [vmem:[#allocation7 + $0x160] sm:$0xff]
          %v6320 = vld [vmem:[#allocation7 + $0x168] sm:$0xff]
          %v6321 = vld [vmem:[#allocation7 + $0x170] sm:$0xff]
          %v6322 = vld [vmem:[#allocation7 + $0x178] sm:$0xff]
          %v6323 = vld [vmem:[#allocation7 + $0x180] sm:$0xff]
          %v6324 = vld [vmem:[#allocation7 + $0x188] sm:$0xff]
          %v6325 = vld [vmem:[#allocation7 + $0x190] sm:$0xff]
          %v6326 = vld [vmem:[#allocation7 + $0x198] sm:$0xff]
          %v6327 = vld [vmem:[#allocation7 + $0x1a0] sm:$0xff]
          %v6328 = vld [vmem:[#allocation7 + $0x1a8] sm:$0xff]
          %v6329 = vld [vmem:[#allocation7 + $0x1b0] sm:$0xff]
          %v6330 = vld [vmem:[#allocation7 + $0x1b8] sm:$0xff]
          %v6331 = vld [vmem:[#allocation7 + $0x1c0] sm:$0xff]
          %v6332 = vld [vmem:[#allocation7 + $0x1c8] sm:$0xff]
          %v6333 = vld [vmem:[#allocation7 + $0x1d0] sm:$0xff]
          %v6334 = vld [vmem:[#allocation7 + $0x1d8] sm:$0xff]
          %v6335 = vld [vmem:[#allocation7 + $0x1e0] sm:$0xff]
          %v6336 = vld [vmem:[#allocation7 + $0x1e8] sm:$0xff]
          %v6337 = vld [vmem:[#allocation7 + $0x1f0] sm:$0xff]
          %v6338 = vld [vmem:[#allocation7 + $0x1f8] sm:$0xff]
          %v6339 = vpack.c.bf16 %v6277, %v6275
          %v6340 = vpack.c.bf16 %v6278, %v6276
          %v6341 = vpack.c.bf16 %v6281, %v6279
          %v6342 = vpack.c.bf16 %v6282, %v6280
          %v6343 = vpack.c.bf16 %v6285, %v6283
          %v6344 = vpack.c.bf16 %v6286, %v6284
          %v6345 = vpack.c.bf16 %v6289, %v6287
          %v6346 = vpack.c.bf16 %v6290, %v6288
          %v6347 = vpack.c.bf16 %v6293, %v6291
          %v6348 = vpack.c.bf16 %v6294, %v6292
          %v6349 = vpack.c.bf16 %v6297, %v6295
          %v6350 = vpack.c.bf16 %v6298, %v6296
          %v6351 = vpack.c.bf16 %v6301, %v6299
          %v6352 = vpack.c.bf16 %v6302, %v6300
          %v6353 = vpack.c.bf16 %v6305, %v6303
          %v6354 = vpack.c.bf16 %v6306, %v6304
          %v6355 = vpack.c.bf16 %v6309, %v6307
          %v6356 = vpack.c.bf16 %v6310, %v6308
          %v6357 = vpack.c.bf16 %v6313, %v6311
          %v6358 = vpack.c.bf16 %v6314, %v6312
          %v6359 = vpack.c.bf16 %v6317, %v6315
          %v6360 = vpack.c.bf16 %v6318, %v6316
          %v6361 = vpack.c.bf16 %v6321, %v6319
          %v6362 = vpack.c.bf16 %v6322, %v6320
          %v6363 = vpack.c.bf16 %v6325, %v6323
          %v6364 = vpack.c.bf16 %v6326, %v6324
          %v6365 = vpack.c.bf16 %v6329, %v6327
          %v6366 = vpack.c.bf16 %v6330, %v6328
          %v6367 = vpack.c.bf16 %v6333, %v6331
          %v6368 = vpack.c.bf16 %v6334, %v6332
          %v6369 = vpack.c.bf16 %v6337, %v6335
          %v6370 = vpack.c.bf16 %v6338, %v6336
          %v6371 = vld [vmem:[%s234] sm:$0xff]
          %v6372 = vld [vmem:[%s234 + $0x8] sm:$0xff]
          %v6373 = vld [vmem:[%s234 + $0x10] sm:$0xff]
          %v6374 = vld [vmem:[%s234 + $0x18] sm:$0xff]
          %v6375 = vld [vmem:[%s234 + $0x20] sm:$0xff]
          %v6376 = vld [vmem:[%s234 + $0x28] sm:$0xff]
          %v6377 = vld [vmem:[%s234 + $0x30] sm:$0xff]
          %v6378 = vld [vmem:[%s234 + $0x38] sm:$0xff]
          %v6379 = vld [vmem:[%s234 + $0x40] sm:$0xff]
          %v6380 = vld [vmem:[%s234 + $0x48] sm:$0xff]
          %v6381 = vld [vmem:[%s234 + $0x50] sm:$0xff]
          %v6382 = vld [vmem:[%s234 + $0x58] sm:$0xff]
          %v6383 = vld [vmem:[%s234 + $0x60] sm:$0xff]
          %v6384 = vld [vmem:[%s234 + $0x68] sm:$0xff]
          %v6385 = vld [vmem:[%s234 + $0x70] sm:$0xff]
          %v6386 = vld [vmem:[%s234 + $0x78] sm:$0xff]
          %v6387 = vld [vmem:[%s234 + $0x80] sm:$0xff]
          %v6388 = vld [vmem:[%s234 + $0x88] sm:$0xff]
          %v6389 = vld [vmem:[%s234 + $0x90] sm:$0xff]
          %v6390 = vld [vmem:[%s234 + $0x98] sm:$0xff]
          %v6391 = vld [vmem:[%s234 + $0xa0] sm:$0xff]
          %v6392 = vld [vmem:[%s234 + $0xa8] sm:$0xff]
          %v6393 = vld [vmem:[%s234 + $0xb0] sm:$0xff]
          %v6394 = vld [vmem:[%s234 + $0xb8] sm:$0xff]
          %v6395 = vld [vmem:[%s234 + $0xc0] sm:$0xff]
          %v6396 = vld [vmem:[%s234 + $0xc8] sm:$0xff]
          %v6397 = vld [vmem:[%s234 + $0xd0] sm:$0xff]
          %v6398 = vld [vmem:[%s234 + $0xd8] sm:$0xff]
          %v6399 = vld [vmem:[%s234 + $0xe0] sm:$0xff]
          %v6400 = vld [vmem:[%s234 + $0xe8] sm:$0xff]
          %v6401 = vld [vmem:[%s234 + $0xf0] sm:$0xff]
          %v6402 = vld [vmem:[%s234 + $0xf8] sm:$0xff]
          %v6435 = vunpack.c.l.b16 %v6371
          %v6436 = vunpack.c.h.b16 %v6371
          %v6437 = vunpack.c.l.b16 %v6372
          %v6438 = vunpack.c.h.b16 %v6372
          %v6439 = vunpack.c.l.b16 %v6373
          %v6440 = vunpack.c.h.b16 %v6373
          %v6441 = vunpack.c.l.b16 %v6374
          %v6442 = vunpack.c.h.b16 %v6374
          %v6443 = vunpack.c.l.b16 %v6375
          %v6444 = vunpack.c.h.b16 %v6375
          %v6445 = vunpack.c.l.b16 %v6376
          %v6446 = vunpack.c.h.b16 %v6376
          %v6447 = vunpack.c.l.b16 %v6377
          %v6448 = vunpack.c.h.b16 %v6377
          %v6449 = vunpack.c.l.b16 %v6378
          %v6450 = vunpack.c.h.b16 %v6378
          %v6451 = vunpack.c.l.b16 %v6379
          %v6452 = vunpack.c.h.b16 %v6379
          %v6453 = vunpack.c.l.b16 %v6380
          %v6454 = vunpack.c.h.b16 %v6380
          %v6455 = vunpack.c.l.b16 %v6381
          %v6456 = vunpack.c.h.b16 %v6381
          %v6457 = vunpack.c.l.b16 %v6382
          %v6458 = vunpack.c.h.b16 %v6382
          %v6459 = vunpack.c.l.b16 %v6383
          %v6460 = vunpack.c.h.b16 %v6383
          %v6461 = vunpack.c.l.b16 %v6384
          %v6462 = vunpack.c.h.b16 %v6384
          %v6463 = vunpack.c.l.b16 %v6385
          %v6464 = vunpack.c.h.b16 %v6385
          %v6465 = vunpack.c.l.b16 %v6386
          %v6466 = vunpack.c.h.b16 %v6386
          %v6467 = vunpack.c.l.b16 %v6387
          %v6468 = vunpack.c.h.b16 %v6387
          %v6469 = vunpack.c.l.b16 %v6388
          %v6470 = vunpack.c.h.b16 %v6388
          %v6471 = vunpack.c.l.b16 %v6389
          %v6472 = vunpack.c.h.b16 %v6389
          %v6473 = vunpack.c.l.b16 %v6390
          %v6474 = vunpack.c.h.b16 %v6390
          %v6475 = vunpack.c.l.b16 %v6391
          %v6476 = vunpack.c.h.b16 %v6391
          %v6477 = vunpack.c.l.b16 %v6392
          %v6478 = vunpack.c.h.b16 %v6392
          %v6479 = vunpack.c.l.b16 %v6393
          %v6480 = vunpack.c.h.b16 %v6393
          %v6481 = vunpack.c.l.b16 %v6394
          %v6482 = vunpack.c.h.b16 %v6394
          %v6483 = vunpack.c.l.b16 %v6395
          %v6484 = vunpack.c.h.b16 %v6395
          %v6485 = vunpack.c.l.b16 %v6396
          %v6486 = vunpack.c.h.b16 %v6396
          %v6487 = vunpack.c.l.b16 %v6397
          %v6488 = vunpack.c.h.b16 %v6397
          %v6489 = vunpack.c.l.b16 %v6398
          %v6490 = vunpack.c.h.b16 %v6398
          %v6491 = vunpack.c.l.b16 %v6399
          %v6492 = vunpack.c.h.b16 %v6399
          %v6493 = vunpack.c.l.b16 %v6400
          %v6494 = vunpack.c.h.b16 %v6400
          %v6495 = vunpack.c.l.b16 %v6401
          %v6496 = vunpack.c.h.b16 %v6401
          %v6497 = vunpack.c.l.b16 %v6402
          %v6498 = vunpack.c.h.b16 %v6402
          %v6499 = vpack.c.b16 %v6437, %v6435
          %v6500 = vpack.c.b16 %v6438, %v6436
          %v6501 = vpack.c.b16 %v6441, %v6439
          %v6502 = vpack.c.b16 %v6442, %v6440
          %v6503 = vpack.c.b16 %v6445, %v6443
          %v6504 = vpack.c.b16 %v6446, %v6444
          %v6505 = vpack.c.b16 %v6449, %v6447
          %v6506 = vpack.c.b16 %v6450, %v6448
          %v6507 = vpack.c.b16 %v6453, %v6451
          %v6508 = vpack.c.b16 %v6454, %v6452
          %v6509 = vpack.c.b16 %v6457, %v6455
          %v6510 = vpack.c.b16 %v6458, %v6456
          %v6511 = vpack.c.b16 %v6461, %v6459
          %v6512 = vpack.c.b16 %v6462, %v6460
          %v6513 = vpack.c.b16 %v6465, %v6463
          %v6514 = vpack.c.b16 %v6466, %v6464
          %v6515 = vpack.c.b16 %v6469, %v6467
          %v6516 = vpack.c.b16 %v6470, %v6468
          %v6517 = vpack.c.b16 %v6473, %v6471
          %v6518 = vpack.c.b16 %v6474, %v6472
          %v6519 = vpack.c.b16 %v6477, %v6475
          %v6520 = vpack.c.b16 %v6478, %v6476
          %v6521 = vpack.c.b16 %v6481, %v6479
          %v6522 = vpack.c.b16 %v6482, %v6480
          %v6523 = vpack.c.b16 %v6485, %v6483
          %v6524 = vpack.c.b16 %v6486, %v6484
          %v6525 = vpack.c.b16 %v6489, %v6487
          %v6526 = vpack.c.b16 %v6490, %v6488
          %v6527 = vpack.c.b16 %v6493, %v6491
          %v6528 = vpack.c.b16 %v6494, %v6492
          %v6529 = vpack.c.b16 %v6497, %v6495
          %v6530 = vpack.c.b16 %v6498, %v6496
          %6563 = vmatprep.subr.bf16.mxu0 %v6500
          %6564 = vmatpush1.bf16.msra.mxu0 %v6499
          %6565 = vmatprep.subr.bf16.mxu0 %v6502
          %6566 = vmatpush1.bf16.msra.mxu0 %v6501
          %6567 = vmatprep.subr.bf16.mxu0 %v6504
          %6568 = vmatpush1.bf16.msra.mxu0 %v6503
          %6569 = vmatprep.subr.bf16.mxu0 %v6506
          %6570 = vmatpush1.bf16.msra.mxu0 %v6505
          %6571 = vmatprep.subr.bf16.mxu0 %v6508
          %6572 = vmatpush1.bf16.msra.mxu0 %v6507
          %6573 = vmatprep.subr.bf16.mxu0 %v6510
          %6574 = vmatpush1.bf16.msra.mxu0 %v6509
          %6575 = vmatprep.subr.bf16.mxu0 %v6512
          %6576 = vmatpush1.bf16.msra.mxu0 %v6511
          %6577 = vmatprep.subr.bf16.mxu0 %v6514
          %6578 = vmatpush1.bf16.msra.mxu0 %v6513
          %6579 = vmatprep.subr.bf16.mxu0 %v6516
          %6580 = vmatpush1.bf16.msra.mxu0 %v6515
          %6581 = vmatprep.subr.bf16.mxu0 %v6518
          %6582 = vmatpush1.bf16.msra.mxu0 %v6517
          %6583 = vmatprep.subr.bf16.mxu0 %v6520
          %6584 = vmatpush1.bf16.msra.mxu0 %v6519
          %6585 = vmatprep.subr.bf16.mxu0 %v6522
          %6586 = vmatpush1.bf16.msra.mxu0 %v6521
          %6587 = vmatprep.subr.bf16.mxu0 %v6524
          %6588 = vmatpush1.bf16.msra.mxu0 %v6523
          %6589 = vmatprep.subr.bf16.mxu0 %v6526
          %6590 = vmatpush1.bf16.msra.mxu0 %v6525
          %6591 = vmatprep.subr.bf16.mxu0 %v6528
          %6592 = vmatpush1.bf16.msra.mxu0 %v6527
          %6593 = vmatprep.subr.bf16.mxu0 %v6530
          %6594 = vmatpush1.bf16.msra.mxu0 %v6529
          %6595 = vmatprep.mubr.bf16.mxu0 %v6340
          %6596 = vmatmul.mubr.bf16.gmra.mrb[0].mxu0 %v6339
          %v6597 = vpop.f32.mrb[0].mxu0
          %v6598 = vadd.f32 0.0, %v6597
          %v6599 = vpop.f32.mrb[0].mxu0
          %v6600 = vadd.f32 0.0, %v6599
          %v6601 = vpop.f32.mrb[0].mxu0
          %v6602 = vadd.f32 0.0, %v6601
          %v6603 = vpop.f32.mrb[0].mxu0
          %v6604 = vadd.f32 0.0, %v6603
          %6605 = vmatprep.mubr.bf16.mxu0 %v6342
          %6606 = vmatmul.mubr.bf16.gmra.mrb[0].mxu0 %v6341
          %v6607 = vpop.f32.mrb[0].mxu0
          %v6608 = vadd.f32 0.0, %v6607
          %v6609 = vpop.f32.mrb[0].mxu0
          %v6610 = vadd.f32 0.0, %v6609
          %v6611 = vpop.f32.mrb[0].mxu0
          %v6612 = vadd.f32 0.0, %v6611
          %v6613 = vpop.f32.mrb[0].mxu0
          %v6614 = vadd.f32 0.0, %v6613
          %6615 = vmatprep.mubr.bf16.mxu0 %v6344
          %6616 = vmatmul.mubr.bf16.gmra.mrb[0].mxu0 %v6343
          %v6617 = vpop.f32.mrb[0].mxu0
          %v6618 = vadd.f32 0.0, %v6617
          %v6619 = vpop.f32.mrb[0].mxu0
          %v6620 = vadd.f32 0.0, %v6619
          %v6621 = vpop.f32.mrb[0].mxu0
          %v6622 = vadd.f32 0.0, %v6621
          %v6623 = vpop.f32.mrb[0].mxu0
          %v6624 = vadd.f32 0.0, %v6623
          %6625 = vmatprep.mubr.bf16.mxu0 %v6346
          %6626 = vmatmul.mubr.bf16.gmra.mrb[0].mxu0 %v6345
          %v6627 = vpop.f32.mrb[0].mxu0
          %v6628 = vadd.f32 0.0, %v6627
          %v6629 = vpop.f32.mrb[0].mxu0
          %v6630 = vadd.f32 0.0, %v6629
          %v6631 = vpop.f32.mrb[0].mxu0
          %v6632 = vadd.f32 0.0, %v6631
          %v6633 = vpop.f32.mrb[0].mxu0
          %v6634 = vadd.f32 0.0, %v6633
          %6635 = vmatprep.mubr.bf16.mxu0 %v6348
          %6636 = vmatmul.mubr.bf16.gmra.mrb[0].mxu0 %v6347
          %v6637 = vpop.f32.mrb[0].mxu0
          %v6638 = vadd.f32 0.0, %v6637
          %v6639 = vpop.f32.mrb[0].mxu0
          %v6640 = vadd.f32 0.0, %v6639
          %v6641 = vpop.f32.mrb[0].mxu0
          %v6642 = vadd.f32 0.0, %v6641
          %v6643 = vpop.f32.mrb[0].mxu0
          %v6644 = vadd.f32 0.0, %v6643
          %6645 = vmatprep.mubr.bf16.mxu0 %v6350
          %6646 = vmatmul.mubr.bf16.gmra.mrb[0].mxu0 %v6349
          %v6647 = vpop.f32.mrb[0].mxu0
          %v6648 = vadd.f32 0.0, %v6647
          %v6649 = vpop.f32.mrb[0].mxu0
          %v6650 = vadd.f32 0.0, %v6649
          %v6651 = vpop.f32.mrb[0].mxu0
          %v6652 = vadd.f32 0.0, %v6651
          %v6653 = vpop.f32.mrb[0].mxu0
          %v6654 = vadd.f32 0.0, %v6653
          %6655 = vmatprep.mubr.bf16.mxu0 %v6352
          %6656 = vmatmul.mubr.bf16.gmra.mrb[0].mxu0 %v6351
          %v6657 = vpop.f32.mrb[0].mxu0
          %v6658 = vadd.f32 0.0, %v6657
          %v6659 = vpop.f32.mrb[0].mxu0
          %v6660 = vadd.f32 0.0, %v6659
          %v6661 = vpop.f32.mrb[0].mxu0
          %v6662 = vadd.f32 0.0, %v6661
          %v6663 = vpop.f32.mrb[0].mxu0
          %v6664 = vadd.f32 0.0, %v6663
          %6665 = vmatprep.mubr.bf16.mxu0 %v6354
          %6666 = vmatmul.mubr.bf16.gmra.mrb[0].mxu0 %v6353
          %v6667 = vpop.f32.mrb[0].mxu0
          %v6668 = vadd.f32 0.0, %v6667
          %v6669 = vpop.f32.mrb[0].mxu0
          %v6670 = vadd.f32 0.0, %v6669
          %v6671 = vpop.f32.mrb[0].mxu0
          %v6672 = vadd.f32 0.0, %v6671
          %v6673 = vpop.f32.mrb[0].mxu0
          %v6674 = vadd.f32 0.0, %v6673
          %6675 = vmatprep.mubr.bf16.mxu0 %v6356
          %6676 = vmatmul.mubr.bf16.gmra.mrb[0].mxu0 %v6355
          %v6677 = vpop.f32.mrb[0].mxu0
          %v6678 = vadd.f32 0.0, %v6677
          %v6679 = vpop.f32.mrb[0].mxu0
          %v6680 = vadd.f32 0.0, %v6679
          %v6681 = vpop.f32.mrb[0].mxu0
          %v6682 = vadd.f32 0.0, %v6681
          %v6683 = vpop.f32.mrb[0].mxu0
          %v6684 = vadd.f32 0.0, %v6683
          %6685 = vmatprep.mubr.bf16.mxu0 %v6358
          %6686 = vmatmul.mubr.bf16.gmra.mrb[0].mxu0 %v6357
          %v6687 = vpop.f32.mrb[0].mxu0
          %v6688 = vadd.f32 0.0, %v6687
          %v6689 = vpop.f32.mrb[0].mxu0
          %v6690 = vadd.f32 0.0, %v6689
          %v6691 = vpop.f32.mrb[0].mxu0
          %v6692 = vadd.f32 0.0, %v6691
          %v6693 = vpop.f32.mrb[0].mxu0
          %v6694 = vadd.f32 0.0, %v6693
          %6695 = vmatprep.mubr.bf16.mxu0 %v6360
          %6696 = vmatmul.mubr.bf16.gmra.mrb[0].mxu0 %v6359
          %v6697 = vpop.f32.mrb[0].mxu0
          %v6698 = vadd.f32 0.0, %v6697
          %v6699 = vpop.f32.mrb[0].mxu0
          %v6700 = vadd.f32 0.0, %v6699
          %v6701 = vpop.f32.mrb[0].mxu0
          %v6702 = vadd.f32 0.0, %v6701
          %v6703 = vpop.f32.mrb[0].mxu0
          %v6704 = vadd.f32 0.0, %v6703
          %6705 = vmatprep.mubr.bf16.mxu0 %v6362
          %6706 = vmatmul.mubr.bf16.gmra.mrb[0].mxu0 %v6361
          %v6707 = vpop.f32.mrb[0].mxu0
          %v6708 = vadd.f32 0.0, %v6707
          %v6709 = vpop.f32.mrb[0].mxu0
          %v6710 = vadd.f32 0.0, %v6709
          %v6711 = vpop.f32.mrb[0].mxu0
          %v6712 = vadd.f32 0.0, %v6711
          %v6713 = vpop.f32.mrb[0].mxu0
          %v6714 = vadd.f32 0.0, %v6713
          %6715 = vmatprep.mubr.bf16.mxu0 %v6364
          %6716 = vmatmul.mubr.bf16.gmra.mrb[0].mxu0 %v6363
          %v6717 = vpop.f32.mrb[0].mxu0
          %v6718 = vadd.f32 0.0, %v6717
          %v6719 = vpop.f32.mrb[0].mxu0
          %v6720 = vadd.f32 0.0, %v6719
          %v6721 = vpop.f32.mrb[0].mxu0
          %v6722 = vadd.f32 0.0, %v6721
          %v6723 = vpop.f32.mrb[0].mxu0
          %v6724 = vadd.f32 0.0, %v6723
          %6725 = vmatprep.mubr.bf16.mxu0 %v6366
          %6726 = vmatmul.mubr.bf16.gmra.mrb[0].mxu0 %v6365
          %v6727 = vpop.f32.mrb[0].mxu0
          %v6728 = vadd.f32 0.0, %v6727
          %v6729 = vpop.f32.mrb[0].mxu0
          %v6730 = vadd.f32 0.0, %v6729
          %v6731 = vpop.f32.mrb[0].mxu0
          %v6732 = vadd.f32 0.0, %v6731
          %v6733 = vpop.f32.mrb[0].mxu0
          %v6734 = vadd.f32 0.0, %v6733
          %6735 = vmatprep.mubr.bf16.mxu0 %v6368
          %6736 = vmatmul.mubr.bf16.gmra.mrb[0].mxu0 %v6367
          %v6737 = vpop.f32.mrb[0].mxu0
          %v6738 = vadd.f32 0.0, %v6737
          %v6739 = vpop.f32.mrb[0].mxu0
          %v6740 = vadd.f32 0.0, %v6739
          %v6741 = vpop.f32.mrb[0].mxu0
          %v6742 = vadd.f32 0.0, %v6741
          %v6743 = vpop.f32.mrb[0].mxu0
          %v6744 = vadd.f32 0.0, %v6743
          %6745 = vmatprep.mubr.bf16.mxu0 %v6370
          %6746 = vmatmul.mubr.bf16.gmra.mrb[0].mxu0 %v6369
          %v6747 = vpop.f32.mrb[0].mxu0
          %v6748 = vadd.f32 0.0, %v6747
          %v6749 = vpop.f32.mrb[0].mxu0
          %v6750 = vadd.f32 0.0, %v6749
          %v6751 = vpop.f32.mrb[0].mxu0
          %v6752 = vadd.f32 0.0, %v6751
          %v6753 = vpop.f32.mrb[0].mxu0
          %v6754 = vadd.f32 0.0, %v6753
          %6755 = vdwg.mxu0
          %v6756 = vld [vmem:[#allocation6] sm:$0xff]
          %v6757 = vld [vmem:[#allocation6 + $0x8] sm:$0xff]
          %v6758 = vld [vmem:[#allocation6 + $0x10] sm:$0xff]
          %v6759 = vld [vmem:[#allocation6 + $0x18] sm:$0xff]
          %v6760 = vld [vmem:[#allocation6 + $0x20] sm:$0xff]
          %v6761 = vld [vmem:[#allocation6 + $0x28] sm:$0xff]
          %v6762 = vld [vmem:[#allocation6 + $0x30] sm:$0xff]
          %v6763 = vld [vmem:[#allocation6 + $0x38] sm:$0xff]
          %v6764 = vld [vmem:[#allocation6 + $0x40] sm:$0xff]
          %v6765 = vld [vmem:[#allocation6 + $0x48] sm:$0xff]
          %v6766 = vld [vmem:[#allocation6 + $0x50] sm:$0xff]
          %v6767 = vld [vmem:[#allocation6 + $0x58] sm:$0xff]
          %v6768 = vld [vmem:[#allocation6 + $0x60] sm:$0xff]
          %v6769 = vld [vmem:[#allocation6 + $0x68] sm:$0xff]
          %v6770 = vld [vmem:[#allocation6 + $0x70] sm:$0xff]
          %v6771 = vld [vmem:[#allocation6 + $0x78] sm:$0xff]
          %v6772 = vld [vmem:[#allocation6 + $0x80] sm:$0xff]
          %v6773 = vld [vmem:[#allocation6 + $0x88] sm:$0xff]
          %v6774 = vld [vmem:[#allocation6 + $0x90] sm:$0xff]
          %v6775 = vld [vmem:[#allocation6 + $0x98] sm:$0xff]
          %v6776 = vld [vmem:[#allocation6 + $0xa0] sm:$0xff]
          %v6777 = vld [vmem:[#allocation6 + $0xa8] sm:$0xff]
          %v6778 = vld [vmem:[#allocation6 + $0xb0] sm:$0xff]
          %v6779 = vld [vmem:[#allocation6 + $0xb8] sm:$0xff]
          %v6780 = vld [vmem:[#allocation6 + $0xc0] sm:$0xff]
          %v6781 = vld [vmem:[#allocation6 + $0xc8] sm:$0xff]
          %v6782 = vld [vmem:[#allocation6 + $0xd0] sm:$0xff]
          %v6783 = vld [vmem:[#allocation6 + $0xd8] sm:$0xff]
          %v6784 = vld [vmem:[#allocation6 + $0xe0] sm:$0xff]
          %v6785 = vld [vmem:[#allocation6 + $0xe8] sm:$0xff]
          %v6786 = vld [vmem:[#allocation6 + $0xf0] sm:$0xff]
          %v6787 = vld [vmem:[#allocation6 + $0xf8] sm:$0xff]
          %v6788 = vld [vmem:[#allocation6 + $0x100] sm:$0xff]
          %v6789 = vld [vmem:[#allocation6 + $0x108] sm:$0xff]
          %v6790 = vld [vmem:[#allocation6 + $0x110] sm:$0xff]
          %v6791 = vld [vmem:[#allocation6 + $0x118] sm:$0xff]
          %v6792 = vld [vmem:[#allocation6 + $0x120] sm:$0xff]
          %v6793 = vld [vmem:[#allocation6 + $0x128] sm:$0xff]
          %v6794 = vld [vmem:[#allocation6 + $0x130] sm:$0xff]
          %v6795 = vld [vmem:[#allocation6 + $0x138] sm:$0xff]
          %v6796 = vld [vmem:[#allocation6 + $0x140] sm:$0xff]
          %v6797 = vld [vmem:[#allocation6 + $0x148] sm:$0xff]
          %v6798 = vld [vmem:[#allocation6 + $0x150] sm:$0xff]
          %v6799 = vld [vmem:[#allocation6 + $0x158] sm:$0xff]
          %v6800 = vld [vmem:[#allocation6 + $0x160] sm:$0xff]
          %v6801 = vld [vmem:[#allocation6 + $0x168] sm:$0xff]
          %v6802 = vld [vmem:[#allocation6 + $0x170] sm:$0xff]
          %v6803 = vld [vmem:[#allocation6 + $0x178] sm:$0xff]
          %v6804 = vld [vmem:[#allocation6 + $0x180] sm:$0xff]
          %v6805 = vld [vmem:[#allocation6 + $0x188] sm:$0xff]
          %v6806 = vld [vmem:[#allocation6 + $0x190] sm:$0xff]
          %v6807 = vld [vmem:[#allocation6 + $0x198] sm:$0xff]
          %v6808 = vld [vmem:[#allocation6 + $0x1a0] sm:$0xff]
          %v6809 = vld [vmem:[#allocation6 + $0x1a8] sm:$0xff]
          %v6810 = vld [vmem:[#allocation6 + $0x1b0] sm:$0xff]
          %v6811 = vld [vmem:[#allocation6 + $0x1b8] sm:$0xff]
          %v6812 = vld [vmem:[#allocation6 + $0x1c0] sm:$0xff]
          %v6813 = vld [vmem:[#allocation6 + $0x1c8] sm:$0xff]
          %v6814 = vld [vmem:[#allocation6 + $0x1d0] sm:$0xff]
          %v6815 = vld [vmem:[#allocation6 + $0x1d8] sm:$0xff]
          %v6816 = vld [vmem:[#allocation6 + $0x1e0] sm:$0xff]
          %v6817 = vld [vmem:[#allocation6 + $0x1e8] sm:$0xff]
          %v6818 = vld [vmem:[#allocation6 + $0x1f0] sm:$0xff]
          %v6819 = vld [vmem:[#allocation6 + $0x1f8] sm:$0xff]
          %v6820 = vadd.f32 %v6756, %v6598
          %v6821 = vadd.f32 %v6757, %v6600
          %v6822 = vadd.f32 %v6758, %v6602
          %v6823 = vadd.f32 %v6759, %v6604
          %v6824 = vadd.f32 %v6760, %v6608
          %v6825 = vadd.f32 %v6761, %v6610
          %v6826 = vadd.f32 %v6762, %v6612
          %v6827 = vadd.f32 %v6763, %v6614
          %v6828 = vadd.f32 %v6764, %v6618
          %v6829 = vadd.f32 %v6765, %v6620
          %v6830 = vadd.f32 %v6766, %v6622
          %v6831 = vadd.f32 %v6767, %v6624
          %v6832 = vadd.f32 %v6768, %v6628
          %v6833 = vadd.f32 %v6769, %v6630
          %v6834 = vadd.f32 %v6770, %v6632
          %v6835 = vadd.f32 %v6771, %v6634
          %v6836 = vadd.f32 %v6772, %v6638
          %v6837 = vadd.f32 %v6773, %v6640
          %v6838 = vadd.f32 %v6774, %v6642
          %v6839 = vadd.f32 %v6775, %v6644
          %v6840 = vadd.f32 %v6776, %v6648
          %v6841 = vadd.f32 %v6777, %v6650
          %v6842 = vadd.f32 %v6778, %v6652
          %v6843 = vadd.f32 %v6779, %v6654
          %v6844 = vadd.f32 %v6780, %v6658
          %v6845 = vadd.f32 %v6781, %v6660
          %v6846 = vadd.f32 %v6782, %v6662
          %v6847 = vadd.f32 %v6783, %v6664
          %v6848 = vadd.f32 %v6784, %v6668
          %v6849 = vadd.f32 %v6785, %v6670
          %v6850 = vadd.f32 %v6786, %v6672
          %v6851 = vadd.f32 %v6787, %v6674
          %v6852 = vadd.f32 %v6788, %v6678
          %v6853 = vadd.f32 %v6789, %v6680
          %v6854 = vadd.f32 %v6790, %v6682
          %v6855 = vadd.f32 %v6791, %v6684
          %v6856 = vadd.f32 %v6792, %v6688
          %v6857 = vadd.f32 %v6793, %v6690
          %v6858 = vadd.f32 %v6794, %v6692
          %v6859 = vadd.f32 %v6795, %v6694
          %v6860 = vadd.f32 %v6796, %v6698
          %v6861 = vadd.f32 %v6797, %v6700
          %v6862 = vadd.f32 %v6798, %v6702
          %v6863 = vadd.f32 %v6799, %v6704
          %v6864 = vadd.f32 %v6800, %v6708
          %v6865 = vadd.f32 %v6801, %v6710
          %v6866 = vadd.f32 %v6802, %v6712
          %v6867 = vadd.f32 %v6803, %v6714
          %v6868 = vadd.f32 %v6804, %v6718
          %v6869 = vadd.f32 %v6805, %v6720
          %v6870 = vadd.f32 %v6806, %v6722
          %v6871 = vadd.f32 %v6807, %v6724
          %v6872 = vadd.f32 %v6808, %v6728
          %v6873 = vadd.f32 %v6809, %v6730
          %v6874 = vadd.f32 %v6810, %v6732
          %v6875 = vadd.f32 %v6811, %v6734
          %v6876 = vadd.f32 %v6812, %v6738
          %v6877 = vadd.f32 %v6813, %v6740
          %v6878 = vadd.f32 %v6814, %v6742
          %v6879 = vadd.f32 %v6815, %v6744
          %v6880 = vadd.f32 %v6816, %v6748
          %v6881 = vadd.f32 %v6817, %v6750
          %v6882 = vadd.f32 %v6818, %v6752
          %v6883 = vadd.f32 %v6819, %v6754
          %6884 = vst [vmem:[#allocation14] sm:$0xff] %v6820
          %6885 = vst [vmem:[#allocation14 + $0x8] sm:$0xff] %v6821
          %6886 = vst [vmem:[#allocation14 + $0x10] sm:$0xff] %v6822
          %6887 = vst [vmem:[#allocation14 + $0x18] sm:$0xff] %v6823
          %6888 = vst [vmem:[#allocation14 + $0x20] sm:$0xff] %v6824
          %6889 = vst [vmem:[#allocation14 + $0x28] sm:$0xff] %v6825
          %6890 = vst [vmem:[#allocation14 + $0x30] sm:$0xff] %v6826
          %6891 = vst [vmem:[#allocation14 + $0x38] sm:$0xff] %v6827
          %6892 = vst [vmem:[#allocation14 + $0x40] sm:$0xff] %v6828
          %6893 = vst [vmem:[#allocation14 + $0x48] sm:$0xff] %v6829
          %6894 = vst [vmem:[#allocation14 + $0x50] sm:$0xff] %v6830
          %6895 = vst [vmem:[#allocation14 + $0x58] sm:$0xff] %v6831
          %6896 = vst [vmem:[#allocation14 + $0x60] sm:$0xff] %v6832
          %6897 = vst [vmem:[#allocation14 + $0x68] sm:$0xff] %v6833
          %6898 = vst [vmem:[#allocation14 + $0x70] sm:$0xff] %v6834
          %6899 = vst [vmem:[#allocation14 + $0x78] sm:$0xff] %v6835
          %6900 = vst [vmem:[#allocation14 + $0x80] sm:$0xff] %v6836
          %6901 = vst [vmem:[#allocation14 + $0x88] sm:$0xff] %v6837
          %6902 = vst [vmem:[#allocation14 + $0x90] sm:$0xff] %v6838
          %6903 = vst [vmem:[#allocation14 + $0x98] sm:$0xff] %v6839
          %6904 = vst [vmem:[#allocation14 + $0xa0] sm:$0xff] %v6840
          %6905 = vst [vmem:[#allocation14 + $0xa8] sm:$0xff] %v6841
          %6906 = vst [vmem:[#allocation14 + $0xb0] sm:$0xff] %v6842
          %6907 = vst [vmem:[#allocation14 + $0xb8] sm:$0xff] %v6843
          %6908 = vst [vmem:[#allocation14 + $0xc0] sm:$0xff] %v6844
          %6909 = vst [vmem:[#allocation14 + $0xc8] sm:$0xff] %v6845
          %6910 = vst [vmem:[#allocation14 + $0xd0] sm:$0xff] %v6846
          %6911 = vst [vmem:[#allocation14 + $0xd8] sm:$0xff] %v6847
          %6912 = vst [vmem:[#allocation14 + $0xe0] sm:$0xff] %v6848
          %6913 = vst [vmem:[#allocation14 + $0xe8] sm:$0xff] %v6849
          %6914 = vst [vmem:[#allocation14 + $0xf0] sm:$0xff] %v6850
          %6915 = vst [vmem:[#allocation14 + $0xf8] sm:$0xff] %v6851
          %6916 = vst [vmem:[#allocation14 + $0x100] sm:$0xff] %v6852
          %6917 = vst [vmem:[#allocation14 + $0x108] sm:$0xff] %v6853
          %6918 = vst [vmem:[#allocation14 + $0x110] sm:$0xff] %v6854
          %6919 = vst [vmem:[#allocation14 + $0x118] sm:$0xff] %v6855
          %6920 = vst [vmem:[#allocation14 + $0x120] sm:$0xff] %v6856
          %6921 = vst [vmem:[#allocation14 + $0x128] sm:$0xff] %v6857
          %6922 = vst [vmem:[#allocation14 + $0x130] sm:$0xff] %v6858
          %6923 = vst [vmem:[#allocation14 + $0x138] sm:$0xff] %v6859
          %6924 = vst [vmem:[#allocation14 + $0x140] sm:$0xff] %v6860
          %6925 = vst [vmem:[#allocation14 + $0x148] sm:$0xff] %v6861
          %6926 = vst [vmem:[#allocation14 + $0x150] sm:$0xff] %v6862
          %6927 = vst [vmem:[#allocation14 + $0x158] sm:$0xff] %v6863
          %6928 = vst [vmem:[#allocation14 + $0x160] sm:$0xff] %v6864
          %6929 = vst [vmem:[#allocation14 + $0x168] sm:$0xff] %v6865
          %6930 = vst [vmem:[#allocation14 + $0x170] sm:$0xff] %v6866
          %6931 = vst [vmem:[#allocation14 + $0x178] sm:$0xff] %v6867
          %6932 = vst [vmem:[#allocation14 + $0x180] sm:$0xff] %v6868
          %6933 = vst [vmem:[#allocation14 + $0x188] sm:$0xff] %v6869
          %6934 = vst [vmem:[#allocation14 + $0x190] sm:$0xff] %v6870
          %6935 = vst [vmem:[#allocation14 + $0x198] sm:$0xff] %v6871
          %6936 = vst [vmem:[#allocation14 + $0x1a0] sm:$0xff] %v6872
          %6937 = vst [vmem:[#allocation14 + $0x1a8] sm:$0xff] %v6873
          %6938 = vst [vmem:[#allocation14 + $0x1b0] sm:$0xff] %v6874
          %6939 = vst [vmem:[#allocation14 + $0x1b8] sm:$0xff] %v6875
          %6940 = vst [vmem:[#allocation14 + $0x1c0] sm:$0xff] %v6876
          %6941 = vst [vmem:[#allocation14 + $0x1c8] sm:$0xff] %v6877
          %6942 = vst [vmem:[#allocation14 + $0x1d0] sm:$0xff] %v6878
          %6943 = vst [vmem:[#allocation14 + $0x1d8] sm:$0xff] %v6879
          %6944 = vst [vmem:[#allocation14 + $0x1e0] sm:$0xff] %v6880
          %6945 = vst [vmem:[#allocation14 + $0x1e8] sm:$0xff] %v6881
          %6946 = vst [vmem:[#allocation14 + $0x1f0] sm:$0xff] %v6882
          %6947 = vst [vmem:[#allocation14 + $0x1f8] sm:$0xff] %v6883
        $region76: #{tpu_custom_call.1} parent=39 // pred_fallthru
          _
        // Predicated region
        $region77: #{tpu_custom_call.1} parent=39 // pred_check
          %p6948 = pneg %p144
        $region78: #{tpu_custom_call.1} parent=39 // pred_check_branch
          %6950 = sbr.rel (%p6948) target = $region80
        $region79: #{tpu_custom_call.1} parent=39 // pred_region
          %s6952 = ssub.s32 8192, 8192
          %6953 = vsyncadd [#allocation10], %s6952
          %s6954 = sshll.u32 [#allocation14], 4
          %s6955 = int_to_ptr.vmem [resolvable:$true] %s6954
          %6960 = dma.vmem_to_hbm [thread:$0]  %s6955, 8192, %s5, [#allocation10], 256, 256, 16
        $region80: #{tpu_custom_call.1} parent=39 // pred_fallthru
          _
        // Predicated region
        $region81: #{tpu_custom_call.1} parent=39 // pred_check
          %p6961 = pneg %p144
        $region82: #{tpu_custom_call.1} parent=39 // pred_check_branch
          %6963 = sbr.rel (%p6961) target = $region84
        $region83: #{tpu_custom_call.1} parent=39 // pred_region
          %6964 = dma.done [#allocation10], 8192
        $region84: #{tpu_custom_call.1} parent=39 // pred_fallthru
          _
      $region40: #{tpu_custom_call.1} parent=5 // pred_fallthru
        _
      %p6965 = scmp.le.s32.totalorder 2, %s16
      // Predicated region
      $region85: #{tpu_custom_call.1} parent=5 // pred_check
        %p6966 = pneg %p6965
      $region86: #{tpu_custom_call.1} parent=5 // pred_check_branch
        %6968 = sbr.rel (%p6966) target = $region88
      $region87: #{tpu_custom_call.1} parent=5 // pred_region
        %s6969 = ssub.s32 %s16, 2
      $region88: #{tpu_custom_call.1} parent=5 // pred_fallthru
        _
    $region6: #{tpu_custom_call.1} parent=1 // loop_footer
      %s20 = sadd.s32 1, %s16
    $region7: #{tpu_custom_call.1} parent=1 // loop_footer_branch
      %15 = sbr.rel target = $region3
    $region8: #{tpu_custom_call.1} parent=1 // loop_exit
      _
    %6970 = vsyncpa [#allocation9], 1
    %s6971 = scalar_lea.sflag [#allocation9], 1
    %6972 = vsyncpa %s6971, 1
    %6973 = vsyncpa [#allocation12], 1
    %s6974 = scalar_lea.sflag [#allocation12], 1
    %6975 = vsyncpa %s6974, 1
    %6976 = vsyncpa [#allocation10], 1
    %s6977 = scalar_lea.sflag [#allocation10], 1
    %6978 = vsyncpa %s6977, 1

</llo_original>
